<compile_context>
chip_gen: v7x
topology: tpu7x:2x2x1
jax: 0.10.0
libtpu: 0.0.40
codegen_flags: <defaults>
</compile_context>

<pallas_src>
import numpy as np
import jax
import jax.numpy as jnp
from jax import lax
from jax.experimental import pallas as pl
from jax.experimental.pallas import tpu as pltpu

LN_EPS = 1e-5  # PyTorch nn.LayerNorm default


def make_recurrent_kernel(num_layers, hidden_size, time_chunk, batch_block,
                          seq_len, unroll):
    """Serial LSTM recurrence over one (batch_block, time_chunk) tile."""
    H, L, TC, BB, T = hidden_size, num_layers, time_chunk, batch_block, seq_len

    def kernel(*refs):
        it = iter(refs)
        whh0_ref = next(it)                                     # (H, 4H)
        layer_refs = [(next(it), next(it), next(it))            # (H,4H),(H,4H),(1,4H)
                      for _ in range(1, L)]
        pre_g_ref = next(it)                                    # (TC, BB, 4H) f32
        out_ref = next(it)                                      # (TC, BB, H)  f32
        h_ref = next(it)                                        # scratch (L, BB, H)
        c_ref = next(it)                                        # scratch (L, BB, H)

        @pl.when(pl.program_id(1) == 0)
        def _():
            # states = [MemoryState(zeros, zeros), ...] in the PyTorch module
            h_ref[...] = jnp.zeros_like(h_ref)
            c_ref[...] = jnp.zeros_like(c_ref)

        # Hoist weight loads + bias broadcasts out of the time loop.
        whh0T = whh0_ref[...]
        mxu_dt = whh0T.dtype
        layer_w = [(wih_r[...], whh_r[...],
                    jnp.broadcast_to(b_r[...], (BB, 4 * H)))
                   for (wih_r, whh_r, b_r) in layer_refs]

        # Valid steps in this chunk (last chunk may be partial; no padding in HBM).
        nvalid = jnp.minimum(TC, T - pl.program_id(1) * TC)

        def lstm_cell(gates, c_prev):
            # PyTorch gate order: i, f, g, o
            i_g = jax.nn.sigmoid(gates[:, 0 * H:1 * H])
            f_g = jax.nn.sigmoid(gates[:, 1 * H:2 * H])
            g_g = jnp.tanh(gates[:, 2 * H:3 * H])
            o_g = jax.nn.sigmoid(gates[:, 3 * H:4 * H])
            c_new = f_g * c_prev + i_g * g_g
            h_new = o_g * jnp.tanh(c_new)
            return h_new, c_new

        def step(t, carry):
            hs, cs = carry
            valid = t < nvalid

            # Layer 0: input-to-hidden part (incl. bias) was precomputed; only
            # the recurrent matmul runs here.
            gates0 = pre_g_ref[t] + jnp.dot(
                hs[0].astype(mxu_dt), whh0T, preferred_element_type=jnp.float32)
            h_new, c_new = lstm_cell(gates0, cs[0])
            new_hs = [jnp.where(valid, h_new, hs[0])]
            new_cs = [jnp.where(valid, c_new, cs[0])]
            cur = new_hs[0]

            # Layers >= 1: two accumulating dots (no per-step concatenate).
            for l in range(1, L):
                wihT, whhT, b_bc = layer_w[l - 1]
                gates = (jnp.dot(cur.astype(mxu_dt), wihT,
                                 preferred_element_type=jnp.float32)
                         + jnp.dot(hs[l].astype(mxu_dt), whhT,
                                   preferred_element_type=jnp.float32)
                         + b_bc)
                h_new, c_new = lstm_cell(gates, cs[l])
                new_hs.append(jnp.where(valid, h_new, hs[l]))
                new_cs.append(jnp.where(valid, c_new, cs[l]))
                cur = new_hs[-1]

            # Out-of-range rows of the final partial block are dropped by Pallas.
            out_ref[t] = cur
            return (tuple(new_hs), tuple(new_cs))

        init = (tuple(h_ref[l] for l in range(L)),
                tuple(c_ref[l] for l in range(L)))
        hs_f, cs_f = lax.fori_loop(0, TC, step, init, unroll=unroll)

        # Persist state for the next time chunk of this batch block.
        for l in range(L):
            h_ref[l] = hs_f[l]
            c_ref[l] = cs_f[l]

    return kernel


def _vmem_limit_bytes(TC, BB, H, L, w_itemsize):
    pre_gates = 2 * TC * BB * 4 * H * 4          # double-buffered pre-gate chunk
    out_block = 2 * TC * BB * H * 4              # double-buffered output chunk
    weights = 2 * ((2 * L - 1) * H * 4 * H * w_itemsize + (L - 1) * 4 * H * 4)
    state = 2 * L * BB * H * 4
    total = pre_gates + out_block + weights + state + (4 << 20)
    return int(min(max(total, 8 << 20), 64 << 20))


def sequence_model_forward(x_bft, prep, *, time_chunk=128, batch_block=None,
                           unroll=8):
    """x_bft: (batch, num_freq, seq_len) float32.  Returns ((B, P, T), [])."""
    B, F, T = x_bft.shape
    L, H, P = prep["L"], prep["H"], prep["P"]
    BB = B if batch_block is None else batch_block
    assert B % BB == 0, "batch_block must divide batch"
    NB = B // BB

    # ---------------- Prologue (batched, XLA) --------------------------------
    ln_w, ln_b = prep["ln_w"][0], prep["ln_b"][0]
    mean = jnp.mean(x_bft, axis=1, keepdims=True)
    var = jnp.mean((x_bft - mean) ** 2, axis=1, keepdims=True)
    xn = (x_bft - mean) * lax.rsqrt(var + LN_EPS)
    xn = xn * ln_w[None, :, None] + ln_b[None, :, None]           # (B, F, T)

    # Layer-0 pre-gates for all steps (time-major), combined bias folded in.
    pre_g0 = jnp.einsum("bft,fg->tbg", xn, prep["Wih0T"]) + prep["b0"][0]

    # ---------------- Recurrent Pallas kernel --------------------------------
    TC = min(time_chunk, T)
    NC = -(-T // TC)
    unroll_eff = max(1, min(unroll, TC))
    w_itemsize = jnp.dtype(prep["WhhT_k"][0].dtype).itemsize

    inputs = [prep["WhhT_k"][0]]
    in_specs = [pl.BlockSpec((H, 4 * H), lambda b, c: (0, 0))]
    for l in range(1, L):
        inputs += [prep["WihT_k"][l], prep["WhhT_k"][l], prep["b"][l]]
        in_specs += [
            pl.BlockSpec((H, 4 * H), lambda b, c: (0, 0)),
            pl.BlockSpec((H, 4 * H), lambda b, c: (0, 0)),
            pl.BlockSpec((1, 4 * H), lambda b, c: (0, 0)),
        ]
    inputs.append(pre_g0)
    in_specs.append(pl.BlockSpec((TC, BB, 4 * H), lambda b, c: (c, b, 0)))

    h_top = pl.pallas_call(
        make_recurrent_kernel(L, H, TC, BB, T, unroll_eff),
        out_shape=jax.ShapeDtypeStruct((T, B, H), jnp.float32),
        grid_spec=pltpu.PrefetchScalarGridSpec(
            num_scalar_prefetch=0,
            grid=(NB, NC),
            in_specs=in_specs,
            out_specs=pl.BlockSpec((TC, BB, H), lambda b, c: (c, b, 0)),
            scratch_shapes=[
                pltpu.VMEM((L, BB, H), jnp.float32),  # h state
                pltpu.VMEM((L, BB, H), jnp.float32),  # c state
            ],
        ),
        compiler_params=pltpu.CompilerParams(
            dimension_semantics=("parallel", "arbitrary"),
            vmem_limit_bytes=_vmem_limit_bytes(TC, BB, H, L, w_itemsize),
        ),
    )(*inputs)                                                    # (T, B, H)

    # ---------------- Epilogue (batched projection + tanh, XLA) --------------
    y_bpt = jnp.einsum("tbh,hp->bpt", h_top, prep["WpT"]) + prep["bp"][0][:, None]
    return jnp.tanh(y_bpt), []


def init_params(key, input_size, hidden_size, num_layers, proj_size):
    """Deterministic synthetic parameters (PyTorch-style uniform init)."""
    H = hidden_size
    k_lstm = 1.0 / np.sqrt(H)
    keys = jax.random.split(key, 4 * num_layers + 2)

    params = {
        "ln_w": jnp.ones((1, input_size), jnp.float32),
        "ln_b": jnp.zeros((1, input_size), jnp.float32),
        "WihT": [], "WhhT": [], "b": [],
    }
    for l in range(num_layers):
        in_l = input_size if l == 0 else H
        k0, k1, k2, k3 = keys[4 * l:4 * l + 4]
        wih = jax.random.uniform(k0, (4 * H, in_l), jnp.float32, -k_lstm, k_lstm)
        whh = jax.random.uniform(k1, (4 * H, H), jnp.float32, -k_lstm, k_lstm)
        b_ih = jax.random.uniform(k2, (4 * H,), jnp.float32, -k_lstm, k_lstm)
        b_hh = jax.random.uniform(k3, (4 * H,), jnp.float32, -k_lstm, k_lstm)
        params["WihT"].append(wih.T)                    # (in_l, 4H)
        params["WhhT"].append(whh.T)                    # (H, 4H)
        params["b"].append((b_ih + b_hh)[None, :])      # (1, 4H)

    kp_w, kp_b = keys[-2:]
    wp = jax.random.uniform(kp_w, (proj_size, H), jnp.float32, -k_lstm, k_lstm)
    bp = jax.random.uniform(kp_b, (proj_size,), jnp.float32, -k_lstm, k_lstm)
    params["WpT"] = wp.T                                # (H, P)
    params["bp"] = bp[None, :]                          # (1, P)
    return params


def prepare_params(params, mxu_dtype=jnp.float32):
    """Once-per-model weight prep (transpose already done; cast MXU operands)."""
    L = len(params["WihT"])
    return {
        "ln_w": params["ln_w"], "ln_b": params["ln_b"],
        "Wih0T": params["WihT"][0],        # f32, consumed by the XLA prologue
        "b0": params["b"][0],
        "WhhT_k": [w.astype(mxu_dtype) for w in params["WhhT"]],
        "WihT_k": [None] + [params["WihT"][l].astype(mxu_dtype) for l in range(1, L)],
        "b": params["b"],
        "WpT": params["WpT"], "bp": params["bp"],
        "L": L, "H": params["WhhT"][0].shape[0], "P": params["WpT"].shape[1],
    }


def reference_forward(x_bft, params):
    """Pure-JAX reference replicating forward_lstm semantics."""
    B, F, T = x_bft.shape
    x_btf = jnp.transpose(x_bft, (0, 2, 1))
    mean = jnp.mean(x_btf, -1, keepdims=True)
    var = jnp.mean((x_btf - mean) ** 2, -1, keepdims=True)
    cur = (x_btf - mean) / jnp.sqrt(var + LN_EPS) * params["ln_w"][0] + params["ln_b"][0]

    L = len(params["WihT"])
    H = params["WhhT"][0].shape[0]
    for l in range(L):
        wihT, whhT, b = params["WihT"][l], params["WhhT"][l], params["b"][l][0]

        def step(carry, x_t, wihT=wihT, whhT=whhT, b=b):
            h, c = carry
            gates = x_t @ wihT + h @ whhT + b
            i, f, g, o = jnp.split(gates, 4, axis=-1)
            i, f, o = jax.nn.sigmoid(i), jax.nn.sigmoid(f), jax.nn.sigmoid(o)
            g = jnp.tanh(g)
            c = f * c + i * g
            h = o * jnp.tanh(c)
            return (h, c), h

        h0 = jnp.zeros((B, H), jnp.float32)
        c0 = jnp.zeros((B, H), jnp.float32)
        _, ys = lax.scan(step, (h0, c0), jnp.transpose(cur, (1, 0, 2)))
        cur = jnp.transpose(ys, (1, 0, 2))

    y = cur @ params["WpT"] + params["bp"][0]     # (B, T, P)
    return jnp.tanh(jnp.transpose(y, (0, 2, 1)))  # (B, P, T)


if __name__ == "__main__":
    # Make XLA-side matmuls true f32 so the reference matches the kernel tightly.
    jax.config.update("jax_default_matmul_precision", "highest")

    B, F, T = 16, 16, 10        # batch, num_freq (input_size), seq_len
    H, L, P = 32, 2, 16         # hidden_size, num_layers, proj_size

    key = jax.random.PRNGKey(0)
    params = init_params(key, F, H, L, P)
    x = jax.random.normal(jax.random.fold_in(key, 999), (B, F, T), dtype=jnp.float32)

    ref = reference_forward(x, params)

    # f32 MXU path, non-divisible tail chunk (T=10, TC=4), single batch block.
    prep32 = prepare_params(params, jnp.float32)
    out_a, _ = sequence_model_forward(x, prep32, time_chunk=4, batch_block=B, unroll=4)
    out_a = jax.block_until_ready(out_a)
    assert out_a.shape == (B, P, T), out_a.shape
    np.testing.assert_allclose(np.asarray(out_a), np.asarray(ref), rtol=2e-3, atol=2e-3)

    # f32 MXU path, divisible chunks + batch split across the parallel grid axis.
    out_b, _ = sequence_model_forward(x, prep32, time_chunk=5, batch_block=8, unroll=8)
    out_b = jax.block_until_ready(out_b)
    np.testing.assert_allclose(np.asarray(out_b), np.asarray(ref), rtol=2e-3, atol=2e-3)

    # bf16 MXU operands (v6e/v7x recommendation): weights + h cast for the dots,
    # state/gates stay f32.  Looser tolerance for the reduced-precision matmuls.
    prep16 = prepare_params(params, jnp.bfloat16)
    out_c, _ = sequence_model_forward(x, prep16, time_chunk=5, batch_block=B, unroll=8)
    out_c = jax.block_until_ready(out_c)
    np.testing.assert_allclose(np.asarray(out_c), np.asarray(ref), rtol=5e-2, atol=5e-2)

    print("KERNEL_OK")
</pallas_src>

<mosaic_0001>
module attributes {stable_mosaic.version = 11 : i64} {
  func.func @kernel(%arg0: i32, %arg1: i32, %arg2: memref<32x128xf32, #tpu.memory_space<vmem>>, %arg3: memref<32x128xf32, #tpu.memory_space<vmem>>, %arg4: memref<32x128xf32, #tpu.memory_space<vmem>>, %arg5: memref<1x128xf32, #tpu.memory_space<vmem>>, %arg6: memref<4x16x128xf32, #tpu.memory_space<vmem>>, %arg7: memref<4x16x32xf32, #tpu.memory_space<vmem>>, %arg8: memref<2x16x32xf32, #tpu.memory_space<vmem>>, %arg9: memref<2x16x32xf32, #tpu.memory_space<vmem>>) attributes {dimension_semantics = [#tpu.dimension_semantics<parallel>, #tpu.dimension_semantics<arbitrary>], iteration_bounds = array<i64: 1, 3>, scalar_prefetch = 0 : i64, scratch_operands = 2 : i64, tpu.core_type = #tpu.core_type<tc>, window_params = [{pipeline_mode = #tpu.pipeline_mode<synchronous>, transform_indices = @transform_0, window_bounds = array<i64: 32, 128>}, {pipeline_mode = #tpu.pipeline_mode<synchronous>, transform_indices = @transform_1, window_bounds = array<i64: 32, 128>}, {pipeline_mode = #tpu.pipeline_mode<synchronous>, transform_indices = @transform_2, window_bounds = array<i64: 32, 128>}, {pipeline_mode = #tpu.pipeline_mode<synchronous>, transform_indices = @transform_3, window_bounds = array<i64: 1, 128>}, {transform_indices = @transform_4, window_bounds = array<i64: 4, 16, 128>}, {transform_indices = @transform_5, window_bounds = array<i64: 4, 16, 32>}]} {
    %c0_i32 = arith.constant 0 : i32
    %0 = arith.cmpi eq, %arg1, %c0_i32 : i32
    %1 = arith.extui %0 : i1 to i32
    %c0_i32_0 = arith.constant 0 : i32
    %2 = arith.cmpi ne, %1, %c0_i32_0 : i32
    scf.if %2 {
      %cst_85 = arith.constant 0.000000e+00 : f32
      %304 = vector.broadcast %cst_85 : f32 to vector<2x16x32xf32>
      %c0_86 = arith.constant 0 : index
      %c0_87 = arith.constant 0 : index
      %c0_88 = arith.constant 0 : index
      %305 = vector.load %arg8[%c0_86, %c0_87, %c0_88] : memref<2x16x32xf32, #tpu.memory_space<vmem>>, vector<2x16x32xf32>
      tpu.vector_store %arg8[%c0_86, %c0_87, %c0_88], %304 {strides = array<i32>} : memref<2x16x32xf32, #tpu.memory_space<vmem>>, vector<2x16x32xf32>,
      %cst_89 = arith.constant 0.000000e+00 : f32
      %306 = vector.broadcast %cst_89 : f32 to vector<2x16x32xf32>
      %c0_90 = arith.constant 0 : index
      %c0_91 = arith.constant 0 : index
      %c0_92 = arith.constant 0 : index
      %307 = vector.load %arg9[%c0_90, %c0_91, %c0_92] : memref<2x16x32xf32, #tpu.memory_space<vmem>>, vector<2x16x32xf32>
      tpu.vector_store %arg9[%c0_90, %c0_91, %c0_92], %306 {strides = array<i32>} : memref<2x16x32xf32, #tpu.memory_space<vmem>>, vector<2x16x32xf32>,
    } else {
    }
    %c0 = arith.constant 0 : index
    %c0_1 = arith.constant 0 : index
    %3 = vector.load %arg2[%c0, %c0_1] : memref<32x128xf32, #tpu.memory_space<vmem>>, vector<32x128xf32>
    %c0_2 = arith.constant 0 : index
    %c0_3 = arith.constant 0 : index
    %4 = vector.load %arg3[%c0_2, %c0_3] : memref<32x128xf32, #tpu.memory_space<vmem>>, vector<32x128xf32>
    %c0_4 = arith.constant 0 : index
    %c0_5 = arith.constant 0 : index
    %5 = vector.load %arg4[%c0_4, %c0_5] : memref<32x128xf32, #tpu.memory_space<vmem>>, vector<32x128xf32>
    %c0_6 = arith.constant 0 : index
    %c0_7 = arith.constant 0 : index
    %6 = vector.load %arg5[%c0_6, %c0_7] : memref<1x128xf32, #tpu.memory_space<vmem>>, vector<1x128xf32>
    %7 = vector.shape_cast %6 : vector<1x128xf32> to vector<1x128xf32>
    %8 = vector.broadcast %7 : vector<1x128xf32> to vector<16x128xf32>
    %c4_i32 = arith.constant 4 : i32
    %9 = arith.muli %arg1, %c4_i32 : i32
    %c10_i32 = arith.constant 10 : i32
    %10 = arith.subi %c10_i32, %9 : i32
    %c4_i32_8 = arith.constant 4 : i32
    %11 = arith.minsi %c4_i32_8, %10 : i32
    %c0_9 = arith.constant 0 : index
    %c0_10 = arith.constant 0 : index
    %c0_11 = arith.constant 0 : index
    %12 = vector.load %arg8[%c0_9, %c0_10, %c0_11] : memref<2x16x32xf32, #tpu.memory_space<vmem>>, vector<1x16x32xf32>
    %13 = vector.shape_cast %12 : vector<1x16x32xf32> to vector<16x32xf32>
    %c1 = arith.constant 1 : index
    %c0_12 = arith.constant 0 : index
    %c0_13 = arith.constant 0 : index
    %14 = vector.load %arg8[%c1, %c0_12, %c0_13] : memref<2x16x32xf32, #tpu.memory_space<vmem>>, vector<1x16x32xf32>
    %15 = vector.shape_cast %14 : vector<1x16x32xf32> to vector<16x32xf32>
    %c0_14 = arith.constant 0 : index
    %c0_15 = arith.constant 0 : index
    %c0_16 = arith.constant 0 : index
    %16 = vector.load %arg9[%c0_14, %c0_15, %c0_16] : memref<2x16x32xf32, #tpu.memory_space<vmem>>, vector<1x16x32xf32>
    %17 = vector.shape_cast %16 : vector<1x16x32xf32> to vector<16x32xf32>
    %c1_17 = arith.constant 1 : index
    %c0_18 = arith.constant 0 : index
    %c0_19 = arith.constant 0 : index
    %18 = vector.load %arg9[%c1_17, %c0_18, %c0_19] : memref<2x16x32xf32, #tpu.memory_space<vmem>>, vector<1x16x32xf32>
    %19 = vector.shape_cast %18 : vector<1x16x32xf32> to vector<16x32xf32>
    %c0_i32_20 = arith.constant 0 : i32
    %20 = arith.cmpi slt, %c0_i32_20, %11 : i32
    %21 = arith.index_cast %c0_i32_20 : i32 to index
    %c0_21 = arith.constant 0 : index
    %c0_22 = arith.constant 0 : index
    %22 = vector.load %arg6[%21, %c0_21, %c0_22] : memref<4x16x128xf32, #tpu.memory_space<vmem>>, vector<1x16x128xf32>
    %23 = vector.shape_cast %22 : vector<1x16x128xf32> to vector<16x128xf32>
    %cst = arith.constant dense<0.000000e+00> : vector<16x128xf32>
    %24 = tpu.matmul %13, %3, %cst {dimension_numbers = #tpu.dot_dimension_numbers<[1], [0], [0], [1], [0, 0, 1, 1], [], []>, precision = #tpu.contract_precision<fp32>} : vector<16x32xf32>, vector<32x128xf32>, vector<16x128xf32> -> vector<16x128xf32>
    %25 = arith.addf %23, %24 : vector<16x128xf32>
    %26 = vector.extract_strided_slice %25 {offsets = [0, 0], sizes = [16, 32], strides = [1, 1]} : vector<16x128xf32> to vector<16x32xf32>
    %27 = arith.negf %26 : vector<16x32xf32>
    %28 = math.exp %27 : vector<16x32xf32>
    %cst_23 = arith.constant 1.000000e+00 : f32
    %29 = vector.broadcast %cst_23 : f32 to vector<16x32xf32>
    %30 = arith.addf %29, %28 : vector<16x32xf32>
    %31 = arith.divf %29, %30 : vector<16x32xf32>
    %32 = vector.extract_strided_slice %25 {offsets = [0, 32], sizes = [16, 32], strides = [1, 1]} : vector<16x128xf32> to vector<16x32xf32>
    %33 = arith.negf %32 : vector<16x32xf32>
    %34 = math.exp %33 : vector<16x32xf32>
    %cst_24 = arith.constant 1.000000e+00 : f32
    %35 = vector.broadcast %cst_24 : f32 to vector<16x32xf32>
    %36 = arith.addf %35, %34 : vector<16x32xf32>
    %37 = arith.divf %35, %36 : vector<16x32xf32>
    %38 = vector.extract_strided_slice %25 {offsets = [0, 64], sizes = [16, 32], strides = [1, 1]} : vector<16x128xf32> to vector<16x32xf32>
    %39 = math.tanh %38 : vector<16x32xf32>
    %40 = vector.extract_strided_slice %25 {offsets = [0, 96], sizes = [16, 32], strides = [1, 1]} : vector<16x128xf32> to vector<16x32xf32>
    %41 = arith.negf %40 : vector<16x32xf32>
    %42 = math.exp %41 : vector<16x32xf32>
    %cst_25 = arith.constant 1.000000e+00 : f32
    %43 = vector.broadcast %cst_25 : f32 to vector<16x32xf32>
    %44 = arith.addf %43, %42 : vector<16x32xf32>
    %45 = arith.divf %43, %44 : vector<16x32xf32>
    %46 = arith.mulf %37, %17 : vector<16x32xf32>
    %47 = arith.mulf %31, %39 : vector<16x32xf32>
    %48 = arith.addf %46, %47 : vector<16x32xf32>
    %49 = math.tanh %48 : vector<16x32xf32>
    %50 = arith.mulf %45, %49 : vector<16x32xf32>
    %51 = arith.select %20, %50, %13 : vector<16x32xf32>
    %52 = arith.select %20, %48, %17 : vector<16x32xf32>
    %cst_26 = arith.constant dense<0.000000e+00> : vector<16x128xf32>
    %53 = tpu.matmul %51, %4, %cst_26 {dimension_numbers = #tpu.dot_dimension_numbers<[1], [0], [0], [1], [0, 0, 1, 1], [], []>, precision = #tpu.contract_precision<fp32>} : vector<16x32xf32>, vector<32x128xf32>, vector<16x128xf32> -> vector<16x128xf32>
    %cst_27 = arith.constant dense<0.000000e+00> : vector<16x128xf32>
    %54 = tpu.matmul %15, %5, %cst_27 {dimension_numbers = #tpu.dot_dimension_numbers<[1], [0], [0], [1], [0, 0, 1, 1], [], []>, precision = #tpu.contract_precision<fp32>} : vector<16x32xf32>, vector<32x128xf32>, vector<16x128xf32> -> vector<16x128xf32>
    %55 = arith.addf %53, %54 : vector<16x128xf32>
    %56 = arith.addf %55, %8 : vector<16x128xf32>
    %57 = vector.extract_strided_slice %56 {offsets = [0, 0], sizes = [16, 32], strides = [1, 1]} : vector<16x128xf32> to vector<16x32xf32>
    %58 = arith.negf %57 : vector<16x32xf32>
    %59 = math.exp %58 : vector<16x32xf32>
    %cst_28 = arith.constant 1.000000e+00 : f32
    %60 = vector.broadcast %cst_28 : f32 to vector<16x32xf32>
    %61 = arith.addf %60, %59 : vector<16x32xf32>
    %62 = arith.divf %60, %61 : vector<16x32xf32>
    %63 = vector.extract_strided_slice %56 {offsets = [0, 32], sizes = [16, 32], strides = [1, 1]} : vector<16x128xf32> to vector<16x32xf32>
    %64 = arith.negf %63 : vector<16x32xf32>
    %65 = math.exp %64 : vector<16x32xf32>
    %cst_29 = arith.constant 1.000000e+00 : f32
    %66 = vector.broadcast %cst_29 : f32 to vector<16x32xf32>
    %67 = arith.addf %66, %65 : vector<16x32xf32>
    %68 = arith.divf %66, %67 : vector<16x32xf32>
    %69 = vector.extract_strided_slice %56 {offsets = [0, 64], sizes = [16, 32], strides = [1, 1]} : vector<16x128xf32> to vector<16x32xf32>
    %70 = math.tanh %69 : vector<16x32xf32>
    %71 = vector.extract_strided_slice %56 {offsets = [0, 96], sizes = [16, 32], strides = [1, 1]} : vector<16x128xf32> to vector<16x32xf32>
    %72 = arith.negf %71 : vector<16x32xf32>
    %73 = math.exp %72 : vector<16x32xf32>
    %cst_30 = arith.constant 1.000000e+00 : f32
    %74 = vector.broadcast %cst_30 : f32 to vector<16x32xf32>
    %75 = arith.addf %74, %73 : vector<16x32xf32>
    %76 = arith.divf %74, %75 : vector<16x32xf32>
    %77 = arith.mulf %68, %19 : vector<16x32xf32>
    %78 = arith.mulf %62, %70 : vector<16x32xf32>
    %79 = arith.addf %77, %78 : vector<16x32xf32>
    %80 = math.tanh %79 : vector<16x32xf32>
    %81 = arith.mulf %76, %80 : vector<16x32xf32>
    %82 = arith.select %20, %81, %15 : vector<16x32xf32>
    %83 = arith.select %20, %79, %19 : vector<16x32xf32>
    %84 = arith.index_cast %c0_i32_20 : i32 to index
    %c0_31 = arith.constant 0 : index
    %c0_32 = arith.constant 0 : index
    %85 = vector.load %arg7[%84, %c0_31, %c0_32] : memref<4x16x32xf32, #tpu.memory_space<vmem>>, vector<1x16x32xf32>
    %86 = vector.shape_cast %85 : vector<1x16x32xf32> to vector<16x32xf32>
    %87 = vector.shape_cast %82 : vector<16x32xf32> to vector<1x16x32xf32>
    tpu.vector_store %arg7[%84, %c0_31, %c0_32], %87 {strides = array<i32>} : memref<4x16x32xf32, #tpu.memory_space<vmem>>, vector<1x16x32xf32>,
    %c1_i32 = arith.constant 1 : i32
    %88 = arith.cmpi slt, %c1_i32, %11 : i32
    %89 = arith.index_cast %c1_i32 : i32 to index
    %c0_33 = arith.constant 0 : index
    %c0_34 = arith.constant 0 : index
    %90 = vector.load %arg6[%89, %c0_33, %c0_34] : memref<4x16x128xf32, #tpu.memory_space<vmem>>, vector<1x16x128xf32>
    %91 = vector.shape_cast %90 : vector<1x16x128xf32> to vector<16x128xf32>
    %cst_35 = arith.constant dense<0.000000e+00> : vector<16x128xf32>
    %92 = tpu.matmul %51, %3, %cst_35 {dimension_numbers = #tpu.dot_dimension_numbers<[1], [0], [0], [1], [0, 0, 1, 1], [], []>, precision = #tpu.contract_precision<fp32>} : vector<16x32xf32>, vector<32x128xf32>, vector<16x128xf32> -> vector<16x128xf32>
    %93 = arith.addf %91, %92 : vector<16x128xf32>
    %94 = vector.extract_strided_slice %93 {offsets = [0, 0], sizes = [16, 32], strides = [1, 1]} : vector<16x128xf32> to vector<16x32xf32>
    %95 = arith.negf %94 : vector<16x32xf32>
    %96 = math.exp %95 : vector<16x32xf32>
    %cst_36 = arith.constant 1.000000e+00 : f32
    %97 = vector.broadcast %cst_36 : f32 to vector<16x32xf32>
    %98 = arith.addf %97, %96 : vector<16x32xf32>
    %99 = arith.divf %97, %98 : vector<16x32xf32>
    %100 = vector.extract_strided_slice %93 {offsets = [0, 32], sizes = [16, 32], strides = [1, 1]} : vector<16x128xf32> to vector<16x32xf32>
    %101 = arith.negf %100 : vector<16x32xf32>
    %102 = math.exp %101 : vector<16x32xf32>
    %cst_37 = arith.constant 1.000000e+00 : f32
    %103 = vector.broadcast %cst_37 : f32 to vector<16x32xf32>
    %104 = arith.addf %103, %102 : vector<16x32xf32>
    %105 = arith.divf %103, %104 : vector<16x32xf32>
    %106 = vector.extract_strided_slice %93 {offsets = [0, 64], sizes = [16, 32], strides = [1, 1]} : vector<16x128xf32> to vector<16x32xf32>
    %107 = math.tanh %106 : vector<16x32xf32>
    %108 = vector.extract_strided_slice %93 {offsets = [0, 96], sizes = [16, 32], strides = [1, 1]} : vector<16x128xf32> to vector<16x32xf32>
    %109 = arith.negf %108 : vector<16x32xf32>
    %110 = math.exp %109 : vector<16x32xf32>
    %cst_38 = arith.constant 1.000000e+00 : f32
    %111 = vector.broadcast %cst_38 : f32 to vector<16x32xf32>
    %112 = arith.addf %111, %110 : vector<16x32xf32>
    %113 = arith.divf %111, %112 : vector<16x32xf32>
    %114 = arith.mulf %105, %52 : vector<16x32xf32>
    %115 = arith.mulf %99, %107 : vector<16x32xf32>
    %116 = arith.addf %114, %115 : vector<16x32xf32>
    %117 = math.tanh %116 : vector<16x32xf32>
    %118 = arith.mulf %113, %117 : vector<16x32xf32>
    %119 = arith.select %88, %118, %51 : vector<16x32xf32>
    %120 = arith.select %88, %116, %52 : vector<16x32xf32>
    %cst_39 = arith.constant dense<0.000000e+00> : vector<16x128xf32>
    %121 = tpu.matmul %119, %4, %cst_39 {dimension_numbers = #tpu.dot_dimension_numbers<[1], [0], [0], [1], [0, 0, 1, 1], [], []>, precision = #tpu.contract_precision<fp32>} : vector<16x32xf32>, vector<32x128xf32>, vector<16x128xf32> -> vector<16x128xf32>
    %cst_40 = arith.constant dense<0.000000e+00> : vector<16x128xf32>
    %122 = tpu.matmul %82, %5, %cst_40 {dimension_numbers = #tpu.dot_dimension_numbers<[1], [0], [0], [1], [0, 0, 1, 1], [], []>, precision = #tpu.contract_precision<fp32>} : vector<16x32xf32>, vector<32x128xf32>, vector<16x128xf32> -> vector<16x128xf32>
    %123 = arith.addf %121, %122 : vector<16x128xf32>
    %124 = arith.addf %123, %8 : vector<16x128xf32>
    %125 = vector.extract_strided_slice %124 {offsets = [0, 0], sizes = [16, 32], strides = [1, 1]} : vector<16x128xf32> to vector<16x32xf32>
    %126 = arith.negf %125 : vector<16x32xf32>
    %127 = math.exp %126 : vector<16x32xf32>
    %cst_41 = arith.constant 1.000000e+00 : f32
    %128 = vector.broadcast %cst_41 : f32 to vector<16x32xf32>
    %129 = arith.addf %128, %127 : vector<16x32xf32>
    %130 = arith.divf %128, %129 : vector<16x32xf32>
    %131 = vector.extract_strided_slice %124 {offsets = [0, 32], sizes = [16, 32], strides = [1, 1]} : vector<16x128xf32> to vector<16x32xf32>
    %132 = arith.negf %131 : vector<16x32xf32>
    %133 = math.exp %132 : vector<16x32xf32>
    %cst_42 = arith.constant 1.000000e+00 : f32
    %134 = vector.broadcast %cst_42 : f32 to vector<16x32xf32>
    %135 = arith.addf %134, %133 : vector<16x32xf32>
    %136 = arith.divf %134, %135 : vector<16x32xf32>
    %137 = vector.extract_strided_slice %124 {offsets = [0, 64], sizes = [16, 32], strides = [1, 1]} : vector<16x128xf32> to vector<16x32xf32>
    %138 = math.tanh %137 : vector<16x32xf32>
    %139 = vector.extract_strided_slice %124 {offsets = [0, 96], sizes = [16, 32], strides = [1, 1]} : vector<16x128xf32> to vector<16x32xf32>
    %140 = arith.negf %139 : vector<16x32xf32>
    %141 = math.exp %140 : vector<16x32xf32>
    %cst_43 = arith.constant 1.000000e+00 : f32
    %142 = vector.broadcast %cst_43 : f32 to vector<16x32xf32>
    %143 = arith.addf %142, %141 : vector<16x32xf32>
    %144 = arith.divf %142, %143 : vector<16x32xf32>
    %145 = arith.mulf %136, %83 : vector<16x32xf32>
    %146 = arith.mulf %130, %138 : vector<16x32xf32>
    %147 = arith.addf %145, %146 : vector<16x32xf32>
    %148 = math.tanh %147 : vector<16x32xf32>
    %149 = arith.mulf %144, %148 : vector<16x32xf32>
    %150 = arith.select %88, %149, %82 : vector<16x32xf32>
    %151 = arith.select %88, %147, %83 : vector<16x32xf32>
    %152 = arith.index_cast %c1_i32 : i32 to index
    %c0_44 = arith.constant 0 : index
    %c0_45 = arith.constant 0 : index
    %153 = vector.load %arg7[%152, %c0_44, %c0_45] : memref<4x16x32xf32, #tpu.memory_space<vmem>>, vector<1x16x32xf32>
    %154 = vector.shape_cast %153 : vector<1x16x32xf32> to vector<16x32xf32>
    %155 = vector.shape_cast %150 : vector<16x32xf32> to vector<1x16x32xf32>
    tpu.vector_store %arg7[%152, %c0_44, %c0_45], %155 {strides = array<i32>} : memref<4x16x32xf32, #tpu.memory_space<vmem>>, vector<1x16x32xf32>,
    %c2_i32 = arith.constant 2 : i32
    %156 = arith.cmpi slt, %c2_i32, %11 : i32
    %157 = arith.index_cast %c2_i32 : i32 to index
    %c0_46 = arith.constant 0 : index
    %c0_47 = arith.constant 0 : index
    %158 = vector.load %arg6[%157, %c0_46, %c0_47] : memref<4x16x128xf32, #tpu.memory_space<vmem>>, vector<1x16x128xf32>
    %159 = vector.shape_cast %158 : vector<1x16x128xf32> to vector<16x128xf32>
    %cst_48 = arith.constant dense<0.000000e+00> : vector<16x128xf32>
    %160 = tpu.matmul %119, %3, %cst_48 {dimension_numbers = #tpu.dot_dimension_numbers<[1], [0], [0], [1], [0, 0, 1, 1], [], []>, precision = #tpu.contract_precision<fp32>} : vector<16x32xf32>, vector<32x128xf32>, vector<16x128xf32> -> vector<16x128xf32>
    %161 = arith.addf %159, %160 : vector<16x128xf32>
    %162 = vector.extract_strided_slice %161 {offsets = [0, 0], sizes = [16, 32], strides = [1, 1]} : vector<16x128xf32> to vector<16x32xf32>
    %163 = arith.negf %162 : vector<16x32xf32>
    %164 = math.exp %163 : vector<16x32xf32>
    %cst_49 = arith.constant 1.000000e+00 : f32
    %165 = vector.broadcast %cst_49 : f32 to vector<16x32xf32>
    %166 = arith.addf %165, %164 : vector<16x32xf32>
    %167 = arith.divf %165, %166 : vector<16x32xf32>
    %168 = vector.extract_strided_slice %161 {offsets = [0, 32], sizes = [16, 32], strides = [1, 1]} : vector<16x128xf32> to vector<16x32xf32>
    %169 = arith.negf %168 : vector<16x32xf32>
    %170 = math.exp %169 : vector<16x32xf32>
    %cst_50 = arith.constant 1.000000e+00 : f32
    %171 = vector.broadcast %cst_50 : f32 to vector<16x32xf32>
    %172 = arith.addf %171, %170 : vector<16x32xf32>
    %173 = arith.divf %171, %172 : vector<16x32xf32>
    %174 = vector.extract_strided_slice %161 {offsets = [0, 64], sizes = [16, 32], strides = [1, 1]} : vector<16x128xf32> to vector<16x32xf32>
    %175 = math.tanh %174 : vector<16x32xf32>
    %176 = vector.extract_strided_slice %161 {offsets = [0, 96], sizes = [16, 32], strides = [1, 1]} : vector<16x128xf32> to vector<16x32xf32>
    %177 = arith.negf %176 : vector<16x32xf32>
    %178 = math.exp %177 : vector<16x32xf32>
    %cst_51 = arith.constant 1.000000e+00 : f32
    %179 = vector.broadcast %cst_51 : f32 to vector<16x32xf32>
    %180 = arith.addf %179, %178 : vector<16x32xf32>
    %181 = arith.divf %179, %180 : vector<16x32xf32>
    %182 = arith.mulf %173, %120 : vector<16x32xf32>
    %183 = arith.mulf %167, %175 : vector<16x32xf32>
    %184 = arith.addf %182, %183 : vector<16x32xf32>
    %185 = math.tanh %184 : vector<16x32xf32>
    %186 = arith.mulf %181, %185 : vector<16x32xf32>
    %187 = arith.select %156, %186, %119 : vector<16x32xf32>
    %188 = arith.select %156, %184, %120 : vector<16x32xf32>
    %cst_52 = arith.constant dense<0.000000e+00> : vector<16x128xf32>
    %189 = tpu.matmul %187, %4, %cst_52 {dimension_numbers = #tpu.dot_dimension_numbers<[1], [0], [0], [1], [0, 0, 1, 1], [], []>, precision = #tpu.contract_precision<fp32>} : vector<16x32xf32>, vector<32x128xf32>, vector<16x128xf32> -> vector<16x128xf32>
    %cst_53 = arith.constant dense<0.000000e+00> : vector<16x128xf32>
    %190 = tpu.matmul %150, %5, %cst_53 {dimension_numbers = #tpu.dot_dimension_numbers<[1], [0], [0], [1], [0, 0, 1, 1], [], []>, precision = #tpu.contract_precision<fp32>} : vector<16x32xf32>, vector<32x128xf32>, vector<16x128xf32> -> vector<16x128xf32>
    %191 = arith.addf %189, %190 : vector<16x128xf32>
    %192 = arith.addf %191, %8 : vector<16x128xf32>
    %193 = vector.extract_strided_slice %192 {offsets = [0, 0], sizes = [16, 32], strides = [1, 1]} : vector<16x128xf32> to vector<16x32xf32>
    %194 = arith.negf %193 : vector<16x32xf32>
    %195 = math.exp %194 : vector<16x32xf32>
    %cst_54 = arith.constant 1.000000e+00 : f32
    %196 = vector.broadcast %cst_54 : f32 to vector<16x32xf32>
    %197 = arith.addf %196, %195 : vector<16x32xf32>
    %198 = arith.divf %196, %197 : vector<16x32xf32>
    %199 = vector.extract_strided_slice %192 {offsets = [0, 32], sizes = [16, 32], strides = [1, 1]} : vector<16x128xf32> to vector<16x32xf32>
    %200 = arith.negf %199 : vector<16x32xf32>
    %201 = math.exp %200 : vector<16x32xf32>
    %cst_55 = arith.constant 1.000000e+00 : f32
    %202 = vector.broadcast %cst_55 : f32 to vector<16x32xf32>
    %203 = arith.addf %202, %201 : vector<16x32xf32>
    %204 = arith.divf %202, %203 : vector<16x32xf32>
    %205 = vector.extract_strided_slice %192 {offsets = [0, 64], sizes = [16, 32], strides = [1, 1]} : vector<16x128xf32> to vector<16x32xf32>
    %206 = math.tanh %205 : vector<16x32xf32>
    %207 = vector.extract_strided_slice %192 {offsets = [0, 96], sizes = [16, 32], strides = [1, 1]} : vector<16x128xf32> to vector<16x32xf32>
    %208 = arith.negf %207 : vector<16x32xf32>
    %209 = math.exp %208 : vector<16x32xf32>
    %cst_56 = arith.constant 1.000000e+00 : f32
    %210 = vector.broadcast %cst_56 : f32 to vector<16x32xf32>
    %211 = arith.addf %210, %209 : vector<16x32xf32>
    %212 = arith.divf %210, %211 : vector<16x32xf32>
    %213 = arith.mulf %204, %151 : vector<16x32xf32>
    %214 = arith.mulf %198, %206 : vector<16x32xf32>
    %215 = arith.addf %213, %214 : vector<16x32xf32>
    %216 = math.tanh %215 : vector<16x32xf32>
    %217 = arith.mulf %212, %216 : vector<16x32xf32>
    %218 = arith.select %156, %217, %150 : vector<16x32xf32>
    %219 = arith.select %156, %215, %151 : vector<16x32xf32>
    %220 = arith.index_cast %c2_i32 : i32 to index
    %c0_57 = arith.constant 0 : index
    %c0_58 = arith.constant 0 : index
    %221 = vector.load %arg7[%220, %c0_57, %c0_58] : memref<4x16x32xf32, #tpu.memory_space<vmem>>, vector<1x16x32xf32>
    %222 = vector.shape_cast %221 : vector<1x16x32xf32> to vector<16x32xf32>
    %223 = vector.shape_cast %218 : vector<16x32xf32> to vector<1x16x32xf32>
    tpu.vector_store %arg7[%220, %c0_57, %c0_58], %223 {strides = array<i32>} : memref<4x16x32xf32, #tpu.memory_space<vmem>>, vector<1x16x32xf32>,
    %c3_i32 = arith.constant 3 : i32
    %224 = arith.cmpi slt, %c3_i32, %11 : i32
    %225 = arith.index_cast %c3_i32 : i32 to index
    %c0_59 = arith.constant 0 : index
    %c0_60 = arith.constant 0 : index
    %226 = vector.load %arg6[%225, %c0_59, %c0_60] : memref<4x16x128xf32, #tpu.memory_space<vmem>>, vector<1x16x128xf32>
    %227 = vector.shape_cast %226 : vector<1x16x128xf32> to vector<16x128xf32>
    %cst_61 = arith.constant dense<0.000000e+00> : vector<16x128xf32>
    %228 = tpu.matmul %187, %3, %cst_61 {dimension_numbers = #tpu.dot_dimension_numbers<[1], [0], [0], [1], [0, 0, 1, 1], [], []>, precision = #tpu.contract_precision<fp32>} : vector<16x32xf32>, vector<32x128xf32>, vector<16x128xf32> -> vector<16x128xf32>
    %229 = arith.addf %227, %228 : vector<16x128xf32>
    %230 = vector.extract_strided_slice %229 {offsets = [0, 0], sizes = [16, 32], strides = [1, 1]} : vector<16x128xf32> to vector<16x32xf32>
    %231 = arith.negf %230 : vector<16x32xf32>
    %232 = math.exp %231 : vector<16x32xf32>
    %cst_62 = arith.constant 1.000000e+00 : f32
    %233 = vector.broadcast %cst_62 : f32 to vector<16x32xf32>
    %234 = arith.addf %233, %232 : vector<16x32xf32>
    %235 = arith.divf %233, %234 : vector<16x32xf32>
    %236 = vector.extract_strided_slice %229 {offsets = [0, 32], sizes = [16, 32], strides = [1, 1]} : vector<16x128xf32> to vector<16x32xf32>
    %237 = arith.negf %236 : vector<16x32xf32>
    %238 = math.exp %237 : vector<16x32xf32>
    %cst_63 = arith.constant 1.000000e+00 : f32
    %239 = vector.broadcast %cst_63 : f32 to vector<16x32xf32>
    %240 = arith.addf %239, %238 : vector<16x32xf32>
    %241 = arith.divf %239, %240 : vector<16x32xf32>
    %242 = vector.extract_strided_slice %229 {offsets = [0, 64], sizes = [16, 32], strides = [1, 1]} : vector<16x128xf32> to vector<16x32xf32>
    %243 = math.tanh %242 : vector<16x32xf32>
    %244 = vector.extract_strided_slice %229 {offsets = [0, 96], sizes = [16, 32], strides = [1, 1]} : vector<16x128xf32> to vector<16x32xf32>
    %245 = arith.negf %244 : vector<16x32xf32>
    %246 = math.exp %245 : vector<16x32xf32>
    %cst_64 = arith.constant 1.000000e+00 : f32
    %247 = vector.broadcast %cst_64 : f32 to vector<16x32xf32>
    %248 = arith.addf %247, %246 : vector<16x32xf32>
    %249 = arith.divf %247, %248 : vector<16x32xf32>
    %250 = arith.mulf %241, %188 : vector<16x32xf32>
    %251 = arith.mulf %235, %243 : vector<16x32xf32>
    %252 = arith.addf %250, %251 : vector<16x32xf32>
    %253 = math.tanh %252 : vector<16x32xf32>
    %254 = arith.mulf %249, %253 : vector<16x32xf32>
    %255 = arith.select %224, %254, %187 : vector<16x32xf32>
    %256 = arith.select %224, %252, %188 : vector<16x32xf32>
    %cst_65 = arith.constant dense<0.000000e+00> : vector<16x128xf32>
    %257 = tpu.matmul %255, %4, %cst_65 {dimension_numbers = #tpu.dot_dimension_numbers<[1], [0], [0], [1], [0, 0, 1, 1], [], []>, precision = #tpu.contract_precision<fp32>} : vector<16x32xf32>, vector<32x128xf32>, vector<16x128xf32> -> vector<16x128xf32>
    %cst_66 = arith.constant dense<0.000000e+00> : vector<16x128xf32>
    %258 = tpu.matmul %218, %5, %cst_66 {dimension_numbers = #tpu.dot_dimension_numbers<[1], [0], [0], [1], [0, 0, 1, 1], [], []>, precision = #tpu.contract_precision<fp32>} : vector<16x32xf32>, vector<32x128xf32>, vector<16x128xf32> -> vector<16x128xf32>
    %259 = arith.addf %257, %258 : vector<16x128xf32>
    %260 = arith.addf %259, %8 : vector<16x128xf32>
    %261 = vector.extract_strided_slice %260 {offsets = [0, 0], sizes = [16, 32], strides = [1, 1]} : vector<16x128xf32> to vector<16x32xf32>
    %262 = arith.negf %261 : vector<16x32xf32>
    %263 = math.exp %262 : vector<16x32xf32>
    %cst_67 = arith.constant 1.000000e+00 : f32
    %264 = vector.broadcast %cst_67 : f32 to vector<16x32xf32>
    %265 = arith.addf %264, %263 : vector<16x32xf32>
    %266 = arith.divf %264, %265 : vector<16x32xf32>
    %267 = vector.extract_strided_slice %260 {offsets = [0, 32], sizes = [16, 32], strides = [1, 1]} : vector<16x128xf32> to vector<16x32xf32>
    %268 = arith.negf %267 : vector<16x32xf32>
    %269 = math.exp %268 : vector<16x32xf32>
    %cst_68 = arith.constant 1.000000e+00 : f32
    %270 = vector.broadcast %cst_68 : f32 to vector<16x32xf32>
    %271 = arith.addf %270, %269 : vector<16x32xf32>
    %272 = arith.divf %270, %271 : vector<16x32xf32>
    %273 = vector.extract_strided_slice %260 {offsets = [0, 64], sizes = [16, 32], strides = [1, 1]} : vector<16x128xf32> to vector<16x32xf32>
    %274 = math.tanh %273 : vector<16x32xf32>
    %275 = vector.extract_strided_slice %260 {offsets = [0, 96], sizes = [16, 32], strides = [1, 1]} : vector<16x128xf32> to vector<16x32xf32>
    %276 = arith.negf %275 : vector<16x32xf32>
    %277 = math.exp %276 : vector<16x32xf32>
    %cst_69 = arith.constant 1.000000e+00 : f32
    %278 = vector.broadcast %cst_69 : f32 to vector<16x32xf32>
    %279 = arith.addf %278, %277 : vector<16x32xf32>
    %280 = arith.divf %278, %279 : vector<16x32xf32>
    %281 = arith.mulf %272, %219 : vector<16x32xf32>
    %282 = arith.mulf %266, %274 : vector<16x32xf32>
    %283 = arith.addf %281, %282 : vector<16x32xf32>
    %284 = math.tanh %283 : vector<16x32xf32>
    %285 = arith.mulf %280, %284 : vector<16x32xf32>
    %286 = arith.select %224, %285, %218 : vector<16x32xf32>
    %287 = arith.select %224, %283, %219 : vector<16x32xf32>
    %288 = arith.index_cast %c3_i32 : i32 to index
    %c0_70 = arith.constant 0 : index
    %c0_71 = arith.constant 0 : index
    %289 = vector.load %arg7[%288, %c0_70, %c0_71] : memref<4x16x32xf32, #tpu.memory_space<vmem>>, vector<1x16x32xf32>
    %290 = vector.shape_cast %289 : vector<1x16x32xf32> to vector<16x32xf32>
    %291 = vector.shape_cast %286 : vector<16x32xf32> to vector<1x16x32xf32>
    tpu.vector_store %arg7[%288, %c0_70, %c0_71], %291 {strides = array<i32>} : memref<4x16x32xf32, #tpu.memory_space<vmem>>, vector<1x16x32xf32>,
    %c4_i32_72 = arith.constant 4 : i32
    %c0_73 = arith.constant 0 : index
    %c0_74 = arith.constant 0 : index
    %c0_75 = arith.constant 0 : index
    %292 = vector.load %arg8[%c0_73, %c0_74, %c0_75] : memref<2x16x32xf32, #tpu.memory_space<vmem>>, vector<1x16x32xf32>
    %293 = vector.shape_cast %292 : vector<1x16x32xf32> to vector<16x32xf32>
    %294 = vector.shape_cast %255 : vector<16x32xf32> to vector<1x16x32xf32>
    tpu.vector_store %arg8[%c0_73, %c0_74, %c0_75], %294 {strides = array<i32>} : memref<2x16x32xf32, #tpu.memory_space<vmem>>, vector<1x16x32xf32>,
    %c0_76 = arith.constant 0 : index
    %c0_77 = arith.constant 0 : index
    %c0_78 = arith.constant 0 : index
    %295 = vector.load %arg9[%c0_76, %c0_77, %c0_78] : memref<2x16x32xf32, #tpu.memory_space<vmem>>, vector<1x16x32xf32>
    %296 = vector.shape_cast %295 : vector<1x16x32xf32> to vector<16x32xf32>
    %297 = vector.shape_cast %256 : vector<16x32xf32> to vector<1x16x32xf32>
    tpu.vector_store %arg9[%c0_76, %c0_77, %c0_78], %297 {strides = array<i32>} : memref<2x16x32xf32, #tpu.memory_space<vmem>>, vector<1x16x32xf32>,
    %c1_79 = arith.constant 1 : index
    %c0_80 = arith.constant 0 : index
    %c0_81 = arith.constant 0 : index
    %298 = vector.load %arg8[%c1_79, %c0_80, %c0_81] : memref<2x16x32xf32, #tpu.memory_space<vmem>>, vector<1x16x32xf32>
    %299 = vector.shape_cast %298 : vector<1x16x32xf32> to vector<16x32xf32>
    %300 = vector.shape_cast %286 : vector<16x32xf32> to vector<1x16x32xf32>
    tpu.vector_store %arg8[%c1_79, %c0_80, %c0_81], %300 {strides = array<i32>} : memref<2x16x32xf32, #tpu.memory_space<vmem>>, vector<1x16x32xf32>,
    %c1_82 = arith.constant 1 : index
    %c0_83 = arith.constant 0 : index
    %c0_84 = arith.constant 0 : index
    %301 = vector.load %arg9[%c1_82, %c0_83, %c0_84] : memref<2x16x32xf32, #tpu.memory_space<vmem>>, vector<1x16x32xf32>
    %302 = vector.shape_cast %301 : vector<1x16x32xf32> to vector<16x32xf32>
    %303 = vector.shape_cast %287 : vector<16x32xf32> to vector<1x16x32xf32>
    tpu.vector_store %arg9[%c1_82, %c0_83, %c0_84], %303 {strides = array<i32>} : memref<2x16x32xf32, #tpu.memory_space<vmem>>, vector<1x16x32xf32>,
    return
  }
  func.func @transform_0(%arg0: i32, %arg1: i32) -> (i32, i32) {
    %c0_i32 = arith.constant 0 : i32
    %c0_i32_0 = arith.constant 0 : i32
    %c0_i32_1 = arith.constant 0 : i32
    return %c0_i32, %c0_i32_0 : i32, i32
  }
  func.func @transform_1(%arg0: i32, %arg1: i32) -> (i32, i32) {
    %c0_i32 = arith.constant 0 : i32
    %c0_i32_0 = arith.constant 0 : i32
    %c0_i32_1 = arith.constant 0 : i32
    return %c0_i32, %c0_i32_0 : i32, i32
  }
  func.func @transform_2(%arg0: i32, %arg1: i32) -> (i32, i32) {
    %c0_i32 = arith.constant 0 : i32
    %c0_i32_0 = arith.constant 0 : i32
    %c0_i32_1 = arith.constant 0 : i32
    return %c0_i32, %c0_i32_0 : i32, i32
  }
  func.func @transform_3(%arg0: i32, %arg1: i32) -> (i32, i32) {
    %c0_i32 = arith.constant 0 : i32
    %c0_i32_0 = arith.constant 0 : i32
    %c0_i32_1 = arith.constant 0 : i32
    return %c0_i32, %c0_i32_0 : i32, i32
  }
  func.func @transform_4(%arg0: i32, %arg1: i32) -> (i32, i32, i32) {
    %c0_i32 = arith.constant 0 : i32
    %c0_i32_0 = arith.constant 0 : i32
    return %arg1, %arg0, %c0_i32 : i32, i32, i32
  }
  func.func @transform_5(%arg0: i32, %arg1: i32) -> (i32, i32, i32) {
    %c0_i32 = arith.constant 0 : i32
    %c0_i32_0 = arith.constant 0 : i32
    return %arg1, %arg0, %c0_i32 : i32, i32, i32
  }
}

</mosaic_0001>

<llo_original>
// kernel: tpu_custom_call.1
$region0: #{tpu_custom_call.1}
  #allocation0 [shape = 'u32[]', space=smem, size = 0x4, offset = 0x4, fixed_abs, tag = 'smem constant byte address 0x4 - core index']
  #allocation1 [shape = 'u32[144,128]{1,0:T(1,128)}', space=vmem, size = 0x12000, scoped, tag = 'internal scratch']
  #allocation2 [shape = 'f32[2,16,32]{2,1,0:T(8,128)}', space=vmem, size = 0x4000, scoped, tag = 'scratch operand']
  #allocation3 [shape = 'f32[2,16,32]{2,1,0:T(8,128)}', space=vmem, size = 0x4000, scoped, tag = 'scratch operand']
  %s0 = inlined_call_operand.hbm [shape: f32[32,128], index: 0, kind: input, shape index: {}]
  %s1 = inlined_call_operand.hbm [shape: f32[32,128], index: 1, kind: input, shape index: {}]
  %s2 = inlined_call_operand.hbm [shape: f32[32,128], index: 2, kind: input, shape index: {}]
  %s3 = inlined_call_operand.vmem [shape: f32[1,128], index: 3, kind: input, shape index: {}]
  %s4 = inlined_call_operand.hbm [shape: f32[10,16,128], index: 4, kind: input, shape index: {}]
  %s5 = inlined_call_operand.hbm [shape: f32[10,16,32], index: 5, kind: output, shape index: {}]
  %s6 = sld [smem:[#allocation0]]
  $region73: #{tpu_custom_call.1} parent=0
    _
  %s8 = ssub.s32 1, %s6
  %s9 = scalar_select 0, %s8, %s6
  $region1: #{tpu_custom_call.1} parent=0
    #allocation4 [shape = 'u8[16384]{0}', space=vmem, size = 0x4000, scoped, tag = 'input window, operand 0, single buffered']
    #allocation5 [shape = 's32[2]{0}', space=sflag, size = 0x8, scoped, tag = 'scoped memory for tpu_custom_call.1']
    #allocation6 [shape = 's32[2]{0}', space=sflag, size = 0x8, scoped, tag = 'scoped memory for tpu_custom_call.1']
    #allocation7 [shape = 'u8[16384]{0}', space=vmem, size = 0x4000, scoped, tag = 'input window, operand 1, single buffered']
    #allocation8 [shape = 's32[1]{0}', space=sflag, size = 0x4, scoped, tag = 'scoped memory for tpu_custom_call.1']
    #allocation9 [shape = 'u8[16384]{0}', space=vmem, size = 0x4000, scoped, tag = 'input window, operand 2, single buffered']
    #allocation10 [shape = 'u8[65536]{0}', space=vmem, size = 0x10000, scoped, tag = 'input window, operand 4']
    #allocation11 [shape = 's32[2]{0}', space=sflag, size = 0x8, scoped, tag = 'scoped memory for tpu_custom_call.1']
    #allocation12 [shape = 'u8[65536]{0}', space=vmem, size = 0x10000, scoped, tag = 'output window, operand 0']
    %10 = vsyncpa [#allocation5], 0
    %11 = vsyncpa [#allocation8], 0
    %12 = vsyncpa [#allocation11], 0
    %s13 = scalar_lea.sflag [#allocation11], 1
    %14 = vsyncpa %s13, 0
    %15 = vsyncpa [#allocation6], 0
    %s16 = scalar_lea.sflag [#allocation6], 1
    %17 = vsyncpa %s16, 0
    loop: start=0, step=1, limit=5
    $region2: #{tpu_custom_call.1} parent=1 // loop_pre_header
      _
    $region3: #{tpu_custom_call.1} parent=1 // loop_header
      %s19 = sphi 0, %s23
      %p20 = scmp.ge.s32.totalorder %s19, 5
      %s26 = sphi 0, %s38
      %s27 = sphi 0, %s34
      %s28 = sphi 0, %s26
      %s29 = sphi 0, %s27
      %s30 = sphi 0, %s28
      %s31 = sphi 0, %s29
      %s39 = sphi 0, %s39
      %s41 = sphi 0, %s39
      %s42 = sphi 0, %s41
      %s56 = sphi 0, %s42
      %s60 = sphi 0, %s60
      %s62 = sphi 0, %s60
      %s63 = sphi 0, %s62
      %s77 = sphi 0, %s63
      %s81 = sphi 0, %s81
      %s83 = sphi 0, %s81
      %s84 = sphi 0, %s83
      %s98 = sphi 0, %s84
      %s102 = sphi 0, %s102
      %s104 = sphi 0, %s102
      %s105 = sphi 0, %s104
      %s119 = sphi 0, %s105
      %s127 = sphi 0, %s129
      %s130 = sphi 0, %s127
      %s131 = sphi 0, %s130
      %s147 = sphi 0, %s131
      %s155 = sphi 0, %s157
      %s158 = sphi 0, %s155
      %s159 = sphi 0, %s158
      %s175 = sphi 0, %s159
    $region4: #{tpu_custom_call.1} parent=1 // loop_header_branch
      %22 = sbr.rel (%p20) target = $region8
    $region5: #{tpu_custom_call.1} parent=1 // loop_body
      %s24 = ssub.s32 %s19, 1
      %s25 = ssub.s32 %s19, 2
      %s32 = sadd.s32 1, %s27
      %p33 = scmp.ge.s32.totalorder %s32, 3
      %s34 = scalar_select %p33, 0, %s32
      %s35 = sadd.s32 1, %s26
      %s36 = scalar_select %p33, %s35, %s26
      %p37 = scmp.ge.s32.totalorder %s36, 1
      %s38 = scalar_select %p37, 0, %s36
      %s40 = sadd.s32 %s39, 1
      %p43 = scmp.eq.s32.totalorder %s19, 2
      %p44 = scmp.ne.s32.totalorder %s39, %s41
      %p45 = scmp.eq.s32.totalorder %s19, 0
      %p46 = por %p44, %p45
      %p47 = scmp.ne.s32.totalorder %s39, %s41
      %p48 = scmp.eq.s32.totalorder %s24, 2
      %p49 = por %p47, %p48
      %p50 = scmp.ne.s32.totalorder %s41, %s42
      %p51 = scmp.eq.s32.totalorder %s24, 0
      %p52 = por %p50, %p51
      %p53 = scmp.ne.s32.totalorder %s41, %s42
      %p54 = scmp.eq.s32.totalorder %s25, 2
      %p55 = por %p53, %p54
      %p57 = scmp.ne.s32.totalorder %s42, %s56
      %p58 = scmp.eq.s32.totalorder %s25, 0
      %p59 = por %p57, %p58
      %s61 = sadd.s32 %s60, 1
      %p64 = scmp.eq.s32.totalorder %s19, 2
      %p65 = scmp.ne.s32.totalorder %s60, %s62
      %p66 = scmp.eq.s32.totalorder %s19, 0
      %p67 = por %p65, %p66
      %p68 = scmp.ne.s32.totalorder %s60, %s62
      %p69 = scmp.eq.s32.totalorder %s24, 2
      %p70 = por %p68, %p69
      %p71 = scmp.ne.s32.totalorder %s62, %s63
      %p72 = scmp.eq.s32.totalorder %s24, 0
      %p73 = por %p71, %p72
      %p74 = scmp.ne.s32.totalorder %s62, %s63
      %p75 = scmp.eq.s32.totalorder %s25, 2
      %p76 = por %p74, %p75
      %p78 = scmp.ne.s32.totalorder %s63, %s77
      %p79 = scmp.eq.s32.totalorder %s25, 0
      %p80 = por %p78, %p79
      %s82 = sadd.s32 %s81, 1
      %p85 = scmp.eq.s32.totalorder %s19, 2
      %p86 = scmp.ne.s32.totalorder %s81, %s83
      %p87 = scmp.eq.s32.totalorder %s19, 0
      %p88 = por %p86, %p87
      %p89 = scmp.ne.s32.totalorder %s81, %s83
      %p90 = scmp.eq.s32.totalorder %s24, 2
      %p91 = por %p89, %p90
      %p92 = scmp.ne.s32.totalorder %s83, %s84
      %p93 = scmp.eq.s32.totalorder %s24, 0
      %p94 = por %p92, %p93
      %p95 = scmp.ne.s32.totalorder %s83, %s84
      %p96 = scmp.eq.s32.totalorder %s25, 2
      %p97 = por %p95, %p96
      %p99 = scmp.ne.s32.totalorder %s84, %s98
      %p100 = scmp.eq.s32.totalorder %s25, 0
      %p101 = por %p99, %p100
      %s103 = sadd.s32 %s102, 1
      %p106 = scmp.eq.s32.totalorder %s19, 2
      %p107 = scmp.ne.s32.totalorder %s102, %s104
      %p108 = scmp.eq.s32.totalorder %s19, 0
      %p109 = por %p107, %p108
      %p110 = scmp.ne.s32.totalorder %s102, %s104
      %p111 = scmp.eq.s32.totalorder %s24, 2
      %p112 = por %p110, %p111
      %p113 = scmp.ne.s32.totalorder %s104, %s105
      %p114 = scmp.eq.s32.totalorder %s24, 0
      %p115 = por %p113, %p114
      %p116 = scmp.ne.s32.totalorder %s104, %s105
      %p117 = scmp.eq.s32.totalorder %s25, 2
      %p118 = por %p116, %p117
      %p120 = scmp.ne.s32.totalorder %s105, %s119
      %p121 = scmp.eq.s32.totalorder %s25, 0
      %p122 = por %p120, %p121
      %s123 = ssub.s32 %s27, %s34
      %s124 = ssub.s32 %s26, %s38
      %s125 = sor.u32 %s123, %s124
      %p126 = scmp.eq.s32.totalorder %s125, 0
      %s128 = sadd.s32 %s127, 1
      %s129 = scalar_select %p126, %s127, %s128
      %p132 = pneg %p126
      %p133 = scmp.eq.s32.totalorder %s19, 2
      %p134 = por %p132, %p133
      %p135 = scmp.ne.s32.totalorder %s127, %s130
      %p136 = scmp.eq.s32.totalorder %s19, 0
      %p137 = por %p135, %p136
      %p138 = scmp.ne.s32.totalorder %s127, %s130
      %p139 = scmp.eq.s32.totalorder %s24, 2
      %p140 = por %p138, %p139
      %p141 = scmp.ne.s32.totalorder %s130, %s131
      %p142 = scmp.eq.s32.totalorder %s24, 0
      %p143 = por %p141, %p142
      %p144 = scmp.ne.s32.totalorder %s130, %s131
      %p145 = scmp.eq.s32.totalorder %s25, 2
      %p146 = por %p144, %p145
      %p148 = scmp.ne.s32.totalorder %s131, %s147
      %p149 = scmp.eq.s32.totalorder %s25, 0
      %p150 = por %p148, %p149
      %s151 = ssub.s32 %s27, %s34
      %s152 = ssub.s32 %s26, %s38
      %s153 = sor.u32 %s151, %s152
      %p154 = scmp.eq.s32.totalorder %s153, 0
      %s156 = sadd.s32 %s155, 1
      %s157 = scalar_select %p154, %s155, %s156
      %p160 = pneg %p154
      %p161 = scmp.eq.s32.totalorder %s19, 2
      %p162 = por %p160, %p161
      %p163 = scmp.ne.s32.totalorder %s155, %s158
      %p164 = scmp.eq.s32.totalorder %s19, 0
      %p165 = por %p163, %p164
      %p166 = scmp.ne.s32.totalorder %s155, %s158
      %p167 = scmp.eq.s32.totalorder %s24, 2
      %p168 = por %p166, %p167
      %p169 = scmp.ne.s32.totalorder %s158, %s159
      %p170 = scmp.eq.s32.totalorder %s24, 0
      %p171 = por %p169, %p170
      %p172 = scmp.ne.s32.totalorder %s158, %s159
      %p173 = scmp.eq.s32.totalorder %s25, 2
      %p174 = por %p172, %p173
      %p176 = scmp.ne.s32.totalorder %s159, %s175
      %p177 = scmp.eq.s32.totalorder %s25, 0
      %p178 = por %p176, %p177
      %p179 = scmp.le.s32.totalorder 1, %s19
      %p180 = scmp.lt.s32.totalorder %s19, 4
      %p181 = pnand %p179, %p180
      %p182 = pneg %p181
      // Predicated region
      $region9: #{tpu_custom_call.1} parent=5 // pred_check
        _
      $region10: #{tpu_custom_call.1} parent=5 // pred_check_branch
        %184 = sbr.rel (%p181) target = $region12
      $region11: #{tpu_custom_call.1} parent=5 // pred_region
        %s185 = ssub.s32 %s19, 1
        // Predicated region
        $region13: #{tpu_custom_call.1} parent=11 // pred_check
          %p186 = pneg %p52
        $region14: #{tpu_custom_call.1} parent=11 // pred_check_branch
          %188 = sbr.rel (%p186) target = $region16
        $region15: #{tpu_custom_call.1} parent=11 // pred_region
          %s190 = ssub.s32 512, 512
          %191 = vsyncadd [#allocation5], %s190
          %s192 = sshll.u32 [#allocation4], 4
          %s193 = int_to_ptr.vmem [resolvable:$true] %s192
          %198 = dma.hbm_to_vmem [thread:$0]  %s0, 512, %s193, [#allocation5], 128, 128, 8
        $region16: #{tpu_custom_call.1} parent=11 // pred_fallthru
          _
        // Predicated region
        $region17: #{tpu_custom_call.1} parent=11 // pred_check
          %p199 = pneg %p73
        $region18: #{tpu_custom_call.1} parent=11 // pred_check_branch
          %201 = sbr.rel (%p199) target = $region20
        $region19: #{tpu_custom_call.1} parent=11 // pred_region
          %s203 = ssub.s32 512, 512
          %204 = vsyncadd [#allocation8], %s203
          %s205 = sshll.u32 [#allocation7], 4
          %s206 = int_to_ptr.vmem [resolvable:$true] %s205
          %211 = dma.hbm_to_vmem [thread:$0]  %s1, 512, %s206, [#allocation8], 128, 128, 8
        $region20: #{tpu_custom_call.1} parent=11 // pred_fallthru
          _
        // Predicated region
        $region21: #{tpu_custom_call.1} parent=11 // pred_check
          %p212 = pneg %p94
        $region22: #{tpu_custom_call.1} parent=11 // pred_check_branch
          %214 = sbr.rel (%p212) target = $region24
        $region23: #{tpu_custom_call.1} parent=11 // pred_region
          %s216 = ssub.s32 512, 512
          %217 = vsyncadd [#allocation8], %s216
          %s218 = sshll.u32 [#allocation9], 4
          %s219 = int_to_ptr.vmem [resolvable:$true] %s218
          %224 = dma.hbm_to_vmem [thread:$0]  %s2, 512, %s219, [#allocation8], 128, 128, 8
        $region24: #{tpu_custom_call.1} parent=11 // pred_fallthru
          _
        // Predicated region
        $region25: #{tpu_custom_call.1} parent=11 // pred_check
          %p225 = pneg %p115
        $region26: #{tpu_custom_call.1} parent=11 // pred_check_branch
          %227 = sbr.rel (%p225) target = $region28
        $region27: #{tpu_custom_call.1} parent=11 // pred_region
          _
        $region28: #{tpu_custom_call.1} parent=11 // pred_fallthru
          _
      $region12: #{tpu_custom_call.1} parent=5 // pred_fallthru
        _
      %p228 = scmp.lt.s32.totalorder %s19, 3
      // Predicated region
      $region29: #{tpu_custom_call.1} parent=5 // pred_check
        %p229 = pneg %p228
      $region30: #{tpu_custom_call.1} parent=5 // pred_check_branch
        %231 = sbr.rel (%p229) target = $region32
      $region31: #{tpu_custom_call.1} parent=5 // pred_region
        // Predicated region
        $region33: #{tpu_custom_call.1} parent=31 // pred_check
          %p232 = pneg %p137
        $region34: #{tpu_custom_call.1} parent=31 // pred_check_branch
          %234 = sbr.rel (%p232) target = $region36
        $region35: #{tpu_custom_call.1} parent=31 // pred_region
          %s235 = sand.u32 %s127, 1
          %s236 = scalar_lea.sflag [#allocation11], %s235
          %s237 = sand.u32 %s127, 1
          %s238 = smul.addr %s237, 64
          %s239 = scalar_lea.vmem [#allocation10], %s238
          %s240 = smul.u32 4, %s27
          %s241 = smul.u32 2, %s26
          %s242 = ssub.s32 10, %s240
          %p243 = scmp.lt.s32.totalorder %s242, 4
          %s244 = scalar_select %p243, %s242, 4
          %s245 = smul.u32 128, %s244
          %s246 = smul.u32 %s245, 2
          %s248 = ssub.s32 1024, %s246
          %249 = vsyncadd %s236, %s248
          %p250 = scmp.ne.s32.totalorder 0, %s246
          %s251 = smul.addr %s240, 2
          %s252 = sadd.s32 %s241, %s251
          %s253 = smul.addr %s252, 128
          %s254 = scalar_lea.hbm %s4, %s253
          %s255 = smul.u32 %s244, 2
          %s256 = smul.u32 8, %s255
          %s257 = sshll.u32 %s239, 4
          %s258 = int_to_ptr.vmem [resolvable:$true] %s257
          %s259 = sshll.u32 %s256, 4
          %263 = dma.hbm_to_vmem [thread:$0]  (%p250), %s254, %s259, %s258, %s236, 128, 128, 8
        $region36: #{tpu_custom_call.1} parent=31 // pred_fallthru
          _
      $region32: #{tpu_custom_call.1} parent=5 // pred_fallthru
        _
      %p264 = scmp.le.s32.totalorder 1, %s19
      %p265 = scmp.lt.s32.totalorder %s19, 4
      %p266 = pnand %p264, %p265
      %p267 = pneg %p266
      // Predicated region
      $region37: #{tpu_custom_call.1} parent=5 // pred_check
        _
      $region38: #{tpu_custom_call.1} parent=5 // pred_check_branch
        %269 = sbr.rel (%p266) target = $region40
      $region39: #{tpu_custom_call.1} parent=5 // pred_region
        %s270 = ssub.s32 %s19, 1
        // Predicated region
        $region41: #{tpu_custom_call.1} parent=39 // pred_check
          %p271 = pneg %p52
        $region42: #{tpu_custom_call.1} parent=39 // pred_check_branch
          %273 = sbr.rel (%p271) target = $region44
        $region43: #{tpu_custom_call.1} parent=39 // pred_region
          %274 = dma.done [#allocation5], 512
        $region44: #{tpu_custom_call.1} parent=39 // pred_fallthru
          _
        // Predicated region
        $region45: #{tpu_custom_call.1} parent=39 // pred_check
          %p275 = pneg %p73
        $region46: #{tpu_custom_call.1} parent=39 // pred_check_branch
          %277 = sbr.rel (%p275) target = $region48
        $region47: #{tpu_custom_call.1} parent=39 // pred_region
          %278 = dma.done [#allocation8], 512
        $region48: #{tpu_custom_call.1} parent=39 // pred_fallthru
          _
        // Predicated region
        $region49: #{tpu_custom_call.1} parent=39 // pred_check
          %p279 = pneg %p94
        $region50: #{tpu_custom_call.1} parent=39 // pred_check_branch
          %281 = sbr.rel (%p279) target = $region52
        $region51: #{tpu_custom_call.1} parent=39 // pred_region
          %282 = dma.done [#allocation8], 512
        $region52: #{tpu_custom_call.1} parent=39 // pred_fallthru
          _
        %s283 = sand.u32 %s130, 1
        %s284 = scalar_lea.sflag [#allocation11], %s283
        %s285 = sand.u32 %s130, 1
        %s286 = smul.addr %s285, 64
        %s287 = scalar_lea.vmem [#allocation10], %s286
        // Predicated region
        $region53: #{tpu_custom_call.1} parent=39 // pred_check
          %p288 = pneg %p143
        $region54: #{tpu_custom_call.1} parent=39 // pred_check_branch
          %290 = sbr.rel (%p288) target = $region56
        $region55: #{tpu_custom_call.1} parent=39 // pred_region
          %291 = dma.done %s284, 1024
        $region56: #{tpu_custom_call.1} parent=39 // pred_fallthru
          _
        %p292 = pneg %p52
        %p293 = pneg %p49
        %p294 = pneg %p73
        %p295 = pneg %p70
        %p296 = pneg %p94
        %p297 = pneg %p91
        %p298 = pneg %p115
        %p299 = pneg %p112
        %s300 = sand.u32 %s130, 1
        %s301 = scalar_lea.sflag [#allocation11], %s300
        %s302 = sand.u32 %s130, 1
        %s303 = smul.addr %s302, 64
        %s304 = scalar_lea.vmem [#allocation10], %s303
        %p305 = pneg %p143
        %p306 = pneg %p140
        %p307 = pneg %p171
        %p308 = pneg %p168
        %s309 = sand.u32 %s158, 1
        %s310 = scalar_lea.sflag [#allocation6], %s309
        %s311 = sand.u32 %s158, 1
        %s312 = smul.addr %s311, 64
        %s313 = scalar_lea.vmem [#allocation12], %s312
        %s314 = smul.u32 4, %s29
        %s315 = smul.u32 2, %s28
        %s316 = ssub.s32 10, %s314
        %p317 = scmp.lt.s32.totalorder %s316, 4
        %s318 = scalar_select %p317, %s316, 4
        %s319 = smul.u32 128, %s318
        %s320 = smul.u32 %s319, 2
        %s321 = smul.u32 4, %s29
        %s322 = smul.u32 2, %s28
        %s323 = ssub.s32 10, %s321
        %p324 = scmp.lt.s32.totalorder %s323, 4
        %s325 = scalar_select %p324, %s323, 4
        %s326 = smul.u32 128, %s325
        %s327 = smul.u32 %s326, 2
        %p328 = scmp.eq.s32.totalorder %s29, 0
        // Predicated region
        $region57: #{tpu_custom_call.1} parent=39 // pred_check
          %p329 = pneg %p328
        $region58: #{tpu_custom_call.1} parent=39 // pred_check_branch
          %331 = sbr.rel (%p329) target = $region60
        $region59: #{tpu_custom_call.1} parent=39 // pred_region
          %vm332 = vcmask 261120
          %333 = vst.msk [vmem:[#allocation2] sm:$0xff] %vm332, 0.0
          %334 = vst.msk [vmem:[#allocation2 + $0x8] sm:$0xff] %vm332, 0.0
          %335 = vst.msk [vmem:[#allocation2 + $0x10] sm:$0xff] %vm332, 0.0
          %336 = vst.msk [vmem:[#allocation2 + $0x18] sm:$0xff] %vm332, 0.0
          %337 = vst.msk [vmem:[#allocation3] sm:$0xff] %vm332, 0.0
          %338 = vst.msk [vmem:[#allocation3 + $0x8] sm:$0xff] %vm332, 0.0
          %339 = vst.msk [vmem:[#allocation3 + $0x10] sm:$0xff] %vm332, 0.0
          %340 = vst.msk [vmem:[#allocation3 + $0x18] sm:$0xff] %vm332, 0.0
        $region60: #{tpu_custom_call.1} parent=39 // pred_fallthru
          _
        %v341 = vld [vmem:[#allocation4] sm:$0xff]
        %v342 = vld [vmem:[#allocation4 + $0x8] sm:$0xff]
        %v343 = vld [vmem:[#allocation4 + $0x10] sm:$0xff]
        %v344 = vld [vmem:[#allocation4 + $0x18] sm:$0xff]
        %v345 = vld [vmem:[#allocation7] sm:$0xff]
        %v346 = vld [vmem:[#allocation7 + $0x8] sm:$0xff]
        %v347 = vld [vmem:[#allocation7 + $0x10] sm:$0xff]
        %v348 = vld [vmem:[#allocation7 + $0x18] sm:$0xff]
        %v349 = vld [vmem:[#allocation9] sm:$0xff]
        %v350 = vld [vmem:[#allocation9 + $0x8] sm:$0xff]
        %v351 = vld [vmem:[#allocation9 + $0x10] sm:$0xff]
        %v352 = vld [vmem:[#allocation9 + $0x18] sm:$0xff]
        %v353 = vld [vmem:[%s3] sm:$0x1]
        %v355 = vlaneseq
        %v356 = vshrl.u32 %v355, 7
        %v357 = vsub.s32 0, %v356
        %v358 = vrot.slane %v353, %v357
        %s360 = smul.u32 %s29, 4
        %s361 = ssub.s32 10, %s360
        %p362 = scmp.lt.s32.totalorder %s361, 4
        %s363 = scalar_select %p362, %s361, 4
        %v364 = vld [vmem:[#allocation2] sm:$0xff]
        %v365 = vld [vmem:[#allocation2 + $0x8] sm:$0xff]
        %s366 = scalar_lea.vmem [#allocation2], 16
        %v367 = vld [vmem:[%s366] sm:$0xff]
        %v368 = vld [vmem:[%s366 + $0x8] sm:$0xff]
        %v369 = vld [vmem:[#allocation3] sm:$0xff]
        %v370 = vld [vmem:[#allocation3 + $0x8] sm:$0xff]
        %s371 = scalar_lea.vmem [#allocation3], 16
        %v372 = vld [vmem:[%s371] sm:$0xff]
        %v373 = vld [vmem:[%s371 + $0x8] sm:$0xff]
        %p374 = scmp.gt.s32.totalorder %s363, 0
        %v375 = vld [vmem:[%s287] sm:$0xff]
        %v376 = vld [vmem:[%s287 + $0x8] sm:$0xff]
        %vm377 = vcmask 261120
        %v379 = vsel %vm377, %v364, 0
        %v382 = vsel %vm377, %v365, 0
        %384 = vmatprep.subr.mxu0 0.0
        %v385 = vand.u32 %v341, 4294901760
        %386 = vmatpush1.msra.mxu0 %v385
        %387 = vmatprep.subr.mxu0 0.0
        %v388 = vand.u32 %v342, 4294901760
        %389 = vmatpush1.msra.mxu0 %v388
        %390 = vmatprep.subr.mxu0 0.0
        %v391 = vand.u32 %v343, 4294901760
        %392 = vmatpush1.msra.mxu0 %v391
        %393 = vmatprep.subr.mxu0 0.0
        %v394 = vand.u32 %v344, 4294901760
        %395 = vmatpush1.msra.mxu0 %v394
        %396 = vmatprep.subr.mxu0 0.0
        %397 = vmatpush1.msra.mxu0 0.0
        %398 = vmatprep.subr.mxu0 0.0
        %399 = vmatpush1.msra.mxu0 0.0
        %400 = vmatprep.subr.mxu0 0.0
        %401 = vmatpush1.msra.mxu0 0.0
        %402 = vmatprep.subr.mxu0 0.0
        %403 = vmatpush1.msra.mxu0 0.0
        %404 = vmatprep.subr.mxu0 0.0
        %405 = vmatpush1.msra.mxu0 0.0
        %406 = vmatprep.subr.mxu0 0.0
        %407 = vmatpush1.msra.mxu0 0.0
        %408 = vmatprep.subr.mxu0 0.0
        %409 = vmatpush1.msra.mxu0 0.0
        %410 = vmatprep.subr.mxu0 0.0
        %411 = vmatpush1.msra.mxu0 0.0
        %412 = vmatprep.subr.mxu0 0.0
        %413 = vmatpush1.msra.mxu0 0.0
        %414 = vmatprep.subr.mxu0 0.0
        %415 = vmatpush1.msra.mxu0 0.0
        %416 = vmatprep.subr.mxu0 0.0
        %417 = vmatpush1.msra.mxu0 0.0
        %418 = vmatprep.subr.mxu0 0.0
        %419 = vmatpush1.msra.mxu0 0.0
        %420 = vmatprep.subr.mxu0 0.0
        %421 = vmatpush1.msra.mxu0 0.0
        %422 = vmatprep.subr.mxu0 0.0
        %423 = vmatpush1.msra.mxu0 0.0
        %424 = vmatprep.subr.mxu0 0.0
        %425 = vmatpush1.msra.mxu0 0.0
        %426 = vmatprep.subr.mxu0 0.0
        %427 = vmatpush1.msra.mxu0 0.0
        %428 = vmatprep.subr.mxu0 0.0
        %429 = vmatpush1.msra.mxu0 0.0
        %430 = vmatprep.subr.mxu0 0.0
        %431 = vmatpush1.msra.mxu0 0.0
        %432 = vmatprep.subr.mxu0 0.0
        %433 = vmatpush1.msra.mxu0 0.0
        %434 = vmatprep.subr.mxu0 0.0
        %435 = vmatpush1.msra.mxu0 0.0
        %436 = vmatprep.subr.mxu0 0.0
        %437 = vmatpush1.msra.mxu0 0.0
        %438 = vmatprep.subr.mxu0 0.0
        %439 = vmatpush1.msra.mxu0 0.0
        %440 = vmatprep.subr.mxu0 0.0
        %441 = vmatpush1.msra.mxu0 0.0
        %442 = vmatprep.subr.mxu0 0.0
        %443 = vmatpush1.msra.mxu0 0.0
        %444 = vmatprep.subr.mxu0 0.0
        %445 = vmatpush1.msra.mxu0 0.0
        %446 = vmatprep.subr.mxu0 0.0
        %447 = vmatpush1.msra.mxu0 0.0
        %448 = vmatprep.subr.mxu0 0.0
        %449 = vmatpush1.msra.mxu0 0.0
        %450 = vmatprep.subr.mxu0 0.0
        %451 = vmatpush1.msra.mxu0 0.0
        %452 = vmatprep.mubr.f32.mxu0 0.0
        %v453 = vand.u32 %v379, 4294901760
        %v454 = vsub.f32 %v379, %v453
        %v455 = vand.u32 %v454, 4294901760
        %v456 = vsub.f32 %v454, %v455
        %v457 = vand.u32 %v456, 4294901760
        %458 = vmatmul.mubr.f32.gmra.mrb[0].mxu0 %v457
        %v459 = vpop.f32.mrb[0].mxu0
        %v460 = vadd.f32 0.0, %v459
        %v461 = vpop.f32.mrb[0].mxu0
        %462 = vmatprep.mubr.f32.mxu0 0.0
        %v463 = vand.u32 %v382, 4294901760
        %v464 = vsub.f32 %v382, %v463
        %v465 = vand.u32 %v464, 4294901760
        %v466 = vsub.f32 %v464, %v465
        %v467 = vand.u32 %v466, 4294901760
        %468 = vmatmul.mubr.f32.gmra.mrb[0].mxu0 %v467
        %v469 = vpop.f32.mrb[0].mxu0
        %v470 = vadd.f32 0.0, %v469
        %v471 = vpop.f32.mrb[0].mxu0
        %472 = vdwg.mxu0
        %473 = vmatprep.subr.mxu0 0.0
        %v474 = vand.u32 %v341, 4294901760
        %v475 = vsub.f32 %v341, %v474
        %v476 = vand.u32 %v475, 4294901760
        %v477 = vsub.f32 %v475, %v476
        %v478 = vand.u32 %v477, 4294901760
        %479 = vmatpush1.msra.mxu0 %v478
        %480 = vmatprep.subr.mxu0 0.0
        %v481 = vand.u32 %v342, 4294901760
        %v482 = vsub.f32 %v342, %v481
        %v483 = vand.u32 %v482, 4294901760
        %v484 = vsub.f32 %v482, %v483
        %v485 = vand.u32 %v484, 4294901760
        %486 = vmatpush1.msra.mxu0 %v485
        %487 = vmatprep.subr.mxu0 0.0
        %v488 = vand.u32 %v343, 4294901760
        %v489 = vsub.f32 %v343, %v488
        %v490 = vand.u32 %v489, 4294901760
        %v491 = vsub.f32 %v489, %v490
        %v492 = vand.u32 %v491, 4294901760
        %493 = vmatpush1.msra.mxu0 %v492
        %494 = vmatprep.subr.mxu0 0.0
        %v495 = vand.u32 %v344, 4294901760
        %v496 = vsub.f32 %v344, %v495
        %v497 = vand.u32 %v496, 4294901760
        %v498 = vsub.f32 %v496, %v497
        %v499 = vand.u32 %v498, 4294901760
        %500 = vmatpush1.msra.mxu0 %v499
        %501 = vmatprep.subr.mxu0 0.0
        %502 = vmatpush1.msra.mxu0 0.0
        %503 = vmatprep.subr.mxu0 0.0
        %504 = vmatpush1.msra.mxu0 0.0
        %505 = vmatprep.subr.mxu0 0.0
        %506 = vmatpush1.msra.mxu0 0.0
        %507 = vmatprep.subr.mxu0 0.0
        %508 = vmatpush1.msra.mxu0 0.0
        %509 = vmatprep.subr.mxu0 0.0
        %510 = vmatpush1.msra.mxu0 0.0
        %511 = vmatprep.subr.mxu0 0.0
        %512 = vmatpush1.msra.mxu0 0.0
        %513 = vmatprep.subr.mxu0 0.0
        %514 = vmatpush1.msra.mxu0 0.0
        %515 = vmatprep.subr.mxu0 0.0
        %516 = vmatpush1.msra.mxu0 0.0
        %517 = vmatprep.subr.mxu0 0.0
        %518 = vmatpush1.msra.mxu0 0.0
        %519 = vmatprep.subr.mxu0 0.0
        %520 = vmatpush1.msra.mxu0 0.0
        %521 = vmatprep.subr.mxu0 0.0
        %522 = vmatpush1.msra.mxu0 0.0
        %523 = vmatprep.subr.mxu0 0.0
        %524 = vmatpush1.msra.mxu0 0.0
        %525 = vmatprep.subr.mxu0 0.0
        %526 = vmatpush1.msra.mxu0 0.0
        %527 = vmatprep.subr.mxu0 0.0
        %528 = vmatpush1.msra.mxu0 0.0
        %529 = vmatprep.subr.mxu0 0.0
        %530 = vmatpush1.msra.mxu0 0.0
        %531 = vmatprep.subr.mxu0 0.0
        %532 = vmatpush1.msra.mxu0 0.0
        %533 = vmatprep.subr.mxu0 0.0
        %534 = vmatpush1.msra.mxu0 0.0
        %535 = vmatprep.subr.mxu0 0.0
        %536 = vmatpush1.msra.mxu0 0.0
        %537 = vmatprep.subr.mxu0 0.0
        %538 = vmatpush1.msra.mxu0 0.0
        %539 = vmatprep.subr.mxu0 0.0
        %540 = vmatpush1.msra.mxu0 0.0
        %541 = vmatprep.subr.mxu0 0.0
        %542 = vmatpush1.msra.mxu0 0.0
        %543 = vmatprep.subr.mxu0 0.0
        %544 = vmatpush1.msra.mxu0 0.0
        %545 = vmatprep.subr.mxu0 0.0
        %546 = vmatpush1.msra.mxu0 0.0
        %547 = vmatprep.subr.mxu0 0.0
        %548 = vmatpush1.msra.mxu0 0.0
        %549 = vmatprep.subr.mxu0 0.0
        %550 = vmatpush1.msra.mxu0 0.0
        %551 = vmatprep.subr.mxu0 0.0
        %552 = vmatpush1.msra.mxu0 0.0
        %553 = vmatprep.subr.mxu0 0.0
        %554 = vmatpush1.msra.mxu0 0.0
        %555 = vmatprep.subr.mxu0 0.0
        %556 = vmatpush1.msra.mxu0 0.0
        %557 = vmatprep.mubr.f32.mxu0 0.0
        %v558 = vand.u32 %v379, 4294901760
        %559 = vmatmul.mubr.f32.gmra.mrb[0].mxu0 %v558
        %v560 = vpop.f32.mrb[0].mxu0
        %v561 = vadd.f32 %v460, %v560
        %v562 = vpop.f32.mrb[0].mxu0
        %563 = vmatprep.mubr.f32.mxu0 0.0
        %v564 = vand.u32 %v382, 4294901760
        %565 = vmatmul.mubr.f32.gmra.mrb[0].mxu0 %v564
        %v566 = vpop.f32.mrb[0].mxu0
        %v567 = vadd.f32 %v470, %v566
        %v568 = vpop.f32.mrb[0].mxu0
        %569 = vdwg.mxu0
        %570 = vmatprep.subr.mxu0 0.0
        %v571 = vand.u32 %v341, 4294901760
        %v572 = vsub.f32 %v341, %v571
        %573 = vmatpush1.msra.mxu0 %v572
        %574 = vmatprep.subr.mxu0 0.0
        %v575 = vand.u32 %v342, 4294901760
        %v576 = vsub.f32 %v342, %v575
        %577 = vmatpush1.msra.mxu0 %v576
        %578 = vmatprep.subr.mxu0 0.0
        %v579 = vand.u32 %v343, 4294901760
        %v580 = vsub.f32 %v343, %v579
        %581 = vmatpush1.msra.mxu0 %v580
        %582 = vmatprep.subr.mxu0 0.0
        %v583 = vand.u32 %v344, 4294901760
        %v584 = vsub.f32 %v344, %v583
        %585 = vmatpush1.msra.mxu0 %v584
        %586 = vmatprep.subr.mxu0 0.0
        %587 = vmatpush1.msra.mxu0 0.0
        %588 = vmatprep.subr.mxu0 0.0
        %589 = vmatpush1.msra.mxu0 0.0
        %590 = vmatprep.subr.mxu0 0.0
        %591 = vmatpush1.msra.mxu0 0.0
        %592 = vmatprep.subr.mxu0 0.0
        %593 = vmatpush1.msra.mxu0 0.0
        %594 = vmatprep.subr.mxu0 0.0
        %595 = vmatpush1.msra.mxu0 0.0
        %596 = vmatprep.subr.mxu0 0.0
        %597 = vmatpush1.msra.mxu0 0.0
        %598 = vmatprep.subr.mxu0 0.0
        %599 = vmatpush1.msra.mxu0 0.0
        %600 = vmatprep.subr.mxu0 0.0
        %601 = vmatpush1.msra.mxu0 0.0
        %602 = vmatprep.subr.mxu0 0.0
        %603 = vmatpush1.msra.mxu0 0.0
        %604 = vmatprep.subr.mxu0 0.0
        %605 = vmatpush1.msra.mxu0 0.0
        %606 = vmatprep.subr.mxu0 0.0
        %607 = vmatpush1.msra.mxu0 0.0
        %608 = vmatprep.subr.mxu0 0.0
        %609 = vmatpush1.msra.mxu0 0.0
        %610 = vmatprep.subr.mxu0 0.0
        %611 = vmatpush1.msra.mxu0 0.0
        %612 = vmatprep.subr.mxu0 0.0
        %613 = vmatpush1.msra.mxu0 0.0
        %614 = vmatprep.subr.mxu0 0.0
        %615 = vmatpush1.msra.mxu0 0.0
        %616 = vmatprep.subr.mxu0 0.0
        %617 = vmatpush1.msra.mxu0 0.0
        %618 = vmatprep.subr.mxu0 0.0
        %619 = vmatpush1.msra.mxu0 0.0
        %620 = vmatprep.subr.mxu0 0.0
        %621 = vmatpush1.msra.mxu0 0.0
        %622 = vmatprep.subr.mxu0 0.0
        %623 = vmatpush1.msra.mxu0 0.0
        %624 = vmatprep.subr.mxu0 0.0
        %625 = vmatpush1.msra.mxu0 0.0
        %626 = vmatprep.subr.mxu0 0.0
        %627 = vmatpush1.msra.mxu0 0.0
        %628 = vmatprep.subr.mxu0 0.0
        %629 = vmatpush1.msra.mxu0 0.0
        %630 = vmatprep.subr.mxu0 0.0
        %631 = vmatpush1.msra.mxu0 0.0
        %632 = vmatprep.subr.mxu0 0.0
        %633 = vmatpush1.msra.mxu0 0.0
        %634 = vmatprep.subr.mxu0 0.0
        %635 = vmatpush1.msra.mxu0 0.0
        %636 = vmatprep.subr.mxu0 0.0
        %637 = vmatpush1.msra.mxu0 0.0
        %638 = vmatprep.subr.mxu0 0.0
        %639 = vmatpush1.msra.mxu0 0.0
        %640 = vmatprep.subr.mxu0 0.0
        %641 = vmatpush1.msra.mxu0 0.0
        %642 = vmatprep.mubr.f32.mxu0 0.0
        %v643 = vand.u32 %v379, 4294901760
        %v644 = vsub.f32 %v379, %v643
        %645 = vmatmul.mubr.f32.gmra.mrb[0].mxu0 %v644
        %v646 = vpop.f32.mrb[0].mxu0
        %v647 = vadd.f32 %v561, %v646
        %v648 = vpop.f32.mrb[0].mxu0
        %649 = vmatprep.mubr.f32.mxu0 0.0
        %v650 = vand.u32 %v382, 4294901760
        %v651 = vsub.f32 %v382, %v650
        %652 = vmatmul.mubr.f32.gmra.mrb[0].mxu0 %v651
        %v653 = vpop.f32.mrb[0].mxu0
        %v654 = vadd.f32 %v567, %v653
        %v655 = vpop.f32.mrb[0].mxu0
        %656 = vdwg.mxu0
        %657 = vmatprep.subr.mxu0 0.0
        %v658 = vand.u32 %v341, 4294901760
        %659 = vmatpush1.msra.mxu0 %v658
        %660 = vmatprep.subr.mxu0 0.0
        %v661 = vand.u32 %v342, 4294901760
        %662 = vmatpush1.msra.mxu0 %v661
        %663 = vmatprep.subr.mxu0 0.0
        %v664 = vand.u32 %v343, 4294901760
        %665 = vmatpush1.msra.mxu0 %v664
        %666 = vmatprep.subr.mxu0 0.0
        %v667 = vand.u32 %v344, 4294901760
        %668 = vmatpush1.msra.mxu0 %v667
        %669 = vmatprep.subr.mxu0 0.0
        %670 = vmatpush1.msra.mxu0 0.0
        %671 = vmatprep.subr.mxu0 0.0
        %672 = vmatpush1.msra.mxu0 0.0
        %673 = vmatprep.subr.mxu0 0.0
        %674 = vmatpush1.msra.mxu0 0.0
        %675 = vmatprep.subr.mxu0 0.0
        %676 = vmatpush1.msra.mxu0 0.0
        %677 = vmatprep.subr.mxu0 0.0
        %678 = vmatpush1.msra.mxu0 0.0
        %679 = vmatprep.subr.mxu0 0.0
        %680 = vmatpush1.msra.mxu0 0.0
        %681 = vmatprep.subr.mxu0 0.0
        %682 = vmatpush1.msra.mxu0 0.0
        %683 = vmatprep.subr.mxu0 0.0
        %684 = vmatpush1.msra.mxu0 0.0
        %685 = vmatprep.subr.mxu0 0.0
        %686 = vmatpush1.msra.mxu0 0.0
        %687 = vmatprep.subr.mxu0 0.0
        %688 = vmatpush1.msra.mxu0 0.0
        %689 = vmatprep.subr.mxu0 0.0
        %690 = vmatpush1.msra.mxu0 0.0
        %691 = vmatprep.subr.mxu0 0.0
        %692 = vmatpush1.msra.mxu0 0.0
        %693 = vmatprep.subr.mxu0 0.0
        %694 = vmatpush1.msra.mxu0 0.0
        %695 = vmatprep.subr.mxu0 0.0
        %696 = vmatpush1.msra.mxu0 0.0
        %697 = vmatprep.subr.mxu0 0.0
        %698 = vmatpush1.msra.mxu0 0.0
        %699 = vmatprep.subr.mxu0 0.0
        %700 = vmatpush1.msra.mxu0 0.0
        %701 = vmatprep.subr.mxu0 0.0
        %702 = vmatpush1.msra.mxu0 0.0
        %703 = vmatprep.subr.mxu0 0.0
        %704 = vmatpush1.msra.mxu0 0.0
        %705 = vmatprep.subr.mxu0 0.0
        %706 = vmatpush1.msra.mxu0 0.0
        %707 = vmatprep.subr.mxu0 0.0
        %708 = vmatpush1.msra.mxu0 0.0
        %709 = vmatprep.subr.mxu0 0.0
        %710 = vmatpush1.msra.mxu0 0.0
        %711 = vmatprep.subr.mxu0 0.0
        %712 = vmatpush1.msra.mxu0 0.0
        %713 = vmatprep.subr.mxu0 0.0
        %714 = vmatpush1.msra.mxu0 0.0
        %715 = vmatprep.subr.mxu0 0.0
        %716 = vmatpush1.msra.mxu0 0.0
        %717 = vmatprep.subr.mxu0 0.0
        %718 = vmatpush1.msra.mxu0 0.0
        %719 = vmatprep.subr.mxu0 0.0
        %720 = vmatpush1.msra.mxu0 0.0
        %721 = vmatprep.subr.mxu0 0.0
        %722 = vmatpush1.msra.mxu0 0.0
        %723 = vmatprep.subr.mxu0 0.0
        %724 = vmatpush1.msra.mxu0 0.0
        %725 = vmatprep.mubr.f32.mxu0 0.0
        %v726 = vand.u32 %v379, 4294901760
        %v727 = vsub.f32 %v379, %v726
        %v728 = vand.u32 %v727, 4294901760
        %729 = vmatmul.mubr.f32.gmra.mrb[0].mxu0 %v728
        %v730 = vpop.f32.mrb[0].mxu0
        %v731 = vadd.f32 %v647, %v730
        %v732 = vpop.f32.mrb[0].mxu0
        %733 = vmatprep.mubr.f32.mxu0 0.0
        %v734 = vand.u32 %v382, 4294901760
        %v735 = vsub.f32 %v382, %v734
        %v736 = vand.u32 %v735, 4294901760
        %737 = vmatmul.mubr.f32.gmra.mrb[0].mxu0 %v736
        %v738 = vpop.f32.mrb[0].mxu0
        %v739 = vadd.f32 %v654, %v738
        %v740 = vpop.f32.mrb[0].mxu0
        %741 = vdwg.mxu0
        %742 = vmatprep.subr.mxu0 0.0
        %v743 = vand.u32 %v341, 4294901760
        %v744 = vsub.f32 %v341, %v743
        %v745 = vand.u32 %v744, 4294901760
        %746 = vmatpush1.msra.mxu0 %v745
        %747 = vmatprep.subr.mxu0 0.0
        %v748 = vand.u32 %v342, 4294901760
        %v749 = vsub.f32 %v342, %v748
        %v750 = vand.u32 %v749, 4294901760
        %751 = vmatpush1.msra.mxu0 %v750
        %752 = vmatprep.subr.mxu0 0.0
        %v753 = vand.u32 %v343, 4294901760
        %v754 = vsub.f32 %v343, %v753
        %v755 = vand.u32 %v754, 4294901760
        %756 = vmatpush1.msra.mxu0 %v755
        %757 = vmatprep.subr.mxu0 0.0
        %v758 = vand.u32 %v344, 4294901760
        %v759 = vsub.f32 %v344, %v758
        %v760 = vand.u32 %v759, 4294901760
        %761 = vmatpush1.msra.mxu0 %v760
        %762 = vmatprep.subr.mxu0 0.0
        %763 = vmatpush1.msra.mxu0 0.0
        %764 = vmatprep.subr.mxu0 0.0
        %765 = vmatpush1.msra.mxu0 0.0
        %766 = vmatprep.subr.mxu0 0.0
        %767 = vmatpush1.msra.mxu0 0.0
        %768 = vmatprep.subr.mxu0 0.0
        %769 = vmatpush1.msra.mxu0 0.0
        %770 = vmatprep.subr.mxu0 0.0
        %771 = vmatpush1.msra.mxu0 0.0
        %772 = vmatprep.subr.mxu0 0.0
        %773 = vmatpush1.msra.mxu0 0.0
        %774 = vmatprep.subr.mxu0 0.0
        %775 = vmatpush1.msra.mxu0 0.0
        %776 = vmatprep.subr.mxu0 0.0
        %777 = vmatpush1.msra.mxu0 0.0
        %778 = vmatprep.subr.mxu0 0.0
        %779 = vmatpush1.msra.mxu0 0.0
        %780 = vmatprep.subr.mxu0 0.0
        %781 = vmatpush1.msra.mxu0 0.0
        %782 = vmatprep.subr.mxu0 0.0
        %783 = vmatpush1.msra.mxu0 0.0
        %784 = vmatprep.subr.mxu0 0.0
        %785 = vmatpush1.msra.mxu0 0.0
        %786 = vmatprep.subr.mxu0 0.0
        %787 = vmatpush1.msra.mxu0 0.0
        %788 = vmatprep.subr.mxu0 0.0
        %789 = vmatpush1.msra.mxu0 0.0
        %790 = vmatprep.subr.mxu0 0.0
        %791 = vmatpush1.msra.mxu0 0.0
        %792 = vmatprep.subr.mxu0 0.0
        %793 = vmatpush1.msra.mxu0 0.0
        %794 = vmatprep.subr.mxu0 0.0
        %795 = vmatpush1.msra.mxu0 0.0
        %796 = vmatprep.subr.mxu0 0.0
        %797 = vmatpush1.msra.mxu0 0.0
        %798 = vmatprep.subr.mxu0 0.0
        %799 = vmatpush1.msra.mxu0 0.0
        %800 = vmatprep.subr.mxu0 0.0
        %801 = vmatpush1.msra.mxu0 0.0
        %802 = vmatprep.subr.mxu0 0.0
        %803 = vmatpush1.msra.mxu0 0.0
        %804 = vmatprep.subr.mxu0 0.0
        %805 = vmatpush1.msra.mxu0 0.0
        %806 = vmatprep.subr.mxu0 0.0
        %807 = vmatpush1.msra.mxu0 0.0
        %808 = vmatprep.subr.mxu0 0.0
        %809 = vmatpush1.msra.mxu0 0.0
        %810 = vmatprep.subr.mxu0 0.0
        %811 = vmatpush1.msra.mxu0 0.0
        %812 = vmatprep.subr.mxu0 0.0
        %813 = vmatpush1.msra.mxu0 0.0
        %814 = vmatprep.subr.mxu0 0.0
        %815 = vmatpush1.msra.mxu0 0.0
        %816 = vmatprep.subr.mxu0 0.0
        %817 = vmatpush1.msra.mxu0 0.0
        %818 = vmatprep.mubr.f32.mxu0 0.0
        %v819 = vand.u32 %v379, 4294901760
        %820 = vmatmul.mubr.f32.gmra.mrb[0].mxu0 %v819
        %v821 = vpop.f32.mrb[0].mxu0
        %v822 = vadd.f32 %v731, %v821
        %v823 = vpop.f32.mrb[0].mxu0
        %824 = vmatprep.mubr.f32.mxu0 0.0
        %v825 = vand.u32 %v382, 4294901760
        %826 = vmatmul.mubr.f32.gmra.mrb[0].mxu0 %v825
        %v827 = vpop.f32.mrb[0].mxu0
        %v828 = vadd.f32 %v739, %v827
        %v829 = vpop.f32.mrb[0].mxu0
        %830 = vdwg.mxu0
        %831 = vmatprep.subr.mxu0 0.0
        %v832 = vand.u32 %v341, 4294901760
        %833 = vmatpush1.msra.mxu0 %v832
        %834 = vmatprep.subr.mxu0 0.0
        %v835 = vand.u32 %v342, 4294901760
        %836 = vmatpush1.msra.mxu0 %v835
        %837 = vmatprep.subr.mxu0 0.0
        %v838 = vand.u32 %v343, 4294901760
        %839 = vmatpush1.msra.mxu0 %v838
        %840 = vmatprep.subr.mxu0 0.0
        %v841 = vand.u32 %v344, 4294901760
        %842 = vmatpush1.msra.mxu0 %v841
        %843 = vmatprep.subr.mxu0 0.0
        %844 = vmatpush1.msra.mxu0 0.0
        %845 = vmatprep.subr.mxu0 0.0
        %846 = vmatpush1.msra.mxu0 0.0
        %847 = vmatprep.subr.mxu0 0.0
        %848 = vmatpush1.msra.mxu0 0.0
        %849 = vmatprep.subr.mxu0 0.0
        %850 = vmatpush1.msra.mxu0 0.0
        %851 = vmatprep.subr.mxu0 0.0
        %852 = vmatpush1.msra.mxu0 0.0
        %853 = vmatprep.subr.mxu0 0.0
        %854 = vmatpush1.msra.mxu0 0.0
        %855 = vmatprep.subr.mxu0 0.0
        %856 = vmatpush1.msra.mxu0 0.0
        %857 = vmatprep.subr.mxu0 0.0
        %858 = vmatpush1.msra.mxu0 0.0
        %859 = vmatprep.subr.mxu0 0.0
        %860 = vmatpush1.msra.mxu0 0.0
        %861 = vmatprep.subr.mxu0 0.0
        %862 = vmatpush1.msra.mxu0 0.0
        %863 = vmatprep.subr.mxu0 0.0
        %864 = vmatpush1.msra.mxu0 0.0
        %865 = vmatprep.subr.mxu0 0.0
        %866 = vmatpush1.msra.mxu0 0.0
        %867 = vmatprep.subr.mxu0 0.0
        %868 = vmatpush1.msra.mxu0 0.0
        %869 = vmatprep.subr.mxu0 0.0
        %870 = vmatpush1.msra.mxu0 0.0
        %871 = vmatprep.subr.mxu0 0.0
        %872 = vmatpush1.msra.mxu0 0.0
        %873 = vmatprep.subr.mxu0 0.0
        %874 = vmatpush1.msra.mxu0 0.0
        %875 = vmatprep.subr.mxu0 0.0
        %876 = vmatpush1.msra.mxu0 0.0
        %877 = vmatprep.subr.mxu0 0.0
        %878 = vmatpush1.msra.mxu0 0.0
        %879 = vmatprep.subr.mxu0 0.0
        %880 = vmatpush1.msra.mxu0 0.0
        %881 = vmatprep.subr.mxu0 0.0
        %882 = vmatpush1.msra.mxu0 0.0
        %883 = vmatprep.subr.mxu0 0.0
        %884 = vmatpush1.msra.mxu0 0.0
        %885 = vmatprep.subr.mxu0 0.0
        %886 = vmatpush1.msra.mxu0 0.0
        %887 = vmatprep.subr.mxu0 0.0
        %888 = vmatpush1.msra.mxu0 0.0
        %889 = vmatprep.subr.mxu0 0.0
        %890 = vmatpush1.msra.mxu0 0.0
        %891 = vmatprep.subr.mxu0 0.0
        %892 = vmatpush1.msra.mxu0 0.0
        %893 = vmatprep.subr.mxu0 0.0
        %894 = vmatpush1.msra.mxu0 0.0
        %895 = vmatprep.subr.mxu0 0.0
        %896 = vmatpush1.msra.mxu0 0.0
        %897 = vmatprep.subr.mxu0 0.0
        %898 = vmatpush1.msra.mxu0 0.0
        %899 = vmatprep.mubr.f32.mxu0 0.0
        %v900 = vand.u32 %v379, 4294901760
        %901 = vmatmul.mubr.f32.gmra.mrb[0].mxu0 %v900
        %v902 = vpop.f32.mrb[0].mxu0
        %v903 = vadd.f32 %v822, %v902
        %v904 = vpop.f32.mrb[0].mxu0
        %905 = vmatprep.mubr.f32.mxu0 0.0
        %v906 = vand.u32 %v382, 4294901760
        %907 = vmatmul.mubr.f32.gmra.mrb[0].mxu0 %v906
        %v908 = vpop.f32.mrb[0].mxu0
        %v909 = vadd.f32 %v828, %v908
        %v910 = vpop.f32.mrb[0].mxu0
        %911 = vdwg.mxu0
        %v912 = vadd.f32 %v375, %v903
        %v913 = vadd.f32 %v376, %v909
        %v914 = vxor.u32 %v912, 2147483648
        %v915 = vxor.u32 %v913, 2147483648
        %v916 = vmul.f32 %v914, 1.442695
        %v917 = vpow.pop %v916
        %v918 = vmul.f32 %v915, 1.442695
        %v919 = vpow.pop %v918
        %v920 = vadd.f32 %v917, 1.0
        %v921 = vadd.f32 %v919, 1.0
        %v922 = vrcp.pop %v920
        %v923 = vmul.f32 1.0, %v922
        %v924 = vrcp.pop %v921
        %v925 = vmul.f32 1.0, %v924
        %v926 = vtanh.pop %v912
        %v927 = vtanh.pop %v913
        %930 = vrot.lane.b32.xlu0 %v369, 32
        %v931 = vpop.permute.xlu0 %930
        %932 = vrot.lane.b32.xlu0 %v370, 32
        %v933 = vpop.permute.xlu0 %932
        %v936 = vmul.f32 %v923, %v931
        %v937 = vmul.f32 %v925, %v933
        %940 = vrot.lane.b32.xlu0 %v926, 64
        %v941 = vpop.permute.xlu0 %940
        %942 = vrot.lane.b32.xlu0 %v927, 64
        %v943 = vpop.permute.xlu0 %942
        %v946 = vmul.f32 %v923, %v941
        %v947 = vmul.f32 %v925, %v943
        %950 = vrot.lane.b32.xlu0 %v946, 32
        %v951 = vpop.permute.xlu0 %950
        %952 = vrot.lane.b32.xlu0 %v947, 32
        %v953 = vpop.permute.xlu0 %952
        %v956 = vadd.f32 %v936, %v951
        %v957 = vadd.f32 %v937, %v953
        %v958 = vtanh.pop %v956
        %v959 = vtanh.pop %v957
        %962 = vrot.lane.b32.xlu0 %v958, 64
        %v963 = vpop.permute.xlu0 %962
        %964 = vrot.lane.b32.xlu0 %v959, 64
        %v965 = vpop.permute.xlu0 %964
        %v968 = vmul.f32 %v923, %v963
        %v969 = vmul.f32 %v925, %v965
        %s970 = scalar_select %p374, 1, 0
        %v971 = vstv %s970
        %vm972 = vcmp.eq.s32.totalorder %v971, 1
        %973 = vrot.lane.b32.xlu0 %v364, 96
        %v974 = vpop.permute.xlu0 %973
        %975 = vrot.lane.b32.xlu0 %v365, 96
        %v976 = vpop.permute.xlu0 %975
        %v979 = vsel %vm972, %v968, %v974
        %v980 = vsel %vm972, %v969, %v976
        %v981 = vsel %vm972, %v956, %v931
        %v982 = vsel %vm972, %v957, %v933
        %v984 = vsel %vm377, %v367, 0
        %v987 = vsel %vm377, %v368, 0
        %989 = vmatprep.subr.mxu0 0.0
        %v990 = vand.u32 %v349, 4294901760
        %991 = vmatpush1.msra.mxu0 %v990
        %992 = vmatprep.subr.mxu0 0.0
        %v993 = vand.u32 %v350, 4294901760
        %994 = vmatpush1.msra.mxu0 %v993
        %995 = vmatprep.subr.mxu0 0.0
        %v996 = vand.u32 %v351, 4294901760
        %997 = vmatpush1.msra.mxu0 %v996
        %998 = vmatprep.subr.mxu0 0.0
        %v999 = vand.u32 %v352, 4294901760
        %1000 = vmatpush1.msra.mxu0 %v999
        %1001 = vmatprep.subr.mxu0 0.0
        %1002 = vmatpush1.msra.mxu0 0.0
        %1003 = vmatprep.subr.mxu0 0.0
        %1004 = vmatpush1.msra.mxu0 0.0
        %1005 = vmatprep.subr.mxu0 0.0
        %1006 = vmatpush1.msra.mxu0 0.0
        %1007 = vmatprep.subr.mxu0 0.0
        %1008 = vmatpush1.msra.mxu0 0.0
        %1009 = vmatprep.subr.mxu0 0.0
        %1010 = vmatpush1.msra.mxu0 0.0
        %1011 = vmatprep.subr.mxu0 0.0
        %1012 = vmatpush1.msra.mxu0 0.0
        %1013 = vmatprep.subr.mxu0 0.0
        %1014 = vmatpush1.msra.mxu0 0.0
        %1015 = vmatprep.subr.mxu0 0.0
        %1016 = vmatpush1.msra.mxu0 0.0
        %1017 = vmatprep.subr.mxu0 0.0
        %1018 = vmatpush1.msra.mxu0 0.0
        %1019 = vmatprep.subr.mxu0 0.0
        %1020 = vmatpush1.msra.mxu0 0.0
        %1021 = vmatprep.subr.mxu0 0.0
        %1022 = vmatpush1.msra.mxu0 0.0
        %1023 = vmatprep.subr.mxu0 0.0
        %1024 = vmatpush1.msra.mxu0 0.0
        %1025 = vmatprep.subr.mxu0 0.0
        %1026 = vmatpush1.msra.mxu0 0.0
        %1027 = vmatprep.subr.mxu0 0.0
        %1028 = vmatpush1.msra.mxu0 0.0
        %1029 = vmatprep.subr.mxu0 0.0
        %1030 = vmatpush1.msra.mxu0 0.0
        %1031 = vmatprep.subr.mxu0 0.0
        %1032 = vmatpush1.msra.mxu0 0.0
        %1033 = vmatprep.subr.mxu0 0.0
        %1034 = vmatpush1.msra.mxu0 0.0
        %1035 = vmatprep.subr.mxu0 0.0
        %1036 = vmatpush1.msra.mxu0 0.0
        %1037 = vmatprep.subr.mxu0 0.0
        %1038 = vmatpush1.msra.mxu0 0.0
        %1039 = vmatprep.subr.mxu0 0.0
        %1040 = vmatpush1.msra.mxu0 0.0
        %1041 = vmatprep.subr.mxu0 0.0
        %1042 = vmatpush1.msra.mxu0 0.0
        %1043 = vmatprep.subr.mxu0 0.0
        %1044 = vmatpush1.msra.mxu0 0.0
        %1045 = vmatprep.subr.mxu0 0.0
        %1046 = vmatpush1.msra.mxu0 0.0
        %1047 = vmatprep.subr.mxu0 0.0
        %1048 = vmatpush1.msra.mxu0 0.0
        %1049 = vmatprep.subr.mxu0 0.0
        %1050 = vmatpush1.msra.mxu0 0.0
        %1051 = vmatprep.subr.mxu0 0.0
        %1052 = vmatpush1.msra.mxu0 0.0
        %1053 = vmatprep.subr.mxu0 0.0
        %1054 = vmatpush1.msra.mxu0 0.0
        %1055 = vmatprep.subr.mxu0 0.0
        %1056 = vmatpush1.msra.mxu0 0.0
        %1057 = vmatprep.mubr.f32.mxu0 0.0
        %v1058 = vand.u32 %v984, 4294901760
        %v1059 = vsub.f32 %v984, %v1058
        %v1060 = vand.u32 %v1059, 4294901760
        %v1061 = vsub.f32 %v1059, %v1060
        %v1062 = vand.u32 %v1061, 4294901760
        %1063 = vmatmul.mubr.f32.gmra.mrb[0].mxu0 %v1062
        %v1064 = vpop.f32.mrb[0].mxu0
        %v1065 = vadd.f32 0.0, %v1064
        %v1066 = vpop.f32.mrb[0].mxu0
        %1067 = vmatprep.mubr.f32.mxu0 0.0
        %v1068 = vand.u32 %v987, 4294901760
        %v1069 = vsub.f32 %v987, %v1068
        %v1070 = vand.u32 %v1069, 4294901760
        %v1071 = vsub.f32 %v1069, %v1070
        %v1072 = vand.u32 %v1071, 4294901760
        %1073 = vmatmul.mubr.f32.gmra.mrb[0].mxu0 %v1072
        %v1074 = vpop.f32.mrb[0].mxu0
        %v1075 = vadd.f32 0.0, %v1074
        %v1076 = vpop.f32.mrb[0].mxu0
        %1077 = vdwg.mxu0
        %1078 = vmatprep.subr.mxu0 0.0
        %v1079 = vand.u32 %v349, 4294901760
        %v1080 = vsub.f32 %v349, %v1079
        %v1081 = vand.u32 %v1080, 4294901760
        %v1082 = vsub.f32 %v1080, %v1081
        %v1083 = vand.u32 %v1082, 4294901760
        %1084 = vmatpush1.msra.mxu0 %v1083
        %1085 = vmatprep.subr.mxu0 0.0
        %v1086 = vand.u32 %v350, 4294901760
        %v1087 = vsub.f32 %v350, %v1086
        %v1088 = vand.u32 %v1087, 4294901760
        %v1089 = vsub.f32 %v1087, %v1088
        %v1090 = vand.u32 %v1089, 4294901760
        %1091 = vmatpush1.msra.mxu0 %v1090
        %1092 = vmatprep.subr.mxu0 0.0
        %v1093 = vand.u32 %v351, 4294901760
        %v1094 = vsub.f32 %v351, %v1093
        %v1095 = vand.u32 %v1094, 4294901760
        %v1096 = vsub.f32 %v1094, %v1095
        %v1097 = vand.u32 %v1096, 4294901760
        %1098 = vmatpush1.msra.mxu0 %v1097
        %1099 = vmatprep.subr.mxu0 0.0
        %v1100 = vand.u32 %v352, 4294901760
        %v1101 = vsub.f32 %v352, %v1100
        %v1102 = vand.u32 %v1101, 4294901760
        %v1103 = vsub.f32 %v1101, %v1102
        %v1104 = vand.u32 %v1103, 4294901760
        %1105 = vmatpush1.msra.mxu0 %v1104
        %1106 = vmatprep.subr.mxu0 0.0
        %1107 = vmatpush1.msra.mxu0 0.0
        %1108 = vmatprep.subr.mxu0 0.0
        %1109 = vmatpush1.msra.mxu0 0.0
        %1110 = vmatprep.subr.mxu0 0.0
        %1111 = vmatpush1.msra.mxu0 0.0
        %1112 = vmatprep.subr.mxu0 0.0
        %1113 = vmatpush1.msra.mxu0 0.0
        %1114 = vmatprep.subr.mxu0 0.0
        %1115 = vmatpush1.msra.mxu0 0.0
        %1116 = vmatprep.subr.mxu0 0.0
        %1117 = vmatpush1.msra.mxu0 0.0
        %1118 = vmatprep.subr.mxu0 0.0
        %1119 = vmatpush1.msra.mxu0 0.0
        %1120 = vmatprep.subr.mxu0 0.0
        %1121 = vmatpush1.msra.mxu0 0.0
        %1122 = vmatprep.subr.mxu0 0.0
        %1123 = vmatpush1.msra.mxu0 0.0
        %1124 = vmatprep.subr.mxu0 0.0
        %1125 = vmatpush1.msra.mxu0 0.0
        %1126 = vmatprep.subr.mxu0 0.0
        %1127 = vmatpush1.msra.mxu0 0.0
        %1128 = vmatprep.subr.mxu0 0.0
        %1129 = vmatpush1.msra.mxu0 0.0
        %1130 = vmatprep.subr.mxu0 0.0
        %1131 = vmatpush1.msra.mxu0 0.0
        %1132 = vmatprep.subr.mxu0 0.0
        %1133 = vmatpush1.msra.mxu0 0.0
        %1134 = vmatprep.subr.mxu0 0.0
        %1135 = vmatpush1.msra.mxu0 0.0
        %1136 = vmatprep.subr.mxu0 0.0
        %1137 = vmatpush1.msra.mxu0 0.0
        %1138 = vmatprep.subr.mxu0 0.0
        %1139 = vmatpush1.msra.mxu0 0.0
        %1140 = vmatprep.subr.mxu0 0.0
        %1141 = vmatpush1.msra.mxu0 0.0
        %1142 = vmatprep.subr.mxu0 0.0
        %1143 = vmatpush1.msra.mxu0 0.0
        %1144 = vmatprep.subr.mxu0 0.0
        %1145 = vmatpush1.msra.mxu0 0.0
        %1146 = vmatprep.subr.mxu0 0.0
        %1147 = vmatpush1.msra.mxu0 0.0
        %1148 = vmatprep.subr.mxu0 0.0
        %1149 = vmatpush1.msra.mxu0 0.0
        %1150 = vmatprep.subr.mxu0 0.0
        %1151 = vmatpush1.msra.mxu0 0.0
        %1152 = vmatprep.subr.mxu0 0.0
        %1153 = vmatpush1.msra.mxu0 0.0
        %1154 = vmatprep.subr.mxu0 0.0
        %1155 = vmatpush1.msra.mxu0 0.0
        %1156 = vmatprep.subr.mxu0 0.0
        %1157 = vmatpush1.msra.mxu0 0.0
        %1158 = vmatprep.subr.mxu0 0.0
        %1159 = vmatpush1.msra.mxu0 0.0
        %1160 = vmatprep.subr.mxu0 0.0
        %1161 = vmatpush1.msra.mxu0 0.0
        %1162 = vmatprep.mubr.f32.mxu0 0.0
        %v1163 = vand.u32 %v984, 4294901760
        %1164 = vmatmul.mubr.f32.gmra.mrb[0].mxu0 %v1163
        %v1165 = vpop.f32.mrb[0].mxu0
        %v1166 = vadd.f32 %v1065, %v1165
        %v1167 = vpop.f32.mrb[0].mxu0
        %1168 = vmatprep.mubr.f32.mxu0 0.0
        %v1169 = vand.u32 %v987, 4294901760
        %1170 = vmatmul.mubr.f32.gmra.mrb[0].mxu0 %v1169
        %v1171 = vpop.f32.mrb[0].mxu0
        %v1172 = vadd.f32 %v1075, %v1171
        %v1173 = vpop.f32.mrb[0].mxu0
        %1174 = vdwg.mxu0
        %1175 = vmatprep.subr.mxu0 0.0
        %v1176 = vand.u32 %v349, 4294901760
        %v1177 = vsub.f32 %v349, %v1176
        %1178 = vmatpush1.msra.mxu0 %v1177
        %1179 = vmatprep.subr.mxu0 0.0
        %v1180 = vand.u32 %v350, 4294901760
        %v1181 = vsub.f32 %v350, %v1180
        %1182 = vmatpush1.msra.mxu0 %v1181
        %1183 = vmatprep.subr.mxu0 0.0
        %v1184 = vand.u32 %v351, 4294901760
        %v1185 = vsub.f32 %v351, %v1184
        %1186 = vmatpush1.msra.mxu0 %v1185
        %1187 = vmatprep.subr.mxu0 0.0
        %v1188 = vand.u32 %v352, 4294901760
        %v1189 = vsub.f32 %v352, %v1188
        %1190 = vmatpush1.msra.mxu0 %v1189
        %1191 = vmatprep.subr.mxu0 0.0
        %1192 = vmatpush1.msra.mxu0 0.0
        %1193 = vmatprep.subr.mxu0 0.0
        %1194 = vmatpush1.msra.mxu0 0.0
        %1195 = vmatprep.subr.mxu0 0.0
        %1196 = vmatpush1.msra.mxu0 0.0
        %1197 = vmatprep.subr.mxu0 0.0
        %1198 = vmatpush1.msra.mxu0 0.0
        %1199 = vmatprep.subr.mxu0 0.0
        %1200 = vmatpush1.msra.mxu0 0.0
        %1201 = vmatprep.subr.mxu0 0.0
        %1202 = vmatpush1.msra.mxu0 0.0
        %1203 = vmatprep.subr.mxu0 0.0
        %1204 = vmatpush1.msra.mxu0 0.0
        %1205 = vmatprep.subr.mxu0 0.0
        %1206 = vmatpush1.msra.mxu0 0.0
        %1207 = vmatprep.subr.mxu0 0.0
        %1208 = vmatpush1.msra.mxu0 0.0
        %1209 = vmatprep.subr.mxu0 0.0
        %1210 = vmatpush1.msra.mxu0 0.0
        %1211 = vmatprep.subr.mxu0 0.0
        %1212 = vmatpush1.msra.mxu0 0.0
        %1213 = vmatprep.subr.mxu0 0.0
        %1214 = vmatpush1.msra.mxu0 0.0
        %1215 = vmatprep.subr.mxu0 0.0
        %1216 = vmatpush1.msra.mxu0 0.0
        %1217 = vmatprep.subr.mxu0 0.0
        %1218 = vmatpush1.msra.mxu0 0.0
        %1219 = vmatprep.subr.mxu0 0.0
        %1220 = vmatpush1.msra.mxu0 0.0
        %1221 = vmatprep.subr.mxu0 0.0
        %1222 = vmatpush1.msra.mxu0 0.0
        %1223 = vmatprep.subr.mxu0 0.0
        %1224 = vmatpush1.msra.mxu0 0.0
        %1225 = vmatprep.subr.mxu0 0.0
        %1226 = vmatpush1.msra.mxu0 0.0
        %1227 = vmatprep.subr.mxu0 0.0
        %1228 = vmatpush1.msra.mxu0 0.0
        %1229 = vmatprep.subr.mxu0 0.0
        %1230 = vmatpush1.msra.mxu0 0.0
        %1231 = vmatprep.subr.mxu0 0.0
        %1232 = vmatpush1.msra.mxu0 0.0
        %1233 = vmatprep.subr.mxu0 0.0
        %1234 = vmatpush1.msra.mxu0 0.0
        %1235 = vmatprep.subr.mxu0 0.0
        %1236 = vmatpush1.msra.mxu0 0.0
        %1237 = vmatprep.subr.mxu0 0.0
        %1238 = vmatpush1.msra.mxu0 0.0
        %1239 = vmatprep.subr.mxu0 0.0
        %1240 = vmatpush1.msra.mxu0 0.0
        %1241 = vmatprep.subr.mxu0 0.0
        %1242 = vmatpush1.msra.mxu0 0.0
        %1243 = vmatprep.subr.mxu0 0.0
        %1244 = vmatpush1.msra.mxu0 0.0
        %1245 = vmatprep.subr.mxu0 0.0
        %1246 = vmatpush1.msra.mxu0 0.0
        %1247 = vmatprep.mubr.f32.mxu0 0.0
        %v1248 = vand.u32 %v984, 4294901760
        %v1249 = vsub.f32 %v984, %v1248
        %1250 = vmatmul.mubr.f32.gmra.mrb[0].mxu0 %v1249
        %v1251 = vpop.f32.mrb[0].mxu0
        %v1252 = vadd.f32 %v1166, %v1251
        %v1253 = vpop.f32.mrb[0].mxu0
        %1254 = vmatprep.mubr.f32.mxu0 0.0
        %v1255 = vand.u32 %v987, 4294901760
        %v1256 = vsub.f32 %v987, %v1255
        %1257 = vmatmul.mubr.f32.gmra.mrb[0].mxu0 %v1256
        %v1258 = vpop.f32.mrb[0].mxu0
        %v1259 = vadd.f32 %v1172, %v1258
        %v1260 = vpop.f32.mrb[0].mxu0
        %1261 = vdwg.mxu0
        %1262 = vmatprep.subr.mxu0 0.0
        %v1263 = vand.u32 %v349, 4294901760
        %1264 = vmatpush1.msra.mxu0 %v1263
        %1265 = vmatprep.subr.mxu0 0.0
        %v1266 = vand.u32 %v350, 4294901760
        %1267 = vmatpush1.msra.mxu0 %v1266
        %1268 = vmatprep.subr.mxu0 0.0
        %v1269 = vand.u32 %v351, 4294901760
        %1270 = vmatpush1.msra.mxu0 %v1269
        %1271 = vmatprep.subr.mxu0 0.0
        %v1272 = vand.u32 %v352, 4294901760
        %1273 = vmatpush1.msra.mxu0 %v1272
        %1274 = vmatprep.subr.mxu0 0.0
        %1275 = vmatpush1.msra.mxu0 0.0
        %1276 = vmatprep.subr.mxu0 0.0
        %1277 = vmatpush1.msra.mxu0 0.0
        %1278 = vmatprep.subr.mxu0 0.0
        %1279 = vmatpush1.msra.mxu0 0.0
        %1280 = vmatprep.subr.mxu0 0.0
        %1281 = vmatpush1.msra.mxu0 0.0
        %1282 = vmatprep.subr.mxu0 0.0
        %1283 = vmatpush1.msra.mxu0 0.0
        %1284 = vmatprep.subr.mxu0 0.0
        %1285 = vmatpush1.msra.mxu0 0.0
        %1286 = vmatprep.subr.mxu0 0.0
        %1287 = vmatpush1.msra.mxu0 0.0
        %1288 = vmatprep.subr.mxu0 0.0
        %1289 = vmatpush1.msra.mxu0 0.0
        %1290 = vmatprep.subr.mxu0 0.0
        %1291 = vmatpush1.msra.mxu0 0.0
        %1292 = vmatprep.subr.mxu0 0.0
        %1293 = vmatpush1.msra.mxu0 0.0
        %1294 = vmatprep.subr.mxu0 0.0
        %1295 = vmatpush1.msra.mxu0 0.0
        %1296 = vmatprep.subr.mxu0 0.0
        %1297 = vmatpush1.msra.mxu0 0.0
        %1298 = vmatprep.subr.mxu0 0.0
        %1299 = vmatpush1.msra.mxu0 0.0
        %1300 = vmatprep.subr.mxu0 0.0
        %1301 = vmatpush1.msra.mxu0 0.0
        %1302 = vmatprep.subr.mxu0 0.0
        %1303 = vmatpush1.msra.mxu0 0.0
        %1304 = vmatprep.subr.mxu0 0.0
        %1305 = vmatpush1.msra.mxu0 0.0
        %1306 = vmatprep.subr.mxu0 0.0
        %1307 = vmatpush1.msra.mxu0 0.0
        %1308 = vmatprep.subr.mxu0 0.0
        %1309 = vmatpush1.msra.mxu0 0.0
        %1310 = vmatprep.subr.mxu0 0.0
        %1311 = vmatpush1.msra.mxu0 0.0
        %1312 = vmatprep.subr.mxu0 0.0
        %1313 = vmatpush1.msra.mxu0 0.0
        %1314 = vmatprep.subr.mxu0 0.0
        %1315 = vmatpush1.msra.mxu0 0.0
        %1316 = vmatprep.subr.mxu0 0.0
        %1317 = vmatpush1.msra.mxu0 0.0
        %1318 = vmatprep.subr.mxu0 0.0
        %1319 = vmatpush1.msra.mxu0 0.0
        %1320 = vmatprep.subr.mxu0 0.0
        %1321 = vmatpush1.msra.mxu0 0.0
        %1322 = vmatprep.subr.mxu0 0.0
        %1323 = vmatpush1.msra.mxu0 0.0
        %1324 = vmatprep.subr.mxu0 0.0
        %1325 = vmatpush1.msra.mxu0 0.0
        %1326 = vmatprep.subr.mxu0 0.0
        %1327 = vmatpush1.msra.mxu0 0.0
        %1328 = vmatprep.subr.mxu0 0.0
        %1329 = vmatpush1.msra.mxu0 0.0
        %1330 = vmatprep.mubr.f32.mxu0 0.0
        %v1331 = vand.u32 %v984, 4294901760
        %v1332 = vsub.f32 %v984, %v1331
        %v1333 = vand.u32 %v1332, 4294901760
        %1334 = vmatmul.mubr.f32.gmra.mrb[0].mxu0 %v1333
        %v1335 = vpop.f32.mrb[0].mxu0
        %v1336 = vadd.f32 %v1252, %v1335
        %v1337 = vpop.f32.mrb[0].mxu0
        %1338 = vmatprep.mubr.f32.mxu0 0.0
        %v1339 = vand.u32 %v987, 4294901760
        %v1340 = vsub.f32 %v987, %v1339
        %v1341 = vand.u32 %v1340, 4294901760
        %1342 = vmatmul.mubr.f32.gmra.mrb[0].mxu0 %v1341
        %v1343 = vpop.f32.mrb[0].mxu0
        %v1344 = vadd.f32 %v1259, %v1343
        %v1345 = vpop.f32.mrb[0].mxu0
        %1346 = vdwg.mxu0
        %1347 = vmatprep.subr.mxu0 0.0
        %v1348 = vand.u32 %v349, 4294901760
        %v1349 = vsub.f32 %v349, %v1348
        %v1350 = vand.u32 %v1349, 4294901760
        %1351 = vmatpush1.msra.mxu0 %v1350
        %1352 = vmatprep.subr.mxu0 0.0
        %v1353 = vand.u32 %v350, 4294901760
        %v1354 = vsub.f32 %v350, %v1353
        %v1355 = vand.u32 %v1354, 4294901760
        %1356 = vmatpush1.msra.mxu0 %v1355
        %1357 = vmatprep.subr.mxu0 0.0
        %v1358 = vand.u32 %v351, 4294901760
        %v1359 = vsub.f32 %v351, %v1358
        %v1360 = vand.u32 %v1359, 4294901760
        %1361 = vmatpush1.msra.mxu0 %v1360
        %1362 = vmatprep.subr.mxu0 0.0
        %v1363 = vand.u32 %v352, 4294901760
        %v1364 = vsub.f32 %v352, %v1363
        %v1365 = vand.u32 %v1364, 4294901760
        %1366 = vmatpush1.msra.mxu0 %v1365
        %1367 = vmatprep.subr.mxu0 0.0
        %1368 = vmatpush1.msra.mxu0 0.0
        %1369 = vmatprep.subr.mxu0 0.0
        %1370 = vmatpush1.msra.mxu0 0.0
        %1371 = vmatprep.subr.mxu0 0.0
        %1372 = vmatpush1.msra.mxu0 0.0
        %1373 = vmatprep.subr.mxu0 0.0
        %1374 = vmatpush1.msra.mxu0 0.0
        %1375 = vmatprep.subr.mxu0 0.0
        %1376 = vmatpush1.msra.mxu0 0.0
        %1377 = vmatprep.subr.mxu0 0.0
        %1378 = vmatpush1.msra.mxu0 0.0
        %1379 = vmatprep.subr.mxu0 0.0
        %1380 = vmatpush1.msra.mxu0 0.0
        %1381 = vmatprep.subr.mxu0 0.0
        %1382 = vmatpush1.msra.mxu0 0.0
        %1383 = vmatprep.subr.mxu0 0.0
        %1384 = vmatpush1.msra.mxu0 0.0
        %1385 = vmatprep.subr.mxu0 0.0
        %1386 = vmatpush1.msra.mxu0 0.0
        %1387 = vmatprep.subr.mxu0 0.0
        %1388 = vmatpush1.msra.mxu0 0.0
        %1389 = vmatprep.subr.mxu0 0.0
        %1390 = vmatpush1.msra.mxu0 0.0
        %1391 = vmatprep.subr.mxu0 0.0
        %1392 = vmatpush1.msra.mxu0 0.0
        %1393 = vmatprep.subr.mxu0 0.0
        %1394 = vmatpush1.msra.mxu0 0.0
        %1395 = vmatprep.subr.mxu0 0.0
        %1396 = vmatpush1.msra.mxu0 0.0
        %1397 = vmatprep.subr.mxu0 0.0
        %1398 = vmatpush1.msra.mxu0 0.0
        %1399 = vmatprep.subr.mxu0 0.0
        %1400 = vmatpush1.msra.mxu0 0.0
        %1401 = vmatprep.subr.mxu0 0.0
        %1402 = vmatpush1.msra.mxu0 0.0
        %1403 = vmatprep.subr.mxu0 0.0
        %1404 = vmatpush1.msra.mxu0 0.0
        %1405 = vmatprep.subr.mxu0 0.0
        %1406 = vmatpush1.msra.mxu0 0.0
        %1407 = vmatprep.subr.mxu0 0.0
        %1408 = vmatpush1.msra.mxu0 0.0
        %1409 = vmatprep.subr.mxu0 0.0
        %1410 = vmatpush1.msra.mxu0 0.0
        %1411 = vmatprep.subr.mxu0 0.0
        %1412 = vmatpush1.msra.mxu0 0.0
        %1413 = vmatprep.subr.mxu0 0.0
        %1414 = vmatpush1.msra.mxu0 0.0
        %1415 = vmatprep.subr.mxu0 0.0
        %1416 = vmatpush1.msra.mxu0 0.0
        %1417 = vmatprep.subr.mxu0 0.0
        %1418 = vmatpush1.msra.mxu0 0.0
        %1419 = vmatprep.subr.mxu0 0.0
        %1420 = vmatpush1.msra.mxu0 0.0
        %1421 = vmatprep.subr.mxu0 0.0
        %1422 = vmatpush1.msra.mxu0 0.0
        %1423 = vmatprep.mubr.f32.mxu0 0.0
        %v1424 = vand.u32 %v984, 4294901760
        %1425 = vmatmul.mubr.f32.gmra.mrb[0].mxu0 %v1424
        %v1426 = vpop.f32.mrb[0].mxu0
        %v1427 = vadd.f32 %v1336, %v1426
        %v1428 = vpop.f32.mrb[0].mxu0
        %1429 = vmatprep.mubr.f32.mxu0 0.0
        %v1430 = vand.u32 %v987, 4294901760
        %1431 = vmatmul.mubr.f32.gmra.mrb[0].mxu0 %v1430
        %v1432 = vpop.f32.mrb[0].mxu0
        %v1433 = vadd.f32 %v1344, %v1432
        %v1434 = vpop.f32.mrb[0].mxu0
        %1435 = vdwg.mxu0
        %1436 = vmatprep.subr.mxu0 0.0
        %v1437 = vand.u32 %v349, 4294901760
        %1438 = vmatpush1.msra.mxu0 %v1437
        %1439 = vmatprep.subr.mxu0 0.0
        %v1440 = vand.u32 %v350, 4294901760
        %1441 = vmatpush1.msra.mxu0 %v1440
        %1442 = vmatprep.subr.mxu0 0.0
        %v1443 = vand.u32 %v351, 4294901760
        %1444 = vmatpush1.msra.mxu0 %v1443
        %1445 = vmatprep.subr.mxu0 0.0
        %v1446 = vand.u32 %v352, 4294901760
        %1447 = vmatpush1.msra.mxu0 %v1446
        %1448 = vmatprep.subr.mxu0 0.0
        %1449 = vmatpush1.msra.mxu0 0.0
        %1450 = vmatprep.subr.mxu0 0.0
        %1451 = vmatpush1.msra.mxu0 0.0
        %1452 = vmatprep.subr.mxu0 0.0
        %1453 = vmatpush1.msra.mxu0 0.0
        %1454 = vmatprep.subr.mxu0 0.0
        %1455 = vmatpush1.msra.mxu0 0.0
        %1456 = vmatprep.subr.mxu0 0.0
        %1457 = vmatpush1.msra.mxu0 0.0
        %1458 = vmatprep.subr.mxu0 0.0
        %1459 = vmatpush1.msra.mxu0 0.0
        %1460 = vmatprep.subr.mxu0 0.0
        %1461 = vmatpush1.msra.mxu0 0.0
        %1462 = vmatprep.subr.mxu0 0.0
        %1463 = vmatpush1.msra.mxu0 0.0
        %1464 = vmatprep.subr.mxu0 0.0
        %1465 = vmatpush1.msra.mxu0 0.0
        %1466 = vmatprep.subr.mxu0 0.0
        %1467 = vmatpush1.msra.mxu0 0.0
        %1468 = vmatprep.subr.mxu0 0.0
        %1469 = vmatpush1.msra.mxu0 0.0
        %1470 = vmatprep.subr.mxu0 0.0
        %1471 = vmatpush1.msra.mxu0 0.0
        %1472 = vmatprep.subr.mxu0 0.0
        %1473 = vmatpush1.msra.mxu0 0.0
        %1474 = vmatprep.subr.mxu0 0.0
        %1475 = vmatpush1.msra.mxu0 0.0
        %1476 = vmatprep.subr.mxu0 0.0
        %1477 = vmatpush1.msra.mxu0 0.0
        %1478 = vmatprep.subr.mxu0 0.0
        %1479 = vmatpush1.msra.mxu0 0.0
        %1480 = vmatprep.subr.mxu0 0.0
        %1481 = vmatpush1.msra.mxu0 0.0
        %1482 = vmatprep.subr.mxu0 0.0
        %1483 = vmatpush1.msra.mxu0 0.0
        %1484 = vmatprep.subr.mxu0 0.0
        %1485 = vmatpush1.msra.mxu0 0.0
        %1486 = vmatprep.subr.mxu0 0.0
        %1487 = vmatpush1.msra.mxu0 0.0
        %1488 = vmatprep.subr.mxu0 0.0
        %1489 = vmatpush1.msra.mxu0 0.0
        %1490 = vmatprep.subr.mxu0 0.0
        %1491 = vmatpush1.msra.mxu0 0.0
        %1492 = vmatprep.subr.mxu0 0.0
        %1493 = vmatpush1.msra.mxu0 0.0
        %1494 = vmatprep.subr.mxu0 0.0
        %1495 = vmatpush1.msra.mxu0 0.0
        %1496 = vmatprep.subr.mxu0 0.0
        %1497 = vmatpush1.msra.mxu0 0.0
        %1498 = vmatprep.subr.mxu0 0.0
        %1499 = vmatpush1.msra.mxu0 0.0
        %1500 = vmatprep.subr.mxu0 0.0
        %1501 = vmatpush1.msra.mxu0 0.0
        %1502 = vmatprep.subr.mxu0 0.0
        %1503 = vmatpush1.msra.mxu0 0.0
        %1504 = vmatprep.mubr.f32.mxu0 0.0
        %v1505 = vand.u32 %v984, 4294901760
        %1506 = vmatmul.mubr.f32.gmra.mrb[0].mxu0 %v1505
        %v1507 = vpop.f32.mrb[0].mxu0
        %v1508 = vadd.f32 %v1427, %v1507
        %v1509 = vpop.f32.mrb[0].mxu0
        %1510 = vmatprep.mubr.f32.mxu0 0.0
        %v1511 = vand.u32 %v987, 4294901760
        %1512 = vmatmul.mubr.f32.gmra.mrb[0].mxu0 %v1511
        %v1513 = vpop.f32.mrb[0].mxu0
        %v1514 = vadd.f32 %v1433, %v1513
        %v1515 = vpop.f32.mrb[0].mxu0
        %1516 = vdwg.mxu0
        %1519 = vrot.lane.b32.xlu0 %v979, 32
        %v1520 = vpop.permute.xlu0 %1519
        %1521 = vrot.lane.b32.xlu0 %v980, 32
        %v1522 = vpop.permute.xlu0 %1521
        %v1523 = vsel %vm377, %v1520, 0
        %v1525 = vsel %vm377, %v1522, 0
        %1527 = vmatprep.subr.mxu0 0.0
        %v1528 = vand.u32 %v345, 4294901760
        %1529 = vmatpush1.msra.mxu0 %v1528
        %1530 = vmatprep.subr.mxu0 0.0
        %v1531 = vand.u32 %v346, 4294901760
        %1532 = vmatpush1.msra.mxu0 %v1531
        %1533 = vmatprep.subr.mxu0 0.0
        %v1534 = vand.u32 %v347, 4294901760
        %1535 = vmatpush1.msra.mxu0 %v1534
        %1536 = vmatprep.subr.mxu0 0.0
        %v1537 = vand.u32 %v348, 4294901760
        %1538 = vmatpush1.msra.mxu0 %v1537
        %1539 = vmatprep.subr.mxu0 0.0
        %1540 = vmatpush1.msra.mxu0 0.0
        %1541 = vmatprep.subr.mxu0 0.0
        %1542 = vmatpush1.msra.mxu0 0.0
        %1543 = vmatprep.subr.mxu0 0.0
        %1544 = vmatpush1.msra.mxu0 0.0
        %1545 = vmatprep.subr.mxu0 0.0
        %1546 = vmatpush1.msra.mxu0 0.0
        %1547 = vmatprep.subr.mxu0 0.0
        %1548 = vmatpush1.msra.mxu0 0.0
        %1549 = vmatprep.subr.mxu0 0.0
        %1550 = vmatpush1.msra.mxu0 0.0
        %1551 = vmatprep.subr.mxu0 0.0
        %1552 = vmatpush1.msra.mxu0 0.0
        %1553 = vmatprep.subr.mxu0 0.0
        %1554 = vmatpush1.msra.mxu0 0.0
        %1555 = vmatprep.subr.mxu0 0.0
        %1556 = vmatpush1.msra.mxu0 0.0
        %1557 = vmatprep.subr.mxu0 0.0
        %1558 = vmatpush1.msra.mxu0 0.0
        %1559 = vmatprep.subr.mxu0 0.0
        %1560 = vmatpush1.msra.mxu0 0.0
        %1561 = vmatprep.subr.mxu0 0.0
        %1562 = vmatpush1.msra.mxu0 0.0
        %1563 = vmatprep.subr.mxu0 0.0
        %1564 = vmatpush1.msra.mxu0 0.0
        %1565 = vmatprep.subr.mxu0 0.0
        %1566 = vmatpush1.msra.mxu0 0.0
        %1567 = vmatprep.subr.mxu0 0.0
        %1568 = vmatpush1.msra.mxu0 0.0
        %1569 = vmatprep.subr.mxu0 0.0
        %1570 = vmatpush1.msra.mxu0 0.0
        %1571 = vmatprep.subr.mxu0 0.0
        %1572 = vmatpush1.msra.mxu0 0.0
        %1573 = vmatprep.subr.mxu0 0.0
        %1574 = vmatpush1.msra.mxu0 0.0
        %1575 = vmatprep.subr.mxu0 0.0
        %1576 = vmatpush1.msra.mxu0 0.0
        %1577 = vmatprep.subr.mxu0 0.0
        %1578 = vmatpush1.msra.mxu0 0.0
        %1579 = vmatprep.subr.mxu0 0.0
        %1580 = vmatpush1.msra.mxu0 0.0
        %1581 = vmatprep.subr.mxu0 0.0
        %1582 = vmatpush1.msra.mxu0 0.0
        %1583 = vmatprep.subr.mxu0 0.0
        %1584 = vmatpush1.msra.mxu0 0.0
        %1585 = vmatprep.subr.mxu0 0.0
        %1586 = vmatpush1.msra.mxu0 0.0
        %1587 = vmatprep.subr.mxu0 0.0
        %1588 = vmatpush1.msra.mxu0 0.0
        %1589 = vmatprep.subr.mxu0 0.0
        %1590 = vmatpush1.msra.mxu0 0.0
        %1591 = vmatprep.subr.mxu0 0.0
        %1592 = vmatpush1.msra.mxu0 0.0
        %1593 = vmatprep.subr.mxu0 0.0
        %1594 = vmatpush1.msra.mxu0 0.0
        %1595 = vmatprep.mubr.f32.mxu0 0.0
        %v1596 = vand.u32 %v1523, 4294901760
        %v1597 = vsub.f32 %v1523, %v1596
        %v1598 = vand.u32 %v1597, 4294901760
        %v1599 = vsub.f32 %v1597, %v1598
        %v1600 = vand.u32 %v1599, 4294901760
        %1601 = vmatmul.mubr.f32.gmra.mrb[0].mxu0 %v1600
        %v1602 = vpop.f32.mrb[0].mxu0
        %v1603 = vadd.f32 %v1508, %v1602
        %v1604 = vpop.f32.mrb[0].mxu0
        %1605 = vmatprep.mubr.f32.mxu0 0.0
        %v1606 = vand.u32 %v1525, 4294901760
        %v1607 = vsub.f32 %v1525, %v1606
        %v1608 = vand.u32 %v1607, 4294901760
        %v1609 = vsub.f32 %v1607, %v1608
        %v1610 = vand.u32 %v1609, 4294901760
        %1611 = vmatmul.mubr.f32.gmra.mrb[0].mxu0 %v1610
        %v1612 = vpop.f32.mrb[0].mxu0
        %v1613 = vadd.f32 %v1514, %v1612
        %v1614 = vpop.f32.mrb[0].mxu0
        %1615 = vdwg.mxu0
        %1616 = vmatprep.subr.mxu0 0.0
        %v1617 = vand.u32 %v345, 4294901760
        %v1618 = vsub.f32 %v345, %v1617
        %v1619 = vand.u32 %v1618, 4294901760
        %v1620 = vsub.f32 %v1618, %v1619
        %v1621 = vand.u32 %v1620, 4294901760
        %1622 = vmatpush1.msra.mxu0 %v1621
        %1623 = vmatprep.subr.mxu0 0.0
        %v1624 = vand.u32 %v346, 4294901760
        %v1625 = vsub.f32 %v346, %v1624
        %v1626 = vand.u32 %v1625, 4294901760
        %v1627 = vsub.f32 %v1625, %v1626
        %v1628 = vand.u32 %v1627, 4294901760
        %1629 = vmatpush1.msra.mxu0 %v1628
        %1630 = vmatprep.subr.mxu0 0.0
        %v1631 = vand.u32 %v347, 4294901760
        %v1632 = vsub.f32 %v347, %v1631
        %v1633 = vand.u32 %v1632, 4294901760
        %v1634 = vsub.f32 %v1632, %v1633
        %v1635 = vand.u32 %v1634, 4294901760
        %1636 = vmatpush1.msra.mxu0 %v1635
        %1637 = vmatprep.subr.mxu0 0.0
        %v1638 = vand.u32 %v348, 4294901760
        %v1639 = vsub.f32 %v348, %v1638
        %v1640 = vand.u32 %v1639, 4294901760
        %v1641 = vsub.f32 %v1639, %v1640
        %v1642 = vand.u32 %v1641, 4294901760
        %1643 = vmatpush1.msra.mxu0 %v1642
        %1644 = vmatprep.subr.mxu0 0.0
        %1645 = vmatpush1.msra.mxu0 0.0
        %1646 = vmatprep.subr.mxu0 0.0
        %1647 = vmatpush1.msra.mxu0 0.0
        %1648 = vmatprep.subr.mxu0 0.0
        %1649 = vmatpush1.msra.mxu0 0.0
        %1650 = vmatprep.subr.mxu0 0.0
        %1651 = vmatpush1.msra.mxu0 0.0
        %1652 = vmatprep.subr.mxu0 0.0
        %1653 = vmatpush1.msra.mxu0 0.0
        %1654 = vmatprep.subr.mxu0 0.0
        %1655 = vmatpush1.msra.mxu0 0.0
        %1656 = vmatprep.subr.mxu0 0.0
        %1657 = vmatpush1.msra.mxu0 0.0
        %1658 = vmatprep.subr.mxu0 0.0
        %1659 = vmatpush1.msra.mxu0 0.0
        %1660 = vmatprep.subr.mxu0 0.0
        %1661 = vmatpush1.msra.mxu0 0.0
        %1662 = vmatprep.subr.mxu0 0.0
        %1663 = vmatpush1.msra.mxu0 0.0
        %1664 = vmatprep.subr.mxu0 0.0
        %1665 = vmatpush1.msra.mxu0 0.0
        %1666 = vmatprep.subr.mxu0 0.0
        %1667 = vmatpush1.msra.mxu0 0.0
        %1668 = vmatprep.subr.mxu0 0.0
        %1669 = vmatpush1.msra.mxu0 0.0
        %1670 = vmatprep.subr.mxu0 0.0
        %1671 = vmatpush1.msra.mxu0 0.0
        %1672 = vmatprep.subr.mxu0 0.0
        %1673 = vmatpush1.msra.mxu0 0.0
        %1674 = vmatprep.subr.mxu0 0.0
        %1675 = vmatpush1.msra.mxu0 0.0
        %1676 = vmatprep.subr.mxu0 0.0
        %1677 = vmatpush1.msra.mxu0 0.0
        %1678 = vmatprep.subr.mxu0 0.0
        %1679 = vmatpush1.msra.mxu0 0.0
        %1680 = vmatprep.subr.mxu0 0.0
        %1681 = vmatpush1.msra.mxu0 0.0
        %1682 = vmatprep.subr.mxu0 0.0
        %1683 = vmatpush1.msra.mxu0 0.0
        %1684 = vmatprep.subr.mxu0 0.0
        %1685 = vmatpush1.msra.mxu0 0.0
        %1686 = vmatprep.subr.mxu0 0.0
        %1687 = vmatpush1.msra.mxu0 0.0
        %1688 = vmatprep.subr.mxu0 0.0
        %1689 = vmatpush1.msra.mxu0 0.0
        %1690 = vmatprep.subr.mxu0 0.0
        %1691 = vmatpush1.msra.mxu0 0.0
        %1692 = vmatprep.subr.mxu0 0.0
        %1693 = vmatpush1.msra.mxu0 0.0
        %1694 = vmatprep.subr.mxu0 0.0
        %1695 = vmatpush1.msra.mxu0 0.0
        %1696 = vmatprep.subr.mxu0 0.0
        %1697 = vmatpush1.msra.mxu0 0.0
        %1698 = vmatprep.subr.mxu0 0.0
        %1699 = vmatpush1.msra.mxu0 0.0
        %1700 = vmatprep.mubr.f32.mxu0 0.0
        %v1701 = vand.u32 %v1523, 4294901760
        %1702 = vmatmul.mubr.f32.gmra.mrb[0].mxu0 %v1701
        %v1703 = vpop.f32.mrb[0].mxu0
        %v1704 = vadd.f32 %v1603, %v1703
        %v1705 = vpop.f32.mrb[0].mxu0
        %1706 = vmatprep.mubr.f32.mxu0 0.0
        %v1707 = vand.u32 %v1525, 4294901760
        %1708 = vmatmul.mubr.f32.gmra.mrb[0].mxu0 %v1707
        %v1709 = vpop.f32.mrb[0].mxu0
        %v1710 = vadd.f32 %v1613, %v1709
        %v1711 = vpop.f32.mrb[0].mxu0
        %1712 = vdwg.mxu0
        %1713 = vmatprep.subr.mxu0 0.0
        %v1714 = vand.u32 %v345, 4294901760
        %v1715 = vsub.f32 %v345, %v1714
        %1716 = vmatpush1.msra.mxu0 %v1715
        %1717 = vmatprep.subr.mxu0 0.0
        %v1718 = vand.u32 %v346, 4294901760
        %v1719 = vsub.f32 %v346, %v1718
        %1720 = vmatpush1.msra.mxu0 %v1719
        %1721 = vmatprep.subr.mxu0 0.0
        %v1722 = vand.u32 %v347, 4294901760
        %v1723 = vsub.f32 %v347, %v1722
        %1724 = vmatpush1.msra.mxu0 %v1723
        %1725 = vmatprep.subr.mxu0 0.0
        %v1726 = vand.u32 %v348, 4294901760
        %v1727 = vsub.f32 %v348, %v1726
        %1728 = vmatpush1.msra.mxu0 %v1727
        %1729 = vmatprep.subr.mxu0 0.0
        %1730 = vmatpush1.msra.mxu0 0.0
        %1731 = vmatprep.subr.mxu0 0.0
        %1732 = vmatpush1.msra.mxu0 0.0
        %1733 = vmatprep.subr.mxu0 0.0
        %1734 = vmatpush1.msra.mxu0 0.0
        %1735 = vmatprep.subr.mxu0 0.0
        %1736 = vmatpush1.msra.mxu0 0.0
        %1737 = vmatprep.subr.mxu0 0.0
        %1738 = vmatpush1.msra.mxu0 0.0
        %1739 = vmatprep.subr.mxu0 0.0
        %1740 = vmatpush1.msra.mxu0 0.0
        %1741 = vmatprep.subr.mxu0 0.0
        %1742 = vmatpush1.msra.mxu0 0.0
        %1743 = vmatprep.subr.mxu0 0.0
        %1744 = vmatpush1.msra.mxu0 0.0
        %1745 = vmatprep.subr.mxu0 0.0
        %1746 = vmatpush1.msra.mxu0 0.0
        %1747 = vmatprep.subr.mxu0 0.0
        %1748 = vmatpush1.msra.mxu0 0.0
        %1749 = vmatprep.subr.mxu0 0.0
        %1750 = vmatpush1.msra.mxu0 0.0
        %1751 = vmatprep.subr.mxu0 0.0
        %1752 = vmatpush1.msra.mxu0 0.0
        %1753 = vmatprep.subr.mxu0 0.0
        %1754 = vmatpush1.msra.mxu0 0.0
        %1755 = vmatprep.subr.mxu0 0.0
        %1756 = vmatpush1.msra.mxu0 0.0
        %1757 = vmatprep.subr.mxu0 0.0
        %1758 = vmatpush1.msra.mxu0 0.0
        %1759 = vmatprep.subr.mxu0 0.0
        %1760 = vmatpush1.msra.mxu0 0.0
        %1761 = vmatprep.subr.mxu0 0.0
        %1762 = vmatpush1.msra.mxu0 0.0
        %1763 = vmatprep.subr.mxu0 0.0
        %1764 = vmatpush1.msra.mxu0 0.0
        %1765 = vmatprep.subr.mxu0 0.0
        %1766 = vmatpush1.msra.mxu0 0.0
        %1767 = vmatprep.subr.mxu0 0.0
        %1768 = vmatpush1.msra.mxu0 0.0
        %1769 = vmatprep.subr.mxu0 0.0
        %1770 = vmatpush1.msra.mxu0 0.0
        %1771 = vmatprep.subr.mxu0 0.0
        %1772 = vmatpush1.msra.mxu0 0.0
        %1773 = vmatprep.subr.mxu0 0.0
        %1774 = vmatpush1.msra.mxu0 0.0
        %1775 = vmatprep.subr.mxu0 0.0
        %1776 = vmatpush1.msra.mxu0 0.0
        %1777 = vmatprep.subr.mxu0 0.0
        %1778 = vmatpush1.msra.mxu0 0.0
        %1779 = vmatprep.subr.mxu0 0.0
        %1780 = vmatpush1.msra.mxu0 0.0
        %1781 = vmatprep.subr.mxu0 0.0
        %1782 = vmatpush1.msra.mxu0 0.0
        %1783 = vmatprep.subr.mxu0 0.0
        %1784 = vmatpush1.msra.mxu0 0.0
        %1785 = vmatprep.mubr.f32.mxu0 0.0
        %v1786 = vand.u32 %v1523, 4294901760
        %v1787 = vsub.f32 %v1523, %v1786
        %1788 = vmatmul.mubr.f32.gmra.mrb[0].mxu0 %v1787
        %v1789 = vpop.f32.mrb[0].mxu0
        %v1790 = vadd.f32 %v1704, %v1789
        %v1791 = vpop.f32.mrb[0].mxu0
        %1792 = vmatprep.mubr.f32.mxu0 0.0
        %v1793 = vand.u32 %v1525, 4294901760
        %v1794 = vsub.f32 %v1525, %v1793
        %1795 = vmatmul.mubr.f32.gmra.mrb[0].mxu0 %v1794
        %v1796 = vpop.f32.mrb[0].mxu0
        %v1797 = vadd.f32 %v1710, %v1796
        %v1798 = vpop.f32.mrb[0].mxu0
        %1799 = vdwg.mxu0
        %1800 = vmatprep.subr.mxu0 0.0
        %v1801 = vand.u32 %v345, 4294901760
        %1802 = vmatpush1.msra.mxu0 %v1801
        %1803 = vmatprep.subr.mxu0 0.0
        %v1804 = vand.u32 %v346, 4294901760
        %1805 = vmatpush1.msra.mxu0 %v1804
        %1806 = vmatprep.subr.mxu0 0.0
        %v1807 = vand.u32 %v347, 4294901760
        %1808 = vmatpush1.msra.mxu0 %v1807
        %1809 = vmatprep.subr.mxu0 0.0
        %v1810 = vand.u32 %v348, 4294901760
        %1811 = vmatpush1.msra.mxu0 %v1810
        %1812 = vmatprep.subr.mxu0 0.0
        %1813 = vmatpush1.msra.mxu0 0.0
        %1814 = vmatprep.subr.mxu0 0.0
        %1815 = vmatpush1.msra.mxu0 0.0
        %1816 = vmatprep.subr.mxu0 0.0
        %1817 = vmatpush1.msra.mxu0 0.0
        %1818 = vmatprep.subr.mxu0 0.0
        %1819 = vmatpush1.msra.mxu0 0.0
        %1820 = vmatprep.subr.mxu0 0.0
        %1821 = vmatpush1.msra.mxu0 0.0
        %1822 = vmatprep.subr.mxu0 0.0
        %1823 = vmatpush1.msra.mxu0 0.0
        %1824 = vmatprep.subr.mxu0 0.0
        %1825 = vmatpush1.msra.mxu0 0.0
        %1826 = vmatprep.subr.mxu0 0.0
        %1827 = vmatpush1.msra.mxu0 0.0
        %1828 = vmatprep.subr.mxu0 0.0
        %1829 = vmatpush1.msra.mxu0 0.0
        %1830 = vmatprep.subr.mxu0 0.0
        %1831 = vmatpush1.msra.mxu0 0.0
        %1832 = vmatprep.subr.mxu0 0.0
        %1833 = vmatpush1.msra.mxu0 0.0
        %1834 = vmatprep.subr.mxu0 0.0
        %1835 = vmatpush1.msra.mxu0 0.0
        %1836 = vmatprep.subr.mxu0 0.0
        %1837 = vmatpush1.msra.mxu0 0.0
        %1838 = vmatprep.subr.mxu0 0.0
        %1839 = vmatpush1.msra.mxu0 0.0
        %1840 = vmatprep.subr.mxu0 0.0
        %1841 = vmatpush1.msra.mxu0 0.0
        %1842 = vmatprep.subr.mxu0 0.0
        %1843 = vmatpush1.msra.mxu0 0.0
        %1844 = vmatprep.subr.mxu0 0.0
        %1845 = vmatpush1.msra.mxu0 0.0
        %1846 = vmatprep.subr.mxu0 0.0
        %1847 = vmatpush1.msra.mxu0 0.0
        %1848 = vmatprep.subr.mxu0 0.0
        %1849 = vmatpush1.msra.mxu0 0.0
        %1850 = vmatprep.subr.mxu0 0.0
        %1851 = vmatpush1.msra.mxu0 0.0
        %1852 = vmatprep.subr.mxu0 0.0
        %1853 = vmatpush1.msra.mxu0 0.0
        %1854 = vmatprep.subr.mxu0 0.0
        %1855 = vmatpush1.msra.mxu0 0.0
        %1856 = vmatprep.subr.mxu0 0.0
        %1857 = vmatpush1.msra.mxu0 0.0
        %1858 = vmatprep.subr.mxu0 0.0
        %1859 = vmatpush1.msra.mxu0 0.0
        %1860 = vmatprep.subr.mxu0 0.0
        %1861 = vmatpush1.msra.mxu0 0.0
        %1862 = vmatprep.subr.mxu0 0.0
        %1863 = vmatpush1.msra.mxu0 0.0
        %1864 = vmatprep.subr.mxu0 0.0
        %1865 = vmatpush1.msra.mxu0 0.0
        %1866 = vmatprep.subr.mxu0 0.0
        %1867 = vmatpush1.msra.mxu0 0.0
        %1868 = vmatprep.mubr.f32.mxu0 0.0
        %v1869 = vand.u32 %v1523, 4294901760
        %v1870 = vsub.f32 %v1523, %v1869
        %v1871 = vand.u32 %v1870, 4294901760
        %1872 = vmatmul.mubr.f32.gmra.mrb[0].mxu0 %v1871
        %v1873 = vpop.f32.mrb[0].mxu0
        %v1874 = vadd.f32 %v1790, %v1873
        %v1875 = vpop.f32.mrb[0].mxu0
        %1876 = vmatprep.mubr.f32.mxu0 0.0
        %v1877 = vand.u32 %v1525, 4294901760
        %v1878 = vsub.f32 %v1525, %v1877
        %v1879 = vand.u32 %v1878, 4294901760
        %1880 = vmatmul.mubr.f32.gmra.mrb[0].mxu0 %v1879
        %v1881 = vpop.f32.mrb[0].mxu0
        %v1882 = vadd.f32 %v1797, %v1881
        %v1883 = vpop.f32.mrb[0].mxu0
        %1884 = vdwg.mxu0
        %1885 = vmatprep.subr.mxu0 0.0
        %v1886 = vand.u32 %v345, 4294901760
        %v1887 = vsub.f32 %v345, %v1886
        %v1888 = vand.u32 %v1887, 4294901760
        %1889 = vmatpush1.msra.mxu0 %v1888
        %1890 = vmatprep.subr.mxu0 0.0
        %v1891 = vand.u32 %v346, 4294901760
        %v1892 = vsub.f32 %v346, %v1891
        %v1893 = vand.u32 %v1892, 4294901760
        %1894 = vmatpush1.msra.mxu0 %v1893
        %1895 = vmatprep.subr.mxu0 0.0
        %v1896 = vand.u32 %v347, 4294901760
        %v1897 = vsub.f32 %v347, %v1896
        %v1898 = vand.u32 %v1897, 4294901760
        %1899 = vmatpush1.msra.mxu0 %v1898
        %1900 = vmatprep.subr.mxu0 0.0
        %v1901 = vand.u32 %v348, 4294901760
        %v1902 = vsub.f32 %v348, %v1901
        %v1903 = vand.u32 %v1902, 4294901760
        %1904 = vmatpush1.msra.mxu0 %v1903
        %1905 = vmatprep.subr.mxu0 0.0
        %1906 = vmatpush1.msra.mxu0 0.0
        %1907 = vmatprep.subr.mxu0 0.0
        %1908 = vmatpush1.msra.mxu0 0.0
        %1909 = vmatprep.subr.mxu0 0.0
        %1910 = vmatpush1.msra.mxu0 0.0
        %1911 = vmatprep.subr.mxu0 0.0
        %1912 = vmatpush1.msra.mxu0 0.0
        %1913 = vmatprep.subr.mxu0 0.0
        %1914 = vmatpush1.msra.mxu0 0.0
        %1915 = vmatprep.subr.mxu0 0.0
        %1916 = vmatpush1.msra.mxu0 0.0
        %1917 = vmatprep.subr.mxu0 0.0
        %1918 = vmatpush1.msra.mxu0 0.0
        %1919 = vmatprep.subr.mxu0 0.0
        %1920 = vmatpush1.msra.mxu0 0.0
        %1921 = vmatprep.subr.mxu0 0.0
        %1922 = vmatpush1.msra.mxu0 0.0
        %1923 = vmatprep.subr.mxu0 0.0
        %1924 = vmatpush1.msra.mxu0 0.0
        %1925 = vmatprep.subr.mxu0 0.0
        %1926 = vmatpush1.msra.mxu0 0.0
        %1927 = vmatprep.subr.mxu0 0.0
        %1928 = vmatpush1.msra.mxu0 0.0
        %1929 = vmatprep.subr.mxu0 0.0
        %1930 = vmatpush1.msra.mxu0 0.0
        %1931 = vmatprep.subr.mxu0 0.0
        %1932 = vmatpush1.msra.mxu0 0.0
        %1933 = vmatprep.subr.mxu0 0.0
        %1934 = vmatpush1.msra.mxu0 0.0
        %1935 = vmatprep.subr.mxu0 0.0
        %1936 = vmatpush1.msra.mxu0 0.0
        %1937 = vmatprep.subr.mxu0 0.0
        %1938 = vmatpush1.msra.mxu0 0.0
        %1939 = vmatprep.subr.mxu0 0.0
        %1940 = vmatpush1.msra.mxu0 0.0
        %1941 = vmatprep.subr.mxu0 0.0
        %1942 = vmatpush1.msra.mxu0 0.0
        %1943 = vmatprep.subr.mxu0 0.0
        %1944 = vmatpush1.msra.mxu0 0.0
        %1945 = vmatprep.subr.mxu0 0.0
        %1946 = vmatpush1.msra.mxu0 0.0
        %1947 = vmatprep.subr.mxu0 0.0
        %1948 = vmatpush1.msra.mxu0 0.0
        %1949 = vmatprep.subr.mxu0 0.0
        %1950 = vmatpush1.msra.mxu0 0.0
        %1951 = vmatprep.subr.mxu0 0.0
        %1952 = vmatpush1.msra.mxu0 0.0
        %1953 = vmatprep.subr.mxu0 0.0
        %1954 = vmatpush1.msra.mxu0 0.0
        %1955 = vmatprep.subr.mxu0 0.0
        %1956 = vmatpush1.msra.mxu0 0.0
        %1957 = vmatprep.subr.mxu0 0.0
        %1958 = vmatpush1.msra.mxu0 0.0
        %1959 = vmatprep.subr.mxu0 0.0
        %1960 = vmatpush1.msra.mxu0 0.0
        %1961 = vmatprep.mubr.f32.mxu0 0.0
        %v1962 = vand.u32 %v1523, 4294901760
        %1963 = vmatmul.mubr.f32.gmra.mrb[0].mxu0 %v1962
        %v1964 = vpop.f32.mrb[0].mxu0
        %v1965 = vadd.f32 %v1874, %v1964
        %v1966 = vpop.f32.mrb[0].mxu0
        %1967 = vmatprep.mubr.f32.mxu0 0.0
        %v1968 = vand.u32 %v1525, 4294901760
        %1969 = vmatmul.mubr.f32.gmra.mrb[0].mxu0 %v1968
        %v1970 = vpop.f32.mrb[0].mxu0
        %v1971 = vadd.f32 %v1882, %v1970
        %v1972 = vpop.f32.mrb[0].mxu0
        %1973 = vdwg.mxu0
        %1974 = vmatprep.subr.mxu0 0.0
        %v1975 = vand.u32 %v345, 4294901760
        %1976 = vmatpush1.msra.mxu0 %v1975
        %1977 = vmatprep.subr.mxu0 0.0
        %v1978 = vand.u32 %v346, 4294901760
        %1979 = vmatpush1.msra.mxu0 %v1978
        %1980 = vmatprep.subr.mxu0 0.0
        %v1981 = vand.u32 %v347, 4294901760
        %1982 = vmatpush1.msra.mxu0 %v1981
        %1983 = vmatprep.subr.mxu0 0.0
        %v1984 = vand.u32 %v348, 4294901760
        %1985 = vmatpush1.msra.mxu0 %v1984
        %1986 = vmatprep.subr.mxu0 0.0
        %1987 = vmatpush1.msra.mxu0 0.0
        %1988 = vmatprep.subr.mxu0 0.0
        %1989 = vmatpush1.msra.mxu0 0.0
        %1990 = vmatprep.subr.mxu0 0.0
        %1991 = vmatpush1.msra.mxu0 0.0
        %1992 = vmatprep.subr.mxu0 0.0
        %1993 = vmatpush1.msra.mxu0 0.0
        %1994 = vmatprep.subr.mxu0 0.0
        %1995 = vmatpush1.msra.mxu0 0.0
        %1996 = vmatprep.subr.mxu0 0.0
        %1997 = vmatpush1.msra.mxu0 0.0
        %1998 = vmatprep.subr.mxu0 0.0
        %1999 = vmatpush1.msra.mxu0 0.0
        %2000 = vmatprep.subr.mxu0 0.0
        %2001 = vmatpush1.msra.mxu0 0.0
        %2002 = vmatprep.subr.mxu0 0.0
        %2003 = vmatpush1.msra.mxu0 0.0
        %2004 = vmatprep.subr.mxu0 0.0
        %2005 = vmatpush1.msra.mxu0 0.0
        %2006 = vmatprep.subr.mxu0 0.0
        %2007 = vmatpush1.msra.mxu0 0.0
        %2008 = vmatprep.subr.mxu0 0.0
        %2009 = vmatpush1.msra.mxu0 0.0
        %2010 = vmatprep.subr.mxu0 0.0
        %2011 = vmatpush1.msra.mxu0 0.0
        %2012 = vmatprep.subr.mxu0 0.0
        %2013 = vmatpush1.msra.mxu0 0.0
        %2014 = vmatprep.subr.mxu0 0.0
        %2015 = vmatpush1.msra.mxu0 0.0
        %2016 = vmatprep.subr.mxu0 0.0
        %2017 = vmatpush1.msra.mxu0 0.0
        %2018 = vmatprep.subr.mxu0 0.0
        %2019 = vmatpush1.msra.mxu0 0.0
        %2020 = vmatprep.subr.mxu0 0.0
        %2021 = vmatpush1.msra.mxu0 0.0
        %2022 = vmatprep.subr.mxu0 0.0
        %2023 = vmatpush1.msra.mxu0 0.0
        %2024 = vmatprep.subr.mxu0 0.0
        %2025 = vmatpush1.msra.mxu0 0.0
        %2026 = vmatprep.subr.mxu0 0.0
        %2027 = vmatpush1.msra.mxu0 0.0
        %2028 = vmatprep.subr.mxu0 0.0
        %2029 = vmatpush1.msra.mxu0 0.0
        %2030 = vmatprep.subr.mxu0 0.0
        %2031 = vmatpush1.msra.mxu0 0.0
        %2032 = vmatprep.subr.mxu0 0.0
        %2033 = vmatpush1.msra.mxu0 0.0
        %2034 = vmatprep.subr.mxu0 0.0
        %2035 = vmatpush1.msra.mxu0 0.0
        %2036 = vmatprep.subr.mxu0 0.0
        %2037 = vmatpush1.msra.mxu0 0.0
        %2038 = vmatprep.subr.mxu0 0.0
        %2039 = vmatpush1.msra.mxu0 0.0
        %2040 = vmatprep.subr.mxu0 0.0
        %2041 = vmatpush1.msra.mxu0 0.0
        %2042 = vmatprep.mubr.f32.mxu0 0.0
        %v2043 = vand.u32 %v1523, 4294901760
        %2044 = vmatmul.mubr.f32.gmra.mrb[0].mxu0 %v2043
        %v2045 = vpop.f32.mrb[0].mxu0
        %v2046 = vadd.f32 %v1965, %v2045
        %v2047 = vpop.f32.mrb[0].mxu0
        %2048 = vmatprep.mubr.f32.mxu0 0.0
        %v2049 = vand.u32 %v1525, 4294901760
        %2050 = vmatmul.mubr.f32.gmra.mrb[0].mxu0 %v2049
        %v2051 = vpop.f32.mrb[0].mxu0
        %v2052 = vadd.f32 %v1971, %v2051
        %v2053 = vpop.f32.mrb[0].mxu0
        %2054 = vdwg.mxu0
        %v2055 = vadd.f32 %v2046, %v358
        %v2056 = vadd.f32 %v2052, %v358
        %v2057 = vxor.u32 %v2055, 2147483648
        %v2058 = vxor.u32 %v2056, 2147483648
        %v2059 = vmul.f32 %v2057, 1.442695
        %v2060 = vpow.pop %v2059
        %v2061 = vmul.f32 %v2058, 1.442695
        %v2062 = vpow.pop %v2061
        %v2063 = vadd.f32 %v2060, 1.0
        %v2064 = vadd.f32 %v2062, 1.0
        %v2065 = vrcp.pop %v2063
        %v2066 = vmul.f32 1.0, %v2065
        %v2067 = vrcp.pop %v2064
        %v2068 = vmul.f32 1.0, %v2067
        %v2069 = vtanh.pop %v2055
        %v2070 = vtanh.pop %v2056
        %2073 = vrot.lane.b32.xlu0 %v372, 32
        %v2074 = vpop.permute.xlu0 %2073
        %2075 = vrot.lane.b32.xlu0 %v373, 32
        %v2076 = vpop.permute.xlu0 %2075
        %v2079 = vmul.f32 %v2066, %v2074
        %v2080 = vmul.f32 %v2068, %v2076
        %2083 = vrot.lane.b32.xlu0 %v2069, 64
        %v2084 = vpop.permute.xlu0 %2083
        %2085 = vrot.lane.b32.xlu0 %v2070, 64
        %v2086 = vpop.permute.xlu0 %2085
        %v2089 = vmul.f32 %v2066, %v2084
        %v2090 = vmul.f32 %v2068, %v2086
        %2093 = vrot.lane.b32.xlu0 %v2089, 32
        %v2094 = vpop.permute.xlu0 %2093
        %2095 = vrot.lane.b32.xlu0 %v2090, 32
        %v2096 = vpop.permute.xlu0 %2095
        %v2099 = vadd.f32 %v2079, %v2094
        %v2100 = vadd.f32 %v2080, %v2096
        %v2101 = vtanh.pop %v2099
        %v2102 = vtanh.pop %v2100
        %2105 = vrot.lane.b32.xlu0 %v2101, 64
        %v2106 = vpop.permute.xlu0 %2105
        %2107 = vrot.lane.b32.xlu0 %v2102, 64
        %v2108 = vpop.permute.xlu0 %2107
        %v2111 = vmul.f32 %v2066, %v2106
        %v2112 = vmul.f32 %v2068, %v2108
        %2113 = vrot.lane.b32.xlu0 %v367, 96
        %v2114 = vpop.permute.xlu0 %2113
        %2115 = vrot.lane.b32.xlu0 %v368, 96
        %v2116 = vpop.permute.xlu0 %2115
        %v2119 = vsel %vm972, %v2111, %v2114
        %v2120 = vsel %vm972, %v2112, %v2116
        %v2121 = vsel %vm972, %v2099, %v2074
        %v2122 = vsel %vm972, %v2100, %v2076
        %2125 = vrot.lane.b32.xlu0 %v2119, 32
        %v2126 = vpop.permute.xlu0 %2125
        %2127 = vrot.lane.b32.xlu0 %v2120, 32
        %v2128 = vpop.permute.xlu0 %2127
        %2131 = vst.msk [vmem:[%s313] sm:$0xff] %vm377, %v2126
        %2132 = vst.msk [vmem:[%s313 + $0x8] sm:$0xff] %vm377, %v2128
        %p2133 = scmp.gt.s32.totalorder %s363, 1
        %s2134 = scalar_lea.vmem %s287, 16 [#allocation10]
        %v2135 = vld [vmem:[%s2134] sm:$0xff]
        %v2136 = vld [vmem:[%s2134 + $0x8] sm:$0xff]
        %2137 = vmatprep.subr.mxu0 0.0
        %v2138 = vand.u32 %v341, 4294901760
        %2139 = vmatpush1.msra.mxu0 %v2138
        %2140 = vmatprep.subr.mxu0 0.0
        %v2141 = vand.u32 %v342, 4294901760
        %2142 = vmatpush1.msra.mxu0 %v2141
        %2143 = vmatprep.subr.mxu0 0.0
        %v2144 = vand.u32 %v343, 4294901760
        %2145 = vmatpush1.msra.mxu0 %v2144
        %2146 = vmatprep.subr.mxu0 0.0
        %v2147 = vand.u32 %v344, 4294901760
        %2148 = vmatpush1.msra.mxu0 %v2147
        %2149 = vmatprep.subr.mxu0 0.0
        %2150 = vmatpush1.msra.mxu0 0.0
        %2151 = vmatprep.subr.mxu0 0.0
        %2152 = vmatpush1.msra.mxu0 0.0
        %2153 = vmatprep.subr.mxu0 0.0
        %2154 = vmatpush1.msra.mxu0 0.0
        %2155 = vmatprep.subr.mxu0 0.0
        %2156 = vmatpush1.msra.mxu0 0.0
        %2157 = vmatprep.subr.mxu0 0.0
        %2158 = vmatpush1.msra.mxu0 0.0
        %2159 = vmatprep.subr.mxu0 0.0
        %2160 = vmatpush1.msra.mxu0 0.0
        %2161 = vmatprep.subr.mxu0 0.0
        %2162 = vmatpush1.msra.mxu0 0.0
        %2163 = vmatprep.subr.mxu0 0.0
        %2164 = vmatpush1.msra.mxu0 0.0
        %2165 = vmatprep.subr.mxu0 0.0
        %2166 = vmatpush1.msra.mxu0 0.0
        %2167 = vmatprep.subr.mxu0 0.0
        %2168 = vmatpush1.msra.mxu0 0.0
        %2169 = vmatprep.subr.mxu0 0.0
        %2170 = vmatpush1.msra.mxu0 0.0
        %2171 = vmatprep.subr.mxu0 0.0
        %2172 = vmatpush1.msra.mxu0 0.0
        %2173 = vmatprep.subr.mxu0 0.0
        %2174 = vmatpush1.msra.mxu0 0.0
        %2175 = vmatprep.subr.mxu0 0.0
        %2176 = vmatpush1.msra.mxu0 0.0
        %2177 = vmatprep.subr.mxu0 0.0
        %2178 = vmatpush1.msra.mxu0 0.0
        %2179 = vmatprep.subr.mxu0 0.0
        %2180 = vmatpush1.msra.mxu0 0.0
        %2181 = vmatprep.subr.mxu0 0.0
        %2182 = vmatpush1.msra.mxu0 0.0
        %2183 = vmatprep.subr.mxu0 0.0
        %2184 = vmatpush1.msra.mxu0 0.0
        %2185 = vmatprep.subr.mxu0 0.0
        %2186 = vmatpush1.msra.mxu0 0.0
        %2187 = vmatprep.subr.mxu0 0.0
        %2188 = vmatpush1.msra.mxu0 0.0
        %2189 = vmatprep.subr.mxu0 0.0
        %2190 = vmatpush1.msra.mxu0 0.0
        %2191 = vmatprep.subr.mxu0 0.0
        %2192 = vmatpush1.msra.mxu0 0.0
        %2193 = vmatprep.subr.mxu0 0.0
        %2194 = vmatpush1.msra.mxu0 0.0
        %2195 = vmatprep.subr.mxu0 0.0
        %2196 = vmatpush1.msra.mxu0 0.0
        %2197 = vmatprep.subr.mxu0 0.0
        %2198 = vmatpush1.msra.mxu0 0.0
        %2199 = vmatprep.subr.mxu0 0.0
        %2200 = vmatpush1.msra.mxu0 0.0
        %2201 = vmatprep.subr.mxu0 0.0
        %2202 = vmatpush1.msra.mxu0 0.0
        %2203 = vmatprep.subr.mxu0 0.0
        %2204 = vmatpush1.msra.mxu0 0.0
        %2205 = vmatprep.mubr.f32.mxu0 0.0
        %v2206 = vand.u32 %v1523, 4294901760
        %v2207 = vsub.f32 %v1523, %v2206
        %v2208 = vand.u32 %v2207, 4294901760
        %v2209 = vsub.f32 %v2207, %v2208
        %v2210 = vand.u32 %v2209, 4294901760
        %2211 = vmatmul.mubr.f32.gmra.mrb[0].mxu0 %v2210
        %v2212 = vpop.f32.mrb[0].mxu0
        %v2213 = vadd.f32 0.0, %v2212
        %v2214 = vpop.f32.mrb[0].mxu0
        %2215 = vmatprep.mubr.f32.mxu0 0.0
        %v2216 = vand.u32 %v1525, 4294901760
        %v2217 = vsub.f32 %v1525, %v2216
        %v2218 = vand.u32 %v2217, 4294901760
        %v2219 = vsub.f32 %v2217, %v2218
        %v2220 = vand.u32 %v2219, 4294901760
        %2221 = vmatmul.mubr.f32.gmra.mrb[0].mxu0 %v2220
        %v2222 = vpop.f32.mrb[0].mxu0
        %v2223 = vadd.f32 0.0, %v2222
        %v2224 = vpop.f32.mrb[0].mxu0
        %2225 = vdwg.mxu0
        %2226 = vmatprep.subr.mxu0 0.0
        %v2227 = vand.u32 %v341, 4294901760
        %v2228 = vsub.f32 %v341, %v2227
        %v2229 = vand.u32 %v2228, 4294901760
        %v2230 = vsub.f32 %v2228, %v2229
        %v2231 = vand.u32 %v2230, 4294901760
        %2232 = vmatpush1.msra.mxu0 %v2231
        %2233 = vmatprep.subr.mxu0 0.0
        %v2234 = vand.u32 %v342, 4294901760
        %v2235 = vsub.f32 %v342, %v2234
        %v2236 = vand.u32 %v2235, 4294901760
        %v2237 = vsub.f32 %v2235, %v2236
        %v2238 = vand.u32 %v2237, 4294901760
        %2239 = vmatpush1.msra.mxu0 %v2238
        %2240 = vmatprep.subr.mxu0 0.0
        %v2241 = vand.u32 %v343, 4294901760
        %v2242 = vsub.f32 %v343, %v2241
        %v2243 = vand.u32 %v2242, 4294901760
        %v2244 = vsub.f32 %v2242, %v2243
        %v2245 = vand.u32 %v2244, 4294901760
        %2246 = vmatpush1.msra.mxu0 %v2245
        %2247 = vmatprep.subr.mxu0 0.0
        %v2248 = vand.u32 %v344, 4294901760
        %v2249 = vsub.f32 %v344, %v2248
        %v2250 = vand.u32 %v2249, 4294901760
        %v2251 = vsub.f32 %v2249, %v2250
        %v2252 = vand.u32 %v2251, 4294901760
        %2253 = vmatpush1.msra.mxu0 %v2252
        %2254 = vmatprep.subr.mxu0 0.0
        %2255 = vmatpush1.msra.mxu0 0.0
        %2256 = vmatprep.subr.mxu0 0.0
        %2257 = vmatpush1.msra.mxu0 0.0
        %2258 = vmatprep.subr.mxu0 0.0
        %2259 = vmatpush1.msra.mxu0 0.0
        %2260 = vmatprep.subr.mxu0 0.0
        %2261 = vmatpush1.msra.mxu0 0.0
        %2262 = vmatprep.subr.mxu0 0.0
        %2263 = vmatpush1.msra.mxu0 0.0
        %2264 = vmatprep.subr.mxu0 0.0
        %2265 = vmatpush1.msra.mxu0 0.0
        %2266 = vmatprep.subr.mxu0 0.0
        %2267 = vmatpush1.msra.mxu0 0.0
        %2268 = vmatprep.subr.mxu0 0.0
        %2269 = vmatpush1.msra.mxu0 0.0
        %2270 = vmatprep.subr.mxu0 0.0
        %2271 = vmatpush1.msra.mxu0 0.0
        %2272 = vmatprep.subr.mxu0 0.0
        %2273 = vmatpush1.msra.mxu0 0.0
        %2274 = vmatprep.subr.mxu0 0.0
        %2275 = vmatpush1.msra.mxu0 0.0
        %2276 = vmatprep.subr.mxu0 0.0
        %2277 = vmatpush1.msra.mxu0 0.0
        %2278 = vmatprep.subr.mxu0 0.0
        %2279 = vmatpush1.msra.mxu0 0.0
        %2280 = vmatprep.subr.mxu0 0.0
        %2281 = vmatpush1.msra.mxu0 0.0
        %2282 = vmatprep.subr.mxu0 0.0
        %2283 = vmatpush1.msra.mxu0 0.0
        %2284 = vmatprep.subr.mxu0 0.0
        %2285 = vmatpush1.msra.mxu0 0.0
        %2286 = vmatprep.subr.mxu0 0.0
        %2287 = vmatpush1.msra.mxu0 0.0
        %2288 = vmatprep.subr.mxu0 0.0
        %2289 = vmatpush1.msra.mxu0 0.0
        %2290 = vmatprep.subr.mxu0 0.0
        %2291 = vmatpush1.msra.mxu0 0.0
        %2292 = vmatprep.subr.mxu0 0.0
        %2293 = vmatpush1.msra.mxu0 0.0
        %2294 = vmatprep.subr.mxu0 0.0
        %2295 = vmatpush1.msra.mxu0 0.0
        %2296 = vmatprep.subr.mxu0 0.0
        %2297 = vmatpush1.msra.mxu0 0.0
        %2298 = vmatprep.subr.mxu0 0.0
        %2299 = vmatpush1.msra.mxu0 0.0
        %2300 = vmatprep.subr.mxu0 0.0
        %2301 = vmatpush1.msra.mxu0 0.0
        %2302 = vmatprep.subr.mxu0 0.0
        %2303 = vmatpush1.msra.mxu0 0.0
        %2304 = vmatprep.subr.mxu0 0.0
        %2305 = vmatpush1.msra.mxu0 0.0
        %2306 = vmatprep.subr.mxu0 0.0
        %2307 = vmatpush1.msra.mxu0 0.0
        %2308 = vmatprep.subr.mxu0 0.0
        %2309 = vmatpush1.msra.mxu0 0.0
        %2310 = vmatprep.mubr.f32.mxu0 0.0
        %v2311 = vand.u32 %v1523, 4294901760
        %2312 = vmatmul.mubr.f32.gmra.mrb[0].mxu0 %v2311
        %v2313 = vpop.f32.mrb[0].mxu0
        %v2314 = vadd.f32 %v2213, %v2313
        %v2315 = vpop.f32.mrb[0].mxu0
        %2316 = vmatprep.mubr.f32.mxu0 0.0
        %v2317 = vand.u32 %v1525, 4294901760
        %2318 = vmatmul.mubr.f32.gmra.mrb[0].mxu0 %v2317
        %v2319 = vpop.f32.mrb[0].mxu0
        %v2320 = vadd.f32 %v2223, %v2319
        %v2321 = vpop.f32.mrb[0].mxu0
        %2322 = vdwg.mxu0
        %2323 = vmatprep.subr.mxu0 0.0
        %v2324 = vand.u32 %v341, 4294901760
        %v2325 = vsub.f32 %v341, %v2324
        %2326 = vmatpush1.msra.mxu0 %v2325
        %2327 = vmatprep.subr.mxu0 0.0
        %v2328 = vand.u32 %v342, 4294901760
        %v2329 = vsub.f32 %v342, %v2328
        %2330 = vmatpush1.msra.mxu0 %v2329
        %2331 = vmatprep.subr.mxu0 0.0
        %v2332 = vand.u32 %v343, 4294901760
        %v2333 = vsub.f32 %v343, %v2332
        %2334 = vmatpush1.msra.mxu0 %v2333
        %2335 = vmatprep.subr.mxu0 0.0
        %v2336 = vand.u32 %v344, 4294901760
        %v2337 = vsub.f32 %v344, %v2336
        %2338 = vmatpush1.msra.mxu0 %v2337
        %2339 = vmatprep.subr.mxu0 0.0
        %2340 = vmatpush1.msra.mxu0 0.0
        %2341 = vmatprep.subr.mxu0 0.0
        %2342 = vmatpush1.msra.mxu0 0.0
        %2343 = vmatprep.subr.mxu0 0.0
        %2344 = vmatpush1.msra.mxu0 0.0
        %2345 = vmatprep.subr.mxu0 0.0
        %2346 = vmatpush1.msra.mxu0 0.0
        %2347 = vmatprep.subr.mxu0 0.0
        %2348 = vmatpush1.msra.mxu0 0.0
        %2349 = vmatprep.subr.mxu0 0.0
        %2350 = vmatpush1.msra.mxu0 0.0
        %2351 = vmatprep.subr.mxu0 0.0
        %2352 = vmatpush1.msra.mxu0 0.0
        %2353 = vmatprep.subr.mxu0 0.0
        %2354 = vmatpush1.msra.mxu0 0.0
        %2355 = vmatprep.subr.mxu0 0.0
        %2356 = vmatpush1.msra.mxu0 0.0
        %2357 = vmatprep.subr.mxu0 0.0
        %2358 = vmatpush1.msra.mxu0 0.0
        %2359 = vmatprep.subr.mxu0 0.0
        %2360 = vmatpush1.msra.mxu0 0.0
        %2361 = vmatprep.subr.mxu0 0.0
        %2362 = vmatpush1.msra.mxu0 0.0
        %2363 = vmatprep.subr.mxu0 0.0
        %2364 = vmatpush1.msra.mxu0 0.0
        %2365 = vmatprep.subr.mxu0 0.0
        %2366 = vmatpush1.msra.mxu0 0.0
        %2367 = vmatprep.subr.mxu0 0.0
        %2368 = vmatpush1.msra.mxu0 0.0
        %2369 = vmatprep.subr.mxu0 0.0
        %2370 = vmatpush1.msra.mxu0 0.0
        %2371 = vmatprep.subr.mxu0 0.0
        %2372 = vmatpush1.msra.mxu0 0.0
        %2373 = vmatprep.subr.mxu0 0.0
        %2374 = vmatpush1.msra.mxu0 0.0
        %2375 = vmatprep.subr.mxu0 0.0
        %2376 = vmatpush1.msra.mxu0 0.0
        %2377 = vmatprep.subr.mxu0 0.0
        %2378 = vmatpush1.msra.mxu0 0.0
        %2379 = vmatprep.subr.mxu0 0.0
        %2380 = vmatpush1.msra.mxu0 0.0
        %2381 = vmatprep.subr.mxu0 0.0
        %2382 = vmatpush1.msra.mxu0 0.0
        %2383 = vmatprep.subr.mxu0 0.0
        %2384 = vmatpush1.msra.mxu0 0.0
        %2385 = vmatprep.subr.mxu0 0.0
        %2386 = vmatpush1.msra.mxu0 0.0
        %2387 = vmatprep.subr.mxu0 0.0
        %2388 = vmatpush1.msra.mxu0 0.0
        %2389 = vmatprep.subr.mxu0 0.0
        %2390 = vmatpush1.msra.mxu0 0.0
        %2391 = vmatprep.subr.mxu0 0.0
        %2392 = vmatpush1.msra.mxu0 0.0
        %2393 = vmatprep.subr.mxu0 0.0
        %2394 = vmatpush1.msra.mxu0 0.0
        %2395 = vmatprep.mubr.f32.mxu0 0.0
        %v2396 = vand.u32 %v1523, 4294901760
        %v2397 = vsub.f32 %v1523, %v2396
        %2398 = vmatmul.mubr.f32.gmra.mrb[0].mxu0 %v2397
        %v2399 = vpop.f32.mrb[0].mxu0
        %v2400 = vadd.f32 %v2314, %v2399
        %v2401 = vpop.f32.mrb[0].mxu0
        %2402 = vmatprep.mubr.f32.mxu0 0.0
        %v2403 = vand.u32 %v1525, 4294901760
        %v2404 = vsub.f32 %v1525, %v2403
        %2405 = vmatmul.mubr.f32.gmra.mrb[0].mxu0 %v2404
        %v2406 = vpop.f32.mrb[0].mxu0
        %v2407 = vadd.f32 %v2320, %v2406
        %v2408 = vpop.f32.mrb[0].mxu0
        %2409 = vdwg.mxu0
        %2410 = vmatprep.subr.mxu0 0.0
        %v2411 = vand.u32 %v341, 4294901760
        %2412 = vmatpush1.msra.mxu0 %v2411
        %2413 = vmatprep.subr.mxu0 0.0
        %v2414 = vand.u32 %v342, 4294901760
        %2415 = vmatpush1.msra.mxu0 %v2414
        %2416 = vmatprep.subr.mxu0 0.0
        %v2417 = vand.u32 %v343, 4294901760
        %2418 = vmatpush1.msra.mxu0 %v2417
        %2419 = vmatprep.subr.mxu0 0.0
        %v2420 = vand.u32 %v344, 4294901760
        %2421 = vmatpush1.msra.mxu0 %v2420
        %2422 = vmatprep.subr.mxu0 0.0
        %2423 = vmatpush1.msra.mxu0 0.0
        %2424 = vmatprep.subr.mxu0 0.0
        %2425 = vmatpush1.msra.mxu0 0.0
        %2426 = vmatprep.subr.mxu0 0.0
        %2427 = vmatpush1.msra.mxu0 0.0
        %2428 = vmatprep.subr.mxu0 0.0
        %2429 = vmatpush1.msra.mxu0 0.0
        %2430 = vmatprep.subr.mxu0 0.0
        %2431 = vmatpush1.msra.mxu0 0.0
        %2432 = vmatprep.subr.mxu0 0.0
        %2433 = vmatpush1.msra.mxu0 0.0
        %2434 = vmatprep.subr.mxu0 0.0
        %2435 = vmatpush1.msra.mxu0 0.0
        %2436 = vmatprep.subr.mxu0 0.0
        %2437 = vmatpush1.msra.mxu0 0.0
        %2438 = vmatprep.subr.mxu0 0.0
        %2439 = vmatpush1.msra.mxu0 0.0
        %2440 = vmatprep.subr.mxu0 0.0
        %2441 = vmatpush1.msra.mxu0 0.0
        %2442 = vmatprep.subr.mxu0 0.0
        %2443 = vmatpush1.msra.mxu0 0.0
        %2444 = vmatprep.subr.mxu0 0.0
        %2445 = vmatpush1.msra.mxu0 0.0
        %2446 = vmatprep.subr.mxu0 0.0
        %2447 = vmatpush1.msra.mxu0 0.0
        %2448 = vmatprep.subr.mxu0 0.0
        %2449 = vmatpush1.msra.mxu0 0.0
        %2450 = vmatprep.subr.mxu0 0.0
        %2451 = vmatpush1.msra.mxu0 0.0
        %2452 = vmatprep.subr.mxu0 0.0
        %2453 = vmatpush1.msra.mxu0 0.0
        %2454 = vmatprep.subr.mxu0 0.0
        %2455 = vmatpush1.msra.mxu0 0.0
        %2456 = vmatprep.subr.mxu0 0.0
        %2457 = vmatpush1.msra.mxu0 0.0
        %2458 = vmatprep.subr.mxu0 0.0
        %2459 = vmatpush1.msra.mxu0 0.0
        %2460 = vmatprep.subr.mxu0 0.0
        %2461 = vmatpush1.msra.mxu0 0.0
        %2462 = vmatprep.subr.mxu0 0.0
        %2463 = vmatpush1.msra.mxu0 0.0
        %2464 = vmatprep.subr.mxu0 0.0
        %2465 = vmatpush1.msra.mxu0 0.0
        %2466 = vmatprep.subr.mxu0 0.0
        %2467 = vmatpush1.msra.mxu0 0.0
        %2468 = vmatprep.subr.mxu0 0.0
        %2469 = vmatpush1.msra.mxu0 0.0
        %2470 = vmatprep.subr.mxu0 0.0
        %2471 = vmatpush1.msra.mxu0 0.0
        %2472 = vmatprep.subr.mxu0 0.0
        %2473 = vmatpush1.msra.mxu0 0.0
        %2474 = vmatprep.subr.mxu0 0.0
        %2475 = vmatpush1.msra.mxu0 0.0
        %2476 = vmatprep.subr.mxu0 0.0
        %2477 = vmatpush1.msra.mxu0 0.0
        %2478 = vmatprep.mubr.f32.mxu0 0.0
        %v2479 = vand.u32 %v1523, 4294901760
        %v2480 = vsub.f32 %v1523, %v2479
        %v2481 = vand.u32 %v2480, 4294901760
        %2482 = vmatmul.mubr.f32.gmra.mrb[0].mxu0 %v2481
        %v2483 = vpop.f32.mrb[0].mxu0
        %v2484 = vadd.f32 %v2400, %v2483
        %v2485 = vpop.f32.mrb[0].mxu0
        %2486 = vmatprep.mubr.f32.mxu0 0.0
        %v2487 = vand.u32 %v1525, 4294901760
        %v2488 = vsub.f32 %v1525, %v2487
        %v2489 = vand.u32 %v2488, 4294901760
        %2490 = vmatmul.mubr.f32.gmra.mrb[0].mxu0 %v2489
        %v2491 = vpop.f32.mrb[0].mxu0
        %v2492 = vadd.f32 %v2407, %v2491
        %v2493 = vpop.f32.mrb[0].mxu0
        %2494 = vdwg.mxu0
        %2495 = vmatprep.subr.mxu0 0.0
        %v2496 = vand.u32 %v341, 4294901760
        %v2497 = vsub.f32 %v341, %v2496
        %v2498 = vand.u32 %v2497, 4294901760
        %2499 = vmatpush1.msra.mxu0 %v2498
        %2500 = vmatprep.subr.mxu0 0.0
        %v2501 = vand.u32 %v342, 4294901760
        %v2502 = vsub.f32 %v342, %v2501
        %v2503 = vand.u32 %v2502, 4294901760
        %2504 = vmatpush1.msra.mxu0 %v2503
        %2505 = vmatprep.subr.mxu0 0.0
        %v2506 = vand.u32 %v343, 4294901760
        %v2507 = vsub.f32 %v343, %v2506
        %v2508 = vand.u32 %v2507, 4294901760
        %2509 = vmatpush1.msra.mxu0 %v2508
        %2510 = vmatprep.subr.mxu0 0.0
        %v2511 = vand.u32 %v344, 4294901760
        %v2512 = vsub.f32 %v344, %v2511
        %v2513 = vand.u32 %v2512, 4294901760
        %2514 = vmatpush1.msra.mxu0 %v2513
        %2515 = vmatprep.subr.mxu0 0.0
        %2516 = vmatpush1.msra.mxu0 0.0
        %2517 = vmatprep.subr.mxu0 0.0
        %2518 = vmatpush1.msra.mxu0 0.0
        %2519 = vmatprep.subr.mxu0 0.0
        %2520 = vmatpush1.msra.mxu0 0.0
        %2521 = vmatprep.subr.mxu0 0.0
        %2522 = vmatpush1.msra.mxu0 0.0
        %2523 = vmatprep.subr.mxu0 0.0
        %2524 = vmatpush1.msra.mxu0 0.0
        %2525 = vmatprep.subr.mxu0 0.0
        %2526 = vmatpush1.msra.mxu0 0.0
        %2527 = vmatprep.subr.mxu0 0.0
        %2528 = vmatpush1.msra.mxu0 0.0
        %2529 = vmatprep.subr.mxu0 0.0
        %2530 = vmatpush1.msra.mxu0 0.0
        %2531 = vmatprep.subr.mxu0 0.0
        %2532 = vmatpush1.msra.mxu0 0.0
        %2533 = vmatprep.subr.mxu0 0.0
        %2534 = vmatpush1.msra.mxu0 0.0
        %2535 = vmatprep.subr.mxu0 0.0
        %2536 = vmatpush1.msra.mxu0 0.0
        %2537 = vmatprep.subr.mxu0 0.0
        %2538 = vmatpush1.msra.mxu0 0.0
        %2539 = vmatprep.subr.mxu0 0.0
        %2540 = vmatpush1.msra.mxu0 0.0
        %2541 = vmatprep.subr.mxu0 0.0
        %2542 = vmatpush1.msra.mxu0 0.0
        %2543 = vmatprep.subr.mxu0 0.0
        %2544 = vmatpush1.msra.mxu0 0.0
        %2545 = vmatprep.subr.mxu0 0.0
        %2546 = vmatpush1.msra.mxu0 0.0
        %2547 = vmatprep.subr.mxu0 0.0
        %2548 = vmatpush1.msra.mxu0 0.0
        %2549 = vmatprep.subr.mxu0 0.0
        %2550 = vmatpush1.msra.mxu0 0.0
        %2551 = vmatprep.subr.mxu0 0.0
        %2552 = vmatpush1.msra.mxu0 0.0
        %2553 = vmatprep.subr.mxu0 0.0
        %2554 = vmatpush1.msra.mxu0 0.0
        %2555 = vmatprep.subr.mxu0 0.0
        %2556 = vmatpush1.msra.mxu0 0.0
        %2557 = vmatprep.subr.mxu0 0.0
        %2558 = vmatpush1.msra.mxu0 0.0
        %2559 = vmatprep.subr.mxu0 0.0
        %2560 = vmatpush1.msra.mxu0 0.0
        %2561 = vmatprep.subr.mxu0 0.0
        %2562 = vmatpush1.msra.mxu0 0.0
        %2563 = vmatprep.subr.mxu0 0.0
        %2564 = vmatpush1.msra.mxu0 0.0
        %2565 = vmatprep.subr.mxu0 0.0
        %2566 = vmatpush1.msra.mxu0 0.0
        %2567 = vmatprep.subr.mxu0 0.0
        %2568 = vmatpush1.msra.mxu0 0.0
        %2569 = vmatprep.subr.mxu0 0.0
        %2570 = vmatpush1.msra.mxu0 0.0
        %2571 = vmatprep.mubr.f32.mxu0 0.0
        %v2572 = vand.u32 %v1523, 4294901760
        %2573 = vmatmul.mubr.f32.gmra.mrb[0].mxu0 %v2572
        %v2574 = vpop.f32.mrb[0].mxu0
        %v2575 = vadd.f32 %v2484, %v2574
        %v2576 = vpop.f32.mrb[0].mxu0
        %2577 = vmatprep.mubr.f32.mxu0 0.0
        %v2578 = vand.u32 %v1525, 4294901760
        %2579 = vmatmul.mubr.f32.gmra.mrb[0].mxu0 %v2578
        %v2580 = vpop.f32.mrb[0].mxu0
        %v2581 = vadd.f32 %v2492, %v2580
        %v2582 = vpop.f32.mrb[0].mxu0
        %2583 = vdwg.mxu0
        %2584 = vmatprep.subr.mxu0 0.0
        %v2585 = vand.u32 %v341, 4294901760
        %2586 = vmatpush1.msra.mxu0 %v2585
        %2587 = vmatprep.subr.mxu0 0.0
        %v2588 = vand.u32 %v342, 4294901760
        %2589 = vmatpush1.msra.mxu0 %v2588
        %2590 = vmatprep.subr.mxu0 0.0
        %v2591 = vand.u32 %v343, 4294901760
        %2592 = vmatpush1.msra.mxu0 %v2591
        %2593 = vmatprep.subr.mxu0 0.0
        %v2594 = vand.u32 %v344, 4294901760
        %2595 = vmatpush1.msra.mxu0 %v2594
        %2596 = vmatprep.subr.mxu0 0.0
        %2597 = vmatpush1.msra.mxu0 0.0
        %2598 = vmatprep.subr.mxu0 0.0
        %2599 = vmatpush1.msra.mxu0 0.0
        %2600 = vmatprep.subr.mxu0 0.0
        %2601 = vmatpush1.msra.mxu0 0.0
        %2602 = vmatprep.subr.mxu0 0.0
        %2603 = vmatpush1.msra.mxu0 0.0
        %2604 = vmatprep.subr.mxu0 0.0
        %2605 = vmatpush1.msra.mxu0 0.0
        %2606 = vmatprep.subr.mxu0 0.0
        %2607 = vmatpush1.msra.mxu0 0.0
        %2608 = vmatprep.subr.mxu0 0.0
        %2609 = vmatpush1.msra.mxu0 0.0
        %2610 = vmatprep.subr.mxu0 0.0
        %2611 = vmatpush1.msra.mxu0 0.0
        %2612 = vmatprep.subr.mxu0 0.0
        %2613 = vmatpush1.msra.mxu0 0.0
        %2614 = vmatprep.subr.mxu0 0.0
        %2615 = vmatpush1.msra.mxu0 0.0
        %2616 = vmatprep.subr.mxu0 0.0
        %2617 = vmatpush1.msra.mxu0 0.0
        %2618 = vmatprep.subr.mxu0 0.0
        %2619 = vmatpush1.msra.mxu0 0.0
        %2620 = vmatprep.subr.mxu0 0.0
        %2621 = vmatpush1.msra.mxu0 0.0
        %2622 = vmatprep.subr.mxu0 0.0
        %2623 = vmatpush1.msra.mxu0 0.0
        %2624 = vmatprep.subr.mxu0 0.0
        %2625 = vmatpush1.msra.mxu0 0.0
        %2626 = vmatprep.subr.mxu0 0.0
        %2627 = vmatpush1.msra.mxu0 0.0
        %2628 = vmatprep.subr.mxu0 0.0
        %2629 = vmatpush1.msra.mxu0 0.0
        %2630 = vmatprep.subr.mxu0 0.0
        %2631 = vmatpush1.msra.mxu0 0.0
        %2632 = vmatprep.subr.mxu0 0.0
        %2633 = vmatpush1.msra.mxu0 0.0
        %2634 = vmatprep.subr.mxu0 0.0
        %2635 = vmatpush1.msra.mxu0 0.0
        %2636 = vmatprep.subr.mxu0 0.0
        %2637 = vmatpush1.msra.mxu0 0.0
        %2638 = vmatprep.subr.mxu0 0.0
        %2639 = vmatpush1.msra.mxu0 0.0
        %2640 = vmatprep.subr.mxu0 0.0
        %2641 = vmatpush1.msra.mxu0 0.0
        %2642 = vmatprep.subr.mxu0 0.0
        %2643 = vmatpush1.msra.mxu0 0.0
        %2644 = vmatprep.subr.mxu0 0.0
        %2645 = vmatpush1.msra.mxu0 0.0
        %2646 = vmatprep.subr.mxu0 0.0
        %2647 = vmatpush1.msra.mxu0 0.0
        %2648 = vmatprep.subr.mxu0 0.0
        %2649 = vmatpush1.msra.mxu0 0.0
        %2650 = vmatprep.subr.mxu0 0.0
        %2651 = vmatpush1.msra.mxu0 0.0
        %2652 = vmatprep.mubr.f32.mxu0 0.0
        %v2653 = vand.u32 %v1523, 4294901760
        %2654 = vmatmul.mubr.f32.gmra.mrb[0].mxu0 %v2653
        %v2655 = vpop.f32.mrb[0].mxu0
        %v2656 = vadd.f32 %v2575, %v2655
        %v2657 = vpop.f32.mrb[0].mxu0
        %2658 = vmatprep.mubr.f32.mxu0 0.0
        %v2659 = vand.u32 %v1525, 4294901760
        %2660 = vmatmul.mubr.f32.gmra.mrb[0].mxu0 %v2659
        %v2661 = vpop.f32.mrb[0].mxu0
        %v2662 = vadd.f32 %v2581, %v2661
        %v2663 = vpop.f32.mrb[0].mxu0
        %2664 = vdwg.mxu0
        %v2665 = vadd.f32 %v2135, %v2656
        %v2666 = vadd.f32 %v2136, %v2662
        %v2667 = vxor.u32 %v2665, 2147483648
        %v2668 = vxor.u32 %v2666, 2147483648
        %v2669 = vmul.f32 %v2667, 1.442695
        %v2670 = vpow.pop %v2669
        %v2671 = vmul.f32 %v2668, 1.442695
        %v2672 = vpow.pop %v2671
        %v2673 = vadd.f32 %v2670, 1.0
        %v2674 = vadd.f32 %v2672, 1.0
        %v2675 = vrcp.pop %v2673
        %v2676 = vmul.f32 1.0, %v2675
        %v2677 = vrcp.pop %v2674
        %v2678 = vmul.f32 1.0, %v2677
        %v2679 = vtanh.pop %v2665
        %v2680 = vtanh.pop %v2666
        %v2681 = vmul.f32 %v2676, %v981
        %v2682 = vmul.f32 %v2678, %v982
        %2685 = vrot.lane.b32.xlu0 %v2679, 64
        %v2686 = vpop.permute.xlu0 %2685
        %2687 = vrot.lane.b32.xlu0 %v2680, 64
        %v2688 = vpop.permute.xlu0 %2687
        %v2691 = vmul.f32 %v2676, %v2686
        %v2692 = vmul.f32 %v2678, %v2688
        %2695 = vrot.lane.b32.xlu0 %v2691, 32
        %v2696 = vpop.permute.xlu0 %2695
        %2697 = vrot.lane.b32.xlu0 %v2692, 32
        %v2698 = vpop.permute.xlu0 %2697
        %v2701 = vadd.f32 %v2681, %v2696
        %v2702 = vadd.f32 %v2682, %v2698
        %v2703 = vtanh.pop %v2701
        %v2704 = vtanh.pop %v2702
        %2707 = vrot.lane.b32.xlu0 %v2703, 64
        %v2708 = vpop.permute.xlu0 %2707
        %2709 = vrot.lane.b32.xlu0 %v2704, 64
        %v2710 = vpop.permute.xlu0 %2709
        %v2713 = vmul.f32 %v2676, %v2708
        %v2714 = vmul.f32 %v2678, %v2710
        %s2715 = scalar_select %p2133, 1, 0
        %v2716 = vstv %s2715
        %vm2717 = vcmp.eq.s32.totalorder %v2716, 1
        %v2718 = vsel %vm2717, %v2713, %v979
        %v2719 = vsel %vm2717, %v2714, %v980
        %v2720 = vsel %vm2717, %v2701, %v981
        %v2721 = vsel %vm2717, %v2702, %v982
        %v2722 = vsel %vm377, %v2126, 0
        %v2724 = vsel %vm377, %v2128, 0
        %2726 = vmatprep.subr.mxu0 0.0
        %v2727 = vand.u32 %v349, 4294901760
        %2728 = vmatpush1.msra.mxu0 %v2727
        %2729 = vmatprep.subr.mxu0 0.0
        %v2730 = vand.u32 %v350, 4294901760
        %2731 = vmatpush1.msra.mxu0 %v2730
        %2732 = vmatprep.subr.mxu0 0.0
        %v2733 = vand.u32 %v351, 4294901760
        %2734 = vmatpush1.msra.mxu0 %v2733
        %2735 = vmatprep.subr.mxu0 0.0
        %v2736 = vand.u32 %v352, 4294901760
        %2737 = vmatpush1.msra.mxu0 %v2736
        %2738 = vmatprep.subr.mxu0 0.0
        %2739 = vmatpush1.msra.mxu0 0.0
        %2740 = vmatprep.subr.mxu0 0.0
        %2741 = vmatpush1.msra.mxu0 0.0
        %2742 = vmatprep.subr.mxu0 0.0
        %2743 = vmatpush1.msra.mxu0 0.0
        %2744 = vmatprep.subr.mxu0 0.0
        %2745 = vmatpush1.msra.mxu0 0.0
        %2746 = vmatprep.subr.mxu0 0.0
        %2747 = vmatpush1.msra.mxu0 0.0
        %2748 = vmatprep.subr.mxu0 0.0
        %2749 = vmatpush1.msra.mxu0 0.0
        %2750 = vmatprep.subr.mxu0 0.0
        %2751 = vmatpush1.msra.mxu0 0.0
        %2752 = vmatprep.subr.mxu0 0.0
        %2753 = vmatpush1.msra.mxu0 0.0
        %2754 = vmatprep.subr.mxu0 0.0
        %2755 = vmatpush1.msra.mxu0 0.0
        %2756 = vmatprep.subr.mxu0 0.0
        %2757 = vmatpush1.msra.mxu0 0.0
        %2758 = vmatprep.subr.mxu0 0.0
        %2759 = vmatpush1.msra.mxu0 0.0
        %2760 = vmatprep.subr.mxu0 0.0
        %2761 = vmatpush1.msra.mxu0 0.0
        %2762 = vmatprep.subr.mxu0 0.0
        %2763 = vmatpush1.msra.mxu0 0.0
        %2764 = vmatprep.subr.mxu0 0.0
        %2765 = vmatpush1.msra.mxu0 0.0
        %2766 = vmatprep.subr.mxu0 0.0
        %2767 = vmatpush1.msra.mxu0 0.0
        %2768 = vmatprep.subr.mxu0 0.0
        %2769 = vmatpush1.msra.mxu0 0.0
        %2770 = vmatprep.subr.mxu0 0.0
        %2771 = vmatpush1.msra.mxu0 0.0
        %2772 = vmatprep.subr.mxu0 0.0
        %2773 = vmatpush1.msra.mxu0 0.0
        %2774 = vmatprep.subr.mxu0 0.0
        %2775 = vmatpush1.msra.mxu0 0.0
        %2776 = vmatprep.subr.mxu0 0.0
        %2777 = vmatpush1.msra.mxu0 0.0
        %2778 = vmatprep.subr.mxu0 0.0
        %2779 = vmatpush1.msra.mxu0 0.0
        %2780 = vmatprep.subr.mxu0 0.0
        %2781 = vmatpush1.msra.mxu0 0.0
        %2782 = vmatprep.subr.mxu0 0.0
        %2783 = vmatpush1.msra.mxu0 0.0
        %2784 = vmatprep.subr.mxu0 0.0
        %2785 = vmatpush1.msra.mxu0 0.0
        %2786 = vmatprep.subr.mxu0 0.0
        %2787 = vmatpush1.msra.mxu0 0.0
        %2788 = vmatprep.subr.mxu0 0.0
        %2789 = vmatpush1.msra.mxu0 0.0
        %2790 = vmatprep.subr.mxu0 0.0
        %2791 = vmatpush1.msra.mxu0 0.0
        %2792 = vmatprep.subr.mxu0 0.0
        %2793 = vmatpush1.msra.mxu0 0.0
        %2794 = vmatprep.mubr.f32.mxu0 0.0
        %v2795 = vand.u32 %v2722, 4294901760
        %v2796 = vsub.f32 %v2722, %v2795
        %v2797 = vand.u32 %v2796, 4294901760
        %v2798 = vsub.f32 %v2796, %v2797
        %v2799 = vand.u32 %v2798, 4294901760
        %2800 = vmatmul.mubr.f32.gmra.mrb[0].mxu0 %v2799
        %v2801 = vpop.f32.mrb[0].mxu0
        %v2802 = vadd.f32 0.0, %v2801
        %v2803 = vpop.f32.mrb[0].mxu0
        %2804 = vmatprep.mubr.f32.mxu0 0.0
        %v2805 = vand.u32 %v2724, 4294901760
        %v2806 = vsub.f32 %v2724, %v2805
        %v2807 = vand.u32 %v2806, 4294901760
        %v2808 = vsub.f32 %v2806, %v2807
        %v2809 = vand.u32 %v2808, 4294901760
        %2810 = vmatmul.mubr.f32.gmra.mrb[0].mxu0 %v2809
        %v2811 = vpop.f32.mrb[0].mxu0
        %v2812 = vadd.f32 0.0, %v2811
        %v2813 = vpop.f32.mrb[0].mxu0
        %2814 = vdwg.mxu0
        %2815 = vmatprep.subr.mxu0 0.0
        %v2816 = vand.u32 %v349, 4294901760
        %v2817 = vsub.f32 %v349, %v2816
        %v2818 = vand.u32 %v2817, 4294901760
        %v2819 = vsub.f32 %v2817, %v2818
        %v2820 = vand.u32 %v2819, 4294901760
        %2821 = vmatpush1.msra.mxu0 %v2820
        %2822 = vmatprep.subr.mxu0 0.0
        %v2823 = vand.u32 %v350, 4294901760
        %v2824 = vsub.f32 %v350, %v2823
        %v2825 = vand.u32 %v2824, 4294901760
        %v2826 = vsub.f32 %v2824, %v2825
        %v2827 = vand.u32 %v2826, 4294901760
        %2828 = vmatpush1.msra.mxu0 %v2827
        %2829 = vmatprep.subr.mxu0 0.0
        %v2830 = vand.u32 %v351, 4294901760
        %v2831 = vsub.f32 %v351, %v2830
        %v2832 = vand.u32 %v2831, 4294901760
        %v2833 = vsub.f32 %v2831, %v2832
        %v2834 = vand.u32 %v2833, 4294901760
        %2835 = vmatpush1.msra.mxu0 %v2834
        %2836 = vmatprep.subr.mxu0 0.0
        %v2837 = vand.u32 %v352, 4294901760
        %v2838 = vsub.f32 %v352, %v2837
        %v2839 = vand.u32 %v2838, 4294901760
        %v2840 = vsub.f32 %v2838, %v2839
        %v2841 = vand.u32 %v2840, 4294901760
        %2842 = vmatpush1.msra.mxu0 %v2841
        %2843 = vmatprep.subr.mxu0 0.0
        %2844 = vmatpush1.msra.mxu0 0.0
        %2845 = vmatprep.subr.mxu0 0.0
        %2846 = vmatpush1.msra.mxu0 0.0
        %2847 = vmatprep.subr.mxu0 0.0
        %2848 = vmatpush1.msra.mxu0 0.0
        %2849 = vmatprep.subr.mxu0 0.0
        %2850 = vmatpush1.msra.mxu0 0.0
        %2851 = vmatprep.subr.mxu0 0.0
        %2852 = vmatpush1.msra.mxu0 0.0
        %2853 = vmatprep.subr.mxu0 0.0
        %2854 = vmatpush1.msra.mxu0 0.0
        %2855 = vmatprep.subr.mxu0 0.0
        %2856 = vmatpush1.msra.mxu0 0.0
        %2857 = vmatprep.subr.mxu0 0.0
        %2858 = vmatpush1.msra.mxu0 0.0
        %2859 = vmatprep.subr.mxu0 0.0
        %2860 = vmatpush1.msra.mxu0 0.0
        %2861 = vmatprep.subr.mxu0 0.0
        %2862 = vmatpush1.msra.mxu0 0.0
        %2863 = vmatprep.subr.mxu0 0.0
        %2864 = vmatpush1.msra.mxu0 0.0
        %2865 = vmatprep.subr.mxu0 0.0
        %2866 = vmatpush1.msra.mxu0 0.0
        %2867 = vmatprep.subr.mxu0 0.0
        %2868 = vmatpush1.msra.mxu0 0.0
        %2869 = vmatprep.subr.mxu0 0.0
        %2870 = vmatpush1.msra.mxu0 0.0
        %2871 = vmatprep.subr.mxu0 0.0
        %2872 = vmatpush1.msra.mxu0 0.0
        %2873 = vmatprep.subr.mxu0 0.0
        %2874 = vmatpush1.msra.mxu0 0.0
        %2875 = vmatprep.subr.mxu0 0.0
        %2876 = vmatpush1.msra.mxu0 0.0
        %2877 = vmatprep.subr.mxu0 0.0
        %2878 = vmatpush1.msra.mxu0 0.0
        %2879 = vmatprep.subr.mxu0 0.0
        %2880 = vmatpush1.msra.mxu0 0.0
        %2881 = vmatprep.subr.mxu0 0.0
        %2882 = vmatpush1.msra.mxu0 0.0
        %2883 = vmatprep.subr.mxu0 0.0
        %2884 = vmatpush1.msra.mxu0 0.0
        %2885 = vmatprep.subr.mxu0 0.0
        %2886 = vmatpush1.msra.mxu0 0.0
        %2887 = vmatprep.subr.mxu0 0.0
        %2888 = vmatpush1.msra.mxu0 0.0
        %2889 = vmatprep.subr.mxu0 0.0
        %2890 = vmatpush1.msra.mxu0 0.0
        %2891 = vmatprep.subr.mxu0 0.0
        %2892 = vmatpush1.msra.mxu0 0.0
        %2893 = vmatprep.subr.mxu0 0.0
        %2894 = vmatpush1.msra.mxu0 0.0
        %2895 = vmatprep.subr.mxu0 0.0
        %2896 = vmatpush1.msra.mxu0 0.0
        %2897 = vmatprep.subr.mxu0 0.0
        %2898 = vmatpush1.msra.mxu0 0.0
        %2899 = vmatprep.mubr.f32.mxu0 0.0
        %v2900 = vand.u32 %v2722, 4294901760
        %2901 = vmatmul.mubr.f32.gmra.mrb[0].mxu0 %v2900
        %v2902 = vpop.f32.mrb[0].mxu0
        %v2903 = vadd.f32 %v2802, %v2902
        %v2904 = vpop.f32.mrb[0].mxu0
        %2905 = vmatprep.mubr.f32.mxu0 0.0
        %v2906 = vand.u32 %v2724, 4294901760
        %2907 = vmatmul.mubr.f32.gmra.mrb[0].mxu0 %v2906
        %v2908 = vpop.f32.mrb[0].mxu0
        %v2909 = vadd.f32 %v2812, %v2908
        %v2910 = vpop.f32.mrb[0].mxu0
        %2911 = vdwg.mxu0
        %2912 = vmatprep.subr.mxu0 0.0
        %v2913 = vand.u32 %v349, 4294901760
        %v2914 = vsub.f32 %v349, %v2913
        %2915 = vmatpush1.msra.mxu0 %v2914
        %2916 = vmatprep.subr.mxu0 0.0
        %v2917 = vand.u32 %v350, 4294901760
        %v2918 = vsub.f32 %v350, %v2917
        %2919 = vmatpush1.msra.mxu0 %v2918
        %2920 = vmatprep.subr.mxu0 0.0
        %v2921 = vand.u32 %v351, 4294901760
        %v2922 = vsub.f32 %v351, %v2921
        %2923 = vmatpush1.msra.mxu0 %v2922
        %2924 = vmatprep.subr.mxu0 0.0
        %v2925 = vand.u32 %v352, 4294901760
        %v2926 = vsub.f32 %v352, %v2925
        %2927 = vmatpush1.msra.mxu0 %v2926
        %2928 = vmatprep.subr.mxu0 0.0
        %2929 = vmatpush1.msra.mxu0 0.0
        %2930 = vmatprep.subr.mxu0 0.0
        %2931 = vmatpush1.msra.mxu0 0.0
        %2932 = vmatprep.subr.mxu0 0.0
        %2933 = vmatpush1.msra.mxu0 0.0
        %2934 = vmatprep.subr.mxu0 0.0
        %2935 = vmatpush1.msra.mxu0 0.0
        %2936 = vmatprep.subr.mxu0 0.0
        %2937 = vmatpush1.msra.mxu0 0.0
        %2938 = vmatprep.subr.mxu0 0.0
        %2939 = vmatpush1.msra.mxu0 0.0
        %2940 = vmatprep.subr.mxu0 0.0
        %2941 = vmatpush1.msra.mxu0 0.0
        %2942 = vmatprep.subr.mxu0 0.0
        %2943 = vmatpush1.msra.mxu0 0.0
        %2944 = vmatprep.subr.mxu0 0.0
        %2945 = vmatpush1.msra.mxu0 0.0
        %2946 = vmatprep.subr.mxu0 0.0
        %2947 = vmatpush1.msra.mxu0 0.0
        %2948 = vmatprep.subr.mxu0 0.0
        %2949 = vmatpush1.msra.mxu0 0.0
        %2950 = vmatprep.subr.mxu0 0.0
        %2951 = vmatpush1.msra.mxu0 0.0
        %2952 = vmatprep.subr.mxu0 0.0
        %2953 = vmatpush1.msra.mxu0 0.0
        %2954 = vmatprep.subr.mxu0 0.0
        %2955 = vmatpush1.msra.mxu0 0.0
        %2956 = vmatprep.subr.mxu0 0.0
        %2957 = vmatpush1.msra.mxu0 0.0
        %2958 = vmatprep.subr.mxu0 0.0
        %2959 = vmatpush1.msra.mxu0 0.0
        %2960 = vmatprep.subr.mxu0 0.0
        %2961 = vmatpush1.msra.mxu0 0.0
        %2962 = vmatprep.subr.mxu0 0.0
        %2963 = vmatpush1.msra.mxu0 0.0
        %2964 = vmatprep.subr.mxu0 0.0
        %2965 = vmatpush1.msra.mxu0 0.0
        %2966 = vmatprep.subr.mxu0 0.0
        %2967 = vmatpush1.msra.mxu0 0.0
        %2968 = vmatprep.subr.mxu0 0.0
        %2969 = vmatpush1.msra.mxu0 0.0
        %2970 = vmatprep.subr.mxu0 0.0
        %2971 = vmatpush1.msra.mxu0 0.0
        %2972 = vmatprep.subr.mxu0 0.0
        %2973 = vmatpush1.msra.mxu0 0.0
        %2974 = vmatprep.subr.mxu0 0.0
        %2975 = vmatpush1.msra.mxu0 0.0
        %2976 = vmatprep.subr.mxu0 0.0
        %2977 = vmatpush1.msra.mxu0 0.0
        %2978 = vmatprep.subr.mxu0 0.0
        %2979 = vmatpush1.msra.mxu0 0.0
        %2980 = vmatprep.subr.mxu0 0.0
        %2981 = vmatpush1.msra.mxu0 0.0
        %2982 = vmatprep.subr.mxu0 0.0
        %2983 = vmatpush1.msra.mxu0 0.0
        %2984 = vmatprep.mubr.f32.mxu0 0.0
        %v2985 = vand.u32 %v2722, 4294901760
        %v2986 = vsub.f32 %v2722, %v2985
        %2987 = vmatmul.mubr.f32.gmra.mrb[0].mxu0 %v2986
        %v2988 = vpop.f32.mrb[0].mxu0
        %v2989 = vadd.f32 %v2903, %v2988
        %v2990 = vpop.f32.mrb[0].mxu0
        %2991 = vmatprep.mubr.f32.mxu0 0.0
        %v2992 = vand.u32 %v2724, 4294901760
        %v2993 = vsub.f32 %v2724, %v2992
        %2994 = vmatmul.mubr.f32.gmra.mrb[0].mxu0 %v2993
        %v2995 = vpop.f32.mrb[0].mxu0
        %v2996 = vadd.f32 %v2909, %v2995
        %v2997 = vpop.f32.mrb[0].mxu0
        %2998 = vdwg.mxu0
        %2999 = vmatprep.subr.mxu0 0.0
        %v3000 = vand.u32 %v349, 4294901760
        %3001 = vmatpush1.msra.mxu0 %v3000
        %3002 = vmatprep.subr.mxu0 0.0
        %v3003 = vand.u32 %v350, 4294901760
        %3004 = vmatpush1.msra.mxu0 %v3003
        %3005 = vmatprep.subr.mxu0 0.0
        %v3006 = vand.u32 %v351, 4294901760
        %3007 = vmatpush1.msra.mxu0 %v3006
        %3008 = vmatprep.subr.mxu0 0.0
        %v3009 = vand.u32 %v352, 4294901760
        %3010 = vmatpush1.msra.mxu0 %v3009
        %3011 = vmatprep.subr.mxu0 0.0
        %3012 = vmatpush1.msra.mxu0 0.0
        %3013 = vmatprep.subr.mxu0 0.0
        %3014 = vmatpush1.msra.mxu0 0.0
        %3015 = vmatprep.subr.mxu0 0.0
        %3016 = vmatpush1.msra.mxu0 0.0
        %3017 = vmatprep.subr.mxu0 0.0
        %3018 = vmatpush1.msra.mxu0 0.0
        %3019 = vmatprep.subr.mxu0 0.0
        %3020 = vmatpush1.msra.mxu0 0.0
        %3021 = vmatprep.subr.mxu0 0.0
        %3022 = vmatpush1.msra.mxu0 0.0
        %3023 = vmatprep.subr.mxu0 0.0
        %3024 = vmatpush1.msra.mxu0 0.0
        %3025 = vmatprep.subr.mxu0 0.0
        %3026 = vmatpush1.msra.mxu0 0.0
        %3027 = vmatprep.subr.mxu0 0.0
        %3028 = vmatpush1.msra.mxu0 0.0
        %3029 = vmatprep.subr.mxu0 0.0
        %3030 = vmatpush1.msra.mxu0 0.0
        %3031 = vmatprep.subr.mxu0 0.0
        %3032 = vmatpush1.msra.mxu0 0.0
        %3033 = vmatprep.subr.mxu0 0.0
        %3034 = vmatpush1.msra.mxu0 0.0
        %3035 = vmatprep.subr.mxu0 0.0
        %3036 = vmatpush1.msra.mxu0 0.0
        %3037 = vmatprep.subr.mxu0 0.0
        %3038 = vmatpush1.msra.mxu0 0.0
        %3039 = vmatprep.subr.mxu0 0.0
        %3040 = vmatpush1.msra.mxu0 0.0
        %3041 = vmatprep.subr.mxu0 0.0
        %3042 = vmatpush1.msra.mxu0 0.0
        %3043 = vmatprep.subr.mxu0 0.0
        %3044 = vmatpush1.msra.mxu0 0.0
        %3045 = vmatprep.subr.mxu0 0.0
        %3046 = vmatpush1.msra.mxu0 0.0
        %3047 = vmatprep.subr.mxu0 0.0
        %3048 = vmatpush1.msra.mxu0 0.0
        %3049 = vmatprep.subr.mxu0 0.0
        %3050 = vmatpush1.msra.mxu0 0.0
        %3051 = vmatprep.subr.mxu0 0.0
        %3052 = vmatpush1.msra.mxu0 0.0
        %3053 = vmatprep.subr.mxu0 0.0
        %3054 = vmatpush1.msra.mxu0 0.0
        %3055 = vmatprep.subr.mxu0 0.0
        %3056 = vmatpush1.msra.mxu0 0.0
        %3057 = vmatprep.subr.mxu0 0.0
        %3058 = vmatpush1.msra.mxu0 0.0
        %3059 = vmatprep.subr.mxu0 0.0
        %3060 = vmatpush1.msra.mxu0 0.0
        %3061 = vmatprep.subr.mxu0 0.0
        %3062 = vmatpush1.msra.mxu0 0.0
        %3063 = vmatprep.subr.mxu0 0.0
        %3064 = vmatpush1.msra.mxu0 0.0
        %3065 = vmatprep.subr.mxu0 0.0
        %3066 = vmatpush1.msra.mxu0 0.0
        %3067 = vmatprep.mubr.f32.mxu0 0.0
        %v3068 = vand.u32 %v2722, 4294901760
        %v3069 = vsub.f32 %v2722, %v3068
        %v3070 = vand.u32 %v3069, 4294901760
        %3071 = vmatmul.mubr.f32.gmra.mrb[0].mxu0 %v3070
        %v3072 = vpop.f32.mrb[0].mxu0
        %v3073 = vadd.f32 %v2989, %v3072
        %v3074 = vpop.f32.mrb[0].mxu0
        %3075 = vmatprep.mubr.f32.mxu0 0.0
        %v3076 = vand.u32 %v2724, 4294901760
        %v3077 = vsub.f32 %v2724, %v3076
        %v3078 = vand.u32 %v3077, 4294901760
        %3079 = vmatmul.mubr.f32.gmra.mrb[0].mxu0 %v3078
        %v3080 = vpop.f32.mrb[0].mxu0
        %v3081 = vadd.f32 %v2996, %v3080
        %v3082 = vpop.f32.mrb[0].mxu0
        %3083 = vdwg.mxu0
        %3084 = vmatprep.subr.mxu0 0.0
        %v3085 = vand.u32 %v349, 4294901760
        %v3086 = vsub.f32 %v349, %v3085
        %v3087 = vand.u32 %v3086, 4294901760
        %3088 = vmatpush1.msra.mxu0 %v3087
        %3089 = vmatprep.subr.mxu0 0.0
        %v3090 = vand.u32 %v350, 4294901760
        %v3091 = vsub.f32 %v350, %v3090
        %v3092 = vand.u32 %v3091, 4294901760
        %3093 = vmatpush1.msra.mxu0 %v3092
        %3094 = vmatprep.subr.mxu0 0.0
        %v3095 = vand.u32 %v351, 4294901760
        %v3096 = vsub.f32 %v351, %v3095
        %v3097 = vand.u32 %v3096, 4294901760
        %3098 = vmatpush1.msra.mxu0 %v3097
        %3099 = vmatprep.subr.mxu0 0.0
        %v3100 = vand.u32 %v352, 4294901760
        %v3101 = vsub.f32 %v352, %v3100
        %v3102 = vand.u32 %v3101, 4294901760
        %3103 = vmatpush1.msra.mxu0 %v3102
        %3104 = vmatprep.subr.mxu0 0.0
        %3105 = vmatpush1.msra.mxu0 0.0
        %3106 = vmatprep.subr.mxu0 0.0
        %3107 = vmatpush1.msra.mxu0 0.0
        %3108 = vmatprep.subr.mxu0 0.0
        %3109 = vmatpush1.msra.mxu0 0.0
        %3110 = vmatprep.subr.mxu0 0.0
        %3111 = vmatpush1.msra.mxu0 0.0
        %3112 = vmatprep.subr.mxu0 0.0
        %3113 = vmatpush1.msra.mxu0 0.0
        %3114 = vmatprep.subr.mxu0 0.0
        %3115 = vmatpush1.msra.mxu0 0.0
        %3116 = vmatprep.subr.mxu0 0.0
        %3117 = vmatpush1.msra.mxu0 0.0
        %3118 = vmatprep.subr.mxu0 0.0
        %3119 = vmatpush1.msra.mxu0 0.0
        %3120 = vmatprep.subr.mxu0 0.0
        %3121 = vmatpush1.msra.mxu0 0.0
        %3122 = vmatprep.subr.mxu0 0.0
        %3123 = vmatpush1.msra.mxu0 0.0
        %3124 = vmatprep.subr.mxu0 0.0
        %3125 = vmatpush1.msra.mxu0 0.0
        %3126 = vmatprep.subr.mxu0 0.0
        %3127 = vmatpush1.msra.mxu0 0.0
        %3128 = vmatprep.subr.mxu0 0.0
        %3129 = vmatpush1.msra.mxu0 0.0
        %3130 = vmatprep.subr.mxu0 0.0
        %3131 = vmatpush1.msra.mxu0 0.0
        %3132 = vmatprep.subr.mxu0 0.0
        %3133 = vmatpush1.msra.mxu0 0.0
        %3134 = vmatprep.subr.mxu0 0.0
        %3135 = vmatpush1.msra.mxu0 0.0
        %3136 = vmatprep.subr.mxu0 0.0
        %3137 = vmatpush1.msra.mxu0 0.0
        %3138 = vmatprep.subr.mxu0 0.0
        %3139 = vmatpush1.msra.mxu0 0.0
        %3140 = vmatprep.subr.mxu0 0.0
        %3141 = vmatpush1.msra.mxu0 0.0
        %3142 = vmatprep.subr.mxu0 0.0
        %3143 = vmatpush1.msra.mxu0 0.0
        %3144 = vmatprep.subr.mxu0 0.0
        %3145 = vmatpush1.msra.mxu0 0.0
        %3146 = vmatprep.subr.mxu0 0.0
        %3147 = vmatpush1.msra.mxu0 0.0
        %3148 = vmatprep.subr.mxu0 0.0
        %3149 = vmatpush1.msra.mxu0 0.0
        %3150 = vmatprep.subr.mxu0 0.0
        %3151 = vmatpush1.msra.mxu0 0.0
        %3152 = vmatprep.subr.mxu0 0.0
        %3153 = vmatpush1.msra.mxu0 0.0
        %3154 = vmatprep.subr.mxu0 0.0
        %3155 = vmatpush1.msra.mxu0 0.0
        %3156 = vmatprep.subr.mxu0 0.0
        %3157 = vmatpush1.msra.mxu0 0.0
        %3158 = vmatprep.subr.mxu0 0.0
        %3159 = vmatpush1.msra.mxu0 0.0
        %3160 = vmatprep.mubr.f32.mxu0 0.0
        %v3161 = vand.u32 %v2722, 4294901760
        %3162 = vmatmul.mubr.f32.gmra.mrb[0].mxu0 %v3161
        %v3163 = vpop.f32.mrb[0].mxu0
        %v3164 = vadd.f32 %v3073, %v3163
        %v3165 = vpop.f32.mrb[0].mxu0
        %3166 = vmatprep.mubr.f32.mxu0 0.0
        %v3167 = vand.u32 %v2724, 4294901760
        %3168 = vmatmul.mubr.f32.gmra.mrb[0].mxu0 %v3167
        %v3169 = vpop.f32.mrb[0].mxu0
        %v3170 = vadd.f32 %v3081, %v3169
        %v3171 = vpop.f32.mrb[0].mxu0
        %3172 = vdwg.mxu0
        %3173 = vmatprep.subr.mxu0 0.0
        %v3174 = vand.u32 %v349, 4294901760
        %3175 = vmatpush1.msra.mxu0 %v3174
        %3176 = vmatprep.subr.mxu0 0.0
        %v3177 = vand.u32 %v350, 4294901760
        %3178 = vmatpush1.msra.mxu0 %v3177
        %3179 = vmatprep.subr.mxu0 0.0
        %v3180 = vand.u32 %v351, 4294901760
        %3181 = vmatpush1.msra.mxu0 %v3180
        %3182 = vmatprep.subr.mxu0 0.0
        %v3183 = vand.u32 %v352, 4294901760
        %3184 = vmatpush1.msra.mxu0 %v3183
        %3185 = vmatprep.subr.mxu0 0.0
        %3186 = vmatpush1.msra.mxu0 0.0
        %3187 = vmatprep.subr.mxu0 0.0
        %3188 = vmatpush1.msra.mxu0 0.0
        %3189 = vmatprep.subr.mxu0 0.0
        %3190 = vmatpush1.msra.mxu0 0.0
        %3191 = vmatprep.subr.mxu0 0.0
        %3192 = vmatpush1.msra.mxu0 0.0
        %3193 = vmatprep.subr.mxu0 0.0
        %3194 = vmatpush1.msra.mxu0 0.0
        %3195 = vmatprep.subr.mxu0 0.0
        %3196 = vmatpush1.msra.mxu0 0.0
        %3197 = vmatprep.subr.mxu0 0.0
        %3198 = vmatpush1.msra.mxu0 0.0
        %3199 = vmatprep.subr.mxu0 0.0
        %3200 = vmatpush1.msra.mxu0 0.0
        %3201 = vmatprep.subr.mxu0 0.0
        %3202 = vmatpush1.msra.mxu0 0.0
        %3203 = vmatprep.subr.mxu0 0.0
        %3204 = vmatpush1.msra.mxu0 0.0
        %3205 = vmatprep.subr.mxu0 0.0
        %3206 = vmatpush1.msra.mxu0 0.0
        %3207 = vmatprep.subr.mxu0 0.0
        %3208 = vmatpush1.msra.mxu0 0.0
        %3209 = vmatprep.subr.mxu0 0.0
        %3210 = vmatpush1.msra.mxu0 0.0
        %3211 = vmatprep.subr.mxu0 0.0
        %3212 = vmatpush1.msra.mxu0 0.0
        %3213 = vmatprep.subr.mxu0 0.0
        %3214 = vmatpush1.msra.mxu0 0.0
        %3215 = vmatprep.subr.mxu0 0.0
        %3216 = vmatpush1.msra.mxu0 0.0
        %3217 = vmatprep.subr.mxu0 0.0
        %3218 = vmatpush1.msra.mxu0 0.0
        %3219 = vmatprep.subr.mxu0 0.0
        %3220 = vmatpush1.msra.mxu0 0.0
        %3221 = vmatprep.subr.mxu0 0.0
        %3222 = vmatpush1.msra.mxu0 0.0
        %3223 = vmatprep.subr.mxu0 0.0
        %3224 = vmatpush1.msra.mxu0 0.0
        %3225 = vmatprep.subr.mxu0 0.0
        %3226 = vmatpush1.msra.mxu0 0.0
        %3227 = vmatprep.subr.mxu0 0.0
        %3228 = vmatpush1.msra.mxu0 0.0
        %3229 = vmatprep.subr.mxu0 0.0
        %3230 = vmatpush1.msra.mxu0 0.0
        %3231 = vmatprep.subr.mxu0 0.0
        %3232 = vmatpush1.msra.mxu0 0.0
        %3233 = vmatprep.subr.mxu0 0.0
        %3234 = vmatpush1.msra.mxu0 0.0
        %3235 = vmatprep.subr.mxu0 0.0
        %3236 = vmatpush1.msra.mxu0 0.0
        %3237 = vmatprep.subr.mxu0 0.0
        %3238 = vmatpush1.msra.mxu0 0.0
        %3239 = vmatprep.subr.mxu0 0.0
        %3240 = vmatpush1.msra.mxu0 0.0
        %3241 = vmatprep.mubr.f32.mxu0 0.0
        %v3242 = vand.u32 %v2722, 4294901760
        %3243 = vmatmul.mubr.f32.gmra.mrb[0].mxu0 %v3242
        %v3244 = vpop.f32.mrb[0].mxu0
        %v3245 = vadd.f32 %v3164, %v3244
        %v3246 = vpop.f32.mrb[0].mxu0
        %3247 = vmatprep.mubr.f32.mxu0 0.0
        %v3248 = vand.u32 %v2724, 4294901760
        %3249 = vmatmul.mubr.f32.gmra.mrb[0].mxu0 %v3248
        %v3250 = vpop.f32.mrb[0].mxu0
        %v3251 = vadd.f32 %v3170, %v3250
        %v3252 = vpop.f32.mrb[0].mxu0
        %3253 = vdwg.mxu0
        %3256 = vrot.lane.b32.xlu0 %v2718, 32
        %v3257 = vpop.permute.xlu0 %3256
        %3258 = vrot.lane.b32.xlu0 %v2719, 32
        %v3259 = vpop.permute.xlu0 %3258
        %v3260 = vsel %vm377, %v3257, 0
        %v3262 = vsel %vm377, %v3259, 0
        %3264 = vmatprep.subr.mxu0 0.0
        %v3265 = vand.u32 %v345, 4294901760
        %3266 = vmatpush1.msra.mxu0 %v3265
        %3267 = vmatprep.subr.mxu0 0.0
        %v3268 = vand.u32 %v346, 4294901760
        %3269 = vmatpush1.msra.mxu0 %v3268
        %3270 = vmatprep.subr.mxu0 0.0
        %v3271 = vand.u32 %v347, 4294901760
        %3272 = vmatpush1.msra.mxu0 %v3271
        %3273 = vmatprep.subr.mxu0 0.0
        %v3274 = vand.u32 %v348, 4294901760
        %3275 = vmatpush1.msra.mxu0 %v3274
        %3276 = vmatprep.subr.mxu0 0.0
        %3277 = vmatpush1.msra.mxu0 0.0
        %3278 = vmatprep.subr.mxu0 0.0
        %3279 = vmatpush1.msra.mxu0 0.0
        %3280 = vmatprep.subr.mxu0 0.0
        %3281 = vmatpush1.msra.mxu0 0.0
        %3282 = vmatprep.subr.mxu0 0.0
        %3283 = vmatpush1.msra.mxu0 0.0
        %3284 = vmatprep.subr.mxu0 0.0
        %3285 = vmatpush1.msra.mxu0 0.0
        %3286 = vmatprep.subr.mxu0 0.0
        %3287 = vmatpush1.msra.mxu0 0.0
        %3288 = vmatprep.subr.mxu0 0.0
        %3289 = vmatpush1.msra.mxu0 0.0
        %3290 = vmatprep.subr.mxu0 0.0
        %3291 = vmatpush1.msra.mxu0 0.0
        %3292 = vmatprep.subr.mxu0 0.0
        %3293 = vmatpush1.msra.mxu0 0.0
        %3294 = vmatprep.subr.mxu0 0.0
        %3295 = vmatpush1.msra.mxu0 0.0
        %3296 = vmatprep.subr.mxu0 0.0
        %3297 = vmatpush1.msra.mxu0 0.0
        %3298 = vmatprep.subr.mxu0 0.0
        %3299 = vmatpush1.msra.mxu0 0.0
        %3300 = vmatprep.subr.mxu0 0.0
        %3301 = vmatpush1.msra.mxu0 0.0
        %3302 = vmatprep.subr.mxu0 0.0
        %3303 = vmatpush1.msra.mxu0 0.0
        %3304 = vmatprep.subr.mxu0 0.0
        %3305 = vmatpush1.msra.mxu0 0.0
        %3306 = vmatprep.subr.mxu0 0.0
        %3307 = vmatpush1.msra.mxu0 0.0
        %3308 = vmatprep.subr.mxu0 0.0
        %3309 = vmatpush1.msra.mxu0 0.0
        %3310 = vmatprep.subr.mxu0 0.0
        %3311 = vmatpush1.msra.mxu0 0.0
        %3312 = vmatprep.subr.mxu0 0.0
        %3313 = vmatpush1.msra.mxu0 0.0
        %3314 = vmatprep.subr.mxu0 0.0
        %3315 = vmatpush1.msra.mxu0 0.0
        %3316 = vmatprep.subr.mxu0 0.0
        %3317 = vmatpush1.msra.mxu0 0.0
        %3318 = vmatprep.subr.mxu0 0.0
        %3319 = vmatpush1.msra.mxu0 0.0
        %3320 = vmatprep.subr.mxu0 0.0
        %3321 = vmatpush1.msra.mxu0 0.0
        %3322 = vmatprep.subr.mxu0 0.0
        %3323 = vmatpush1.msra.mxu0 0.0
        %3324 = vmatprep.subr.mxu0 0.0
        %3325 = vmatpush1.msra.mxu0 0.0
        %3326 = vmatprep.subr.mxu0 0.0
        %3327 = vmatpush1.msra.mxu0 0.0
        %3328 = vmatprep.subr.mxu0 0.0
        %3329 = vmatpush1.msra.mxu0 0.0
        %3330 = vmatprep.subr.mxu0 0.0
        %3331 = vmatpush1.msra.mxu0 0.0
        %3332 = vmatprep.mubr.f32.mxu0 0.0
        %v3333 = vand.u32 %v3260, 4294901760
        %v3334 = vsub.f32 %v3260, %v3333
        %v3335 = vand.u32 %v3334, 4294901760
        %v3336 = vsub.f32 %v3334, %v3335
        %v3337 = vand.u32 %v3336, 4294901760
        %3338 = vmatmul.mubr.f32.gmra.mrb[0].mxu0 %v3337
        %v3339 = vpop.f32.mrb[0].mxu0
        %v3340 = vadd.f32 %v3245, %v3339
        %v3341 = vpop.f32.mrb[0].mxu0
        %3342 = vmatprep.mubr.f32.mxu0 0.0
        %v3343 = vand.u32 %v3262, 4294901760
        %v3344 = vsub.f32 %v3262, %v3343
        %v3345 = vand.u32 %v3344, 4294901760
        %v3346 = vsub.f32 %v3344, %v3345
        %v3347 = vand.u32 %v3346, 4294901760
        %3348 = vmatmul.mubr.f32.gmra.mrb[0].mxu0 %v3347
        %v3349 = vpop.f32.mrb[0].mxu0
        %v3350 = vadd.f32 %v3251, %v3349
        %v3351 = vpop.f32.mrb[0].mxu0
        %3352 = vdwg.mxu0
        %3353 = vmatprep.subr.mxu0 0.0
        %v3354 = vand.u32 %v345, 4294901760
        %v3355 = vsub.f32 %v345, %v3354
        %v3356 = vand.u32 %v3355, 4294901760
        %v3357 = vsub.f32 %v3355, %v3356
        %v3358 = vand.u32 %v3357, 4294901760
        %3359 = vmatpush1.msra.mxu0 %v3358
        %3360 = vmatprep.subr.mxu0 0.0
        %v3361 = vand.u32 %v346, 4294901760
        %v3362 = vsub.f32 %v346, %v3361
        %v3363 = vand.u32 %v3362, 4294901760
        %v3364 = vsub.f32 %v3362, %v3363
        %v3365 = vand.u32 %v3364, 4294901760
        %3366 = vmatpush1.msra.mxu0 %v3365
        %3367 = vmatprep.subr.mxu0 0.0
        %v3368 = vand.u32 %v347, 4294901760
        %v3369 = vsub.f32 %v347, %v3368
        %v3370 = vand.u32 %v3369, 4294901760
        %v3371 = vsub.f32 %v3369, %v3370
        %v3372 = vand.u32 %v3371, 4294901760
        %3373 = vmatpush1.msra.mxu0 %v3372
        %3374 = vmatprep.subr.mxu0 0.0
        %v3375 = vand.u32 %v348, 4294901760
        %v3376 = vsub.f32 %v348, %v3375
        %v3377 = vand.u32 %v3376, 4294901760
        %v3378 = vsub.f32 %v3376, %v3377
        %v3379 = vand.u32 %v3378, 4294901760
        %3380 = vmatpush1.msra.mxu0 %v3379
        %3381 = vmatprep.subr.mxu0 0.0
        %3382 = vmatpush1.msra.mxu0 0.0
        %3383 = vmatprep.subr.mxu0 0.0
        %3384 = vmatpush1.msra.mxu0 0.0
        %3385 = vmatprep.subr.mxu0 0.0
        %3386 = vmatpush1.msra.mxu0 0.0
        %3387 = vmatprep.subr.mxu0 0.0
        %3388 = vmatpush1.msra.mxu0 0.0
        %3389 = vmatprep.subr.mxu0 0.0
        %3390 = vmatpush1.msra.mxu0 0.0
        %3391 = vmatprep.subr.mxu0 0.0
        %3392 = vmatpush1.msra.mxu0 0.0
        %3393 = vmatprep.subr.mxu0 0.0
        %3394 = vmatpush1.msra.mxu0 0.0
        %3395 = vmatprep.subr.mxu0 0.0
        %3396 = vmatpush1.msra.mxu0 0.0
        %3397 = vmatprep.subr.mxu0 0.0
        %3398 = vmatpush1.msra.mxu0 0.0
        %3399 = vmatprep.subr.mxu0 0.0
        %3400 = vmatpush1.msra.mxu0 0.0
        %3401 = vmatprep.subr.mxu0 0.0
        %3402 = vmatpush1.msra.mxu0 0.0
        %3403 = vmatprep.subr.mxu0 0.0
        %3404 = vmatpush1.msra.mxu0 0.0
        %3405 = vmatprep.subr.mxu0 0.0
        %3406 = vmatpush1.msra.mxu0 0.0
        %3407 = vmatprep.subr.mxu0 0.0
        %3408 = vmatpush1.msra.mxu0 0.0
        %3409 = vmatprep.subr.mxu0 0.0
        %3410 = vmatpush1.msra.mxu0 0.0
        %3411 = vmatprep.subr.mxu0 0.0
        %3412 = vmatpush1.msra.mxu0 0.0
        %3413 = vmatprep.subr.mxu0 0.0
        %3414 = vmatpush1.msra.mxu0 0.0
        %3415 = vmatprep.subr.mxu0 0.0
        %3416 = vmatpush1.msra.mxu0 0.0
        %3417 = vmatprep.subr.mxu0 0.0
        %3418 = vmatpush1.msra.mxu0 0.0
        %3419 = vmatprep.subr.mxu0 0.0
        %3420 = vmatpush1.msra.mxu0 0.0
        %3421 = vmatprep.subr.mxu0 0.0
        %3422 = vmatpush1.msra.mxu0 0.0
        %3423 = vmatprep.subr.mxu0 0.0
        %3424 = vmatpush1.msra.mxu0 0.0
        %3425 = vmatprep.subr.mxu0 0.0
        %3426 = vmatpush1.msra.mxu0 0.0
        %3427 = vmatprep.subr.mxu0 0.0
        %3428 = vmatpush1.msra.mxu0 0.0
        %3429 = vmatprep.subr.mxu0 0.0
        %3430 = vmatpush1.msra.mxu0 0.0
        %3431 = vmatprep.subr.mxu0 0.0
        %3432 = vmatpush1.msra.mxu0 0.0
        %3433 = vmatprep.subr.mxu0 0.0
        %3434 = vmatpush1.msra.mxu0 0.0
        %3435 = vmatprep.subr.mxu0 0.0
        %3436 = vmatpush1.msra.mxu0 0.0
        %3437 = vmatprep.mubr.f32.mxu0 0.0
        %v3438 = vand.u32 %v3260, 4294901760
        %3439 = vmatmul.mubr.f32.gmra.mrb[0].mxu0 %v3438
        %v3440 = vpop.f32.mrb[0].mxu0
        %v3441 = vadd.f32 %v3340, %v3440
        %v3442 = vpop.f32.mrb[0].mxu0
        %3443 = vmatprep.mubr.f32.mxu0 0.0
        %v3444 = vand.u32 %v3262, 4294901760
        %3445 = vmatmul.mubr.f32.gmra.mrb[0].mxu0 %v3444
        %v3446 = vpop.f32.mrb[0].mxu0
        %v3447 = vadd.f32 %v3350, %v3446
        %v3448 = vpop.f32.mrb[0].mxu0
        %3449 = vdwg.mxu0
        %3450 = vmatprep.subr.mxu0 0.0
        %v3451 = vand.u32 %v345, 4294901760
        %v3452 = vsub.f32 %v345, %v3451
        %3453 = vmatpush1.msra.mxu0 %v3452
        %3454 = vmatprep.subr.mxu0 0.0
        %v3455 = vand.u32 %v346, 4294901760
        %v3456 = vsub.f32 %v346, %v3455
        %3457 = vmatpush1.msra.mxu0 %v3456
        %3458 = vmatprep.subr.mxu0 0.0
        %v3459 = vand.u32 %v347, 4294901760
        %v3460 = vsub.f32 %v347, %v3459
        %3461 = vmatpush1.msra.mxu0 %v3460
        %3462 = vmatprep.subr.mxu0 0.0
        %v3463 = vand.u32 %v348, 4294901760
        %v3464 = vsub.f32 %v348, %v3463
        %3465 = vmatpush1.msra.mxu0 %v3464
        %3466 = vmatprep.subr.mxu0 0.0
        %3467 = vmatpush1.msra.mxu0 0.0
        %3468 = vmatprep.subr.mxu0 0.0
        %3469 = vmatpush1.msra.mxu0 0.0
        %3470 = vmatprep.subr.mxu0 0.0
        %3471 = vmatpush1.msra.mxu0 0.0
        %3472 = vmatprep.subr.mxu0 0.0
        %3473 = vmatpush1.msra.mxu0 0.0
        %3474 = vmatprep.subr.mxu0 0.0
        %3475 = vmatpush1.msra.mxu0 0.0
        %3476 = vmatprep.subr.mxu0 0.0
        %3477 = vmatpush1.msra.mxu0 0.0
        %3478 = vmatprep.subr.mxu0 0.0
        %3479 = vmatpush1.msra.mxu0 0.0
        %3480 = vmatprep.subr.mxu0 0.0
        %3481 = vmatpush1.msra.mxu0 0.0
        %3482 = vmatprep.subr.mxu0 0.0
        %3483 = vmatpush1.msra.mxu0 0.0
        %3484 = vmatprep.subr.mxu0 0.0
        %3485 = vmatpush1.msra.mxu0 0.0
        %3486 = vmatprep.subr.mxu0 0.0
        %3487 = vmatpush1.msra.mxu0 0.0
        %3488 = vmatprep.subr.mxu0 0.0
        %3489 = vmatpush1.msra.mxu0 0.0
        %3490 = vmatprep.subr.mxu0 0.0
        %3491 = vmatpush1.msra.mxu0 0.0
        %3492 = vmatprep.subr.mxu0 0.0
        %3493 = vmatpush1.msra.mxu0 0.0
        %3494 = vmatprep.subr.mxu0 0.0
        %3495 = vmatpush1.msra.mxu0 0.0
        %3496 = vmatprep.subr.mxu0 0.0
        %3497 = vmatpush1.msra.mxu0 0.0
        %3498 = vmatprep.subr.mxu0 0.0
        %3499 = vmatpush1.msra.mxu0 0.0
        %3500 = vmatprep.subr.mxu0 0.0
        %3501 = vmatpush1.msra.mxu0 0.0
        %3502 = vmatprep.subr.mxu0 0.0
        %3503 = vmatpush1.msra.mxu0 0.0
        %3504 = vmatprep.subr.mxu0 0.0
        %3505 = vmatpush1.msra.mxu0 0.0
        %3506 = vmatprep.subr.mxu0 0.0
        %3507 = vmatpush1.msra.mxu0 0.0
        %3508 = vmatprep.subr.mxu0 0.0
        %3509 = vmatpush1.msra.mxu0 0.0
        %3510 = vmatprep.subr.mxu0 0.0
        %3511 = vmatpush1.msra.mxu0 0.0
        %3512 = vmatprep.subr.mxu0 0.0
        %3513 = vmatpush1.msra.mxu0 0.0
        %3514 = vmatprep.subr.mxu0 0.0
        %3515 = vmatpush1.msra.mxu0 0.0
        %3516 = vmatprep.subr.mxu0 0.0
        %3517 = vmatpush1.msra.mxu0 0.0
        %3518 = vmatprep.subr.mxu0 0.0
        %3519 = vmatpush1.msra.mxu0 0.0
        %3520 = vmatprep.subr.mxu0 0.0
        %3521 = vmatpush1.msra.mxu0 0.0
        %3522 = vmatprep.mubr.f32.mxu0 0.0
        %v3523 = vand.u32 %v3260, 4294901760
        %v3524 = vsub.f32 %v3260, %v3523
        %3525 = vmatmul.mubr.f32.gmra.mrb[0].mxu0 %v3524
        %v3526 = vpop.f32.mrb[0].mxu0
        %v3527 = vadd.f32 %v3441, %v3526
        %v3528 = vpop.f32.mrb[0].mxu0
        %3529 = vmatprep.mubr.f32.mxu0 0.0
        %v3530 = vand.u32 %v3262, 4294901760
        %v3531 = vsub.f32 %v3262, %v3530
        %3532 = vmatmul.mubr.f32.gmra.mrb[0].mxu0 %v3531
        %v3533 = vpop.f32.mrb[0].mxu0
        %v3534 = vadd.f32 %v3447, %v3533
        %v3535 = vpop.f32.mrb[0].mxu0
        %3536 = vdwg.mxu0
        %3537 = vmatprep.subr.mxu0 0.0
        %v3538 = vand.u32 %v345, 4294901760
        %3539 = vmatpush1.msra.mxu0 %v3538
        %3540 = vmatprep.subr.mxu0 0.0
        %v3541 = vand.u32 %v346, 4294901760
        %3542 = vmatpush1.msra.mxu0 %v3541
        %3543 = vmatprep.subr.mxu0 0.0
        %v3544 = vand.u32 %v347, 4294901760
        %3545 = vmatpush1.msra.mxu0 %v3544
        %3546 = vmatprep.subr.mxu0 0.0
        %v3547 = vand.u32 %v348, 4294901760
        %3548 = vmatpush1.msra.mxu0 %v3547
        %3549 = vmatprep.subr.mxu0 0.0
        %3550 = vmatpush1.msra.mxu0 0.0
        %3551 = vmatprep.subr.mxu0 0.0
        %3552 = vmatpush1.msra.mxu0 0.0
        %3553 = vmatprep.subr.mxu0 0.0
        %3554 = vmatpush1.msra.mxu0 0.0
        %3555 = vmatprep.subr.mxu0 0.0
        %3556 = vmatpush1.msra.mxu0 0.0
        %3557 = vmatprep.subr.mxu0 0.0
        %3558 = vmatpush1.msra.mxu0 0.0
        %3559 = vmatprep.subr.mxu0 0.0
        %3560 = vmatpush1.msra.mxu0 0.0
        %3561 = vmatprep.subr.mxu0 0.0
        %3562 = vmatpush1.msra.mxu0 0.0
        %3563 = vmatprep.subr.mxu0 0.0
        %3564 = vmatpush1.msra.mxu0 0.0
        %3565 = vmatprep.subr.mxu0 0.0
        %3566 = vmatpush1.msra.mxu0 0.0
        %3567 = vmatprep.subr.mxu0 0.0
        %3568 = vmatpush1.msra.mxu0 0.0
        %3569 = vmatprep.subr.mxu0 0.0
        %3570 = vmatpush1.msra.mxu0 0.0
        %3571 = vmatprep.subr.mxu0 0.0
        %3572 = vmatpush1.msra.mxu0 0.0
        %3573 = vmatprep.subr.mxu0 0.0
        %3574 = vmatpush1.msra.mxu0 0.0
        %3575 = vmatprep.subr.mxu0 0.0
        %3576 = vmatpush1.msra.mxu0 0.0
        %3577 = vmatprep.subr.mxu0 0.0
        %3578 = vmatpush1.msra.mxu0 0.0
        %3579 = vmatprep.subr.mxu0 0.0
        %3580 = vmatpush1.msra.mxu0 0.0
        %3581 = vmatprep.subr.mxu0 0.0
        %3582 = vmatpush1.msra.mxu0 0.0
        %3583 = vmatprep.subr.mxu0 0.0
        %3584 = vmatpush1.msra.mxu0 0.0
        %3585 = vmatprep.subr.mxu0 0.0
        %3586 = vmatpush1.msra.mxu0 0.0
        %3587 = vmatprep.subr.mxu0 0.0
        %3588 = vmatpush1.msra.mxu0 0.0
        %3589 = vmatprep.subr.mxu0 0.0
        %3590 = vmatpush1.msra.mxu0 0.0
        %3591 = vmatprep.subr.mxu0 0.0
        %3592 = vmatpush1.msra.mxu0 0.0
        %3593 = vmatprep.subr.mxu0 0.0
        %3594 = vmatpush1.msra.mxu0 0.0
        %3595 = vmatprep.subr.mxu0 0.0
        %3596 = vmatpush1.msra.mxu0 0.0
        %3597 = vmatprep.subr.mxu0 0.0
        %3598 = vmatpush1.msra.mxu0 0.0
        %3599 = vmatprep.subr.mxu0 0.0
        %3600 = vmatpush1.msra.mxu0 0.0
        %3601 = vmatprep.subr.mxu0 0.0
        %3602 = vmatpush1.msra.mxu0 0.0
        %3603 = vmatprep.subr.mxu0 0.0
        %3604 = vmatpush1.msra.mxu0 0.0
        %3605 = vmatprep.mubr.f32.mxu0 0.0
        %v3606 = vand.u32 %v3260, 4294901760
        %v3607 = vsub.f32 %v3260, %v3606
        %v3608 = vand.u32 %v3607, 4294901760
        %3609 = vmatmul.mubr.f32.gmra.mrb[0].mxu0 %v3608
        %v3610 = vpop.f32.mrb[0].mxu0
        %v3611 = vadd.f32 %v3527, %v3610
        %v3612 = vpop.f32.mrb[0].mxu0
        %3613 = vmatprep.mubr.f32.mxu0 0.0
        %v3614 = vand.u32 %v3262, 4294901760
        %v3615 = vsub.f32 %v3262, %v3614
        %v3616 = vand.u32 %v3615, 4294901760
        %3617 = vmatmul.mubr.f32.gmra.mrb[0].mxu0 %v3616
        %v3618 = vpop.f32.mrb[0].mxu0
        %v3619 = vadd.f32 %v3534, %v3618
        %v3620 = vpop.f32.mrb[0].mxu0
        %3621 = vdwg.mxu0
        %3622 = vmatprep.subr.mxu0 0.0
        %v3623 = vand.u32 %v345, 4294901760
        %v3624 = vsub.f32 %v345, %v3623
        %v3625 = vand.u32 %v3624, 4294901760
        %3626 = vmatpush1.msra.mxu0 %v3625
        %3627 = vmatprep.subr.mxu0 0.0
        %v3628 = vand.u32 %v346, 4294901760
        %v3629 = vsub.f32 %v346, %v3628
        %v3630 = vand.u32 %v3629, 4294901760
        %3631 = vmatpush1.msra.mxu0 %v3630
        %3632 = vmatprep.subr.mxu0 0.0
        %v3633 = vand.u32 %v347, 4294901760
        %v3634 = vsub.f32 %v347, %v3633
        %v3635 = vand.u32 %v3634, 4294901760
        %3636 = vmatpush1.msra.mxu0 %v3635
        %3637 = vmatprep.subr.mxu0 0.0
        %v3638 = vand.u32 %v348, 4294901760
        %v3639 = vsub.f32 %v348, %v3638
        %v3640 = vand.u32 %v3639, 4294901760
        %3641 = vmatpush1.msra.mxu0 %v3640
        %3642 = vmatprep.subr.mxu0 0.0
        %3643 = vmatpush1.msra.mxu0 0.0
        %3644 = vmatprep.subr.mxu0 0.0
        %3645 = vmatpush1.msra.mxu0 0.0
        %3646 = vmatprep.subr.mxu0 0.0
        %3647 = vmatpush1.msra.mxu0 0.0
        %3648 = vmatprep.subr.mxu0 0.0
        %3649 = vmatpush1.msra.mxu0 0.0
        %3650 = vmatprep.subr.mxu0 0.0
        %3651 = vmatpush1.msra.mxu0 0.0
        %3652 = vmatprep.subr.mxu0 0.0
        %3653 = vmatpush1.msra.mxu0 0.0
        %3654 = vmatprep.subr.mxu0 0.0
        %3655 = vmatpush1.msra.mxu0 0.0
        %3656 = vmatprep.subr.mxu0 0.0
        %3657 = vmatpush1.msra.mxu0 0.0
        %3658 = vmatprep.subr.mxu0 0.0
        %3659 = vmatpush1.msra.mxu0 0.0
        %3660 = vmatprep.subr.mxu0 0.0
        %3661 = vmatpush1.msra.mxu0 0.0
        %3662 = vmatprep.subr.mxu0 0.0
        %3663 = vmatpush1.msra.mxu0 0.0
        %3664 = vmatprep.subr.mxu0 0.0
        %3665 = vmatpush1.msra.mxu0 0.0
        %3666 = vmatprep.subr.mxu0 0.0
        %3667 = vmatpush1.msra.mxu0 0.0
        %3668 = vmatprep.subr.mxu0 0.0
        %3669 = vmatpush1.msra.mxu0 0.0
        %3670 = vmatprep.subr.mxu0 0.0
        %3671 = vmatpush1.msra.mxu0 0.0
        %3672 = vmatprep.subr.mxu0 0.0
        %3673 = vmatpush1.msra.mxu0 0.0
        %3674 = vmatprep.subr.mxu0 0.0
        %3675 = vmatpush1.msra.mxu0 0.0
        %3676 = vmatprep.subr.mxu0 0.0
        %3677 = vmatpush1.msra.mxu0 0.0
        %3678 = vmatprep.subr.mxu0 0.0
        %3679 = vmatpush1.msra.mxu0 0.0
        %3680 = vmatprep.subr.mxu0 0.0
        %3681 = vmatpush1.msra.mxu0 0.0
        %3682 = vmatprep.subr.mxu0 0.0
        %3683 = vmatpush1.msra.mxu0 0.0
        %3684 = vmatprep.subr.mxu0 0.0
        %3685 = vmatpush1.msra.mxu0 0.0
        %3686 = vmatprep.subr.mxu0 0.0
        %3687 = vmatpush1.msra.mxu0 0.0
        %3688 = vmatprep.subr.mxu0 0.0
        %3689 = vmatpush1.msra.mxu0 0.0
        %3690 = vmatprep.subr.mxu0 0.0
        %3691 = vmatpush1.msra.mxu0 0.0
        %3692 = vmatprep.subr.mxu0 0.0
        %3693 = vmatpush1.msra.mxu0 0.0
        %3694 = vmatprep.subr.mxu0 0.0
        %3695 = vmatpush1.msra.mxu0 0.0
        %3696 = vmatprep.subr.mxu0 0.0
        %3697 = vmatpush1.msra.mxu0 0.0
        %3698 = vmatprep.mubr.f32.mxu0 0.0
        %v3699 = vand.u32 %v3260, 4294901760
        %3700 = vmatmul.mubr.f32.gmra.mrb[0].mxu0 %v3699
        %v3701 = vpop.f32.mrb[0].mxu0
        %v3702 = vadd.f32 %v3611, %v3701
        %v3703 = vpop.f32.mrb[0].mxu0
        %3704 = vmatprep.mubr.f32.mxu0 0.0
        %v3705 = vand.u32 %v3262, 4294901760
        %3706 = vmatmul.mubr.f32.gmra.mrb[0].mxu0 %v3705
        %v3707 = vpop.f32.mrb[0].mxu0
        %v3708 = vadd.f32 %v3619, %v3707
        %v3709 = vpop.f32.mrb[0].mxu0
        %3710 = vdwg.mxu0
        %3711 = vmatprep.subr.mxu0 0.0
        %v3712 = vand.u32 %v345, 4294901760
        %3713 = vmatpush1.msra.mxu0 %v3712
        %3714 = vmatprep.subr.mxu0 0.0
        %v3715 = vand.u32 %v346, 4294901760
        %3716 = vmatpush1.msra.mxu0 %v3715
        %3717 = vmatprep.subr.mxu0 0.0
        %v3718 = vand.u32 %v347, 4294901760
        %3719 = vmatpush1.msra.mxu0 %v3718
        %3720 = vmatprep.subr.mxu0 0.0
        %v3721 = vand.u32 %v348, 4294901760
        %3722 = vmatpush1.msra.mxu0 %v3721
        %3723 = vmatprep.subr.mxu0 0.0
        %3724 = vmatpush1.msra.mxu0 0.0
        %3725 = vmatprep.subr.mxu0 0.0
        %3726 = vmatpush1.msra.mxu0 0.0
        %3727 = vmatprep.subr.mxu0 0.0
        %3728 = vmatpush1.msra.mxu0 0.0
        %3729 = vmatprep.subr.mxu0 0.0
        %3730 = vmatpush1.msra.mxu0 0.0
        %3731 = vmatprep.subr.mxu0 0.0
        %3732 = vmatpush1.msra.mxu0 0.0
        %3733 = vmatprep.subr.mxu0 0.0
        %3734 = vmatpush1.msra.mxu0 0.0
        %3735 = vmatprep.subr.mxu0 0.0
        %3736 = vmatpush1.msra.mxu0 0.0
        %3737 = vmatprep.subr.mxu0 0.0
        %3738 = vmatpush1.msra.mxu0 0.0
        %3739 = vmatprep.subr.mxu0 0.0
        %3740 = vmatpush1.msra.mxu0 0.0
        %3741 = vmatprep.subr.mxu0 0.0
        %3742 = vmatpush1.msra.mxu0 0.0
        %3743 = vmatprep.subr.mxu0 0.0
        %3744 = vmatpush1.msra.mxu0 0.0
        %3745 = vmatprep.subr.mxu0 0.0
        %3746 = vmatpush1.msra.mxu0 0.0
        %3747 = vmatprep.subr.mxu0 0.0
        %3748 = vmatpush1.msra.mxu0 0.0
        %3749 = vmatprep.subr.mxu0 0.0
        %3750 = vmatpush1.msra.mxu0 0.0
        %3751 = vmatprep.subr.mxu0 0.0
        %3752 = vmatpush1.msra.mxu0 0.0
        %3753 = vmatprep.subr.mxu0 0.0
        %3754 = vmatpush1.msra.mxu0 0.0
        %3755 = vmatprep.subr.mxu0 0.0
        %3756 = vmatpush1.msra.mxu0 0.0
        %3757 = vmatprep.subr.mxu0 0.0
        %3758 = vmatpush1.msra.mxu0 0.0
        %3759 = vmatprep.subr.mxu0 0.0
        %3760 = vmatpush1.msra.mxu0 0.0
        %3761 = vmatprep.subr.mxu0 0.0
        %3762 = vmatpush1.msra.mxu0 0.0
        %3763 = vmatprep.subr.mxu0 0.0
        %3764 = vmatpush1.msra.mxu0 0.0
        %3765 = vmatprep.subr.mxu0 0.0
        %3766 = vmatpush1.msra.mxu0 0.0
        %3767 = vmatprep.subr.mxu0 0.0
        %3768 = vmatpush1.msra.mxu0 0.0
        %3769 = vmatprep.subr.mxu0 0.0
        %3770 = vmatpush1.msra.mxu0 0.0
        %3771 = vmatprep.subr.mxu0 0.0
        %3772 = vmatpush1.msra.mxu0 0.0
        %3773 = vmatprep.subr.mxu0 0.0
        %3774 = vmatpush1.msra.mxu0 0.0
        %3775 = vmatprep.subr.mxu0 0.0
        %3776 = vmatpush1.msra.mxu0 0.0
        %3777 = vmatprep.subr.mxu0 0.0
        %3778 = vmatpush1.msra.mxu0 0.0
        %3779 = vmatprep.mubr.f32.mxu0 0.0
        %v3780 = vand.u32 %v3260, 4294901760
        %3781 = vmatmul.mubr.f32.gmra.mrb[0].mxu0 %v3780
        %v3782 = vpop.f32.mrb[0].mxu0
        %v3783 = vadd.f32 %v3702, %v3782
        %v3784 = vpop.f32.mrb[0].mxu0
        %3785 = vmatprep.mubr.f32.mxu0 0.0
        %v3786 = vand.u32 %v3262, 4294901760
        %3787 = vmatmul.mubr.f32.gmra.mrb[0].mxu0 %v3786
        %v3788 = vpop.f32.mrb[0].mxu0
        %v3789 = vadd.f32 %v3708, %v3788
        %v3790 = vpop.f32.mrb[0].mxu0
        %3791 = vdwg.mxu0
        %v3792 = vadd.f32 %v3783, %v358
        %v3793 = vadd.f32 %v3789, %v358
        %v3794 = vxor.u32 %v3792, 2147483648
        %v3795 = vxor.u32 %v3793, 2147483648
        %v3796 = vmul.f32 %v3794, 1.442695
        %v3797 = vpow.pop %v3796
        %v3798 = vmul.f32 %v3795, 1.442695
        %v3799 = vpow.pop %v3798
        %v3800 = vadd.f32 %v3797, 1.0
        %v3801 = vadd.f32 %v3799, 1.0
        %v3802 = vrcp.pop %v3800
        %v3803 = vmul.f32 1.0, %v3802
        %v3804 = vrcp.pop %v3801
        %v3805 = vmul.f32 1.0, %v3804
        %v3806 = vtanh.pop %v3792
        %v3807 = vtanh.pop %v3793
        %v3808 = vmul.f32 %v3803, %v2121
        %v3809 = vmul.f32 %v3805, %v2122
        %3812 = vrot.lane.b32.xlu0 %v3806, 64
        %v3813 = vpop.permute.xlu0 %3812
        %3814 = vrot.lane.b32.xlu0 %v3807, 64
        %v3815 = vpop.permute.xlu0 %3814
        %v3818 = vmul.f32 %v3803, %v3813
        %v3819 = vmul.f32 %v3805, %v3815
        %3822 = vrot.lane.b32.xlu0 %v3818, 32
        %v3823 = vpop.permute.xlu0 %3822
        %3824 = vrot.lane.b32.xlu0 %v3819, 32
        %v3825 = vpop.permute.xlu0 %3824
        %v3828 = vadd.f32 %v3808, %v3823
        %v3829 = vadd.f32 %v3809, %v3825
        %v3830 = vtanh.pop %v3828
        %v3831 = vtanh.pop %v3829
        %3834 = vrot.lane.b32.xlu0 %v3830, 64
        %v3835 = vpop.permute.xlu0 %3834
        %3836 = vrot.lane.b32.xlu0 %v3831, 64
        %v3837 = vpop.permute.xlu0 %3836
        %v3840 = vmul.f32 %v3803, %v3835
        %v3841 = vmul.f32 %v3805, %v3837
        %v3842 = vsel %vm2717, %v3840, %v2119
        %v3843 = vsel %vm2717, %v3841, %v2120
        %v3844 = vsel %vm2717, %v3828, %v2121
        %v3845 = vsel %vm2717, %v3829, %v2122
        %3848 = vrot.lane.b32.xlu0 %v3842, 32
        %v3849 = vpop.permute.xlu0 %3848
        %3850 = vrot.lane.b32.xlu0 %v3843, 32
        %v3851 = vpop.permute.xlu0 %3850
        %s3854 = scalar_lea.vmem %s313, 16 [#allocation12]
        %3855 = vst.msk [vmem:[%s3854] sm:$0xff] %vm377, %v3849
        %3856 = vst.msk [vmem:[%s3854 + $0x8] sm:$0xff] %vm377, %v3851
        %p3857 = scmp.gt.s32.totalorder %s363, 2
        %s3858 = scalar_lea.vmem %s287, 32 [#allocation10]
        %v3859 = vld [vmem:[%s3858] sm:$0xff]
        %v3860 = vld [vmem:[%s3858 + $0x8] sm:$0xff]
        %3861 = vmatprep.subr.mxu0 0.0
        %v3862 = vand.u32 %v341, 4294901760
        %3863 = vmatpush1.msra.mxu0 %v3862
        %3864 = vmatprep.subr.mxu0 0.0
        %v3865 = vand.u32 %v342, 4294901760
        %3866 = vmatpush1.msra.mxu0 %v3865
        %3867 = vmatprep.subr.mxu0 0.0
        %v3868 = vand.u32 %v343, 4294901760
        %3869 = vmatpush1.msra.mxu0 %v3868
        %3870 = vmatprep.subr.mxu0 0.0
        %v3871 = vand.u32 %v344, 4294901760
        %3872 = vmatpush1.msra.mxu0 %v3871
        %3873 = vmatprep.subr.mxu0 0.0
        %3874 = vmatpush1.msra.mxu0 0.0
        %3875 = vmatprep.subr.mxu0 0.0
        %3876 = vmatpush1.msra.mxu0 0.0
        %3877 = vmatprep.subr.mxu0 0.0
        %3878 = vmatpush1.msra.mxu0 0.0
        %3879 = vmatprep.subr.mxu0 0.0
        %3880 = vmatpush1.msra.mxu0 0.0
        %3881 = vmatprep.subr.mxu0 0.0
        %3882 = vmatpush1.msra.mxu0 0.0
        %3883 = vmatprep.subr.mxu0 0.0
        %3884 = vmatpush1.msra.mxu0 0.0
        %3885 = vmatprep.subr.mxu0 0.0
        %3886 = vmatpush1.msra.mxu0 0.0
        %3887 = vmatprep.subr.mxu0 0.0
        %3888 = vmatpush1.msra.mxu0 0.0
        %3889 = vmatprep.subr.mxu0 0.0
        %3890 = vmatpush1.msra.mxu0 0.0
        %3891 = vmatprep.subr.mxu0 0.0
        %3892 = vmatpush1.msra.mxu0 0.0
        %3893 = vmatprep.subr.mxu0 0.0
        %3894 = vmatpush1.msra.mxu0 0.0
        %3895 = vmatprep.subr.mxu0 0.0
        %3896 = vmatpush1.msra.mxu0 0.0
        %3897 = vmatprep.subr.mxu0 0.0
        %3898 = vmatpush1.msra.mxu0 0.0
        %3899 = vmatprep.subr.mxu0 0.0
        %3900 = vmatpush1.msra.mxu0 0.0
        %3901 = vmatprep.subr.mxu0 0.0
        %3902 = vmatpush1.msra.mxu0 0.0
        %3903 = vmatprep.subr.mxu0 0.0
        %3904 = vmatpush1.msra.mxu0 0.0
        %3905 = vmatprep.subr.mxu0 0.0
        %3906 = vmatpush1.msra.mxu0 0.0
        %3907 = vmatprep.subr.mxu0 0.0
        %3908 = vmatpush1.msra.mxu0 0.0
        %3909 = vmatprep.subr.mxu0 0.0
        %3910 = vmatpush1.msra.mxu0 0.0
        %3911 = vmatprep.subr.mxu0 0.0
        %3912 = vmatpush1.msra.mxu0 0.0
        %3913 = vmatprep.subr.mxu0 0.0
        %3914 = vmatpush1.msra.mxu0 0.0
        %3915 = vmatprep.subr.mxu0 0.0
        %3916 = vmatpush1.msra.mxu0 0.0
        %3917 = vmatprep.subr.mxu0 0.0
        %3918 = vmatpush1.msra.mxu0 0.0
        %3919 = vmatprep.subr.mxu0 0.0
        %3920 = vmatpush1.msra.mxu0 0.0
        %3921 = vmatprep.subr.mxu0 0.0
        %3922 = vmatpush1.msra.mxu0 0.0
        %3923 = vmatprep.subr.mxu0 0.0
        %3924 = vmatpush1.msra.mxu0 0.0
        %3925 = vmatprep.subr.mxu0 0.0
        %3926 = vmatpush1.msra.mxu0 0.0
        %3927 = vmatprep.subr.mxu0 0.0
        %3928 = vmatpush1.msra.mxu0 0.0
        %3929 = vmatprep.mubr.f32.mxu0 0.0
        %v3930 = vand.u32 %v3260, 4294901760
        %v3931 = vsub.f32 %v3260, %v3930
        %v3932 = vand.u32 %v3931, 4294901760
        %v3933 = vsub.f32 %v3931, %v3932
        %v3934 = vand.u32 %v3933, 4294901760
        %3935 = vmatmul.mubr.f32.gmra.mrb[0].mxu0 %v3934
        %v3936 = vpop.f32.mrb[0].mxu0
        %v3937 = vadd.f32 0.0, %v3936
        %v3938 = vpop.f32.mrb[0].mxu0
        %3939 = vmatprep.mubr.f32.mxu0 0.0
        %v3940 = vand.u32 %v3262, 4294901760
        %v3941 = vsub.f32 %v3262, %v3940
        %v3942 = vand.u32 %v3941, 4294901760
        %v3943 = vsub.f32 %v3941, %v3942
        %v3944 = vand.u32 %v3943, 4294901760
        %3945 = vmatmul.mubr.f32.gmra.mrb[0].mxu0 %v3944
        %v3946 = vpop.f32.mrb[0].mxu0
        %v3947 = vadd.f32 0.0, %v3946
        %v3948 = vpop.f32.mrb[0].mxu0
        %3949 = vdwg.mxu0
        %3950 = vmatprep.subr.mxu0 0.0
        %v3951 = vand.u32 %v341, 4294901760
        %v3952 = vsub.f32 %v341, %v3951
        %v3953 = vand.u32 %v3952, 4294901760
        %v3954 = vsub.f32 %v3952, %v3953
        %v3955 = vand.u32 %v3954, 4294901760
        %3956 = vmatpush1.msra.mxu0 %v3955
        %3957 = vmatprep.subr.mxu0 0.0
        %v3958 = vand.u32 %v342, 4294901760
        %v3959 = vsub.f32 %v342, %v3958
        %v3960 = vand.u32 %v3959, 4294901760
        %v3961 = vsub.f32 %v3959, %v3960
        %v3962 = vand.u32 %v3961, 4294901760
        %3963 = vmatpush1.msra.mxu0 %v3962
        %3964 = vmatprep.subr.mxu0 0.0
        %v3965 = vand.u32 %v343, 4294901760
        %v3966 = vsub.f32 %v343, %v3965
        %v3967 = vand.u32 %v3966, 4294901760
        %v3968 = vsub.f32 %v3966, %v3967
        %v3969 = vand.u32 %v3968, 4294901760
        %3970 = vmatpush1.msra.mxu0 %v3969
        %3971 = vmatprep.subr.mxu0 0.0
        %v3972 = vand.u32 %v344, 4294901760
        %v3973 = vsub.f32 %v344, %v3972
        %v3974 = vand.u32 %v3973, 4294901760
        %v3975 = vsub.f32 %v3973, %v3974
        %v3976 = vand.u32 %v3975, 4294901760
        %3977 = vmatpush1.msra.mxu0 %v3976
        %3978 = vmatprep.subr.mxu0 0.0
        %3979 = vmatpush1.msra.mxu0 0.0
        %3980 = vmatprep.subr.mxu0 0.0
        %3981 = vmatpush1.msra.mxu0 0.0
        %3982 = vmatprep.subr.mxu0 0.0
        %3983 = vmatpush1.msra.mxu0 0.0
        %3984 = vmatprep.subr.mxu0 0.0
        %3985 = vmatpush1.msra.mxu0 0.0
        %3986 = vmatprep.subr.mxu0 0.0
        %3987 = vmatpush1.msra.mxu0 0.0
        %3988 = vmatprep.subr.mxu0 0.0
        %3989 = vmatpush1.msra.mxu0 0.0
        %3990 = vmatprep.subr.mxu0 0.0
        %3991 = vmatpush1.msra.mxu0 0.0
        %3992 = vmatprep.subr.mxu0 0.0
        %3993 = vmatpush1.msra.mxu0 0.0
        %3994 = vmatprep.subr.mxu0 0.0
        %3995 = vmatpush1.msra.mxu0 0.0
        %3996 = vmatprep.subr.mxu0 0.0
        %3997 = vmatpush1.msra.mxu0 0.0
        %3998 = vmatprep.subr.mxu0 0.0
        %3999 = vmatpush1.msra.mxu0 0.0
        %4000 = vmatprep.subr.mxu0 0.0
        %4001 = vmatpush1.msra.mxu0 0.0
        %4002 = vmatprep.subr.mxu0 0.0
        %4003 = vmatpush1.msra.mxu0 0.0
        %4004 = vmatprep.subr.mxu0 0.0
        %4005 = vmatpush1.msra.mxu0 0.0
        %4006 = vmatprep.subr.mxu0 0.0
        %4007 = vmatpush1.msra.mxu0 0.0
        %4008 = vmatprep.subr.mxu0 0.0
        %4009 = vmatpush1.msra.mxu0 0.0
        %4010 = vmatprep.subr.mxu0 0.0
        %4011 = vmatpush1.msra.mxu0 0.0
        %4012 = vmatprep.subr.mxu0 0.0
        %4013 = vmatpush1.msra.mxu0 0.0
        %4014 = vmatprep.subr.mxu0 0.0
        %4015 = vmatpush1.msra.mxu0 0.0
        %4016 = vmatprep.subr.mxu0 0.0
        %4017 = vmatpush1.msra.mxu0 0.0
        %4018 = vmatprep.subr.mxu0 0.0
        %4019 = vmatpush1.msra.mxu0 0.0
        %4020 = vmatprep.subr.mxu0 0.0
        %4021 = vmatpush1.msra.mxu0 0.0
        %4022 = vmatprep.subr.mxu0 0.0
        %4023 = vmatpush1.msra.mxu0 0.0
        %4024 = vmatprep.subr.mxu0 0.0
        %4025 = vmatpush1.msra.mxu0 0.0
        %4026 = vmatprep.subr.mxu0 0.0
        %4027 = vmatpush1.msra.mxu0 0.0
        %4028 = vmatprep.subr.mxu0 0.0
        %4029 = vmatpush1.msra.mxu0 0.0
        %4030 = vmatprep.subr.mxu0 0.0
        %4031 = vmatpush1.msra.mxu0 0.0
        %4032 = vmatprep.subr.mxu0 0.0
        %4033 = vmatpush1.msra.mxu0 0.0
        %4034 = vmatprep.mubr.f32.mxu0 0.0
        %v4035 = vand.u32 %v3260, 4294901760
        %4036 = vmatmul.mubr.f32.gmra.mrb[0].mxu0 %v4035
        %v4037 = vpop.f32.mrb[0].mxu0
        %v4038 = vadd.f32 %v3937, %v4037
        %v4039 = vpop.f32.mrb[0].mxu0
        %4040 = vmatprep.mubr.f32.mxu0 0.0
        %v4041 = vand.u32 %v3262, 4294901760
        %4042 = vmatmul.mubr.f32.gmra.mrb[0].mxu0 %v4041
        %v4043 = vpop.f32.mrb[0].mxu0
        %v4044 = vadd.f32 %v3947, %v4043
        %v4045 = vpop.f32.mrb[0].mxu0
        %4046 = vdwg.mxu0
        %4047 = vmatprep.subr.mxu0 0.0
        %v4048 = vand.u32 %v341, 4294901760
        %v4049 = vsub.f32 %v341, %v4048
        %4050 = vmatpush1.msra.mxu0 %v4049
        %4051 = vmatprep.subr.mxu0 0.0
        %v4052 = vand.u32 %v342, 4294901760
        %v4053 = vsub.f32 %v342, %v4052
        %4054 = vmatpush1.msra.mxu0 %v4053
        %4055 = vmatprep.subr.mxu0 0.0
        %v4056 = vand.u32 %v343, 4294901760
        %v4057 = vsub.f32 %v343, %v4056
        %4058 = vmatpush1.msra.mxu0 %v4057
        %4059 = vmatprep.subr.mxu0 0.0
        %v4060 = vand.u32 %v344, 4294901760
        %v4061 = vsub.f32 %v344, %v4060
        %4062 = vmatpush1.msra.mxu0 %v4061
        %4063 = vmatprep.subr.mxu0 0.0
        %4064 = vmatpush1.msra.mxu0 0.0
        %4065 = vmatprep.subr.mxu0 0.0
        %4066 = vmatpush1.msra.mxu0 0.0
        %4067 = vmatprep.subr.mxu0 0.0
        %4068 = vmatpush1.msra.mxu0 0.0
        %4069 = vmatprep.subr.mxu0 0.0
        %4070 = vmatpush1.msra.mxu0 0.0
        %4071 = vmatprep.subr.mxu0 0.0
        %4072 = vmatpush1.msra.mxu0 0.0
        %4073 = vmatprep.subr.mxu0 0.0
        %4074 = vmatpush1.msra.mxu0 0.0
        %4075 = vmatprep.subr.mxu0 0.0
        %4076 = vmatpush1.msra.mxu0 0.0
        %4077 = vmatprep.subr.mxu0 0.0
        %4078 = vmatpush1.msra.mxu0 0.0
        %4079 = vmatprep.subr.mxu0 0.0
        %4080 = vmatpush1.msra.mxu0 0.0
        %4081 = vmatprep.subr.mxu0 0.0
        %4082 = vmatpush1.msra.mxu0 0.0
        %4083 = vmatprep.subr.mxu0 0.0
        %4084 = vmatpush1.msra.mxu0 0.0
        %4085 = vmatprep.subr.mxu0 0.0
        %4086 = vmatpush1.msra.mxu0 0.0
        %4087 = vmatprep.subr.mxu0 0.0
        %4088 = vmatpush1.msra.mxu0 0.0
        %4089 = vmatprep.subr.mxu0 0.0
        %4090 = vmatpush1.msra.mxu0 0.0
        %4091 = vmatprep.subr.mxu0 0.0
        %4092 = vmatpush1.msra.mxu0 0.0
        %4093 = vmatprep.subr.mxu0 0.0
        %4094 = vmatpush1.msra.mxu0 0.0
        %4095 = vmatprep.subr.mxu0 0.0
        %4096 = vmatpush1.msra.mxu0 0.0
        %4097 = vmatprep.subr.mxu0 0.0
        %4098 = vmatpush1.msra.mxu0 0.0
        %4099 = vmatprep.subr.mxu0 0.0
        %4100 = vmatpush1.msra.mxu0 0.0
        %4101 = vmatprep.subr.mxu0 0.0
        %4102 = vmatpush1.msra.mxu0 0.0
        %4103 = vmatprep.subr.mxu0 0.0
        %4104 = vmatpush1.msra.mxu0 0.0
        %4105 = vmatprep.subr.mxu0 0.0
        %4106 = vmatpush1.msra.mxu0 0.0
        %4107 = vmatprep.subr.mxu0 0.0
        %4108 = vmatpush1.msra.mxu0 0.0
        %4109 = vmatprep.subr.mxu0 0.0
        %4110 = vmatpush1.msra.mxu0 0.0
        %4111 = vmatprep.subr.mxu0 0.0
        %4112 = vmatpush1.msra.mxu0 0.0
        %4113 = vmatprep.subr.mxu0 0.0
        %4114 = vmatpush1.msra.mxu0 0.0
        %4115 = vmatprep.subr.mxu0 0.0
        %4116 = vmatpush1.msra.mxu0 0.0
        %4117 = vmatprep.subr.mxu0 0.0
        %4118 = vmatpush1.msra.mxu0 0.0
        %4119 = vmatprep.mubr.f32.mxu0 0.0
        %v4120 = vand.u32 %v3260, 4294901760
        %v4121 = vsub.f32 %v3260, %v4120
        %4122 = vmatmul.mubr.f32.gmra.mrb[0].mxu0 %v4121
        %v4123 = vpop.f32.mrb[0].mxu0
        %v4124 = vadd.f32 %v4038, %v4123
        %v4125 = vpop.f32.mrb[0].mxu0
        %4126 = vmatprep.mubr.f32.mxu0 0.0
        %v4127 = vand.u32 %v3262, 4294901760
        %v4128 = vsub.f32 %v3262, %v4127
        %4129 = vmatmul.mubr.f32.gmra.mrb[0].mxu0 %v4128
        %v4130 = vpop.f32.mrb[0].mxu0
        %v4131 = vadd.f32 %v4044, %v4130
        %v4132 = vpop.f32.mrb[0].mxu0
        %4133 = vdwg.mxu0
        %4134 = vmatprep.subr.mxu0 0.0
        %v4135 = vand.u32 %v341, 4294901760
        %4136 = vmatpush1.msra.mxu0 %v4135
        %4137 = vmatprep.subr.mxu0 0.0
        %v4138 = vand.u32 %v342, 4294901760
        %4139 = vmatpush1.msra.mxu0 %v4138
        %4140 = vmatprep.subr.mxu0 0.0
        %v4141 = vand.u32 %v343, 4294901760
        %4142 = vmatpush1.msra.mxu0 %v4141
        %4143 = vmatprep.subr.mxu0 0.0
        %v4144 = vand.u32 %v344, 4294901760
        %4145 = vmatpush1.msra.mxu0 %v4144
        %4146 = vmatprep.subr.mxu0 0.0
        %4147 = vmatpush1.msra.mxu0 0.0
        %4148 = vmatprep.subr.mxu0 0.0
        %4149 = vmatpush1.msra.mxu0 0.0
        %4150 = vmatprep.subr.mxu0 0.0
        %4151 = vmatpush1.msra.mxu0 0.0
        %4152 = vmatprep.subr.mxu0 0.0
        %4153 = vmatpush1.msra.mxu0 0.0
        %4154 = vmatprep.subr.mxu0 0.0
        %4155 = vmatpush1.msra.mxu0 0.0
        %4156 = vmatprep.subr.mxu0 0.0
        %4157 = vmatpush1.msra.mxu0 0.0
        %4158 = vmatprep.subr.mxu0 0.0
        %4159 = vmatpush1.msra.mxu0 0.0
        %4160 = vmatprep.subr.mxu0 0.0
        %4161 = vmatpush1.msra.mxu0 0.0
        %4162 = vmatprep.subr.mxu0 0.0
        %4163 = vmatpush1.msra.mxu0 0.0
        %4164 = vmatprep.subr.mxu0 0.0
        %4165 = vmatpush1.msra.mxu0 0.0
        %4166 = vmatprep.subr.mxu0 0.0
        %4167 = vmatpush1.msra.mxu0 0.0
        %4168 = vmatprep.subr.mxu0 0.0
        %4169 = vmatpush1.msra.mxu0 0.0
        %4170 = vmatprep.subr.mxu0 0.0
        %4171 = vmatpush1.msra.mxu0 0.0
        %4172 = vmatprep.subr.mxu0 0.0
        %4173 = vmatpush1.msra.mxu0 0.0
        %4174 = vmatprep.subr.mxu0 0.0
        %4175 = vmatpush1.msra.mxu0 0.0
        %4176 = vmatprep.subr.mxu0 0.0
        %4177 = vmatpush1.msra.mxu0 0.0
        %4178 = vmatprep.subr.mxu0 0.0
        %4179 = vmatpush1.msra.mxu0 0.0
        %4180 = vmatprep.subr.mxu0 0.0
        %4181 = vmatpush1.msra.mxu0 0.0
        %4182 = vmatprep.subr.mxu0 0.0
        %4183 = vmatpush1.msra.mxu0 0.0
        %4184 = vmatprep.subr.mxu0 0.0
        %4185 = vmatpush1.msra.mxu0 0.0
        %4186 = vmatprep.subr.mxu0 0.0
        %4187 = vmatpush1.msra.mxu0 0.0
        %4188 = vmatprep.subr.mxu0 0.0
        %4189 = vmatpush1.msra.mxu0 0.0
        %4190 = vmatprep.subr.mxu0 0.0
        %4191 = vmatpush1.msra.mxu0 0.0
        %4192 = vmatprep.subr.mxu0 0.0
        %4193 = vmatpush1.msra.mxu0 0.0
        %4194 = vmatprep.subr.mxu0 0.0
        %4195 = vmatpush1.msra.mxu0 0.0
        %4196 = vmatprep.subr.mxu0 0.0
        %4197 = vmatpush1.msra.mxu0 0.0
        %4198 = vmatprep.subr.mxu0 0.0
        %4199 = vmatpush1.msra.mxu0 0.0
        %4200 = vmatprep.subr.mxu0 0.0
        %4201 = vmatpush1.msra.mxu0 0.0
        %4202 = vmatprep.mubr.f32.mxu0 0.0
        %v4203 = vand.u32 %v3260, 4294901760
        %v4204 = vsub.f32 %v3260, %v4203
        %v4205 = vand.u32 %v4204, 4294901760
        %4206 = vmatmul.mubr.f32.gmra.mrb[0].mxu0 %v4205
        %v4207 = vpop.f32.mrb[0].mxu0
        %v4208 = vadd.f32 %v4124, %v4207
        %v4209 = vpop.f32.mrb[0].mxu0
        %4210 = vmatprep.mubr.f32.mxu0 0.0
        %v4211 = vand.u32 %v3262, 4294901760
        %v4212 = vsub.f32 %v3262, %v4211
        %v4213 = vand.u32 %v4212, 4294901760
        %4214 = vmatmul.mubr.f32.gmra.mrb[0].mxu0 %v4213
        %v4215 = vpop.f32.mrb[0].mxu0
        %v4216 = vadd.f32 %v4131, %v4215
        %v4217 = vpop.f32.mrb[0].mxu0
        %4218 = vdwg.mxu0
        %4219 = vmatprep.subr.mxu0 0.0
        %v4220 = vand.u32 %v341, 4294901760
        %v4221 = vsub.f32 %v341, %v4220
        %v4222 = vand.u32 %v4221, 4294901760
        %4223 = vmatpush1.msra.mxu0 %v4222
        %4224 = vmatprep.subr.mxu0 0.0
        %v4225 = vand.u32 %v342, 4294901760
        %v4226 = vsub.f32 %v342, %v4225
        %v4227 = vand.u32 %v4226, 4294901760
        %4228 = vmatpush1.msra.mxu0 %v4227
        %4229 = vmatprep.subr.mxu0 0.0
        %v4230 = vand.u32 %v343, 4294901760
        %v4231 = vsub.f32 %v343, %v4230
        %v4232 = vand.u32 %v4231, 4294901760
        %4233 = vmatpush1.msra.mxu0 %v4232
        %4234 = vmatprep.subr.mxu0 0.0
        %v4235 = vand.u32 %v344, 4294901760
        %v4236 = vsub.f32 %v344, %v4235
        %v4237 = vand.u32 %v4236, 4294901760
        %4238 = vmatpush1.msra.mxu0 %v4237
        %4239 = vmatprep.subr.mxu0 0.0
        %4240 = vmatpush1.msra.mxu0 0.0
        %4241 = vmatprep.subr.mxu0 0.0
        %4242 = vmatpush1.msra.mxu0 0.0
        %4243 = vmatprep.subr.mxu0 0.0
        %4244 = vmatpush1.msra.mxu0 0.0
        %4245 = vmatprep.subr.mxu0 0.0
        %4246 = vmatpush1.msra.mxu0 0.0
        %4247 = vmatprep.subr.mxu0 0.0
        %4248 = vmatpush1.msra.mxu0 0.0
        %4249 = vmatprep.subr.mxu0 0.0
        %4250 = vmatpush1.msra.mxu0 0.0
        %4251 = vmatprep.subr.mxu0 0.0
        %4252 = vmatpush1.msra.mxu0 0.0
        %4253 = vmatprep.subr.mxu0 0.0
        %4254 = vmatpush1.msra.mxu0 0.0
        %4255 = vmatprep.subr.mxu0 0.0
        %4256 = vmatpush1.msra.mxu0 0.0
        %4257 = vmatprep.subr.mxu0 0.0
        %4258 = vmatpush1.msra.mxu0 0.0
        %4259 = vmatprep.subr.mxu0 0.0
        %4260 = vmatpush1.msra.mxu0 0.0
        %4261 = vmatprep.subr.mxu0 0.0
        %4262 = vmatpush1.msra.mxu0 0.0
        %4263 = vmatprep.subr.mxu0 0.0
        %4264 = vmatpush1.msra.mxu0 0.0
        %4265 = vmatprep.subr.mxu0 0.0
        %4266 = vmatpush1.msra.mxu0 0.0
        %4267 = vmatprep.subr.mxu0 0.0
        %4268 = vmatpush1.msra.mxu0 0.0
        %4269 = vmatprep.subr.mxu0 0.0
        %4270 = vmatpush1.msra.mxu0 0.0
        %4271 = vmatprep.subr.mxu0 0.0
        %4272 = vmatpush1.msra.mxu0 0.0
        %4273 = vmatprep.subr.mxu0 0.0
        %4274 = vmatpush1.msra.mxu0 0.0
        %4275 = vmatprep.subr.mxu0 0.0
        %4276 = vmatpush1.msra.mxu0 0.0
        %4277 = vmatprep.subr.mxu0 0.0
        %4278 = vmatpush1.msra.mxu0 0.0
        %4279 = vmatprep.subr.mxu0 0.0
        %4280 = vmatpush1.msra.mxu0 0.0
        %4281 = vmatprep.subr.mxu0 0.0
        %4282 = vmatpush1.msra.mxu0 0.0
        %4283 = vmatprep.subr.mxu0 0.0
        %4284 = vmatpush1.msra.mxu0 0.0
        %4285 = vmatprep.subr.mxu0 0.0
        %4286 = vmatpush1.msra.mxu0 0.0
        %4287 = vmatprep.subr.mxu0 0.0
        %4288 = vmatpush1.msra.mxu0 0.0
        %4289 = vmatprep.subr.mxu0 0.0
        %4290 = vmatpush1.msra.mxu0 0.0
        %4291 = vmatprep.subr.mxu0 0.0
        %4292 = vmatpush1.msra.mxu0 0.0
        %4293 = vmatprep.subr.mxu0 0.0
        %4294 = vmatpush1.msra.mxu0 0.0
        %4295 = vmatprep.mubr.f32.mxu0 0.0
        %v4296 = vand.u32 %v3260, 4294901760
        %4297 = vmatmul.mubr.f32.gmra.mrb[0].mxu0 %v4296
        %v4298 = vpop.f32.mrb[0].mxu0
        %v4299 = vadd.f32 %v4208, %v4298
        %v4300 = vpop.f32.mrb[0].mxu0
        %4301 = vmatprep.mubr.f32.mxu0 0.0
        %v4302 = vand.u32 %v3262, 4294901760
        %4303 = vmatmul.mubr.f32.gmra.mrb[0].mxu0 %v4302
        %v4304 = vpop.f32.mrb[0].mxu0
        %v4305 = vadd.f32 %v4216, %v4304
        %v4306 = vpop.f32.mrb[0].mxu0
        %4307 = vdwg.mxu0
        %4308 = vmatprep.subr.mxu0 0.0
        %v4309 = vand.u32 %v341, 4294901760
        %4310 = vmatpush1.msra.mxu0 %v4309
        %4311 = vmatprep.subr.mxu0 0.0
        %v4312 = vand.u32 %v342, 4294901760
        %4313 = vmatpush1.msra.mxu0 %v4312
        %4314 = vmatprep.subr.mxu0 0.0
        %v4315 = vand.u32 %v343, 4294901760
        %4316 = vmatpush1.msra.mxu0 %v4315
        %4317 = vmatprep.subr.mxu0 0.0
        %v4318 = vand.u32 %v344, 4294901760
        %4319 = vmatpush1.msra.mxu0 %v4318
        %4320 = vmatprep.subr.mxu0 0.0
        %4321 = vmatpush1.msra.mxu0 0.0
        %4322 = vmatprep.subr.mxu0 0.0
        %4323 = vmatpush1.msra.mxu0 0.0
        %4324 = vmatprep.subr.mxu0 0.0
        %4325 = vmatpush1.msra.mxu0 0.0
        %4326 = vmatprep.subr.mxu0 0.0
        %4327 = vmatpush1.msra.mxu0 0.0
        %4328 = vmatprep.subr.mxu0 0.0
        %4329 = vmatpush1.msra.mxu0 0.0
        %4330 = vmatprep.subr.mxu0 0.0
        %4331 = vmatpush1.msra.mxu0 0.0
        %4332 = vmatprep.subr.mxu0 0.0
        %4333 = vmatpush1.msra.mxu0 0.0
        %4334 = vmatprep.subr.mxu0 0.0
        %4335 = vmatpush1.msra.mxu0 0.0
        %4336 = vmatprep.subr.mxu0 0.0
        %4337 = vmatpush1.msra.mxu0 0.0
        %4338 = vmatprep.subr.mxu0 0.0
        %4339 = vmatpush1.msra.mxu0 0.0
        %4340 = vmatprep.subr.mxu0 0.0
        %4341 = vmatpush1.msra.mxu0 0.0
        %4342 = vmatprep.subr.mxu0 0.0
        %4343 = vmatpush1.msra.mxu0 0.0
        %4344 = vmatprep.subr.mxu0 0.0
        %4345 = vmatpush1.msra.mxu0 0.0
        %4346 = vmatprep.subr.mxu0 0.0
        %4347 = vmatpush1.msra.mxu0 0.0
        %4348 = vmatprep.subr.mxu0 0.0
        %4349 = vmatpush1.msra.mxu0 0.0
        %4350 = vmatprep.subr.mxu0 0.0
        %4351 = vmatpush1.msra.mxu0 0.0
        %4352 = vmatprep.subr.mxu0 0.0
        %4353 = vmatpush1.msra.mxu0 0.0
        %4354 = vmatprep.subr.mxu0 0.0
        %4355 = vmatpush1.msra.mxu0 0.0
        %4356 = vmatprep.subr.mxu0 0.0
        %4357 = vmatpush1.msra.mxu0 0.0
        %4358 = vmatprep.subr.mxu0 0.0
        %4359 = vmatpush1.msra.mxu0 0.0
        %4360 = vmatprep.subr.mxu0 0.0
        %4361 = vmatpush1.msra.mxu0 0.0
        %4362 = vmatprep.subr.mxu0 0.0
        %4363 = vmatpush1.msra.mxu0 0.0
        %4364 = vmatprep.subr.mxu0 0.0
        %4365 = vmatpush1.msra.mxu0 0.0
        %4366 = vmatprep.subr.mxu0 0.0
        %4367 = vmatpush1.msra.mxu0 0.0
        %4368 = vmatprep.subr.mxu0 0.0
        %4369 = vmatpush1.msra.mxu0 0.0
        %4370 = vmatprep.subr.mxu0 0.0
        %4371 = vmatpush1.msra.mxu0 0.0
        %4372 = vmatprep.subr.mxu0 0.0
        %4373 = vmatpush1.msra.mxu0 0.0
        %4374 = vmatprep.subr.mxu0 0.0
        %4375 = vmatpush1.msra.mxu0 0.0
        %4376 = vmatprep.mubr.f32.mxu0 0.0
        %v4377 = vand.u32 %v3260, 4294901760
        %4378 = vmatmul.mubr.f32.gmra.mrb[0].mxu0 %v4377
        %v4379 = vpop.f32.mrb[0].mxu0
        %v4380 = vadd.f32 %v4299, %v4379
        %v4381 = vpop.f32.mrb[0].mxu0
        %4382 = vmatprep.mubr.f32.mxu0 0.0
        %v4383 = vand.u32 %v3262, 4294901760
        %4384 = vmatmul.mubr.f32.gmra.mrb[0].mxu0 %v4383
        %v4385 = vpop.f32.mrb[0].mxu0
        %v4386 = vadd.f32 %v4305, %v4385
        %v4387 = vpop.f32.mrb[0].mxu0
        %4388 = vdwg.mxu0
        %v4389 = vadd.f32 %v3859, %v4380
        %v4390 = vadd.f32 %v3860, %v4386
        %v4391 = vxor.u32 %v4389, 2147483648
        %v4392 = vxor.u32 %v4390, 2147483648
        %v4393 = vmul.f32 %v4391, 1.442695
        %v4394 = vpow.pop %v4393
        %v4395 = vmul.f32 %v4392, 1.442695
        %v4396 = vpow.pop %v4395
        %v4397 = vadd.f32 %v4394, 1.0
        %v4398 = vadd.f32 %v4396, 1.0
        %v4399 = vrcp.pop %v4397
        %v4400 = vmul.f32 1.0, %v4399
        %v4401 = vrcp.pop %v4398
        %v4402 = vmul.f32 1.0, %v4401
        %v4403 = vtanh.pop %v4389
        %v4404 = vtanh.pop %v4390
        %v4405 = vmul.f32 %v4400, %v2720
        %v4406 = vmul.f32 %v4402, %v2721
        %4409 = vrot.lane.b32.xlu0 %v4403, 64
        %v4410 = vpop.permute.xlu0 %4409
        %4411 = vrot.lane.b32.xlu0 %v4404, 64
        %v4412 = vpop.permute.xlu0 %4411
        %v4415 = vmul.f32 %v4400, %v4410
        %v4416 = vmul.f32 %v4402, %v4412
        %4419 = vrot.lane.b32.xlu0 %v4415, 32
        %v4420 = vpop.permute.xlu0 %4419
        %4421 = vrot.lane.b32.xlu0 %v4416, 32
        %v4422 = vpop.permute.xlu0 %4421
        %v4425 = vadd.f32 %v4405, %v4420
        %v4426 = vadd.f32 %v4406, %v4422
        %v4427 = vtanh.pop %v4425
        %v4428 = vtanh.pop %v4426
        %4431 = vrot.lane.b32.xlu0 %v4427, 64
        %v4432 = vpop.permute.xlu0 %4431
        %4433 = vrot.lane.b32.xlu0 %v4428, 64
        %v4434 = vpop.permute.xlu0 %4433
        %v4437 = vmul.f32 %v4400, %v4432
        %v4438 = vmul.f32 %v4402, %v4434
        %s4439 = scalar_select %p3857, 1, 0
        %v4440 = vstv %s4439
        %vm4441 = vcmp.eq.s32.totalorder %v4440, 1
        %v4442 = vsel %vm4441, %v4437, %v2718
        %v4443 = vsel %vm4441, %v4438, %v2719
        %v4444 = vsel %vm4441, %v4425, %v2720
        %v4445 = vsel %vm4441, %v4426, %v2721
        %v4446 = vsel %vm377, %v3849, 0
        %v4448 = vsel %vm377, %v3851, 0
        %4450 = vmatprep.subr.mxu0 0.0
        %v4451 = vand.u32 %v349, 4294901760
        %4452 = vmatpush1.msra.mxu0 %v4451
        %4453 = vmatprep.subr.mxu0 0.0
        %v4454 = vand.u32 %v350, 4294901760
        %4455 = vmatpush1.msra.mxu0 %v4454
        %4456 = vmatprep.subr.mxu0 0.0
        %v4457 = vand.u32 %v351, 4294901760
        %4458 = vmatpush1.msra.mxu0 %v4457
        %4459 = vmatprep.subr.mxu0 0.0
        %v4460 = vand.u32 %v352, 4294901760
        %4461 = vmatpush1.msra.mxu0 %v4460
        %4462 = vmatprep.subr.mxu0 0.0
        %4463 = vmatpush1.msra.mxu0 0.0
        %4464 = vmatprep.subr.mxu0 0.0
        %4465 = vmatpush1.msra.mxu0 0.0
        %4466 = vmatprep.subr.mxu0 0.0
        %4467 = vmatpush1.msra.mxu0 0.0
        %4468 = vmatprep.subr.mxu0 0.0
        %4469 = vmatpush1.msra.mxu0 0.0
        %4470 = vmatprep.subr.mxu0 0.0
        %4471 = vmatpush1.msra.mxu0 0.0
        %4472 = vmatprep.subr.mxu0 0.0
        %4473 = vmatpush1.msra.mxu0 0.0
        %4474 = vmatprep.subr.mxu0 0.0
        %4475 = vmatpush1.msra.mxu0 0.0
        %4476 = vmatprep.subr.mxu0 0.0
        %4477 = vmatpush1.msra.mxu0 0.0
        %4478 = vmatprep.subr.mxu0 0.0
        %4479 = vmatpush1.msra.mxu0 0.0
        %4480 = vmatprep.subr.mxu0 0.0
        %4481 = vmatpush1.msra.mxu0 0.0
        %4482 = vmatprep.subr.mxu0 0.0
        %4483 = vmatpush1.msra.mxu0 0.0
        %4484 = vmatprep.subr.mxu0 0.0
        %4485 = vmatpush1.msra.mxu0 0.0
        %4486 = vmatprep.subr.mxu0 0.0
        %4487 = vmatpush1.msra.mxu0 0.0
        %4488 = vmatprep.subr.mxu0 0.0
        %4489 = vmatpush1.msra.mxu0 0.0
        %4490 = vmatprep.subr.mxu0 0.0
        %4491 = vmatpush1.msra.mxu0 0.0
        %4492 = vmatprep.subr.mxu0 0.0
        %4493 = vmatpush1.msra.mxu0 0.0
        %4494 = vmatprep.subr.mxu0 0.0
        %4495 = vmatpush1.msra.mxu0 0.0
        %4496 = vmatprep.subr.mxu0 0.0
        %4497 = vmatpush1.msra.mxu0 0.0
        %4498 = vmatprep.subr.mxu0 0.0
        %4499 = vmatpush1.msra.mxu0 0.0
        %4500 = vmatprep.subr.mxu0 0.0
        %4501 = vmatpush1.msra.mxu0 0.0
        %4502 = vmatprep.subr.mxu0 0.0
        %4503 = vmatpush1.msra.mxu0 0.0
        %4504 = vmatprep.subr.mxu0 0.0
        %4505 = vmatpush1.msra.mxu0 0.0
        %4506 = vmatprep.subr.mxu0 0.0
        %4507 = vmatpush1.msra.mxu0 0.0
        %4508 = vmatprep.subr.mxu0 0.0
        %4509 = vmatpush1.msra.mxu0 0.0
        %4510 = vmatprep.subr.mxu0 0.0
        %4511 = vmatpush1.msra.mxu0 0.0
        %4512 = vmatprep.subr.mxu0 0.0
        %4513 = vmatpush1.msra.mxu0 0.0
        %4514 = vmatprep.subr.mxu0 0.0
        %4515 = vmatpush1.msra.mxu0 0.0
        %4516 = vmatprep.subr.mxu0 0.0
        %4517 = vmatpush1.msra.mxu0 0.0
        %4518 = vmatprep.mubr.f32.mxu0 0.0
        %v4519 = vand.u32 %v4446, 4294901760
        %v4520 = vsub.f32 %v4446, %v4519
        %v4521 = vand.u32 %v4520, 4294901760
        %v4522 = vsub.f32 %v4520, %v4521
        %v4523 = vand.u32 %v4522, 4294901760
        %4524 = vmatmul.mubr.f32.gmra.mrb[0].mxu0 %v4523
        %v4525 = vpop.f32.mrb[0].mxu0
        %v4526 = vadd.f32 0.0, %v4525
        %v4527 = vpop.f32.mrb[0].mxu0
        %4528 = vmatprep.mubr.f32.mxu0 0.0
        %v4529 = vand.u32 %v4448, 4294901760
        %v4530 = vsub.f32 %v4448, %v4529
        %v4531 = vand.u32 %v4530, 4294901760
        %v4532 = vsub.f32 %v4530, %v4531
        %v4533 = vand.u32 %v4532, 4294901760
        %4534 = vmatmul.mubr.f32.gmra.mrb[0].mxu0 %v4533
        %v4535 = vpop.f32.mrb[0].mxu0
        %v4536 = vadd.f32 0.0, %v4535
        %v4537 = vpop.f32.mrb[0].mxu0
        %4538 = vdwg.mxu0
        %4539 = vmatprep.subr.mxu0 0.0
        %v4540 = vand.u32 %v349, 4294901760
        %v4541 = vsub.f32 %v349, %v4540
        %v4542 = vand.u32 %v4541, 4294901760
        %v4543 = vsub.f32 %v4541, %v4542
        %v4544 = vand.u32 %v4543, 4294901760
        %4545 = vmatpush1.msra.mxu0 %v4544
        %4546 = vmatprep.subr.mxu0 0.0
        %v4547 = vand.u32 %v350, 4294901760
        %v4548 = vsub.f32 %v350, %v4547
        %v4549 = vand.u32 %v4548, 4294901760
        %v4550 = vsub.f32 %v4548, %v4549
        %v4551 = vand.u32 %v4550, 4294901760
        %4552 = vmatpush1.msra.mxu0 %v4551
        %4553 = vmatprep.subr.mxu0 0.0
        %v4554 = vand.u32 %v351, 4294901760
        %v4555 = vsub.f32 %v351, %v4554
        %v4556 = vand.u32 %v4555, 4294901760
        %v4557 = vsub.f32 %v4555, %v4556
        %v4558 = vand.u32 %v4557, 4294901760
        %4559 = vmatpush1.msra.mxu0 %v4558
        %4560 = vmatprep.subr.mxu0 0.0
        %v4561 = vand.u32 %v352, 4294901760
        %v4562 = vsub.f32 %v352, %v4561
        %v4563 = vand.u32 %v4562, 4294901760
        %v4564 = vsub.f32 %v4562, %v4563
        %v4565 = vand.u32 %v4564, 4294901760
        %4566 = vmatpush1.msra.mxu0 %v4565
        %4567 = vmatprep.subr.mxu0 0.0
        %4568 = vmatpush1.msra.mxu0 0.0
        %4569 = vmatprep.subr.mxu0 0.0
        %4570 = vmatpush1.msra.mxu0 0.0
        %4571 = vmatprep.subr.mxu0 0.0
        %4572 = vmatpush1.msra.mxu0 0.0
        %4573 = vmatprep.subr.mxu0 0.0
        %4574 = vmatpush1.msra.mxu0 0.0
        %4575 = vmatprep.subr.mxu0 0.0
        %4576 = vmatpush1.msra.mxu0 0.0
        %4577 = vmatprep.subr.mxu0 0.0
        %4578 = vmatpush1.msra.mxu0 0.0
        %4579 = vmatprep.subr.mxu0 0.0
        %4580 = vmatpush1.msra.mxu0 0.0
        %4581 = vmatprep.subr.mxu0 0.0
        %4582 = vmatpush1.msra.mxu0 0.0
        %4583 = vmatprep.subr.mxu0 0.0
        %4584 = vmatpush1.msra.mxu0 0.0
        %4585 = vmatprep.subr.mxu0 0.0
        %4586 = vmatpush1.msra.mxu0 0.0
        %4587 = vmatprep.subr.mxu0 0.0
        %4588 = vmatpush1.msra.mxu0 0.0
        %4589 = vmatprep.subr.mxu0 0.0
        %4590 = vmatpush1.msra.mxu0 0.0
        %4591 = vmatprep.subr.mxu0 0.0
        %4592 = vmatpush1.msra.mxu0 0.0
        %4593 = vmatprep.subr.mxu0 0.0
        %4594 = vmatpush1.msra.mxu0 0.0
        %4595 = vmatprep.subr.mxu0 0.0
        %4596 = vmatpush1.msra.mxu0 0.0
        %4597 = vmatprep.subr.mxu0 0.0
        %4598 = vmatpush1.msra.mxu0 0.0
        %4599 = vmatprep.subr.mxu0 0.0
        %4600 = vmatpush1.msra.mxu0 0.0
        %4601 = vmatprep.subr.mxu0 0.0
        %4602 = vmatpush1.msra.mxu0 0.0
        %4603 = vmatprep.subr.mxu0 0.0
        %4604 = vmatpush1.msra.mxu0 0.0
        %4605 = vmatprep.subr.mxu0 0.0
        %4606 = vmatpush1.msra.mxu0 0.0
        %4607 = vmatprep.subr.mxu0 0.0
        %4608 = vmatpush1.msra.mxu0 0.0
        %4609 = vmatprep.subr.mxu0 0.0
        %4610 = vmatpush1.msra.mxu0 0.0
        %4611 = vmatprep.subr.mxu0 0.0
        %4612 = vmatpush1.msra.mxu0 0.0
        %4613 = vmatprep.subr.mxu0 0.0
        %4614 = vmatpush1.msra.mxu0 0.0
        %4615 = vmatprep.subr.mxu0 0.0
        %4616 = vmatpush1.msra.mxu0 0.0
        %4617 = vmatprep.subr.mxu0 0.0
        %4618 = vmatpush1.msra.mxu0 0.0
        %4619 = vmatprep.subr.mxu0 0.0
        %4620 = vmatpush1.msra.mxu0 0.0
        %4621 = vmatprep.subr.mxu0 0.0
        %4622 = vmatpush1.msra.mxu0 0.0
        %4623 = vmatprep.mubr.f32.mxu0 0.0
        %v4624 = vand.u32 %v4446, 4294901760
        %4625 = vmatmul.mubr.f32.gmra.mrb[0].mxu0 %v4624
        %v4626 = vpop.f32.mrb[0].mxu0
        %v4627 = vadd.f32 %v4526, %v4626
        %v4628 = vpop.f32.mrb[0].mxu0
        %4629 = vmatprep.mubr.f32.mxu0 0.0
        %v4630 = vand.u32 %v4448, 4294901760
        %4631 = vmatmul.mubr.f32.gmra.mrb[0].mxu0 %v4630
        %v4632 = vpop.f32.mrb[0].mxu0
        %v4633 = vadd.f32 %v4536, %v4632
        %v4634 = vpop.f32.mrb[0].mxu0
        %4635 = vdwg.mxu0
        %4636 = vmatprep.subr.mxu0 0.0
        %v4637 = vand.u32 %v349, 4294901760
        %v4638 = vsub.f32 %v349, %v4637
        %4639 = vmatpush1.msra.mxu0 %v4638
        %4640 = vmatprep.subr.mxu0 0.0
        %v4641 = vand.u32 %v350, 4294901760
        %v4642 = vsub.f32 %v350, %v4641
        %4643 = vmatpush1.msra.mxu0 %v4642
        %4644 = vmatprep.subr.mxu0 0.0
        %v4645 = vand.u32 %v351, 4294901760
        %v4646 = vsub.f32 %v351, %v4645
        %4647 = vmatpush1.msra.mxu0 %v4646
        %4648 = vmatprep.subr.mxu0 0.0
        %v4649 = vand.u32 %v352, 4294901760
        %v4650 = vsub.f32 %v352, %v4649
        %4651 = vmatpush1.msra.mxu0 %v4650
        %4652 = vmatprep.subr.mxu0 0.0
        %4653 = vmatpush1.msra.mxu0 0.0
        %4654 = vmatprep.subr.mxu0 0.0
        %4655 = vmatpush1.msra.mxu0 0.0
        %4656 = vmatprep.subr.mxu0 0.0
        %4657 = vmatpush1.msra.mxu0 0.0
        %4658 = vmatprep.subr.mxu0 0.0
        %4659 = vmatpush1.msra.mxu0 0.0
        %4660 = vmatprep.subr.mxu0 0.0
        %4661 = vmatpush1.msra.mxu0 0.0
        %4662 = vmatprep.subr.mxu0 0.0
        %4663 = vmatpush1.msra.mxu0 0.0
        %4664 = vmatprep.subr.mxu0 0.0
        %4665 = vmatpush1.msra.mxu0 0.0
        %4666 = vmatprep.subr.mxu0 0.0
        %4667 = vmatpush1.msra.mxu0 0.0
        %4668 = vmatprep.subr.mxu0 0.0
        %4669 = vmatpush1.msra.mxu0 0.0
        %4670 = vmatprep.subr.mxu0 0.0
        %4671 = vmatpush1.msra.mxu0 0.0
        %4672 = vmatprep.subr.mxu0 0.0
        %4673 = vmatpush1.msra.mxu0 0.0
        %4674 = vmatprep.subr.mxu0 0.0
        %4675 = vmatpush1.msra.mxu0 0.0
        %4676 = vmatprep.subr.mxu0 0.0
        %4677 = vmatpush1.msra.mxu0 0.0
        %4678 = vmatprep.subr.mxu0 0.0
        %4679 = vmatpush1.msra.mxu0 0.0
        %4680 = vmatprep.subr.mxu0 0.0
        %4681 = vmatpush1.msra.mxu0 0.0
        %4682 = vmatprep.subr.mxu0 0.0
        %4683 = vmatpush1.msra.mxu0 0.0
        %4684 = vmatprep.subr.mxu0 0.0
        %4685 = vmatpush1.msra.mxu0 0.0
        %4686 = vmatprep.subr.mxu0 0.0
        %4687 = vmatpush1.msra.mxu0 0.0
        %4688 = vmatprep.subr.mxu0 0.0
        %4689 = vmatpush1.msra.mxu0 0.0
        %4690 = vmatprep.subr.mxu0 0.0
        %4691 = vmatpush1.msra.mxu0 0.0
        %4692 = vmatprep.subr.mxu0 0.0
        %4693 = vmatpush1.msra.mxu0 0.0
        %4694 = vmatprep.subr.mxu0 0.0
        %4695 = vmatpush1.msra.mxu0 0.0
        %4696 = vmatprep.subr.mxu0 0.0
        %4697 = vmatpush1.msra.mxu0 0.0
        %4698 = vmatprep.subr.mxu0 0.0
        %4699 = vmatpush1.msra.mxu0 0.0
        %4700 = vmatprep.subr.mxu0 0.0
        %4701 = vmatpush1.msra.mxu0 0.0
        %4702 = vmatprep.subr.mxu0 0.0
        %4703 = vmatpush1.msra.mxu0 0.0
        %4704 = vmatprep.subr.mxu0 0.0
        %4705 = vmatpush1.msra.mxu0 0.0
        %4706 = vmatprep.subr.mxu0 0.0
        %4707 = vmatpush1.msra.mxu0 0.0
        %4708 = vmatprep.mubr.f32.mxu0 0.0
        %v4709 = vand.u32 %v4446, 4294901760
        %v4710 = vsub.f32 %v4446, %v4709
        %4711 = vmatmul.mubr.f32.gmra.mrb[0].mxu0 %v4710
        %v4712 = vpop.f32.mrb[0].mxu0
        %v4713 = vadd.f32 %v4627, %v4712
        %v4714 = vpop.f32.mrb[0].mxu0
        %4715 = vmatprep.mubr.f32.mxu0 0.0
        %v4716 = vand.u32 %v4448, 4294901760
        %v4717 = vsub.f32 %v4448, %v4716
        %4718 = vmatmul.mubr.f32.gmra.mrb[0].mxu0 %v4717
        %v4719 = vpop.f32.mrb[0].mxu0
        %v4720 = vadd.f32 %v4633, %v4719
        %v4721 = vpop.f32.mrb[0].mxu0
        %4722 = vdwg.mxu0
        %4723 = vmatprep.subr.mxu0 0.0
        %v4724 = vand.u32 %v349, 4294901760
        %4725 = vmatpush1.msra.mxu0 %v4724
        %4726 = vmatprep.subr.mxu0 0.0
        %v4727 = vand.u32 %v350, 4294901760
        %4728 = vmatpush1.msra.mxu0 %v4727
        %4729 = vmatprep.subr.mxu0 0.0
        %v4730 = vand.u32 %v351, 4294901760
        %4731 = vmatpush1.msra.mxu0 %v4730
        %4732 = vmatprep.subr.mxu0 0.0
        %v4733 = vand.u32 %v352, 4294901760
        %4734 = vmatpush1.msra.mxu0 %v4733
        %4735 = vmatprep.subr.mxu0 0.0
        %4736 = vmatpush1.msra.mxu0 0.0
        %4737 = vmatprep.subr.mxu0 0.0
        %4738 = vmatpush1.msra.mxu0 0.0
        %4739 = vmatprep.subr.mxu0 0.0
        %4740 = vmatpush1.msra.mxu0 0.0
        %4741 = vmatprep.subr.mxu0 0.0
        %4742 = vmatpush1.msra.mxu0 0.0
        %4743 = vmatprep.subr.mxu0 0.0
        %4744 = vmatpush1.msra.mxu0 0.0
        %4745 = vmatprep.subr.mxu0 0.0
        %4746 = vmatpush1.msra.mxu0 0.0
        %4747 = vmatprep.subr.mxu0 0.0
        %4748 = vmatpush1.msra.mxu0 0.0
        %4749 = vmatprep.subr.mxu0 0.0
        %4750 = vmatpush1.msra.mxu0 0.0
        %4751 = vmatprep.subr.mxu0 0.0
        %4752 = vmatpush1.msra.mxu0 0.0
        %4753 = vmatprep.subr.mxu0 0.0
        %4754 = vmatpush1.msra.mxu0 0.0
        %4755 = vmatprep.subr.mxu0 0.0
        %4756 = vmatpush1.msra.mxu0 0.0
        %4757 = vmatprep.subr.mxu0 0.0
        %4758 = vmatpush1.msra.mxu0 0.0
        %4759 = vmatprep.subr.mxu0 0.0
        %4760 = vmatpush1.msra.mxu0 0.0
        %4761 = vmatprep.subr.mxu0 0.0
        %4762 = vmatpush1.msra.mxu0 0.0
        %4763 = vmatprep.subr.mxu0 0.0
        %4764 = vmatpush1.msra.mxu0 0.0
        %4765 = vmatprep.subr.mxu0 0.0
        %4766 = vmatpush1.msra.mxu0 0.0
        %4767 = vmatprep.subr.mxu0 0.0
        %4768 = vmatpush1.msra.mxu0 0.0
        %4769 = vmatprep.subr.mxu0 0.0
        %4770 = vmatpush1.msra.mxu0 0.0
        %4771 = vmatprep.subr.mxu0 0.0
        %4772 = vmatpush1.msra.mxu0 0.0
        %4773 = vmatprep.subr.mxu0 0.0
        %4774 = vmatpush1.msra.mxu0 0.0
        %4775 = vmatprep.subr.mxu0 0.0
        %4776 = vmatpush1.msra.mxu0 0.0
        %4777 = vmatprep.subr.mxu0 0.0
        %4778 = vmatpush1.msra.mxu0 0.0
        %4779 = vmatprep.subr.mxu0 0.0
        %4780 = vmatpush1.msra.mxu0 0.0
        %4781 = vmatprep.subr.mxu0 0.0
        %4782 = vmatpush1.msra.mxu0 0.0
        %4783 = vmatprep.subr.mxu0 0.0
        %4784 = vmatpush1.msra.mxu0 0.0
        %4785 = vmatprep.subr.mxu0 0.0
        %4786 = vmatpush1.msra.mxu0 0.0
        %4787 = vmatprep.subr.mxu0 0.0
        %4788 = vmatpush1.msra.mxu0 0.0
        %4789 = vmatprep.subr.mxu0 0.0
        %4790 = vmatpush1.msra.mxu0 0.0
        %4791 = vmatprep.mubr.f32.mxu0 0.0
        %v4792 = vand.u32 %v4446, 4294901760
        %v4793 = vsub.f32 %v4446, %v4792
        %v4794 = vand.u32 %v4793, 4294901760
        %4795 = vmatmul.mubr.f32.gmra.mrb[0].mxu0 %v4794
        %v4796 = vpop.f32.mrb[0].mxu0
        %v4797 = vadd.f32 %v4713, %v4796
        %v4798 = vpop.f32.mrb[0].mxu0
        %4799 = vmatprep.mubr.f32.mxu0 0.0
        %v4800 = vand.u32 %v4448, 4294901760
        %v4801 = vsub.f32 %v4448, %v4800
        %v4802 = vand.u32 %v4801, 4294901760
        %4803 = vmatmul.mubr.f32.gmra.mrb[0].mxu0 %v4802
        %v4804 = vpop.f32.mrb[0].mxu0
        %v4805 = vadd.f32 %v4720, %v4804
        %v4806 = vpop.f32.mrb[0].mxu0
        %4807 = vdwg.mxu0
        %4808 = vmatprep.subr.mxu0 0.0
        %v4809 = vand.u32 %v349, 4294901760
        %v4810 = vsub.f32 %v349, %v4809
        %v4811 = vand.u32 %v4810, 4294901760
        %4812 = vmatpush1.msra.mxu0 %v4811
        %4813 = vmatprep.subr.mxu0 0.0
        %v4814 = vand.u32 %v350, 4294901760
        %v4815 = vsub.f32 %v350, %v4814
        %v4816 = vand.u32 %v4815, 4294901760
        %4817 = vmatpush1.msra.mxu0 %v4816
        %4818 = vmatprep.subr.mxu0 0.0
        %v4819 = vand.u32 %v351, 4294901760
        %v4820 = vsub.f32 %v351, %v4819
        %v4821 = vand.u32 %v4820, 4294901760
        %4822 = vmatpush1.msra.mxu0 %v4821
        %4823 = vmatprep.subr.mxu0 0.0
        %v4824 = vand.u32 %v352, 4294901760
        %v4825 = vsub.f32 %v352, %v4824
        %v4826 = vand.u32 %v4825, 4294901760
        %4827 = vmatpush1.msra.mxu0 %v4826
        %4828 = vmatprep.subr.mxu0 0.0
        %4829 = vmatpush1.msra.mxu0 0.0
        %4830 = vmatprep.subr.mxu0 0.0
        %4831 = vmatpush1.msra.mxu0 0.0
        %4832 = vmatprep.subr.mxu0 0.0
        %4833 = vmatpush1.msra.mxu0 0.0
        %4834 = vmatprep.subr.mxu0 0.0
        %4835 = vmatpush1.msra.mxu0 0.0
        %4836 = vmatprep.subr.mxu0 0.0
        %4837 = vmatpush1.msra.mxu0 0.0
        %4838 = vmatprep.subr.mxu0 0.0
        %4839 = vmatpush1.msra.mxu0 0.0
        %4840 = vmatprep.subr.mxu0 0.0
        %4841 = vmatpush1.msra.mxu0 0.0
        %4842 = vmatprep.subr.mxu0 0.0
        %4843 = vmatpush1.msra.mxu0 0.0
        %4844 = vmatprep.subr.mxu0 0.0
        %4845 = vmatpush1.msra.mxu0 0.0
        %4846 = vmatprep.subr.mxu0 0.0
        %4847 = vmatpush1.msra.mxu0 0.0
        %4848 = vmatprep.subr.mxu0 0.0
        %4849 = vmatpush1.msra.mxu0 0.0
        %4850 = vmatprep.subr.mxu0 0.0
        %4851 = vmatpush1.msra.mxu0 0.0
        %4852 = vmatprep.subr.mxu0 0.0
        %4853 = vmatpush1.msra.mxu0 0.0
        %4854 = vmatprep.subr.mxu0 0.0
        %4855 = vmatpush1.msra.mxu0 0.0
        %4856 = vmatprep.subr.mxu0 0.0
        %4857 = vmatpush1.msra.mxu0 0.0
        %4858 = vmatprep.subr.mxu0 0.0
        %4859 = vmatpush1.msra.mxu0 0.0
        %4860 = vmatprep.subr.mxu0 0.0
        %4861 = vmatpush1.msra.mxu0 0.0
        %4862 = vmatprep.subr.mxu0 0.0
        %4863 = vmatpush1.msra.mxu0 0.0
        %4864 = vmatprep.subr.mxu0 0.0
        %4865 = vmatpush1.msra.mxu0 0.0
        %4866 = vmatprep.subr.mxu0 0.0
        %4867 = vmatpush1.msra.mxu0 0.0
        %4868 = vmatprep.subr.mxu0 0.0
        %4869 = vmatpush1.msra.mxu0 0.0
        %4870 = vmatprep.subr.mxu0 0.0
        %4871 = vmatpush1.msra.mxu0 0.0
        %4872 = vmatprep.subr.mxu0 0.0
        %4873 = vmatpush1.msra.mxu0 0.0
        %4874 = vmatprep.subr.mxu0 0.0
        %4875 = vmatpush1.msra.mxu0 0.0
        %4876 = vmatprep.subr.mxu0 0.0
        %4877 = vmatpush1.msra.mxu0 0.0
        %4878 = vmatprep.subr.mxu0 0.0
        %4879 = vmatpush1.msra.mxu0 0.0
        %4880 = vmatprep.subr.mxu0 0.0
        %4881 = vmatpush1.msra.mxu0 0.0
        %4882 = vmatprep.subr.mxu0 0.0
        %4883 = vmatpush1.msra.mxu0 0.0
        %4884 = vmatprep.mubr.f32.mxu0 0.0
        %v4885 = vand.u32 %v4446, 4294901760
        %4886 = vmatmul.mubr.f32.gmra.mrb[0].mxu0 %v4885
        %v4887 = vpop.f32.mrb[0].mxu0
        %v4888 = vadd.f32 %v4797, %v4887
        %v4889 = vpop.f32.mrb[0].mxu0
        %4890 = vmatprep.mubr.f32.mxu0 0.0
        %v4891 = vand.u32 %v4448, 4294901760
        %4892 = vmatmul.mubr.f32.gmra.mrb[0].mxu0 %v4891
        %v4893 = vpop.f32.mrb[0].mxu0
        %v4894 = vadd.f32 %v4805, %v4893
        %v4895 = vpop.f32.mrb[0].mxu0
        %4896 = vdwg.mxu0
        %4897 = vmatprep.subr.mxu0 0.0
        %v4898 = vand.u32 %v349, 4294901760
        %4899 = vmatpush1.msra.mxu0 %v4898
        %4900 = vmatprep.subr.mxu0 0.0
        %v4901 = vand.u32 %v350, 4294901760
        %4902 = vmatpush1.msra.mxu0 %v4901
        %4903 = vmatprep.subr.mxu0 0.0
        %v4904 = vand.u32 %v351, 4294901760
        %4905 = vmatpush1.msra.mxu0 %v4904
        %4906 = vmatprep.subr.mxu0 0.0
        %v4907 = vand.u32 %v352, 4294901760
        %4908 = vmatpush1.msra.mxu0 %v4907
        %4909 = vmatprep.subr.mxu0 0.0
        %4910 = vmatpush1.msra.mxu0 0.0
        %4911 = vmatprep.subr.mxu0 0.0
        %4912 = vmatpush1.msra.mxu0 0.0
        %4913 = vmatprep.subr.mxu0 0.0
        %4914 = vmatpush1.msra.mxu0 0.0
        %4915 = vmatprep.subr.mxu0 0.0
        %4916 = vmatpush1.msra.mxu0 0.0
        %4917 = vmatprep.subr.mxu0 0.0
        %4918 = vmatpush1.msra.mxu0 0.0
        %4919 = vmatprep.subr.mxu0 0.0
        %4920 = vmatpush1.msra.mxu0 0.0
        %4921 = vmatprep.subr.mxu0 0.0
        %4922 = vmatpush1.msra.mxu0 0.0
        %4923 = vmatprep.subr.mxu0 0.0
        %4924 = vmatpush1.msra.mxu0 0.0
        %4925 = vmatprep.subr.mxu0 0.0
        %4926 = vmatpush1.msra.mxu0 0.0
        %4927 = vmatprep.subr.mxu0 0.0
        %4928 = vmatpush1.msra.mxu0 0.0
        %4929 = vmatprep.subr.mxu0 0.0
        %4930 = vmatpush1.msra.mxu0 0.0
        %4931 = vmatprep.subr.mxu0 0.0
        %4932 = vmatpush1.msra.mxu0 0.0
        %4933 = vmatprep.subr.mxu0 0.0
        %4934 = vmatpush1.msra.mxu0 0.0
        %4935 = vmatprep.subr.mxu0 0.0
        %4936 = vmatpush1.msra.mxu0 0.0
        %4937 = vmatprep.subr.mxu0 0.0
        %4938 = vmatpush1.msra.mxu0 0.0
        %4939 = vmatprep.subr.mxu0 0.0
        %4940 = vmatpush1.msra.mxu0 0.0
        %4941 = vmatprep.subr.mxu0 0.0
        %4942 = vmatpush1.msra.mxu0 0.0
        %4943 = vmatprep.subr.mxu0 0.0
        %4944 = vmatpush1.msra.mxu0 0.0
        %4945 = vmatprep.subr.mxu0 0.0
        %4946 = vmatpush1.msra.mxu0 0.0
        %4947 = vmatprep.subr.mxu0 0.0
        %4948 = vmatpush1.msra.mxu0 0.0
        %4949 = vmatprep.subr.mxu0 0.0
        %4950 = vmatpush1.msra.mxu0 0.0
        %4951 = vmatprep.subr.mxu0 0.0
        %4952 = vmatpush1.msra.mxu0 0.0
        %4953 = vmatprep.subr.mxu0 0.0
        %4954 = vmatpush1.msra.mxu0 0.0
        %4955 = vmatprep.subr.mxu0 0.0
        %4956 = vmatpush1.msra.mxu0 0.0
        %4957 = vmatprep.subr.mxu0 0.0
        %4958 = vmatpush1.msra.mxu0 0.0
        %4959 = vmatprep.subr.mxu0 0.0
        %4960 = vmatpush1.msra.mxu0 0.0
        %4961 = vmatprep.subr.mxu0 0.0
        %4962 = vmatpush1.msra.mxu0 0.0
        %4963 = vmatprep.subr.mxu0 0.0
        %4964 = vmatpush1.msra.mxu0 0.0
        %4965 = vmatprep.mubr.f32.mxu0 0.0
        %v4966 = vand.u32 %v4446, 4294901760
        %4967 = vmatmul.mubr.f32.gmra.mrb[0].mxu0 %v4966
        %v4968 = vpop.f32.mrb[0].mxu0
        %v4969 = vadd.f32 %v4888, %v4968
        %v4970 = vpop.f32.mrb[0].mxu0
        %4971 = vmatprep.mubr.f32.mxu0 0.0
        %v4972 = vand.u32 %v4448, 4294901760
        %4973 = vmatmul.mubr.f32.gmra.mrb[0].mxu0 %v4972
        %v4974 = vpop.f32.mrb[0].mxu0
        %v4975 = vadd.f32 %v4894, %v4974
        %v4976 = vpop.f32.mrb[0].mxu0
        %4977 = vdwg.mxu0
        %4980 = vrot.lane.b32.xlu0 %v4442, 32
        %v4981 = vpop.permute.xlu0 %4980
        %4982 = vrot.lane.b32.xlu0 %v4443, 32
        %v4983 = vpop.permute.xlu0 %4982
        %v4984 = vsel %vm377, %v4981, 0
        %v4986 = vsel %vm377, %v4983, 0
        %4988 = vmatprep.subr.mxu0 0.0
        %v4989 = vand.u32 %v345, 4294901760
        %4990 = vmatpush1.msra.mxu0 %v4989
        %4991 = vmatprep.subr.mxu0 0.0
        %v4992 = vand.u32 %v346, 4294901760
        %4993 = vmatpush1.msra.mxu0 %v4992
        %4994 = vmatprep.subr.mxu0 0.0
        %v4995 = vand.u32 %v347, 4294901760
        %4996 = vmatpush1.msra.mxu0 %v4995
        %4997 = vmatprep.subr.mxu0 0.0
        %v4998 = vand.u32 %v348, 4294901760
        %4999 = vmatpush1.msra.mxu0 %v4998
        %5000 = vmatprep.subr.mxu0 0.0
        %5001 = vmatpush1.msra.mxu0 0.0
        %5002 = vmatprep.subr.mxu0 0.0
        %5003 = vmatpush1.msra.mxu0 0.0
        %5004 = vmatprep.subr.mxu0 0.0
        %5005 = vmatpush1.msra.mxu0 0.0
        %5006 = vmatprep.subr.mxu0 0.0
        %5007 = vmatpush1.msra.mxu0 0.0
        %5008 = vmatprep.subr.mxu0 0.0
        %5009 = vmatpush1.msra.mxu0 0.0
        %5010 = vmatprep.subr.mxu0 0.0
        %5011 = vmatpush1.msra.mxu0 0.0
        %5012 = vmatprep.subr.mxu0 0.0
        %5013 = vmatpush1.msra.mxu0 0.0
        %5014 = vmatprep.subr.mxu0 0.0
        %5015 = vmatpush1.msra.mxu0 0.0
        %5016 = vmatprep.subr.mxu0 0.0
        %5017 = vmatpush1.msra.mxu0 0.0
        %5018 = vmatprep.subr.mxu0 0.0
        %5019 = vmatpush1.msra.mxu0 0.0
        %5020 = vmatprep.subr.mxu0 0.0
        %5021 = vmatpush1.msra.mxu0 0.0
        %5022 = vmatprep.subr.mxu0 0.0
        %5023 = vmatpush1.msra.mxu0 0.0
        %5024 = vmatprep.subr.mxu0 0.0
        %5025 = vmatpush1.msra.mxu0 0.0
        %5026 = vmatprep.subr.mxu0 0.0
        %5027 = vmatpush1.msra.mxu0 0.0
        %5028 = vmatprep.subr.mxu0 0.0
        %5029 = vmatpush1.msra.mxu0 0.0
        %5030 = vmatprep.subr.mxu0 0.0
        %5031 = vmatpush1.msra.mxu0 0.0
        %5032 = vmatprep.subr.mxu0 0.0
        %5033 = vmatpush1.msra.mxu0 0.0
        %5034 = vmatprep.subr.mxu0 0.0
        %5035 = vmatpush1.msra.mxu0 0.0
        %5036 = vmatprep.subr.mxu0 0.0
        %5037 = vmatpush1.msra.mxu0 0.0
        %5038 = vmatprep.subr.mxu0 0.0
        %5039 = vmatpush1.msra.mxu0 0.0
        %5040 = vmatprep.subr.mxu0 0.0
        %5041 = vmatpush1.msra.mxu0 0.0
        %5042 = vmatprep.subr.mxu0 0.0
        %5043 = vmatpush1.msra.mxu0 0.0
        %5044 = vmatprep.subr.mxu0 0.0
        %5045 = vmatpush1.msra.mxu0 0.0
        %5046 = vmatprep.subr.mxu0 0.0
        %5047 = vmatpush1.msra.mxu0 0.0
        %5048 = vmatprep.subr.mxu0 0.0
        %5049 = vmatpush1.msra.mxu0 0.0
        %5050 = vmatprep.subr.mxu0 0.0
        %5051 = vmatpush1.msra.mxu0 0.0
        %5052 = vmatprep.subr.mxu0 0.0
        %5053 = vmatpush1.msra.mxu0 0.0
        %5054 = vmatprep.subr.mxu0 0.0
        %5055 = vmatpush1.msra.mxu0 0.0
        %5056 = vmatprep.mubr.f32.mxu0 0.0
        %v5057 = vand.u32 %v4984, 4294901760
        %v5058 = vsub.f32 %v4984, %v5057
        %v5059 = vand.u32 %v5058, 4294901760
        %v5060 = vsub.f32 %v5058, %v5059
        %v5061 = vand.u32 %v5060, 4294901760
        %5062 = vmatmul.mubr.f32.gmra.mrb[0].mxu0 %v5061
        %v5063 = vpop.f32.mrb[0].mxu0
        %v5064 = vadd.f32 %v4969, %v5063
        %v5065 = vpop.f32.mrb[0].mxu0
        %5066 = vmatprep.mubr.f32.mxu0 0.0
        %v5067 = vand.u32 %v4986, 4294901760
        %v5068 = vsub.f32 %v4986, %v5067
        %v5069 = vand.u32 %v5068, 4294901760
        %v5070 = vsub.f32 %v5068, %v5069
        %v5071 = vand.u32 %v5070, 4294901760
        %5072 = vmatmul.mubr.f32.gmra.mrb[0].mxu0 %v5071
        %v5073 = vpop.f32.mrb[0].mxu0
        %v5074 = vadd.f32 %v4975, %v5073
        %v5075 = vpop.f32.mrb[0].mxu0
        %5076 = vdwg.mxu0
        %5077 = vmatprep.subr.mxu0 0.0
        %v5078 = vand.u32 %v345, 4294901760
        %v5079 = vsub.f32 %v345, %v5078
        %v5080 = vand.u32 %v5079, 4294901760
        %v5081 = vsub.f32 %v5079, %v5080
        %v5082 = vand.u32 %v5081, 4294901760
        %5083 = vmatpush1.msra.mxu0 %v5082
        %5084 = vmatprep.subr.mxu0 0.0
        %v5085 = vand.u32 %v346, 4294901760
        %v5086 = vsub.f32 %v346, %v5085
        %v5087 = vand.u32 %v5086, 4294901760
        %v5088 = vsub.f32 %v5086, %v5087
        %v5089 = vand.u32 %v5088, 4294901760
        %5090 = vmatpush1.msra.mxu0 %v5089
        %5091 = vmatprep.subr.mxu0 0.0
        %v5092 = vand.u32 %v347, 4294901760
        %v5093 = vsub.f32 %v347, %v5092
        %v5094 = vand.u32 %v5093, 4294901760
        %v5095 = vsub.f32 %v5093, %v5094
        %v5096 = vand.u32 %v5095, 4294901760
        %5097 = vmatpush1.msra.mxu0 %v5096
        %5098 = vmatprep.subr.mxu0 0.0
        %v5099 = vand.u32 %v348, 4294901760
        %v5100 = vsub.f32 %v348, %v5099
        %v5101 = vand.u32 %v5100, 4294901760
        %v5102 = vsub.f32 %v5100, %v5101
        %v5103 = vand.u32 %v5102, 4294901760
        %5104 = vmatpush1.msra.mxu0 %v5103
        %5105 = vmatprep.subr.mxu0 0.0
        %5106 = vmatpush1.msra.mxu0 0.0
        %5107 = vmatprep.subr.mxu0 0.0
        %5108 = vmatpush1.msra.mxu0 0.0
        %5109 = vmatprep.subr.mxu0 0.0
        %5110 = vmatpush1.msra.mxu0 0.0
        %5111 = vmatprep.subr.mxu0 0.0
        %5112 = vmatpush1.msra.mxu0 0.0
        %5113 = vmatprep.subr.mxu0 0.0
        %5114 = vmatpush1.msra.mxu0 0.0
        %5115 = vmatprep.subr.mxu0 0.0
        %5116 = vmatpush1.msra.mxu0 0.0
        %5117 = vmatprep.subr.mxu0 0.0
        %5118 = vmatpush1.msra.mxu0 0.0
        %5119 = vmatprep.subr.mxu0 0.0
        %5120 = vmatpush1.msra.mxu0 0.0
        %5121 = vmatprep.subr.mxu0 0.0
        %5122 = vmatpush1.msra.mxu0 0.0
        %5123 = vmatprep.subr.mxu0 0.0
        %5124 = vmatpush1.msra.mxu0 0.0
        %5125 = vmatprep.subr.mxu0 0.0
        %5126 = vmatpush1.msra.mxu0 0.0
        %5127 = vmatprep.subr.mxu0 0.0
        %5128 = vmatpush1.msra.mxu0 0.0
        %5129 = vmatprep.subr.mxu0 0.0
        %5130 = vmatpush1.msra.mxu0 0.0
        %5131 = vmatprep.subr.mxu0 0.0
        %5132 = vmatpush1.msra.mxu0 0.0
        %5133 = vmatprep.subr.mxu0 0.0
        %5134 = vmatpush1.msra.mxu0 0.0
        %5135 = vmatprep.subr.mxu0 0.0
        %5136 = vmatpush1.msra.mxu0 0.0
        %5137 = vmatprep.subr.mxu0 0.0
        %5138 = vmatpush1.msra.mxu0 0.0
        %5139 = vmatprep.subr.mxu0 0.0
        %5140 = vmatpush1.msra.mxu0 0.0
        %5141 = vmatprep.subr.mxu0 0.0
        %5142 = vmatpush1.msra.mxu0 0.0
        %5143 = vmatprep.subr.mxu0 0.0
        %5144 = vmatpush1.msra.mxu0 0.0
        %5145 = vmatprep.subr.mxu0 0.0
        %5146 = vmatpush1.msra.mxu0 0.0
        %5147 = vmatprep.subr.mxu0 0.0
        %5148 = vmatpush1.msra.mxu0 0.0
        %5149 = vmatprep.subr.mxu0 0.0
        %5150 = vmatpush1.msra.mxu0 0.0
        %5151 = vmatprep.subr.mxu0 0.0
        %5152 = vmatpush1.msra.mxu0 0.0
        %5153 = vmatprep.subr.mxu0 0.0
        %5154 = vmatpush1.msra.mxu0 0.0
        %5155 = vmatprep.subr.mxu0 0.0
        %5156 = vmatpush1.msra.mxu0 0.0
        %5157 = vmatprep.subr.mxu0 0.0
        %5158 = vmatpush1.msra.mxu0 0.0
        %5159 = vmatprep.subr.mxu0 0.0
        %5160 = vmatpush1.msra.mxu0 0.0
        %5161 = vmatprep.mubr.f32.mxu0 0.0
        %v5162 = vand.u32 %v4984, 4294901760
        %5163 = vmatmul.mubr.f32.gmra.mrb[0].mxu0 %v5162
        %v5164 = vpop.f32.mrb[0].mxu0
        %v5165 = vadd.f32 %v5064, %v5164
        %v5166 = vpop.f32.mrb[0].mxu0
        %5167 = vmatprep.mubr.f32.mxu0 0.0
        %v5168 = vand.u32 %v4986, 4294901760
        %5169 = vmatmul.mubr.f32.gmra.mrb[0].mxu0 %v5168
        %v5170 = vpop.f32.mrb[0].mxu0
        %v5171 = vadd.f32 %v5074, %v5170
        %v5172 = vpop.f32.mrb[0].mxu0
        %5173 = vdwg.mxu0
        %5174 = vmatprep.subr.mxu0 0.0
        %v5175 = vand.u32 %v345, 4294901760
        %v5176 = vsub.f32 %v345, %v5175
        %5177 = vmatpush1.msra.mxu0 %v5176
        %5178 = vmatprep.subr.mxu0 0.0
        %v5179 = vand.u32 %v346, 4294901760
        %v5180 = vsub.f32 %v346, %v5179
        %5181 = vmatpush1.msra.mxu0 %v5180
        %5182 = vmatprep.subr.mxu0 0.0
        %v5183 = vand.u32 %v347, 4294901760
        %v5184 = vsub.f32 %v347, %v5183
        %5185 = vmatpush1.msra.mxu0 %v5184
        %5186 = vmatprep.subr.mxu0 0.0
        %v5187 = vand.u32 %v348, 4294901760
        %v5188 = vsub.f32 %v348, %v5187
        %5189 = vmatpush1.msra.mxu0 %v5188
        %5190 = vmatprep.subr.mxu0 0.0
        %5191 = vmatpush1.msra.mxu0 0.0
        %5192 = vmatprep.subr.mxu0 0.0
        %5193 = vmatpush1.msra.mxu0 0.0
        %5194 = vmatprep.subr.mxu0 0.0
        %5195 = vmatpush1.msra.mxu0 0.0
        %5196 = vmatprep.subr.mxu0 0.0
        %5197 = vmatpush1.msra.mxu0 0.0
        %5198 = vmatprep.subr.mxu0 0.0
        %5199 = vmatpush1.msra.mxu0 0.0
        %5200 = vmatprep.subr.mxu0 0.0
        %5201 = vmatpush1.msra.mxu0 0.0
        %5202 = vmatprep.subr.mxu0 0.0
        %5203 = vmatpush1.msra.mxu0 0.0
        %5204 = vmatprep.subr.mxu0 0.0
        %5205 = vmatpush1.msra.mxu0 0.0
        %5206 = vmatprep.subr.mxu0 0.0
        %5207 = vmatpush1.msra.mxu0 0.0
        %5208 = vmatprep.subr.mxu0 0.0
        %5209 = vmatpush1.msra.mxu0 0.0
        %5210 = vmatprep.subr.mxu0 0.0
        %5211 = vmatpush1.msra.mxu0 0.0
        %5212 = vmatprep.subr.mxu0 0.0
        %5213 = vmatpush1.msra.mxu0 0.0
        %5214 = vmatprep.subr.mxu0 0.0
        %5215 = vmatpush1.msra.mxu0 0.0
        %5216 = vmatprep.subr.mxu0 0.0
        %5217 = vmatpush1.msra.mxu0 0.0
        %5218 = vmatprep.subr.mxu0 0.0
        %5219 = vmatpush1.msra.mxu0 0.0
        %5220 = vmatprep.subr.mxu0 0.0
        %5221 = vmatpush1.msra.mxu0 0.0
        %5222 = vmatprep.subr.mxu0 0.0
        %5223 = vmatpush1.msra.mxu0 0.0
        %5224 = vmatprep.subr.mxu0 0.0
        %5225 = vmatpush1.msra.mxu0 0.0
        %5226 = vmatprep.subr.mxu0 0.0
        %5227 = vmatpush1.msra.mxu0 0.0
        %5228 = vmatprep.subr.mxu0 0.0
        %5229 = vmatpush1.msra.mxu0 0.0
        %5230 = vmatprep.subr.mxu0 0.0
        %5231 = vmatpush1.msra.mxu0 0.0
        %5232 = vmatprep.subr.mxu0 0.0
        %5233 = vmatpush1.msra.mxu0 0.0
        %5234 = vmatprep.subr.mxu0 0.0
        %5235 = vmatpush1.msra.mxu0 0.0
        %5236 = vmatprep.subr.mxu0 0.0
        %5237 = vmatpush1.msra.mxu0 0.0
        %5238 = vmatprep.subr.mxu0 0.0
        %5239 = vmatpush1.msra.mxu0 0.0
        %5240 = vmatprep.subr.mxu0 0.0
        %5241 = vmatpush1.msra.mxu0 0.0
        %5242 = vmatprep.subr.mxu0 0.0
        %5243 = vmatpush1.msra.mxu0 0.0
        %5244 = vmatprep.subr.mxu0 0.0
        %5245 = vmatpush1.msra.mxu0 0.0
        %5246 = vmatprep.mubr.f32.mxu0 0.0
        %v5247 = vand.u32 %v4984, 4294901760
        %v5248 = vsub.f32 %v4984, %v5247
        %5249 = vmatmul.mubr.f32.gmra.mrb[0].mxu0 %v5248
        %v5250 = vpop.f32.mrb[0].mxu0
        %v5251 = vadd.f32 %v5165, %v5250
        %v5252 = vpop.f32.mrb[0].mxu0
        %5253 = vmatprep.mubr.f32.mxu0 0.0
        %v5254 = vand.u32 %v4986, 4294901760
        %v5255 = vsub.f32 %v4986, %v5254
        %5256 = vmatmul.mubr.f32.gmra.mrb[0].mxu0 %v5255
        %v5257 = vpop.f32.mrb[0].mxu0
        %v5258 = vadd.f32 %v5171, %v5257
        %v5259 = vpop.f32.mrb[0].mxu0
        %5260 = vdwg.mxu0
        %5261 = vmatprep.subr.mxu0 0.0
        %v5262 = vand.u32 %v345, 4294901760
        %5263 = vmatpush1.msra.mxu0 %v5262
        %5264 = vmatprep.subr.mxu0 0.0
        %v5265 = vand.u32 %v346, 4294901760
        %5266 = vmatpush1.msra.mxu0 %v5265
        %5267 = vmatprep.subr.mxu0 0.0
        %v5268 = vand.u32 %v347, 4294901760
        %5269 = vmatpush1.msra.mxu0 %v5268
        %5270 = vmatprep.subr.mxu0 0.0
        %v5271 = vand.u32 %v348, 4294901760
        %5272 = vmatpush1.msra.mxu0 %v5271
        %5273 = vmatprep.subr.mxu0 0.0
        %5274 = vmatpush1.msra.mxu0 0.0
        %5275 = vmatprep.subr.mxu0 0.0
        %5276 = vmatpush1.msra.mxu0 0.0
        %5277 = vmatprep.subr.mxu0 0.0
        %5278 = vmatpush1.msra.mxu0 0.0
        %5279 = vmatprep.subr.mxu0 0.0
        %5280 = vmatpush1.msra.mxu0 0.0
        %5281 = vmatprep.subr.mxu0 0.0
        %5282 = vmatpush1.msra.mxu0 0.0
        %5283 = vmatprep.subr.mxu0 0.0
        %5284 = vmatpush1.msra.mxu0 0.0
        %5285 = vmatprep.subr.mxu0 0.0
        %5286 = vmatpush1.msra.mxu0 0.0
        %5287 = vmatprep.subr.mxu0 0.0
        %5288 = vmatpush1.msra.mxu0 0.0
        %5289 = vmatprep.subr.mxu0 0.0
        %5290 = vmatpush1.msra.mxu0 0.0
        %5291 = vmatprep.subr.mxu0 0.0
        %5292 = vmatpush1.msra.mxu0 0.0
        %5293 = vmatprep.subr.mxu0 0.0
        %5294 = vmatpush1.msra.mxu0 0.0
        %5295 = vmatprep.subr.mxu0 0.0
        %5296 = vmatpush1.msra.mxu0 0.0
        %5297 = vmatprep.subr.mxu0 0.0
        %5298 = vmatpush1.msra.mxu0 0.0
        %5299 = vmatprep.subr.mxu0 0.0
        %5300 = vmatpush1.msra.mxu0 0.0
        %5301 = vmatprep.subr.mxu0 0.0
        %5302 = vmatpush1.msra.mxu0 0.0
        %5303 = vmatprep.subr.mxu0 0.0
        %5304 = vmatpush1.msra.mxu0 0.0
        %5305 = vmatprep.subr.mxu0 0.0
        %5306 = vmatpush1.msra.mxu0 0.0
        %5307 = vmatprep.subr.mxu0 0.0
        %5308 = vmatpush1.msra.mxu0 0.0
        %5309 = vmatprep.subr.mxu0 0.0
        %5310 = vmatpush1.msra.mxu0 0.0
        %5311 = vmatprep.subr.mxu0 0.0
        %5312 = vmatpush1.msra.mxu0 0.0
        %5313 = vmatprep.subr.mxu0 0.0
        %5314 = vmatpush1.msra.mxu0 0.0
        %5315 = vmatprep.subr.mxu0 0.0
        %5316 = vmatpush1.msra.mxu0 0.0
        %5317 = vmatprep.subr.mxu0 0.0
        %5318 = vmatpush1.msra.mxu0 0.0
        %5319 = vmatprep.subr.mxu0 0.0
        %5320 = vmatpush1.msra.mxu0 0.0
        %5321 = vmatprep.subr.mxu0 0.0
        %5322 = vmatpush1.msra.mxu0 0.0
        %5323 = vmatprep.subr.mxu0 0.0
        %5324 = vmatpush1.msra.mxu0 0.0
        %5325 = vmatprep.subr.mxu0 0.0
        %5326 = vmatpush1.msra.mxu0 0.0
        %5327 = vmatprep.subr.mxu0 0.0
        %5328 = vmatpush1.msra.mxu0 0.0
        %5329 = vmatprep.mubr.f32.mxu0 0.0
        %v5330 = vand.u32 %v4984, 4294901760
        %v5331 = vsub.f32 %v4984, %v5330
        %v5332 = vand.u32 %v5331, 4294901760
        %5333 = vmatmul.mubr.f32.gmra.mrb[0].mxu0 %v5332
        %v5334 = vpop.f32.mrb[0].mxu0
        %v5335 = vadd.f32 %v5251, %v5334
        %v5336 = vpop.f32.mrb[0].mxu0
        %5337 = vmatprep.mubr.f32.mxu0 0.0
        %v5338 = vand.u32 %v4986, 4294901760
        %v5339 = vsub.f32 %v4986, %v5338
        %v5340 = vand.u32 %v5339, 4294901760
        %5341 = vmatmul.mubr.f32.gmra.mrb[0].mxu0 %v5340
        %v5342 = vpop.f32.mrb[0].mxu0
        %v5343 = vadd.f32 %v5258, %v5342
        %v5344 = vpop.f32.mrb[0].mxu0
        %5345 = vdwg.mxu0
        %5346 = vmatprep.subr.mxu0 0.0
        %v5347 = vand.u32 %v345, 4294901760
        %v5348 = vsub.f32 %v345, %v5347
        %v5349 = vand.u32 %v5348, 4294901760
        %5350 = vmatpush1.msra.mxu0 %v5349
        %5351 = vmatprep.subr.mxu0 0.0
        %v5352 = vand.u32 %v346, 4294901760
        %v5353 = vsub.f32 %v346, %v5352
        %v5354 = vand.u32 %v5353, 4294901760
        %5355 = vmatpush1.msra.mxu0 %v5354
        %5356 = vmatprep.subr.mxu0 0.0
        %v5357 = vand.u32 %v347, 4294901760
        %v5358 = vsub.f32 %v347, %v5357
        %v5359 = vand.u32 %v5358, 4294901760
        %5360 = vmatpush1.msra.mxu0 %v5359
        %5361 = vmatprep.subr.mxu0 0.0
        %v5362 = vand.u32 %v348, 4294901760
        %v5363 = vsub.f32 %v348, %v5362
        %v5364 = vand.u32 %v5363, 4294901760
        %5365 = vmatpush1.msra.mxu0 %v5364
        %5366 = vmatprep.subr.mxu0 0.0
        %5367 = vmatpush1.msra.mxu0 0.0
        %5368 = vmatprep.subr.mxu0 0.0
        %5369 = vmatpush1.msra.mxu0 0.0
        %5370 = vmatprep.subr.mxu0 0.0
        %5371 = vmatpush1.msra.mxu0 0.0
        %5372 = vmatprep.subr.mxu0 0.0
        %5373 = vmatpush1.msra.mxu0 0.0
        %5374 = vmatprep.subr.mxu0 0.0
        %5375 = vmatpush1.msra.mxu0 0.0
        %5376 = vmatprep.subr.mxu0 0.0
        %5377 = vmatpush1.msra.mxu0 0.0
        %5378 = vmatprep.subr.mxu0 0.0
        %5379 = vmatpush1.msra.mxu0 0.0
        %5380 = vmatprep.subr.mxu0 0.0
        %5381 = vmatpush1.msra.mxu0 0.0
        %5382 = vmatprep.subr.mxu0 0.0
        %5383 = vmatpush1.msra.mxu0 0.0
        %5384 = vmatprep.subr.mxu0 0.0
        %5385 = vmatpush1.msra.mxu0 0.0
        %5386 = vmatprep.subr.mxu0 0.0
        %5387 = vmatpush1.msra.mxu0 0.0
        %5388 = vmatprep.subr.mxu0 0.0
        %5389 = vmatpush1.msra.mxu0 0.0
        %5390 = vmatprep.subr.mxu0 0.0
        %5391 = vmatpush1.msra.mxu0 0.0
        %5392 = vmatprep.subr.mxu0 0.0
        %5393 = vmatpush1.msra.mxu0 0.0
        %5394 = vmatprep.subr.mxu0 0.0
        %5395 = vmatpush1.msra.mxu0 0.0
        %5396 = vmatprep.subr.mxu0 0.0
        %5397 = vmatpush1.msra.mxu0 0.0
        %5398 = vmatprep.subr.mxu0 0.0
        %5399 = vmatpush1.msra.mxu0 0.0
        %5400 = vmatprep.subr.mxu0 0.0
        %5401 = vmatpush1.msra.mxu0 0.0
        %5402 = vmatprep.subr.mxu0 0.0
        %5403 = vmatpush1.msra.mxu0 0.0
        %5404 = vmatprep.subr.mxu0 0.0
        %5405 = vmatpush1.msra.mxu0 0.0
        %5406 = vmatprep.subr.mxu0 0.0
        %5407 = vmatpush1.msra.mxu0 0.0
        %5408 = vmatprep.subr.mxu0 0.0
        %5409 = vmatpush1.msra.mxu0 0.0
        %5410 = vmatprep.subr.mxu0 0.0
        %5411 = vmatpush1.msra.mxu0 0.0
        %5412 = vmatprep.subr.mxu0 0.0
        %5413 = vmatpush1.msra.mxu0 0.0
        %5414 = vmatprep.subr.mxu0 0.0
        %5415 = vmatpush1.msra.mxu0 0.0
        %5416 = vmatprep.subr.mxu0 0.0
        %5417 = vmatpush1.msra.mxu0 0.0
        %5418 = vmatprep.subr.mxu0 0.0
        %5419 = vmatpush1.msra.mxu0 0.0
        %5420 = vmatprep.subr.mxu0 0.0
        %5421 = vmatpush1.msra.mxu0 0.0
        %5422 = vmatprep.mubr.f32.mxu0 0.0
        %v5423 = vand.u32 %v4984, 4294901760
        %5424 = vmatmul.mubr.f32.gmra.mrb[0].mxu0 %v5423
        %v5425 = vpop.f32.mrb[0].mxu0
        %v5426 = vadd.f32 %v5335, %v5425
        %v5427 = vpop.f32.mrb[0].mxu0
        %5428 = vmatprep.mubr.f32.mxu0 0.0
        %v5429 = vand.u32 %v4986, 4294901760
        %5430 = vmatmul.mubr.f32.gmra.mrb[0].mxu0 %v5429
        %v5431 = vpop.f32.mrb[0].mxu0
        %v5432 = vadd.f32 %v5343, %v5431
        %v5433 = vpop.f32.mrb[0].mxu0
        %5434 = vdwg.mxu0
        %5435 = vmatprep.subr.mxu0 0.0
        %v5436 = vand.u32 %v345, 4294901760
        %5437 = vmatpush1.msra.mxu0 %v5436
        %5438 = vmatprep.subr.mxu0 0.0
        %v5439 = vand.u32 %v346, 4294901760
        %5440 = vmatpush1.msra.mxu0 %v5439
        %5441 = vmatprep.subr.mxu0 0.0
        %v5442 = vand.u32 %v347, 4294901760
        %5443 = vmatpush1.msra.mxu0 %v5442
        %5444 = vmatprep.subr.mxu0 0.0
        %v5445 = vand.u32 %v348, 4294901760
        %5446 = vmatpush1.msra.mxu0 %v5445
        %5447 = vmatprep.subr.mxu0 0.0
        %5448 = vmatpush1.msra.mxu0 0.0
        %5449 = vmatprep.subr.mxu0 0.0
        %5450 = vmatpush1.msra.mxu0 0.0
        %5451 = vmatprep.subr.mxu0 0.0
        %5452 = vmatpush1.msra.mxu0 0.0
        %5453 = vmatprep.subr.mxu0 0.0
        %5454 = vmatpush1.msra.mxu0 0.0
        %5455 = vmatprep.subr.mxu0 0.0
        %5456 = vmatpush1.msra.mxu0 0.0
        %5457 = vmatprep.subr.mxu0 0.0
        %5458 = vmatpush1.msra.mxu0 0.0
        %5459 = vmatprep.subr.mxu0 0.0
        %5460 = vmatpush1.msra.mxu0 0.0
        %5461 = vmatprep.subr.mxu0 0.0
        %5462 = vmatpush1.msra.mxu0 0.0
        %5463 = vmatprep.subr.mxu0 0.0
        %5464 = vmatpush1.msra.mxu0 0.0
        %5465 = vmatprep.subr.mxu0 0.0
        %5466 = vmatpush1.msra.mxu0 0.0
        %5467 = vmatprep.subr.mxu0 0.0
        %5468 = vmatpush1.msra.mxu0 0.0
        %5469 = vmatprep.subr.mxu0 0.0
        %5470 = vmatpush1.msra.mxu0 0.0
        %5471 = vmatprep.subr.mxu0 0.0
        %5472 = vmatpush1.msra.mxu0 0.0
        %5473 = vmatprep.subr.mxu0 0.0
        %5474 = vmatpush1.msra.mxu0 0.0
        %5475 = vmatprep.subr.mxu0 0.0
        %5476 = vmatpush1.msra.mxu0 0.0
        %5477 = vmatprep.subr.mxu0 0.0
        %5478 = vmatpush1.msra.mxu0 0.0
        %5479 = vmatprep.subr.mxu0 0.0
        %5480 = vmatpush1.msra.mxu0 0.0
        %5481 = vmatprep.subr.mxu0 0.0
        %5482 = vmatpush1.msra.mxu0 0.0
        %5483 = vmatprep.subr.mxu0 0.0
        %5484 = vmatpush1.msra.mxu0 0.0
        %5485 = vmatprep.subr.mxu0 0.0
        %5486 = vmatpush1.msra.mxu0 0.0
        %5487 = vmatprep.subr.mxu0 0.0
        %5488 = vmatpush1.msra.mxu0 0.0
        %5489 = vmatprep.subr.mxu0 0.0
        %5490 = vmatpush1.msra.mxu0 0.0
        %5491 = vmatprep.subr.mxu0 0.0
        %5492 = vmatpush1.msra.mxu0 0.0
        %5493 = vmatprep.subr.mxu0 0.0
        %5494 = vmatpush1.msra.mxu0 0.0
        %5495 = vmatprep.subr.mxu0 0.0
        %5496 = vmatpush1.msra.mxu0 0.0
        %5497 = vmatprep.subr.mxu0 0.0
        %5498 = vmatpush1.msra.mxu0 0.0
        %5499 = vmatprep.subr.mxu0 0.0
        %5500 = vmatpush1.msra.mxu0 0.0
        %5501 = vmatprep.subr.mxu0 0.0
        %5502 = vmatpush1.msra.mxu0 0.0
        %5503 = vmatprep.mubr.f32.mxu0 0.0
        %v5504 = vand.u32 %v4984, 4294901760
        %5505 = vmatmul.mubr.f32.gmra.mrb[0].mxu0 %v5504
        %v5506 = vpop.f32.mrb[0].mxu0
        %v5507 = vadd.f32 %v5426, %v5506
        %v5508 = vpop.f32.mrb[0].mxu0
        %5509 = vmatprep.mubr.f32.mxu0 0.0
        %v5510 = vand.u32 %v4986, 4294901760
        %5511 = vmatmul.mubr.f32.gmra.mrb[0].mxu0 %v5510
        %v5512 = vpop.f32.mrb[0].mxu0
        %v5513 = vadd.f32 %v5432, %v5512
        %v5514 = vpop.f32.mrb[0].mxu0
        %5515 = vdwg.mxu0
        %v5516 = vadd.f32 %v5507, %v358
        %v5517 = vadd.f32 %v5513, %v358
        %v5518 = vxor.u32 %v5516, 2147483648
        %v5519 = vxor.u32 %v5517, 2147483648
        %v5520 = vmul.f32 %v5518, 1.442695
        %v5521 = vpow.pop %v5520
        %v5522 = vmul.f32 %v5519, 1.442695
        %v5523 = vpow.pop %v5522
        %v5524 = vadd.f32 %v5521, 1.0
        %v5525 = vadd.f32 %v5523, 1.0
        %v5526 = vrcp.pop %v5524
        %v5527 = vmul.f32 1.0, %v5526
        %v5528 = vrcp.pop %v5525
        %v5529 = vmul.f32 1.0, %v5528
        %v5530 = vtanh.pop %v5516
        %v5531 = vtanh.pop %v5517
        %v5532 = vmul.f32 %v5527, %v3844
        %v5533 = vmul.f32 %v5529, %v3845
        %5536 = vrot.lane.b32.xlu0 %v5530, 64
        %v5537 = vpop.permute.xlu0 %5536
        %5538 = vrot.lane.b32.xlu0 %v5531, 64
        %v5539 = vpop.permute.xlu0 %5538
        %v5542 = vmul.f32 %v5527, %v5537
        %v5543 = vmul.f32 %v5529, %v5539
        %5546 = vrot.lane.b32.xlu0 %v5542, 32
        %v5547 = vpop.permute.xlu0 %5546
        %5548 = vrot.lane.b32.xlu0 %v5543, 32
        %v5549 = vpop.permute.xlu0 %5548
        %v5552 = vadd.f32 %v5532, %v5547
        %v5553 = vadd.f32 %v5533, %v5549
        %v5554 = vtanh.pop %v5552
        %v5555 = vtanh.pop %v5553
        %5558 = vrot.lane.b32.xlu0 %v5554, 64
        %v5559 = vpop.permute.xlu0 %5558
        %5560 = vrot.lane.b32.xlu0 %v5555, 64
        %v5561 = vpop.permute.xlu0 %5560
        %v5564 = vmul.f32 %v5527, %v5559
        %v5565 = vmul.f32 %v5529, %v5561
        %v5566 = vsel %vm4441, %v5564, %v3842
        %v5567 = vsel %vm4441, %v5565, %v3843
        %v5568 = vsel %vm4441, %v5552, %v3844
        %v5569 = vsel %vm4441, %v5553, %v3845
        %5572 = vrot.lane.b32.xlu0 %v5566, 32
        %v5573 = vpop.permute.xlu0 %5572
        %5574 = vrot.lane.b32.xlu0 %v5567, 32
        %v5575 = vpop.permute.xlu0 %5574
        %s5578 = scalar_lea.vmem %s313, 32 [#allocation12]
        %5579 = vst.msk [vmem:[%s5578] sm:$0xff] %vm377, %v5573
        %5580 = vst.msk [vmem:[%s5578 + $0x8] sm:$0xff] %vm377, %v5575
        %p5581 = scmp.gt.s32.totalorder %s363, 3
        %s5582 = scalar_lea.vmem %s287, 48 [#allocation10]
        %v5583 = vld [vmem:[%s5582] sm:$0xff]
        %v5584 = vld [vmem:[%s5582 + $0x8] sm:$0xff]
        %5585 = vmatprep.subr.mxu0 0.0
        %v5586 = vand.u32 %v341, 4294901760
        %5587 = vmatpush1.msra.mxu0 %v5586
        %5588 = vmatprep.subr.mxu0 0.0
        %v5589 = vand.u32 %v342, 4294901760
        %5590 = vmatpush1.msra.mxu0 %v5589
        %5591 = vmatprep.subr.mxu0 0.0
        %v5592 = vand.u32 %v343, 4294901760
        %5593 = vmatpush1.msra.mxu0 %v5592
        %5594 = vmatprep.subr.mxu0 0.0
        %v5595 = vand.u32 %v344, 4294901760
        %5596 = vmatpush1.msra.mxu0 %v5595
        %5597 = vmatprep.subr.mxu0 0.0
        %5598 = vmatpush1.msra.mxu0 0.0
        %5599 = vmatprep.subr.mxu0 0.0
        %5600 = vmatpush1.msra.mxu0 0.0
        %5601 = vmatprep.subr.mxu0 0.0
        %5602 = vmatpush1.msra.mxu0 0.0
        %5603 = vmatprep.subr.mxu0 0.0
        %5604 = vmatpush1.msra.mxu0 0.0
        %5605 = vmatprep.subr.mxu0 0.0
        %5606 = vmatpush1.msra.mxu0 0.0
        %5607 = vmatprep.subr.mxu0 0.0
        %5608 = vmatpush1.msra.mxu0 0.0
        %5609 = vmatprep.subr.mxu0 0.0
        %5610 = vmatpush1.msra.mxu0 0.0
        %5611 = vmatprep.subr.mxu0 0.0
        %5612 = vmatpush1.msra.mxu0 0.0
        %5613 = vmatprep.subr.mxu0 0.0
        %5614 = vmatpush1.msra.mxu0 0.0
        %5615 = vmatprep.subr.mxu0 0.0
        %5616 = vmatpush1.msra.mxu0 0.0
        %5617 = vmatprep.subr.mxu0 0.0
        %5618 = vmatpush1.msra.mxu0 0.0
        %5619 = vmatprep.subr.mxu0 0.0
        %5620 = vmatpush1.msra.mxu0 0.0
        %5621 = vmatprep.subr.mxu0 0.0
        %5622 = vmatpush1.msra.mxu0 0.0
        %5623 = vmatprep.subr.mxu0 0.0
        %5624 = vmatpush1.msra.mxu0 0.0
        %5625 = vmatprep.subr.mxu0 0.0
        %5626 = vmatpush1.msra.mxu0 0.0
        %5627 = vmatprep.subr.mxu0 0.0
        %5628 = vmatpush1.msra.mxu0 0.0
        %5629 = vmatprep.subr.mxu0 0.0
        %5630 = vmatpush1.msra.mxu0 0.0
        %5631 = vmatprep.subr.mxu0 0.0
        %5632 = vmatpush1.msra.mxu0 0.0
        %5633 = vmatprep.subr.mxu0 0.0
        %5634 = vmatpush1.msra.mxu0 0.0
        %5635 = vmatprep.subr.mxu0 0.0
        %5636 = vmatpush1.msra.mxu0 0.0
        %5637 = vmatprep.subr.mxu0 0.0
        %5638 = vmatpush1.msra.mxu0 0.0
        %5639 = vmatprep.subr.mxu0 0.0
        %5640 = vmatpush1.msra.mxu0 0.0
        %5641 = vmatprep.subr.mxu0 0.0
        %5642 = vmatpush1.msra.mxu0 0.0
        %5643 = vmatprep.subr.mxu0 0.0
        %5644 = vmatpush1.msra.mxu0 0.0
        %5645 = vmatprep.subr.mxu0 0.0
        %5646 = vmatpush1.msra.mxu0 0.0
        %5647 = vmatprep.subr.mxu0 0.0
        %5648 = vmatpush1.msra.mxu0 0.0
        %5649 = vmatprep.subr.mxu0 0.0
        %5650 = vmatpush1.msra.mxu0 0.0
        %5651 = vmatprep.subr.mxu0 0.0
        %5652 = vmatpush1.msra.mxu0 0.0
        %5653 = vmatprep.mubr.f32.mxu0 0.0
        %v5654 = vand.u32 %v4984, 4294901760
        %v5655 = vsub.f32 %v4984, %v5654
        %v5656 = vand.u32 %v5655, 4294901760
        %v5657 = vsub.f32 %v5655, %v5656
        %v5658 = vand.u32 %v5657, 4294901760
        %5659 = vmatmul.mubr.f32.gmra.mrb[0].mxu0 %v5658
        %v5660 = vpop.f32.mrb[0].mxu0
        %v5661 = vadd.f32 0.0, %v5660
        %v5662 = vpop.f32.mrb[0].mxu0
        %5663 = vmatprep.mubr.f32.mxu0 0.0
        %v5664 = vand.u32 %v4986, 4294901760
        %v5665 = vsub.f32 %v4986, %v5664
        %v5666 = vand.u32 %v5665, 4294901760
        %v5667 = vsub.f32 %v5665, %v5666
        %v5668 = vand.u32 %v5667, 4294901760
        %5669 = vmatmul.mubr.f32.gmra.mrb[0].mxu0 %v5668
        %v5670 = vpop.f32.mrb[0].mxu0
        %v5671 = vadd.f32 0.0, %v5670
        %v5672 = vpop.f32.mrb[0].mxu0
        %5673 = vdwg.mxu0
        %5674 = vmatprep.subr.mxu0 0.0
        %v5675 = vand.u32 %v341, 4294901760
        %v5676 = vsub.f32 %v341, %v5675
        %v5677 = vand.u32 %v5676, 4294901760
        %v5678 = vsub.f32 %v5676, %v5677
        %v5679 = vand.u32 %v5678, 4294901760
        %5680 = vmatpush1.msra.mxu0 %v5679
        %5681 = vmatprep.subr.mxu0 0.0
        %v5682 = vand.u32 %v342, 4294901760
        %v5683 = vsub.f32 %v342, %v5682
        %v5684 = vand.u32 %v5683, 4294901760
        %v5685 = vsub.f32 %v5683, %v5684
        %v5686 = vand.u32 %v5685, 4294901760
        %5687 = vmatpush1.msra.mxu0 %v5686
        %5688 = vmatprep.subr.mxu0 0.0
        %v5689 = vand.u32 %v343, 4294901760
        %v5690 = vsub.f32 %v343, %v5689
        %v5691 = vand.u32 %v5690, 4294901760
        %v5692 = vsub.f32 %v5690, %v5691
        %v5693 = vand.u32 %v5692, 4294901760
        %5694 = vmatpush1.msra.mxu0 %v5693
        %5695 = vmatprep.subr.mxu0 0.0
        %v5696 = vand.u32 %v344, 4294901760
        %v5697 = vsub.f32 %v344, %v5696
        %v5698 = vand.u32 %v5697, 4294901760
        %v5699 = vsub.f32 %v5697, %v5698
        %v5700 = vand.u32 %v5699, 4294901760
        %5701 = vmatpush1.msra.mxu0 %v5700
        %5702 = vmatprep.subr.mxu0 0.0
        %5703 = vmatpush1.msra.mxu0 0.0
        %5704 = vmatprep.subr.mxu0 0.0
        %5705 = vmatpush1.msra.mxu0 0.0
        %5706 = vmatprep.subr.mxu0 0.0
        %5707 = vmatpush1.msra.mxu0 0.0
        %5708 = vmatprep.subr.mxu0 0.0
        %5709 = vmatpush1.msra.mxu0 0.0
        %5710 = vmatprep.subr.mxu0 0.0
        %5711 = vmatpush1.msra.mxu0 0.0
        %5712 = vmatprep.subr.mxu0 0.0
        %5713 = vmatpush1.msra.mxu0 0.0
        %5714 = vmatprep.subr.mxu0 0.0
        %5715 = vmatpush1.msra.mxu0 0.0
        %5716 = vmatprep.subr.mxu0 0.0
        %5717 = vmatpush1.msra.mxu0 0.0
        %5718 = vmatprep.subr.mxu0 0.0
        %5719 = vmatpush1.msra.mxu0 0.0
        %5720 = vmatprep.subr.mxu0 0.0
        %5721 = vmatpush1.msra.mxu0 0.0
        %5722 = vmatprep.subr.mxu0 0.0
        %5723 = vmatpush1.msra.mxu0 0.0
        %5724 = vmatprep.subr.mxu0 0.0
        %5725 = vmatpush1.msra.mxu0 0.0
        %5726 = vmatprep.subr.mxu0 0.0
        %5727 = vmatpush1.msra.mxu0 0.0
        %5728 = vmatprep.subr.mxu0 0.0
        %5729 = vmatpush1.msra.mxu0 0.0
        %5730 = vmatprep.subr.mxu0 0.0
        %5731 = vmatpush1.msra.mxu0 0.0
        %5732 = vmatprep.subr.mxu0 0.0
        %5733 = vmatpush1.msra.mxu0 0.0
        %5734 = vmatprep.subr.mxu0 0.0
        %5735 = vmatpush1.msra.mxu0 0.0
        %5736 = vmatprep.subr.mxu0 0.0
        %5737 = vmatpush1.msra.mxu0 0.0
        %5738 = vmatprep.subr.mxu0 0.0
        %5739 = vmatpush1.msra.mxu0 0.0
        %5740 = vmatprep.subr.mxu0 0.0
        %5741 = vmatpush1.msra.mxu0 0.0
        %5742 = vmatprep.subr.mxu0 0.0
        %5743 = vmatpush1.msra.mxu0 0.0
        %5744 = vmatprep.subr.mxu0 0.0
        %5745 = vmatpush1.msra.mxu0 0.0
        %5746 = vmatprep.subr.mxu0 0.0
        %5747 = vmatpush1.msra.mxu0 0.0
        %5748 = vmatprep.subr.mxu0 0.0
        %5749 = vmatpush1.msra.mxu0 0.0
        %5750 = vmatprep.subr.mxu0 0.0
        %5751 = vmatpush1.msra.mxu0 0.0
        %5752 = vmatprep.subr.mxu0 0.0
        %5753 = vmatpush1.msra.mxu0 0.0
        %5754 = vmatprep.subr.mxu0 0.0
        %5755 = vmatpush1.msra.mxu0 0.0
        %5756 = vmatprep.subr.mxu0 0.0
        %5757 = vmatpush1.msra.mxu0 0.0
        %5758 = vmatprep.mubr.f32.mxu0 0.0
        %v5759 = vand.u32 %v4984, 4294901760
        %5760 = vmatmul.mubr.f32.gmra.mrb[0].mxu0 %v5759
        %v5761 = vpop.f32.mrb[0].mxu0
        %v5762 = vadd.f32 %v5661, %v5761
        %v5763 = vpop.f32.mrb[0].mxu0
        %5764 = vmatprep.mubr.f32.mxu0 0.0
        %v5765 = vand.u32 %v4986, 4294901760
        %5766 = vmatmul.mubr.f32.gmra.mrb[0].mxu0 %v5765
        %v5767 = vpop.f32.mrb[0].mxu0
        %v5768 = vadd.f32 %v5671, %v5767
        %v5769 = vpop.f32.mrb[0].mxu0
        %5770 = vdwg.mxu0
        %5771 = vmatprep.subr.mxu0 0.0
        %v5772 = vand.u32 %v341, 4294901760
        %v5773 = vsub.f32 %v341, %v5772
        %5774 = vmatpush1.msra.mxu0 %v5773
        %5775 = vmatprep.subr.mxu0 0.0
        %v5776 = vand.u32 %v342, 4294901760
        %v5777 = vsub.f32 %v342, %v5776
        %5778 = vmatpush1.msra.mxu0 %v5777
        %5779 = vmatprep.subr.mxu0 0.0
        %v5780 = vand.u32 %v343, 4294901760
        %v5781 = vsub.f32 %v343, %v5780
        %5782 = vmatpush1.msra.mxu0 %v5781
        %5783 = vmatprep.subr.mxu0 0.0
        %v5784 = vand.u32 %v344, 4294901760
        %v5785 = vsub.f32 %v344, %v5784
        %5786 = vmatpush1.msra.mxu0 %v5785
        %5787 = vmatprep.subr.mxu0 0.0
        %5788 = vmatpush1.msra.mxu0 0.0
        %5789 = vmatprep.subr.mxu0 0.0
        %5790 = vmatpush1.msra.mxu0 0.0
        %5791 = vmatprep.subr.mxu0 0.0
        %5792 = vmatpush1.msra.mxu0 0.0
        %5793 = vmatprep.subr.mxu0 0.0
        %5794 = vmatpush1.msra.mxu0 0.0
        %5795 = vmatprep.subr.mxu0 0.0
        %5796 = vmatpush1.msra.mxu0 0.0
        %5797 = vmatprep.subr.mxu0 0.0
        %5798 = vmatpush1.msra.mxu0 0.0
        %5799 = vmatprep.subr.mxu0 0.0
        %5800 = vmatpush1.msra.mxu0 0.0
        %5801 = vmatprep.subr.mxu0 0.0
        %5802 = vmatpush1.msra.mxu0 0.0
        %5803 = vmatprep.subr.mxu0 0.0
        %5804 = vmatpush1.msra.mxu0 0.0
        %5805 = vmatprep.subr.mxu0 0.0
        %5806 = vmatpush1.msra.mxu0 0.0
        %5807 = vmatprep.subr.mxu0 0.0
        %5808 = vmatpush1.msra.mxu0 0.0
        %5809 = vmatprep.subr.mxu0 0.0
        %5810 = vmatpush1.msra.mxu0 0.0
        %5811 = vmatprep.subr.mxu0 0.0
        %5812 = vmatpush1.msra.mxu0 0.0
        %5813 = vmatprep.subr.mxu0 0.0
        %5814 = vmatpush1.msra.mxu0 0.0
        %5815 = vmatprep.subr.mxu0 0.0
        %5816 = vmatpush1.msra.mxu0 0.0
        %5817 = vmatprep.subr.mxu0 0.0
        %5818 = vmatpush1.msra.mxu0 0.0
        %5819 = vmatprep.subr.mxu0 0.0
        %5820 = vmatpush1.msra.mxu0 0.0
        %5821 = vmatprep.subr.mxu0 0.0
        %5822 = vmatpush1.msra.mxu0 0.0
        %5823 = vmatprep.subr.mxu0 0.0
        %5824 = vmatpush1.msra.mxu0 0.0
        %5825 = vmatprep.subr.mxu0 0.0
        %5826 = vmatpush1.msra.mxu0 0.0
        %5827 = vmatprep.subr.mxu0 0.0
        %5828 = vmatpush1.msra.mxu0 0.0
        %5829 = vmatprep.subr.mxu0 0.0
        %5830 = vmatpush1.msra.mxu0 0.0
        %5831 = vmatprep.subr.mxu0 0.0
        %5832 = vmatpush1.msra.mxu0 0.0
        %5833 = vmatprep.subr.mxu0 0.0
        %5834 = vmatpush1.msra.mxu0 0.0
        %5835 = vmatprep.subr.mxu0 0.0
        %5836 = vmatpush1.msra.mxu0 0.0
        %5837 = vmatprep.subr.mxu0 0.0
        %5838 = vmatpush1.msra.mxu0 0.0
        %5839 = vmatprep.subr.mxu0 0.0
        %5840 = vmatpush1.msra.mxu0 0.0
        %5841 = vmatprep.subr.mxu0 0.0
        %5842 = vmatpush1.msra.mxu0 0.0
        %5843 = vmatprep.mubr.f32.mxu0 0.0
        %v5844 = vand.u32 %v4984, 4294901760
        %v5845 = vsub.f32 %v4984, %v5844
        %5846 = vmatmul.mubr.f32.gmra.mrb[0].mxu0 %v5845
        %v5847 = vpop.f32.mrb[0].mxu0
        %v5848 = vadd.f32 %v5762, %v5847
        %v5849 = vpop.f32.mrb[0].mxu0
        %5850 = vmatprep.mubr.f32.mxu0 0.0
        %v5851 = vand.u32 %v4986, 4294901760
        %v5852 = vsub.f32 %v4986, %v5851
        %5853 = vmatmul.mubr.f32.gmra.mrb[0].mxu0 %v5852
        %v5854 = vpop.f32.mrb[0].mxu0
        %v5855 = vadd.f32 %v5768, %v5854
        %v5856 = vpop.f32.mrb[0].mxu0
        %5857 = vdwg.mxu0
        %5858 = vmatprep.subr.mxu0 0.0
        %v5859 = vand.u32 %v341, 4294901760
        %5860 = vmatpush1.msra.mxu0 %v5859
        %5861 = vmatprep.subr.mxu0 0.0
        %v5862 = vand.u32 %v342, 4294901760
        %5863 = vmatpush1.msra.mxu0 %v5862
        %5864 = vmatprep.subr.mxu0 0.0
        %v5865 = vand.u32 %v343, 4294901760
        %5866 = vmatpush1.msra.mxu0 %v5865
        %5867 = vmatprep.subr.mxu0 0.0
        %v5868 = vand.u32 %v344, 4294901760
        %5869 = vmatpush1.msra.mxu0 %v5868
        %5870 = vmatprep.subr.mxu0 0.0
        %5871 = vmatpush1.msra.mxu0 0.0
        %5872 = vmatprep.subr.mxu0 0.0
        %5873 = vmatpush1.msra.mxu0 0.0
        %5874 = vmatprep.subr.mxu0 0.0
        %5875 = vmatpush1.msra.mxu0 0.0
        %5876 = vmatprep.subr.mxu0 0.0
        %5877 = vmatpush1.msra.mxu0 0.0
        %5878 = vmatprep.subr.mxu0 0.0
        %5879 = vmatpush1.msra.mxu0 0.0
        %5880 = vmatprep.subr.mxu0 0.0
        %5881 = vmatpush1.msra.mxu0 0.0
        %5882 = vmatprep.subr.mxu0 0.0
        %5883 = vmatpush1.msra.mxu0 0.0
        %5884 = vmatprep.subr.mxu0 0.0
        %5885 = vmatpush1.msra.mxu0 0.0
        %5886 = vmatprep.subr.mxu0 0.0
        %5887 = vmatpush1.msra.mxu0 0.0
        %5888 = vmatprep.subr.mxu0 0.0
        %5889 = vmatpush1.msra.mxu0 0.0
        %5890 = vmatprep.subr.mxu0 0.0
        %5891 = vmatpush1.msra.mxu0 0.0
        %5892 = vmatprep.subr.mxu0 0.0
        %5893 = vmatpush1.msra.mxu0 0.0
        %5894 = vmatprep.subr.mxu0 0.0
        %5895 = vmatpush1.msra.mxu0 0.0
        %5896 = vmatprep.subr.mxu0 0.0
        %5897 = vmatpush1.msra.mxu0 0.0
        %5898 = vmatprep.subr.mxu0 0.0
        %5899 = vmatpush1.msra.mxu0 0.0
        %5900 = vmatprep.subr.mxu0 0.0
        %5901 = vmatpush1.msra.mxu0 0.0
        %5902 = vmatprep.subr.mxu0 0.0
        %5903 = vmatpush1.msra.mxu0 0.0
        %5904 = vmatprep.subr.mxu0 0.0
        %5905 = vmatpush1.msra.mxu0 0.0
        %5906 = vmatprep.subr.mxu0 0.0
        %5907 = vmatpush1.msra.mxu0 0.0
        %5908 = vmatprep.subr.mxu0 0.0
        %5909 = vmatpush1.msra.mxu0 0.0
        %5910 = vmatprep.subr.mxu0 0.0
        %5911 = vmatpush1.msra.mxu0 0.0
        %5912 = vmatprep.subr.mxu0 0.0
        %5913 = vmatpush1.msra.mxu0 0.0
        %5914 = vmatprep.subr.mxu0 0.0
        %5915 = vmatpush1.msra.mxu0 0.0
        %5916 = vmatprep.subr.mxu0 0.0
        %5917 = vmatpush1.msra.mxu0 0.0
        %5918 = vmatprep.subr.mxu0 0.0
        %5919 = vmatpush1.msra.mxu0 0.0
        %5920 = vmatprep.subr.mxu0 0.0
        %5921 = vmatpush1.msra.mxu0 0.0
        %5922 = vmatprep.subr.mxu0 0.0
        %5923 = vmatpush1.msra.mxu0 0.0
        %5924 = vmatprep.subr.mxu0 0.0
        %5925 = vmatpush1.msra.mxu0 0.0
        %5926 = vmatprep.mubr.f32.mxu0 0.0
        %v5927 = vand.u32 %v4984, 4294901760
        %v5928 = vsub.f32 %v4984, %v5927
        %v5929 = vand.u32 %v5928, 4294901760
        %5930 = vmatmul.mubr.f32.gmra.mrb[0].mxu0 %v5929
        %v5931 = vpop.f32.mrb[0].mxu0
        %v5932 = vadd.f32 %v5848, %v5931
        %v5933 = vpop.f32.mrb[0].mxu0
        %5934 = vmatprep.mubr.f32.mxu0 0.0
        %v5935 = vand.u32 %v4986, 4294901760
        %v5936 = vsub.f32 %v4986, %v5935
        %v5937 = vand.u32 %v5936, 4294901760
        %5938 = vmatmul.mubr.f32.gmra.mrb[0].mxu0 %v5937
        %v5939 = vpop.f32.mrb[0].mxu0
        %v5940 = vadd.f32 %v5855, %v5939
        %v5941 = vpop.f32.mrb[0].mxu0
        %5942 = vdwg.mxu0
        %5943 = vmatprep.subr.mxu0 0.0
        %v5944 = vand.u32 %v341, 4294901760
        %v5945 = vsub.f32 %v341, %v5944
        %v5946 = vand.u32 %v5945, 4294901760
        %5947 = vmatpush1.msra.mxu0 %v5946
        %5948 = vmatprep.subr.mxu0 0.0
        %v5949 = vand.u32 %v342, 4294901760
        %v5950 = vsub.f32 %v342, %v5949
        %v5951 = vand.u32 %v5950, 4294901760
        %5952 = vmatpush1.msra.mxu0 %v5951
        %5953 = vmatprep.subr.mxu0 0.0
        %v5954 = vand.u32 %v343, 4294901760
        %v5955 = vsub.f32 %v343, %v5954
        %v5956 = vand.u32 %v5955, 4294901760
        %5957 = vmatpush1.msra.mxu0 %v5956
        %5958 = vmatprep.subr.mxu0 0.0
        %v5959 = vand.u32 %v344, 4294901760
        %v5960 = vsub.f32 %v344, %v5959
        %v5961 = vand.u32 %v5960, 4294901760
        %5962 = vmatpush1.msra.mxu0 %v5961
        %5963 = vmatprep.subr.mxu0 0.0
        %5964 = vmatpush1.msra.mxu0 0.0
        %5965 = vmatprep.subr.mxu0 0.0
        %5966 = vmatpush1.msra.mxu0 0.0
        %5967 = vmatprep.subr.mxu0 0.0
        %5968 = vmatpush1.msra.mxu0 0.0
        %5969 = vmatprep.subr.mxu0 0.0
        %5970 = vmatpush1.msra.mxu0 0.0
        %5971 = vmatprep.subr.mxu0 0.0
        %5972 = vmatpush1.msra.mxu0 0.0
        %5973 = vmatprep.subr.mxu0 0.0
        %5974 = vmatpush1.msra.mxu0 0.0
        %5975 = vmatprep.subr.mxu0 0.0
        %5976 = vmatpush1.msra.mxu0 0.0
        %5977 = vmatprep.subr.mxu0 0.0
        %5978 = vmatpush1.msra.mxu0 0.0
        %5979 = vmatprep.subr.mxu0 0.0
        %5980 = vmatpush1.msra.mxu0 0.0
        %5981 = vmatprep.subr.mxu0 0.0
        %5982 = vmatpush1.msra.mxu0 0.0
        %5983 = vmatprep.subr.mxu0 0.0
        %5984 = vmatpush1.msra.mxu0 0.0
        %5985 = vmatprep.subr.mxu0 0.0
        %5986 = vmatpush1.msra.mxu0 0.0
        %5987 = vmatprep.subr.mxu0 0.0
        %5988 = vmatpush1.msra.mxu0 0.0
        %5989 = vmatprep.subr.mxu0 0.0
        %5990 = vmatpush1.msra.mxu0 0.0
        %5991 = vmatprep.subr.mxu0 0.0
        %5992 = vmatpush1.msra.mxu0 0.0
        %5993 = vmatprep.subr.mxu0 0.0
        %5994 = vmatpush1.msra.mxu0 0.0
        %5995 = vmatprep.subr.mxu0 0.0
        %5996 = vmatpush1.msra.mxu0 0.0
        %5997 = vmatprep.subr.mxu0 0.0
        %5998 = vmatpush1.msra.mxu0 0.0
        %5999 = vmatprep.subr.mxu0 0.0
        %6000 = vmatpush1.msra.mxu0 0.0
        %6001 = vmatprep.subr.mxu0 0.0
        %6002 = vmatpush1.msra.mxu0 0.0
        %6003 = vmatprep.subr.mxu0 0.0
        %6004 = vmatpush1.msra.mxu0 0.0
        %6005 = vmatprep.subr.mxu0 0.0
        %6006 = vmatpush1.msra.mxu0 0.0
        %6007 = vmatprep.subr.mxu0 0.0
        %6008 = vmatpush1.msra.mxu0 0.0
        %6009 = vmatprep.subr.mxu0 0.0
        %6010 = vmatpush1.msra.mxu0 0.0
        %6011 = vmatprep.subr.mxu0 0.0
        %6012 = vmatpush1.msra.mxu0 0.0
        %6013 = vmatprep.subr.mxu0 0.0
        %6014 = vmatpush1.msra.mxu0 0.0
        %6015 = vmatprep.subr.mxu0 0.0
        %6016 = vmatpush1.msra.mxu0 0.0
        %6017 = vmatprep.subr.mxu0 0.0
        %6018 = vmatpush1.msra.mxu0 0.0
        %6019 = vmatprep.mubr.f32.mxu0 0.0
        %v6020 = vand.u32 %v4984, 4294901760
        %6021 = vmatmul.mubr.f32.gmra.mrb[0].mxu0 %v6020
        %v6022 = vpop.f32.mrb[0].mxu0
        %v6023 = vadd.f32 %v5932, %v6022
        %v6024 = vpop.f32.mrb[0].mxu0
        %6025 = vmatprep.mubr.f32.mxu0 0.0
        %v6026 = vand.u32 %v4986, 4294901760
        %6027 = vmatmul.mubr.f32.gmra.mrb[0].mxu0 %v6026
        %v6028 = vpop.f32.mrb[0].mxu0
        %v6029 = vadd.f32 %v5940, %v6028
        %v6030 = vpop.f32.mrb[0].mxu0
        %6031 = vdwg.mxu0
        %6032 = vmatprep.subr.mxu0 0.0
        %v6033 = vand.u32 %v341, 4294901760
        %6034 = vmatpush1.msra.mxu0 %v6033
        %6035 = vmatprep.subr.mxu0 0.0
        %v6036 = vand.u32 %v342, 4294901760
        %6037 = vmatpush1.msra.mxu0 %v6036
        %6038 = vmatprep.subr.mxu0 0.0
        %v6039 = vand.u32 %v343, 4294901760
        %6040 = vmatpush1.msra.mxu0 %v6039
        %6041 = vmatprep.subr.mxu0 0.0
        %v6042 = vand.u32 %v344, 4294901760
        %6043 = vmatpush1.msra.mxu0 %v6042
        %6044 = vmatprep.subr.mxu0 0.0
        %6045 = vmatpush1.msra.mxu0 0.0
        %6046 = vmatprep.subr.mxu0 0.0
        %6047 = vmatpush1.msra.mxu0 0.0
        %6048 = vmatprep.subr.mxu0 0.0
        %6049 = vmatpush1.msra.mxu0 0.0
        %6050 = vmatprep.subr.mxu0 0.0
        %6051 = vmatpush1.msra.mxu0 0.0
        %6052 = vmatprep.subr.mxu0 0.0
        %6053 = vmatpush1.msra.mxu0 0.0
        %6054 = vmatprep.subr.mxu0 0.0
        %6055 = vmatpush1.msra.mxu0 0.0
        %6056 = vmatprep.subr.mxu0 0.0
        %6057 = vmatpush1.msra.mxu0 0.0
        %6058 = vmatprep.subr.mxu0 0.0
        %6059 = vmatpush1.msra.mxu0 0.0
        %6060 = vmatprep.subr.mxu0 0.0
        %6061 = vmatpush1.msra.mxu0 0.0
        %6062 = vmatprep.subr.mxu0 0.0
        %6063 = vmatpush1.msra.mxu0 0.0
        %6064 = vmatprep.subr.mxu0 0.0
        %6065 = vmatpush1.msra.mxu0 0.0
        %6066 = vmatprep.subr.mxu0 0.0
        %6067 = vmatpush1.msra.mxu0 0.0
        %6068 = vmatprep.subr.mxu0 0.0
        %6069 = vmatpush1.msra.mxu0 0.0
        %6070 = vmatprep.subr.mxu0 0.0
        %6071 = vmatpush1.msra.mxu0 0.0
        %6072 = vmatprep.subr.mxu0 0.0
        %6073 = vmatpush1.msra.mxu0 0.0
        %6074 = vmatprep.subr.mxu0 0.0
        %6075 = vmatpush1.msra.mxu0 0.0
        %6076 = vmatprep.subr.mxu0 0.0
        %6077 = vmatpush1.msra.mxu0 0.0
        %6078 = vmatprep.subr.mxu0 0.0
        %6079 = vmatpush1.msra.mxu0 0.0
        %6080 = vmatprep.subr.mxu0 0.0
        %6081 = vmatpush1.msra.mxu0 0.0
        %6082 = vmatprep.subr.mxu0 0.0
        %6083 = vmatpush1.msra.mxu0 0.0
        %6084 = vmatprep.subr.mxu0 0.0
        %6085 = vmatpush1.msra.mxu0 0.0
        %6086 = vmatprep.subr.mxu0 0.0
        %6087 = vmatpush1.msra.mxu0 0.0
        %6088 = vmatprep.subr.mxu0 0.0
        %6089 = vmatpush1.msra.mxu0 0.0
        %6090 = vmatprep.subr.mxu0 0.0
        %6091 = vmatpush1.msra.mxu0 0.0
        %6092 = vmatprep.subr.mxu0 0.0
        %6093 = vmatpush1.msra.mxu0 0.0
        %6094 = vmatprep.subr.mxu0 0.0
        %6095 = vmatpush1.msra.mxu0 0.0
        %6096 = vmatprep.subr.mxu0 0.0
        %6097 = vmatpush1.msra.mxu0 0.0
        %6098 = vmatprep.subr.mxu0 0.0
        %6099 = vmatpush1.msra.mxu0 0.0
        %6100 = vmatprep.mubr.f32.mxu0 0.0
        %v6101 = vand.u32 %v4984, 4294901760
        %6102 = vmatmul.mubr.f32.gmra.mrb[0].mxu0 %v6101
        %v6103 = vpop.f32.mrb[0].mxu0
        %v6104 = vadd.f32 %v6023, %v6103
        %v6105 = vpop.f32.mrb[0].mxu0
        %6106 = vmatprep.mubr.f32.mxu0 0.0
        %v6107 = vand.u32 %v4986, 4294901760
        %6108 = vmatmul.mubr.f32.gmra.mrb[0].mxu0 %v6107
        %v6109 = vpop.f32.mrb[0].mxu0
        %v6110 = vadd.f32 %v6029, %v6109
        %v6111 = vpop.f32.mrb[0].mxu0
        %6112 = vdwg.mxu0
        %v6113 = vadd.f32 %v5583, %v6104
        %v6114 = vadd.f32 %v5584, %v6110
        %v6115 = vxor.u32 %v6113, 2147483648
        %v6116 = vxor.u32 %v6114, 2147483648
        %v6117 = vmul.f32 %v6115, 1.442695
        %v6118 = vpow.pop %v6117
        %v6119 = vmul.f32 %v6116, 1.442695
        %v6120 = vpow.pop %v6119
        %v6121 = vadd.f32 %v6118, 1.0
        %v6122 = vadd.f32 %v6120, 1.0
        %v6123 = vrcp.pop %v6121
        %v6124 = vmul.f32 1.0, %v6123
        %v6125 = vrcp.pop %v6122
        %v6126 = vmul.f32 1.0, %v6125
        %v6127 = vtanh.pop %v6113
        %v6128 = vtanh.pop %v6114
        %v6129 = vmul.f32 %v6124, %v4444
        %v6130 = vmul.f32 %v6126, %v4445
        %6133 = vrot.lane.b32.xlu0 %v6127, 64
        %v6134 = vpop.permute.xlu0 %6133
        %6135 = vrot.lane.b32.xlu0 %v6128, 64
        %v6136 = vpop.permute.xlu0 %6135
        %v6139 = vmul.f32 %v6124, %v6134
        %v6140 = vmul.f32 %v6126, %v6136
        %6143 = vrot.lane.b32.xlu0 %v6139, 32
        %v6144 = vpop.permute.xlu0 %6143
        %6145 = vrot.lane.b32.xlu0 %v6140, 32
        %v6146 = vpop.permute.xlu0 %6145
        %v6149 = vadd.f32 %v6129, %v6144
        %v6150 = vadd.f32 %v6130, %v6146
        %v6151 = vtanh.pop %v6149
        %v6152 = vtanh.pop %v6150
        %6155 = vrot.lane.b32.xlu0 %v6151, 64
        %v6156 = vpop.permute.xlu0 %6155
        %6157 = vrot.lane.b32.xlu0 %v6152, 64
        %v6158 = vpop.permute.xlu0 %6157
        %v6161 = vmul.f32 %v6124, %v6156
        %v6162 = vmul.f32 %v6126, %v6158
        %s6163 = scalar_select %p5581, 1, 0
        %v6164 = vstv %s6163
        %vm6165 = vcmp.eq.s32.totalorder %v6164, 1
        %v6166 = vsel %vm6165, %v6161, %v4442
        %v6167 = vsel %vm6165, %v6162, %v4443
        %v6168 = vsel %vm6165, %v6149, %v4444
        %v6169 = vsel %vm6165, %v6150, %v4445
        %v6170 = vsel %vm377, %v5573, 0
        %v6172 = vsel %vm377, %v5575, 0
        %6174 = vmatprep.subr.mxu0 0.0
        %v6175 = vand.u32 %v349, 4294901760
        %6176 = vmatpush1.msra.mxu0 %v6175
        %6177 = vmatprep.subr.mxu0 0.0
        %v6178 = vand.u32 %v350, 4294901760
        %6179 = vmatpush1.msra.mxu0 %v6178
        %6180 = vmatprep.subr.mxu0 0.0
        %v6181 = vand.u32 %v351, 4294901760
        %6182 = vmatpush1.msra.mxu0 %v6181
        %6183 = vmatprep.subr.mxu0 0.0
        %v6184 = vand.u32 %v352, 4294901760
        %6185 = vmatpush1.msra.mxu0 %v6184
        %6186 = vmatprep.subr.mxu0 0.0
        %6187 = vmatpush1.msra.mxu0 0.0
        %6188 = vmatprep.subr.mxu0 0.0
        %6189 = vmatpush1.msra.mxu0 0.0
        %6190 = vmatprep.subr.mxu0 0.0
        %6191 = vmatpush1.msra.mxu0 0.0
        %6192 = vmatprep.subr.mxu0 0.0
        %6193 = vmatpush1.msra.mxu0 0.0
        %6194 = vmatprep.subr.mxu0 0.0
        %6195 = vmatpush1.msra.mxu0 0.0
        %6196 = vmatprep.subr.mxu0 0.0
        %6197 = vmatpush1.msra.mxu0 0.0
        %6198 = vmatprep.subr.mxu0 0.0
        %6199 = vmatpush1.msra.mxu0 0.0
        %6200 = vmatprep.subr.mxu0 0.0
        %6201 = vmatpush1.msra.mxu0 0.0
        %6202 = vmatprep.subr.mxu0 0.0
        %6203 = vmatpush1.msra.mxu0 0.0
        %6204 = vmatprep.subr.mxu0 0.0
        %6205 = vmatpush1.msra.mxu0 0.0
        %6206 = vmatprep.subr.mxu0 0.0
        %6207 = vmatpush1.msra.mxu0 0.0
        %6208 = vmatprep.subr.mxu0 0.0
        %6209 = vmatpush1.msra.mxu0 0.0
        %6210 = vmatprep.subr.mxu0 0.0
        %6211 = vmatpush1.msra.mxu0 0.0
        %6212 = vmatprep.subr.mxu0 0.0
        %6213 = vmatpush1.msra.mxu0 0.0
        %6214 = vmatprep.subr.mxu0 0.0
        %6215 = vmatpush1.msra.mxu0 0.0
        %6216 = vmatprep.subr.mxu0 0.0
        %6217 = vmatpush1.msra.mxu0 0.0
        %6218 = vmatprep.subr.mxu0 0.0
        %6219 = vmatpush1.msra.mxu0 0.0
        %6220 = vmatprep.subr.mxu0 0.0
        %6221 = vmatpush1.msra.mxu0 0.0
        %6222 = vmatprep.subr.mxu0 0.0
        %6223 = vmatpush1.msra.mxu0 0.0
        %6224 = vmatprep.subr.mxu0 0.0
        %6225 = vmatpush1.msra.mxu0 0.0
        %6226 = vmatprep.subr.mxu0 0.0
        %6227 = vmatpush1.msra.mxu0 0.0
        %6228 = vmatprep.subr.mxu0 0.0
        %6229 = vmatpush1.msra.mxu0 0.0
        %6230 = vmatprep.subr.mxu0 0.0
        %6231 = vmatpush1.msra.mxu0 0.0
        %6232 = vmatprep.subr.mxu0 0.0
        %6233 = vmatpush1.msra.mxu0 0.0
        %6234 = vmatprep.subr.mxu0 0.0
        %6235 = vmatpush1.msra.mxu0 0.0
        %6236 = vmatprep.subr.mxu0 0.0
        %6237 = vmatpush1.msra.mxu0 0.0
        %6238 = vmatprep.subr.mxu0 0.0
        %6239 = vmatpush1.msra.mxu0 0.0
        %6240 = vmatprep.subr.mxu0 0.0
        %6241 = vmatpush1.msra.mxu0 0.0
        %6242 = vmatprep.mubr.f32.mxu0 0.0
        %v6243 = vand.u32 %v6170, 4294901760
        %v6244 = vsub.f32 %v6170, %v6243
        %v6245 = vand.u32 %v6244, 4294901760
        %v6246 = vsub.f32 %v6244, %v6245
        %v6247 = vand.u32 %v6246, 4294901760
        %6248 = vmatmul.mubr.f32.gmra.mrb[0].mxu0 %v6247
        %v6249 = vpop.f32.mrb[0].mxu0
        %v6250 = vadd.f32 0.0, %v6249
        %v6251 = vpop.f32.mrb[0].mxu0
        %6252 = vmatprep.mubr.f32.mxu0 0.0
        %v6253 = vand.u32 %v6172, 4294901760
        %v6254 = vsub.f32 %v6172, %v6253
        %v6255 = vand.u32 %v6254, 4294901760
        %v6256 = vsub.f32 %v6254, %v6255
        %v6257 = vand.u32 %v6256, 4294901760
        %6258 = vmatmul.mubr.f32.gmra.mrb[0].mxu0 %v6257
        %v6259 = vpop.f32.mrb[0].mxu0
        %v6260 = vadd.f32 0.0, %v6259
        %v6261 = vpop.f32.mrb[0].mxu0
        %6262 = vdwg.mxu0
        %6263 = vmatprep.subr.mxu0 0.0
        %v6264 = vand.u32 %v349, 4294901760
        %v6265 = vsub.f32 %v349, %v6264
        %v6266 = vand.u32 %v6265, 4294901760
        %v6267 = vsub.f32 %v6265, %v6266
        %v6268 = vand.u32 %v6267, 4294901760
        %6269 = vmatpush1.msra.mxu0 %v6268
        %6270 = vmatprep.subr.mxu0 0.0
        %v6271 = vand.u32 %v350, 4294901760
        %v6272 = vsub.f32 %v350, %v6271
        %v6273 = vand.u32 %v6272, 4294901760
        %v6274 = vsub.f32 %v6272, %v6273
        %v6275 = vand.u32 %v6274, 4294901760
        %6276 = vmatpush1.msra.mxu0 %v6275
        %6277 = vmatprep.subr.mxu0 0.0
        %v6278 = vand.u32 %v351, 4294901760
        %v6279 = vsub.f32 %v351, %v6278
        %v6280 = vand.u32 %v6279, 4294901760
        %v6281 = vsub.f32 %v6279, %v6280
        %v6282 = vand.u32 %v6281, 4294901760
        %6283 = vmatpush1.msra.mxu0 %v6282
        %6284 = vmatprep.subr.mxu0 0.0
        %v6285 = vand.u32 %v352, 4294901760
        %v6286 = vsub.f32 %v352, %v6285
        %v6287 = vand.u32 %v6286, 4294901760
        %v6288 = vsub.f32 %v6286, %v6287
        %v6289 = vand.u32 %v6288, 4294901760
        %6290 = vmatpush1.msra.mxu0 %v6289
        %6291 = vmatprep.subr.mxu0 0.0
        %6292 = vmatpush1.msra.mxu0 0.0
        %6293 = vmatprep.subr.mxu0 0.0
        %6294 = vmatpush1.msra.mxu0 0.0
        %6295 = vmatprep.subr.mxu0 0.0
        %6296 = vmatpush1.msra.mxu0 0.0
        %6297 = vmatprep.subr.mxu0 0.0
        %6298 = vmatpush1.msra.mxu0 0.0
        %6299 = vmatprep.subr.mxu0 0.0
        %6300 = vmatpush1.msra.mxu0 0.0
        %6301 = vmatprep.subr.mxu0 0.0
        %6302 = vmatpush1.msra.mxu0 0.0
        %6303 = vmatprep.subr.mxu0 0.0
        %6304 = vmatpush1.msra.mxu0 0.0
        %6305 = vmatprep.subr.mxu0 0.0
        %6306 = vmatpush1.msra.mxu0 0.0
        %6307 = vmatprep.subr.mxu0 0.0
        %6308 = vmatpush1.msra.mxu0 0.0
        %6309 = vmatprep.subr.mxu0 0.0
        %6310 = vmatpush1.msra.mxu0 0.0
        %6311 = vmatprep.subr.mxu0 0.0
        %6312 = vmatpush1.msra.mxu0 0.0
        %6313 = vmatprep.subr.mxu0 0.0
        %6314 = vmatpush1.msra.mxu0 0.0
        %6315 = vmatprep.subr.mxu0 0.0
        %6316 = vmatpush1.msra.mxu0 0.0
        %6317 = vmatprep.subr.mxu0 0.0
        %6318 = vmatpush1.msra.mxu0 0.0
        %6319 = vmatprep.subr.mxu0 0.0
        %6320 = vmatpush1.msra.mxu0 0.0
        %6321 = vmatprep.subr.mxu0 0.0
        %6322 = vmatpush1.msra.mxu0 0.0
        %6323 = vmatprep.subr.mxu0 0.0
        %6324 = vmatpush1.msra.mxu0 0.0
        %6325 = vmatprep.subr.mxu0 0.0
        %6326 = vmatpush1.msra.mxu0 0.0
        %6327 = vmatprep.subr.mxu0 0.0
        %6328 = vmatpush1.msra.mxu0 0.0
        %6329 = vmatprep.subr.mxu0 0.0
        %6330 = vmatpush1.msra.mxu0 0.0
        %6331 = vmatprep.subr.mxu0 0.0
        %6332 = vmatpush1.msra.mxu0 0.0
        %6333 = vmatprep.subr.mxu0 0.0
        %6334 = vmatpush1.msra.mxu0 0.0
        %6335 = vmatprep.subr.mxu0 0.0
        %6336 = vmatpush1.msra.mxu0 0.0
        %6337 = vmatprep.subr.mxu0 0.0
        %6338 = vmatpush1.msra.mxu0 0.0
        %6339 = vmatprep.subr.mxu0 0.0
        %6340 = vmatpush1.msra.mxu0 0.0
        %6341 = vmatprep.subr.mxu0 0.0
        %6342 = vmatpush1.msra.mxu0 0.0
        %6343 = vmatprep.subr.mxu0 0.0
        %6344 = vmatpush1.msra.mxu0 0.0
        %6345 = vmatprep.subr.mxu0 0.0
        %6346 = vmatpush1.msra.mxu0 0.0
        %6347 = vmatprep.mubr.f32.mxu0 0.0
        %v6348 = vand.u32 %v6170, 4294901760
        %6349 = vmatmul.mubr.f32.gmra.mrb[0].mxu0 %v6348
        %v6350 = vpop.f32.mrb[0].mxu0
        %v6351 = vadd.f32 %v6250, %v6350
        %v6352 = vpop.f32.mrb[0].mxu0
        %6353 = vmatprep.mubr.f32.mxu0 0.0
        %v6354 = vand.u32 %v6172, 4294901760
        %6355 = vmatmul.mubr.f32.gmra.mrb[0].mxu0 %v6354
        %v6356 = vpop.f32.mrb[0].mxu0
        %v6357 = vadd.f32 %v6260, %v6356
        %v6358 = vpop.f32.mrb[0].mxu0
        %6359 = vdwg.mxu0
        %6360 = vmatprep.subr.mxu0 0.0
        %v6361 = vand.u32 %v349, 4294901760
        %v6362 = vsub.f32 %v349, %v6361
        %6363 = vmatpush1.msra.mxu0 %v6362
        %6364 = vmatprep.subr.mxu0 0.0
        %v6365 = vand.u32 %v350, 4294901760
        %v6366 = vsub.f32 %v350, %v6365
        %6367 = vmatpush1.msra.mxu0 %v6366
        %6368 = vmatprep.subr.mxu0 0.0
        %v6369 = vand.u32 %v351, 4294901760
        %v6370 = vsub.f32 %v351, %v6369
        %6371 = vmatpush1.msra.mxu0 %v6370
        %6372 = vmatprep.subr.mxu0 0.0
        %v6373 = vand.u32 %v352, 4294901760
        %v6374 = vsub.f32 %v352, %v6373
        %6375 = vmatpush1.msra.mxu0 %v6374
        %6376 = vmatprep.subr.mxu0 0.0
        %6377 = vmatpush1.msra.mxu0 0.0
        %6378 = vmatprep.subr.mxu0 0.0
        %6379 = vmatpush1.msra.mxu0 0.0
        %6380 = vmatprep.subr.mxu0 0.0
        %6381 = vmatpush1.msra.mxu0 0.0
        %6382 = vmatprep.subr.mxu0 0.0
        %6383 = vmatpush1.msra.mxu0 0.0
        %6384 = vmatprep.subr.mxu0 0.0
        %6385 = vmatpush1.msra.mxu0 0.0
        %6386 = vmatprep.subr.mxu0 0.0
        %6387 = vmatpush1.msra.mxu0 0.0
        %6388 = vmatprep.subr.mxu0 0.0
        %6389 = vmatpush1.msra.mxu0 0.0
        %6390 = vmatprep.subr.mxu0 0.0
        %6391 = vmatpush1.msra.mxu0 0.0
        %6392 = vmatprep.subr.mxu0 0.0
        %6393 = vmatpush1.msra.mxu0 0.0
        %6394 = vmatprep.subr.mxu0 0.0
        %6395 = vmatpush1.msra.mxu0 0.0
        %6396 = vmatprep.subr.mxu0 0.0
        %6397 = vmatpush1.msra.mxu0 0.0
        %6398 = vmatprep.subr.mxu0 0.0
        %6399 = vmatpush1.msra.mxu0 0.0
        %6400 = vmatprep.subr.mxu0 0.0
        %6401 = vmatpush1.msra.mxu0 0.0
        %6402 = vmatprep.subr.mxu0 0.0
        %6403 = vmatpush1.msra.mxu0 0.0
        %6404 = vmatprep.subr.mxu0 0.0
        %6405 = vmatpush1.msra.mxu0 0.0
        %6406 = vmatprep.subr.mxu0 0.0
        %6407 = vmatpush1.msra.mxu0 0.0
        %6408 = vmatprep.subr.mxu0 0.0
        %6409 = vmatpush1.msra.mxu0 0.0
        %6410 = vmatprep.subr.mxu0 0.0
        %6411 = vmatpush1.msra.mxu0 0.0
        %6412 = vmatprep.subr.mxu0 0.0
        %6413 = vmatpush1.msra.mxu0 0.0
        %6414 = vmatprep.subr.mxu0 0.0
        %6415 = vmatpush1.msra.mxu0 0.0
        %6416 = vmatprep.subr.mxu0 0.0
        %6417 = vmatpush1.msra.mxu0 0.0
        %6418 = vmatprep.subr.mxu0 0.0
        %6419 = vmatpush1.msra.mxu0 0.0
        %6420 = vmatprep.subr.mxu0 0.0
        %6421 = vmatpush1.msra.mxu0 0.0
        %6422 = vmatprep.subr.mxu0 0.0
        %6423 = vmatpush1.msra.mxu0 0.0
        %6424 = vmatprep.subr.mxu0 0.0
        %6425 = vmatpush1.msra.mxu0 0.0
        %6426 = vmatprep.subr.mxu0 0.0
        %6427 = vmatpush1.msra.mxu0 0.0
        %6428 = vmatprep.subr.mxu0 0.0
        %6429 = vmatpush1.msra.mxu0 0.0
        %6430 = vmatprep.subr.mxu0 0.0
        %6431 = vmatpush1.msra.mxu0 0.0
        %6432 = vmatprep.mubr.f32.mxu0 0.0
        %v6433 = vand.u32 %v6170, 4294901760
        %v6434 = vsub.f32 %v6170, %v6433
        %6435 = vmatmul.mubr.f32.gmra.mrb[0].mxu0 %v6434
        %v6436 = vpop.f32.mrb[0].mxu0
        %v6437 = vadd.f32 %v6351, %v6436
        %v6438 = vpop.f32.mrb[0].mxu0
        %6439 = vmatprep.mubr.f32.mxu0 0.0
        %v6440 = vand.u32 %v6172, 4294901760
        %v6441 = vsub.f32 %v6172, %v6440
        %6442 = vmatmul.mubr.f32.gmra.mrb[0].mxu0 %v6441
        %v6443 = vpop.f32.mrb[0].mxu0
        %v6444 = vadd.f32 %v6357, %v6443
        %v6445 = vpop.f32.mrb[0].mxu0
        %6446 = vdwg.mxu0
        %6447 = vmatprep.subr.mxu0 0.0
        %v6448 = vand.u32 %v349, 4294901760
        %6449 = vmatpush1.msra.mxu0 %v6448
        %6450 = vmatprep.subr.mxu0 0.0
        %v6451 = vand.u32 %v350, 4294901760
        %6452 = vmatpush1.msra.mxu0 %v6451
        %6453 = vmatprep.subr.mxu0 0.0
        %v6454 = vand.u32 %v351, 4294901760
        %6455 = vmatpush1.msra.mxu0 %v6454
        %6456 = vmatprep.subr.mxu0 0.0
        %v6457 = vand.u32 %v352, 4294901760
        %6458 = vmatpush1.msra.mxu0 %v6457
        %6459 = vmatprep.subr.mxu0 0.0
        %6460 = vmatpush1.msra.mxu0 0.0
        %6461 = vmatprep.subr.mxu0 0.0
        %6462 = vmatpush1.msra.mxu0 0.0
        %6463 = vmatprep.subr.mxu0 0.0
        %6464 = vmatpush1.msra.mxu0 0.0
        %6465 = vmatprep.subr.mxu0 0.0
        %6466 = vmatpush1.msra.mxu0 0.0
        %6467 = vmatprep.subr.mxu0 0.0
        %6468 = vmatpush1.msra.mxu0 0.0
        %6469 = vmatprep.subr.mxu0 0.0
        %6470 = vmatpush1.msra.mxu0 0.0
        %6471 = vmatprep.subr.mxu0 0.0
        %6472 = vmatpush1.msra.mxu0 0.0
        %6473 = vmatprep.subr.mxu0 0.0
        %6474 = vmatpush1.msra.mxu0 0.0
        %6475 = vmatprep.subr.mxu0 0.0
        %6476 = vmatpush1.msra.mxu0 0.0
        %6477 = vmatprep.subr.mxu0 0.0
        %6478 = vmatpush1.msra.mxu0 0.0
        %6479 = vmatprep.subr.mxu0 0.0
        %6480 = vmatpush1.msra.mxu0 0.0
        %6481 = vmatprep.subr.mxu0 0.0
        %6482 = vmatpush1.msra.mxu0 0.0
        %6483 = vmatprep.subr.mxu0 0.0
        %6484 = vmatpush1.msra.mxu0 0.0
        %6485 = vmatprep.subr.mxu0 0.0
        %6486 = vmatpush1.msra.mxu0 0.0
        %6487 = vmatprep.subr.mxu0 0.0
        %6488 = vmatpush1.msra.mxu0 0.0
        %6489 = vmatprep.subr.mxu0 0.0
        %6490 = vmatpush1.msra.mxu0 0.0
        %6491 = vmatprep.subr.mxu0 0.0
        %6492 = vmatpush1.msra.mxu0 0.0
        %6493 = vmatprep.subr.mxu0 0.0
        %6494 = vmatpush1.msra.mxu0 0.0
        %6495 = vmatprep.subr.mxu0 0.0
        %6496 = vmatpush1.msra.mxu0 0.0
        %6497 = vmatprep.subr.mxu0 0.0
        %6498 = vmatpush1.msra.mxu0 0.0
        %6499 = vmatprep.subr.mxu0 0.0
        %6500 = vmatpush1.msra.mxu0 0.0
        %6501 = vmatprep.subr.mxu0 0.0
        %6502 = vmatpush1.msra.mxu0 0.0
        %6503 = vmatprep.subr.mxu0 0.0
        %6504 = vmatpush1.msra.mxu0 0.0
        %6505 = vmatprep.subr.mxu0 0.0
        %6506 = vmatpush1.msra.mxu0 0.0
        %6507 = vmatprep.subr.mxu0 0.0
        %6508 = vmatpush1.msra.mxu0 0.0
        %6509 = vmatprep.subr.mxu0 0.0
        %6510 = vmatpush1.msra.mxu0 0.0
        %6511 = vmatprep.subr.mxu0 0.0
        %6512 = vmatpush1.msra.mxu0 0.0
        %6513 = vmatprep.subr.mxu0 0.0
        %6514 = vmatpush1.msra.mxu0 0.0
        %6515 = vmatprep.mubr.f32.mxu0 0.0
        %v6516 = vand.u32 %v6170, 4294901760
        %v6517 = vsub.f32 %v6170, %v6516
        %v6518 = vand.u32 %v6517, 4294901760
        %6519 = vmatmul.mubr.f32.gmra.mrb[0].mxu0 %v6518
        %v6520 = vpop.f32.mrb[0].mxu0
        %v6521 = vadd.f32 %v6437, %v6520
        %v6522 = vpop.f32.mrb[0].mxu0
        %6523 = vmatprep.mubr.f32.mxu0 0.0
        %v6524 = vand.u32 %v6172, 4294901760
        %v6525 = vsub.f32 %v6172, %v6524
        %v6526 = vand.u32 %v6525, 4294901760
        %6527 = vmatmul.mubr.f32.gmra.mrb[0].mxu0 %v6526
        %v6528 = vpop.f32.mrb[0].mxu0
        %v6529 = vadd.f32 %v6444, %v6528
        %v6530 = vpop.f32.mrb[0].mxu0
        %6531 = vdwg.mxu0
        %6532 = vmatprep.subr.mxu0 0.0
        %v6533 = vand.u32 %v349, 4294901760
        %v6534 = vsub.f32 %v349, %v6533
        %v6535 = vand.u32 %v6534, 4294901760
        %6536 = vmatpush1.msra.mxu0 %v6535
        %6537 = vmatprep.subr.mxu0 0.0
        %v6538 = vand.u32 %v350, 4294901760
        %v6539 = vsub.f32 %v350, %v6538
        %v6540 = vand.u32 %v6539, 4294901760
        %6541 = vmatpush1.msra.mxu0 %v6540
        %6542 = vmatprep.subr.mxu0 0.0
        %v6543 = vand.u32 %v351, 4294901760
        %v6544 = vsub.f32 %v351, %v6543
        %v6545 = vand.u32 %v6544, 4294901760
        %6546 = vmatpush1.msra.mxu0 %v6545
        %6547 = vmatprep.subr.mxu0 0.0
        %v6548 = vand.u32 %v352, 4294901760
        %v6549 = vsub.f32 %v352, %v6548
        %v6550 = vand.u32 %v6549, 4294901760
        %6551 = vmatpush1.msra.mxu0 %v6550
        %6552 = vmatprep.subr.mxu0 0.0
        %6553 = vmatpush1.msra.mxu0 0.0
        %6554 = vmatprep.subr.mxu0 0.0
        %6555 = vmatpush1.msra.mxu0 0.0
        %6556 = vmatprep.subr.mxu0 0.0
        %6557 = vmatpush1.msra.mxu0 0.0
        %6558 = vmatprep.subr.mxu0 0.0
        %6559 = vmatpush1.msra.mxu0 0.0
        %6560 = vmatprep.subr.mxu0 0.0
        %6561 = vmatpush1.msra.mxu0 0.0
        %6562 = vmatprep.subr.mxu0 0.0
        %6563 = vmatpush1.msra.mxu0 0.0
        %6564 = vmatprep.subr.mxu0 0.0
        %6565 = vmatpush1.msra.mxu0 0.0
        %6566 = vmatprep.subr.mxu0 0.0
        %6567 = vmatpush1.msra.mxu0 0.0
        %6568 = vmatprep.subr.mxu0 0.0
        %6569 = vmatpush1.msra.mxu0 0.0
        %6570 = vmatprep.subr.mxu0 0.0
        %6571 = vmatpush1.msra.mxu0 0.0
        %6572 = vmatprep.subr.mxu0 0.0
        %6573 = vmatpush1.msra.mxu0 0.0
        %6574 = vmatprep.subr.mxu0 0.0
        %6575 = vmatpush1.msra.mxu0 0.0
        %6576 = vmatprep.subr.mxu0 0.0
        %6577 = vmatpush1.msra.mxu0 0.0
        %6578 = vmatprep.subr.mxu0 0.0
        %6579 = vmatpush1.msra.mxu0 0.0
        %6580 = vmatprep.subr.mxu0 0.0
        %6581 = vmatpush1.msra.mxu0 0.0
        %6582 = vmatprep.subr.mxu0 0.0
        %6583 = vmatpush1.msra.mxu0 0.0
        %6584 = vmatprep.subr.mxu0 0.0
        %6585 = vmatpush1.msra.mxu0 0.0
        %6586 = vmatprep.subr.mxu0 0.0
        %6587 = vmatpush1.msra.mxu0 0.0
        %6588 = vmatprep.subr.mxu0 0.0
        %6589 = vmatpush1.msra.mxu0 0.0
        %6590 = vmatprep.subr.mxu0 0.0
        %6591 = vmatpush1.msra.mxu0 0.0
        %6592 = vmatprep.subr.mxu0 0.0
        %6593 = vmatpush1.msra.mxu0 0.0
        %6594 = vmatprep.subr.mxu0 0.0
        %6595 = vmatpush1.msra.mxu0 0.0
        %6596 = vmatprep.subr.mxu0 0.0
        %6597 = vmatpush1.msra.mxu0 0.0
        %6598 = vmatprep.subr.mxu0 0.0
        %6599 = vmatpush1.msra.mxu0 0.0
        %6600 = vmatprep.subr.mxu0 0.0
        %6601 = vmatpush1.msra.mxu0 0.0
        %6602 = vmatprep.subr.mxu0 0.0
        %6603 = vmatpush1.msra.mxu0 0.0
        %6604 = vmatprep.subr.mxu0 0.0
        %6605 = vmatpush1.msra.mxu0 0.0
        %6606 = vmatprep.subr.mxu0 0.0
        %6607 = vmatpush1.msra.mxu0 0.0
        %6608 = vmatprep.mubr.f32.mxu0 0.0
        %v6609 = vand.u32 %v6170, 4294901760
        %6610 = vmatmul.mubr.f32.gmra.mrb[0].mxu0 %v6609
        %v6611 = vpop.f32.mrb[0].mxu0
        %v6612 = vadd.f32 %v6521, %v6611
        %v6613 = vpop.f32.mrb[0].mxu0
        %6614 = vmatprep.mubr.f32.mxu0 0.0
        %v6615 = vand.u32 %v6172, 4294901760
        %6616 = vmatmul.mubr.f32.gmra.mrb[0].mxu0 %v6615
        %v6617 = vpop.f32.mrb[0].mxu0
        %v6618 = vadd.f32 %v6529, %v6617
        %v6619 = vpop.f32.mrb[0].mxu0
        %6620 = vdwg.mxu0
        %6621 = vmatprep.subr.mxu0 0.0
        %v6622 = vand.u32 %v349, 4294901760
        %6623 = vmatpush1.msra.mxu0 %v6622
        %6624 = vmatprep.subr.mxu0 0.0
        %v6625 = vand.u32 %v350, 4294901760
        %6626 = vmatpush1.msra.mxu0 %v6625
        %6627 = vmatprep.subr.mxu0 0.0
        %v6628 = vand.u32 %v351, 4294901760
        %6629 = vmatpush1.msra.mxu0 %v6628
        %6630 = vmatprep.subr.mxu0 0.0
        %v6631 = vand.u32 %v352, 4294901760
        %6632 = vmatpush1.msra.mxu0 %v6631
        %6633 = vmatprep.subr.mxu0 0.0
        %6634 = vmatpush1.msra.mxu0 0.0
        %6635 = vmatprep.subr.mxu0 0.0
        %6636 = vmatpush1.msra.mxu0 0.0
        %6637 = vmatprep.subr.mxu0 0.0
        %6638 = vmatpush1.msra.mxu0 0.0
        %6639 = vmatprep.subr.mxu0 0.0
        %6640 = vmatpush1.msra.mxu0 0.0
        %6641 = vmatprep.subr.mxu0 0.0
        %6642 = vmatpush1.msra.mxu0 0.0
        %6643 = vmatprep.subr.mxu0 0.0
        %6644 = vmatpush1.msra.mxu0 0.0
        %6645 = vmatprep.subr.mxu0 0.0
        %6646 = vmatpush1.msra.mxu0 0.0
        %6647 = vmatprep.subr.mxu0 0.0
        %6648 = vmatpush1.msra.mxu0 0.0
        %6649 = vmatprep.subr.mxu0 0.0
        %6650 = vmatpush1.msra.mxu0 0.0
        %6651 = vmatprep.subr.mxu0 0.0
        %6652 = vmatpush1.msra.mxu0 0.0
        %6653 = vmatprep.subr.mxu0 0.0
        %6654 = vmatpush1.msra.mxu0 0.0
        %6655 = vmatprep.subr.mxu0 0.0
        %6656 = vmatpush1.msra.mxu0 0.0
        %6657 = vmatprep.subr.mxu0 0.0
        %6658 = vmatpush1.msra.mxu0 0.0
        %6659 = vmatprep.subr.mxu0 0.0
        %6660 = vmatpush1.msra.mxu0 0.0
        %6661 = vmatprep.subr.mxu0 0.0
        %6662 = vmatpush1.msra.mxu0 0.0
        %6663 = vmatprep.subr.mxu0 0.0
        %6664 = vmatpush1.msra.mxu0 0.0
        %6665 = vmatprep.subr.mxu0 0.0
        %6666 = vmatpush1.msra.mxu0 0.0
        %6667 = vmatprep.subr.mxu0 0.0
        %6668 = vmatpush1.msra.mxu0 0.0
        %6669 = vmatprep.subr.mxu0 0.0
        %6670 = vmatpush1.msra.mxu0 0.0
        %6671 = vmatprep.subr.mxu0 0.0
        %6672 = vmatpush1.msra.mxu0 0.0
        %6673 = vmatprep.subr.mxu0 0.0
        %6674 = vmatpush1.msra.mxu0 0.0
        %6675 = vmatprep.subr.mxu0 0.0
        %6676 = vmatpush1.msra.mxu0 0.0
        %6677 = vmatprep.subr.mxu0 0.0
        %6678 = vmatpush1.msra.mxu0 0.0
        %6679 = vmatprep.subr.mxu0 0.0
        %6680 = vmatpush1.msra.mxu0 0.0
        %6681 = vmatprep.subr.mxu0 0.0
        %6682 = vmatpush1.msra.mxu0 0.0
        %6683 = vmatprep.subr.mxu0 0.0
        %6684 = vmatpush1.msra.mxu0 0.0
        %6685 = vmatprep.subr.mxu0 0.0
        %6686 = vmatpush1.msra.mxu0 0.0
        %6687 = vmatprep.subr.mxu0 0.0
        %6688 = vmatpush1.msra.mxu0 0.0
        %6689 = vmatprep.mubr.f32.mxu0 0.0
        %v6690 = vand.u32 %v6170, 4294901760
        %6691 = vmatmul.mubr.f32.gmra.mrb[0].mxu0 %v6690
        %v6692 = vpop.f32.mrb[0].mxu0
        %v6693 = vadd.f32 %v6612, %v6692
        %v6694 = vpop.f32.mrb[0].mxu0
        %6695 = vmatprep.mubr.f32.mxu0 0.0
        %v6696 = vand.u32 %v6172, 4294901760
        %6697 = vmatmul.mubr.f32.gmra.mrb[0].mxu0 %v6696
        %v6698 = vpop.f32.mrb[0].mxu0
        %v6699 = vadd.f32 %v6618, %v6698
        %v6700 = vpop.f32.mrb[0].mxu0
        %6701 = vdwg.mxu0
        %6704 = vrot.lane.b32.xlu0 %v6166, 32
        %v6705 = vpop.permute.xlu0 %6704
        %6706 = vrot.lane.b32.xlu0 %v6167, 32
        %v6707 = vpop.permute.xlu0 %6706
        %v6708 = vsel %vm377, %v6705, 0
        %v6710 = vsel %vm377, %v6707, 0
        %6712 = vmatprep.subr.mxu0 0.0
        %v6713 = vand.u32 %v345, 4294901760
        %6714 = vmatpush1.msra.mxu0 %v6713
        %6715 = vmatprep.subr.mxu0 0.0
        %v6716 = vand.u32 %v346, 4294901760
        %6717 = vmatpush1.msra.mxu0 %v6716
        %6718 = vmatprep.subr.mxu0 0.0
        %v6719 = vand.u32 %v347, 4294901760
        %6720 = vmatpush1.msra.mxu0 %v6719
        %6721 = vmatprep.subr.mxu0 0.0
        %v6722 = vand.u32 %v348, 4294901760
        %6723 = vmatpush1.msra.mxu0 %v6722
        %6724 = vmatprep.subr.mxu0 0.0
        %6725 = vmatpush1.msra.mxu0 0.0
        %6726 = vmatprep.subr.mxu0 0.0
        %6727 = vmatpush1.msra.mxu0 0.0
        %6728 = vmatprep.subr.mxu0 0.0
        %6729 = vmatpush1.msra.mxu0 0.0
        %6730 = vmatprep.subr.mxu0 0.0
        %6731 = vmatpush1.msra.mxu0 0.0
        %6732 = vmatprep.subr.mxu0 0.0
        %6733 = vmatpush1.msra.mxu0 0.0
        %6734 = vmatprep.subr.mxu0 0.0
        %6735 = vmatpush1.msra.mxu0 0.0
        %6736 = vmatprep.subr.mxu0 0.0
        %6737 = vmatpush1.msra.mxu0 0.0
        %6738 = vmatprep.subr.mxu0 0.0
        %6739 = vmatpush1.msra.mxu0 0.0
        %6740 = vmatprep.subr.mxu0 0.0
        %6741 = vmatpush1.msra.mxu0 0.0
        %6742 = vmatprep.subr.mxu0 0.0
        %6743 = vmatpush1.msra.mxu0 0.0
        %6744 = vmatprep.subr.mxu0 0.0
        %6745 = vmatpush1.msra.mxu0 0.0
        %6746 = vmatprep.subr.mxu0 0.0
        %6747 = vmatpush1.msra.mxu0 0.0
        %6748 = vmatprep.subr.mxu0 0.0
        %6749 = vmatpush1.msra.mxu0 0.0
        %6750 = vmatprep.subr.mxu0 0.0
        %6751 = vmatpush1.msra.mxu0 0.0
        %6752 = vmatprep.subr.mxu0 0.0
        %6753 = vmatpush1.msra.mxu0 0.0
        %6754 = vmatprep.subr.mxu0 0.0
        %6755 = vmatpush1.msra.mxu0 0.0
        %6756 = vmatprep.subr.mxu0 0.0
        %6757 = vmatpush1.msra.mxu0 0.0
        %6758 = vmatprep.subr.mxu0 0.0
        %6759 = vmatpush1.msra.mxu0 0.0
        %6760 = vmatprep.subr.mxu0 0.0
        %6761 = vmatpush1.msra.mxu0 0.0
        %6762 = vmatprep.subr.mxu0 0.0
        %6763 = vmatpush1.msra.mxu0 0.0
        %6764 = vmatprep.subr.mxu0 0.0
        %6765 = vmatpush1.msra.mxu0 0.0
        %6766 = vmatprep.subr.mxu0 0.0
        %6767 = vmatpush1.msra.mxu0 0.0
        %6768 = vmatprep.subr.mxu0 0.0
        %6769 = vmatpush1.msra.mxu0 0.0
        %6770 = vmatprep.subr.mxu0 0.0
        %6771 = vmatpush1.msra.mxu0 0.0
        %6772 = vmatprep.subr.mxu0 0.0
        %6773 = vmatpush1.msra.mxu0 0.0
        %6774 = vmatprep.subr.mxu0 0.0
        %6775 = vmatpush1.msra.mxu0 0.0
        %6776 = vmatprep.subr.mxu0 0.0
        %6777 = vmatpush1.msra.mxu0 0.0
        %6778 = vmatprep.subr.mxu0 0.0
        %6779 = vmatpush1.msra.mxu0 0.0
        %6780 = vmatprep.mubr.f32.mxu0 0.0
        %v6781 = vand.u32 %v6708, 4294901760
        %v6782 = vsub.f32 %v6708, %v6781
        %v6783 = vand.u32 %v6782, 4294901760
        %v6784 = vsub.f32 %v6782, %v6783
        %v6785 = vand.u32 %v6784, 4294901760
        %6786 = vmatmul.mubr.f32.gmra.mrb[0].mxu0 %v6785
        %v6787 = vpop.f32.mrb[0].mxu0
        %v6788 = vadd.f32 %v6693, %v6787
        %v6789 = vpop.f32.mrb[0].mxu0
        %6790 = vmatprep.mubr.f32.mxu0 0.0
        %v6791 = vand.u32 %v6710, 4294901760
        %v6792 = vsub.f32 %v6710, %v6791
        %v6793 = vand.u32 %v6792, 4294901760
        %v6794 = vsub.f32 %v6792, %v6793
        %v6795 = vand.u32 %v6794, 4294901760
        %6796 = vmatmul.mubr.f32.gmra.mrb[0].mxu0 %v6795
        %v6797 = vpop.f32.mrb[0].mxu0
        %v6798 = vadd.f32 %v6699, %v6797
        %v6799 = vpop.f32.mrb[0].mxu0
        %6800 = vdwg.mxu0
        %6801 = vmatprep.subr.mxu0 0.0
        %v6802 = vand.u32 %v345, 4294901760
        %v6803 = vsub.f32 %v345, %v6802
        %v6804 = vand.u32 %v6803, 4294901760
        %v6805 = vsub.f32 %v6803, %v6804
        %v6806 = vand.u32 %v6805, 4294901760
        %6807 = vmatpush1.msra.mxu0 %v6806
        %6808 = vmatprep.subr.mxu0 0.0
        %v6809 = vand.u32 %v346, 4294901760
        %v6810 = vsub.f32 %v346, %v6809
        %v6811 = vand.u32 %v6810, 4294901760
        %v6812 = vsub.f32 %v6810, %v6811
        %v6813 = vand.u32 %v6812, 4294901760
        %6814 = vmatpush1.msra.mxu0 %v6813
        %6815 = vmatprep.subr.mxu0 0.0
        %v6816 = vand.u32 %v347, 4294901760
        %v6817 = vsub.f32 %v347, %v6816
        %v6818 = vand.u32 %v6817, 4294901760
        %v6819 = vsub.f32 %v6817, %v6818
        %v6820 = vand.u32 %v6819, 4294901760
        %6821 = vmatpush1.msra.mxu0 %v6820
        %6822 = vmatprep.subr.mxu0 0.0
        %v6823 = vand.u32 %v348, 4294901760
        %v6824 = vsub.f32 %v348, %v6823
        %v6825 = vand.u32 %v6824, 4294901760
        %v6826 = vsub.f32 %v6824, %v6825
        %v6827 = vand.u32 %v6826, 4294901760
        %6828 = vmatpush1.msra.mxu0 %v6827
        %6829 = vmatprep.subr.mxu0 0.0
        %6830 = vmatpush1.msra.mxu0 0.0
        %6831 = vmatprep.subr.mxu0 0.0
        %6832 = vmatpush1.msra.mxu0 0.0
        %6833 = vmatprep.subr.mxu0 0.0
        %6834 = vmatpush1.msra.mxu0 0.0
        %6835 = vmatprep.subr.mxu0 0.0
        %6836 = vmatpush1.msra.mxu0 0.0
        %6837 = vmatprep.subr.mxu0 0.0
        %6838 = vmatpush1.msra.mxu0 0.0
        %6839 = vmatprep.subr.mxu0 0.0
        %6840 = vmatpush1.msra.mxu0 0.0
        %6841 = vmatprep.subr.mxu0 0.0
        %6842 = vmatpush1.msra.mxu0 0.0
        %6843 = vmatprep.subr.mxu0 0.0
        %6844 = vmatpush1.msra.mxu0 0.0
        %6845 = vmatprep.subr.mxu0 0.0
        %6846 = vmatpush1.msra.mxu0 0.0
        %6847 = vmatprep.subr.mxu0 0.0
        %6848 = vmatpush1.msra.mxu0 0.0
        %6849 = vmatprep.subr.mxu0 0.0
        %6850 = vmatpush1.msra.mxu0 0.0
        %6851 = vmatprep.subr.mxu0 0.0
        %6852 = vmatpush1.msra.mxu0 0.0
        %6853 = vmatprep.subr.mxu0 0.0
        %6854 = vmatpush1.msra.mxu0 0.0
        %6855 = vmatprep.subr.mxu0 0.0
        %6856 = vmatpush1.msra.mxu0 0.0
        %6857 = vmatprep.subr.mxu0 0.0
        %6858 = vmatpush1.msra.mxu0 0.0
        %6859 = vmatprep.subr.mxu0 0.0
        %6860 = vmatpush1.msra.mxu0 0.0
        %6861 = vmatprep.subr.mxu0 0.0
        %6862 = vmatpush1.msra.mxu0 0.0
        %6863 = vmatprep.subr.mxu0 0.0
        %6864 = vmatpush1.msra.mxu0 0.0
        %6865 = vmatprep.subr.mxu0 0.0
        %6866 = vmatpush1.msra.mxu0 0.0
        %6867 = vmatprep.subr.mxu0 0.0
        %6868 = vmatpush1.msra.mxu0 0.0
        %6869 = vmatprep.subr.mxu0 0.0
        %6870 = vmatpush1.msra.mxu0 0.0
        %6871 = vmatprep.subr.mxu0 0.0
        %6872 = vmatpush1.msra.mxu0 0.0
        %6873 = vmatprep.subr.mxu0 0.0
        %6874 = vmatpush1.msra.mxu0 0.0
        %6875 = vmatprep.subr.mxu0 0.0
        %6876 = vmatpush1.msra.mxu0 0.0
        %6877 = vmatprep.subr.mxu0 0.0
        %6878 = vmatpush1.msra.mxu0 0.0
        %6879 = vmatprep.subr.mxu0 0.0
        %6880 = vmatpush1.msra.mxu0 0.0
        %6881 = vmatprep.subr.mxu0 0.0
        %6882 = vmatpush1.msra.mxu0 0.0
        %6883 = vmatprep.subr.mxu0 0.0
        %6884 = vmatpush1.msra.mxu0 0.0
        %6885 = vmatprep.mubr.f32.mxu0 0.0
        %v6886 = vand.u32 %v6708, 4294901760
        %6887 = vmatmul.mubr.f32.gmra.mrb[0].mxu0 %v6886
        %v6888 = vpop.f32.mrb[0].mxu0
        %v6889 = vadd.f32 %v6788, %v6888
        %v6890 = vpop.f32.mrb[0].mxu0
        %6891 = vmatprep.mubr.f32.mxu0 0.0
        %v6892 = vand.u32 %v6710, 4294901760
        %6893 = vmatmul.mubr.f32.gmra.mrb[0].mxu0 %v6892
        %v6894 = vpop.f32.mrb[0].mxu0
        %v6895 = vadd.f32 %v6798, %v6894
        %v6896 = vpop.f32.mrb[0].mxu0
        %6897 = vdwg.mxu0
        %6898 = vmatprep.subr.mxu0 0.0
        %v6899 = vand.u32 %v345, 4294901760
        %v6900 = vsub.f32 %v345, %v6899
        %6901 = vmatpush1.msra.mxu0 %v6900
        %6902 = vmatprep.subr.mxu0 0.0
        %v6903 = vand.u32 %v346, 4294901760
        %v6904 = vsub.f32 %v346, %v6903
        %6905 = vmatpush1.msra.mxu0 %v6904
        %6906 = vmatprep.subr.mxu0 0.0
        %v6907 = vand.u32 %v347, 4294901760
        %v6908 = vsub.f32 %v347, %v6907
        %6909 = vmatpush1.msra.mxu0 %v6908
        %6910 = vmatprep.subr.mxu0 0.0
        %v6911 = vand.u32 %v348, 4294901760
        %v6912 = vsub.f32 %v348, %v6911
        %6913 = vmatpush1.msra.mxu0 %v6912
        %6914 = vmatprep.subr.mxu0 0.0
        %6915 = vmatpush1.msra.mxu0 0.0
        %6916 = vmatprep.subr.mxu0 0.0
        %6917 = vmatpush1.msra.mxu0 0.0
        %6918 = vmatprep.subr.mxu0 0.0
        %6919 = vmatpush1.msra.mxu0 0.0
        %6920 = vmatprep.subr.mxu0 0.0
        %6921 = vmatpush1.msra.mxu0 0.0
        %6922 = vmatprep.subr.mxu0 0.0
        %6923 = vmatpush1.msra.mxu0 0.0
        %6924 = vmatprep.subr.mxu0 0.0
        %6925 = vmatpush1.msra.mxu0 0.0
        %6926 = vmatprep.subr.mxu0 0.0
        %6927 = vmatpush1.msra.mxu0 0.0
        %6928 = vmatprep.subr.mxu0 0.0
        %6929 = vmatpush1.msra.mxu0 0.0
        %6930 = vmatprep.subr.mxu0 0.0
        %6931 = vmatpush1.msra.mxu0 0.0
        %6932 = vmatprep.subr.mxu0 0.0
        %6933 = vmatpush1.msra.mxu0 0.0
        %6934 = vmatprep.subr.mxu0 0.0
        %6935 = vmatpush1.msra.mxu0 0.0
        %6936 = vmatprep.subr.mxu0 0.0
        %6937 = vmatpush1.msra.mxu0 0.0
        %6938 = vmatprep.subr.mxu0 0.0
        %6939 = vmatpush1.msra.mxu0 0.0
        %6940 = vmatprep.subr.mxu0 0.0
        %6941 = vmatpush1.msra.mxu0 0.0
        %6942 = vmatprep.subr.mxu0 0.0
        %6943 = vmatpush1.msra.mxu0 0.0
        %6944 = vmatprep.subr.mxu0 0.0
        %6945 = vmatpush1.msra.mxu0 0.0
        %6946 = vmatprep.subr.mxu0 0.0
        %6947 = vmatpush1.msra.mxu0 0.0
        %6948 = vmatprep.subr.mxu0 0.0
        %6949 = vmatpush1.msra.mxu0 0.0
        %6950 = vmatprep.subr.mxu0 0.0
        %6951 = vmatpush1.msra.mxu0 0.0
        %6952 = vmatprep.subr.mxu0 0.0
        %6953 = vmatpush1.msra.mxu0 0.0
        %6954 = vmatprep.subr.mxu0 0.0
        %6955 = vmatpush1.msra.mxu0 0.0
        %6956 = vmatprep.subr.mxu0 0.0
        %6957 = vmatpush1.msra.mxu0 0.0
        %6958 = vmatprep.subr.mxu0 0.0
        %6959 = vmatpush1.msra.mxu0 0.0
        %6960 = vmatprep.subr.mxu0 0.0
        %6961 = vmatpush1.msra.mxu0 0.0
        %6962 = vmatprep.subr.mxu0 0.0
        %6963 = vmatpush1.msra.mxu0 0.0
        %6964 = vmatprep.subr.mxu0 0.0
        %6965 = vmatpush1.msra.mxu0 0.0
        %6966 = vmatprep.subr.mxu0 0.0
        %6967 = vmatpush1.msra.mxu0 0.0
        %6968 = vmatprep.subr.mxu0 0.0
        %6969 = vmatpush1.msra.mxu0 0.0
        %6970 = vmatprep.mubr.f32.mxu0 0.0
        %v6971 = vand.u32 %v6708, 4294901760
        %v6972 = vsub.f32 %v6708, %v6971
        %6973 = vmatmul.mubr.f32.gmra.mrb[0].mxu0 %v6972
        %v6974 = vpop.f32.mrb[0].mxu0
        %v6975 = vadd.f32 %v6889, %v6974
        %v6976 = vpop.f32.mrb[0].mxu0
        %6977 = vmatprep.mubr.f32.mxu0 0.0
        %v6978 = vand.u32 %v6710, 4294901760
        %v6979 = vsub.f32 %v6710, %v6978
        %6980 = vmatmul.mubr.f32.gmra.mrb[0].mxu0 %v6979
        %v6981 = vpop.f32.mrb[0].mxu0
        %v6982 = vadd.f32 %v6895, %v6981
        %v6983 = vpop.f32.mrb[0].mxu0
        %6984 = vdwg.mxu0
        %6985 = vmatprep.subr.mxu0 0.0
        %v6986 = vand.u32 %v345, 4294901760
        %6987 = vmatpush1.msra.mxu0 %v6986
        %6988 = vmatprep.subr.mxu0 0.0
        %v6989 = vand.u32 %v346, 4294901760
        %6990 = vmatpush1.msra.mxu0 %v6989
        %6991 = vmatprep.subr.mxu0 0.0
        %v6992 = vand.u32 %v347, 4294901760
        %6993 = vmatpush1.msra.mxu0 %v6992
        %6994 = vmatprep.subr.mxu0 0.0
        %v6995 = vand.u32 %v348, 4294901760
        %6996 = vmatpush1.msra.mxu0 %v6995
        %6997 = vmatprep.subr.mxu0 0.0
        %6998 = vmatpush1.msra.mxu0 0.0
        %6999 = vmatprep.subr.mxu0 0.0
        %7000 = vmatpush1.msra.mxu0 0.0
        %7001 = vmatprep.subr.mxu0 0.0
        %7002 = vmatpush1.msra.mxu0 0.0
        %7003 = vmatprep.subr.mxu0 0.0
        %7004 = vmatpush1.msra.mxu0 0.0
        %7005 = vmatprep.subr.mxu0 0.0
        %7006 = vmatpush1.msra.mxu0 0.0
        %7007 = vmatprep.subr.mxu0 0.0
        %7008 = vmatpush1.msra.mxu0 0.0
        %7009 = vmatprep.subr.mxu0 0.0
        %7010 = vmatpush1.msra.mxu0 0.0
        %7011 = vmatprep.subr.mxu0 0.0
        %7012 = vmatpush1.msra.mxu0 0.0
        %7013 = vmatprep.subr.mxu0 0.0
        %7014 = vmatpush1.msra.mxu0 0.0
        %7015 = vmatprep.subr.mxu0 0.0
        %7016 = vmatpush1.msra.mxu0 0.0
        %7017 = vmatprep.subr.mxu0 0.0
        %7018 = vmatpush1.msra.mxu0 0.0
        %7019 = vmatprep.subr.mxu0 0.0
        %7020 = vmatpush1.msra.mxu0 0.0
        %7021 = vmatprep.subr.mxu0 0.0
        %7022 = vmatpush1.msra.mxu0 0.0
        %7023 = vmatprep.subr.mxu0 0.0
        %7024 = vmatpush1.msra.mxu0 0.0
        %7025 = vmatprep.subr.mxu0 0.0
        %7026 = vmatpush1.msra.mxu0 0.0
        %7027 = vmatprep.subr.mxu0 0.0
        %7028 = vmatpush1.msra.mxu0 0.0
        %7029 = vmatprep.subr.mxu0 0.0
        %7030 = vmatpush1.msra.mxu0 0.0
        %7031 = vmatprep.subr.mxu0 0.0
        %7032 = vmatpush1.msra.mxu0 0.0
        %7033 = vmatprep.subr.mxu0 0.0
        %7034 = vmatpush1.msra.mxu0 0.0
        %7035 = vmatprep.subr.mxu0 0.0
        %7036 = vmatpush1.msra.mxu0 0.0
        %7037 = vmatprep.subr.mxu0 0.0
        %7038 = vmatpush1.msra.mxu0 0.0
        %7039 = vmatprep.subr.mxu0 0.0
        %7040 = vmatpush1.msra.mxu0 0.0
        %7041 = vmatprep.subr.mxu0 0.0
        %7042 = vmatpush1.msra.mxu0 0.0
        %7043 = vmatprep.subr.mxu0 0.0
        %7044 = vmatpush1.msra.mxu0 0.0
        %7045 = vmatprep.subr.mxu0 0.0
        %7046 = vmatpush1.msra.mxu0 0.0
        %7047 = vmatprep.subr.mxu0 0.0
        %7048 = vmatpush1.msra.mxu0 0.0
        %7049 = vmatprep.subr.mxu0 0.0
        %7050 = vmatpush1.msra.mxu0 0.0
        %7051 = vmatprep.subr.mxu0 0.0
        %7052 = vmatpush1.msra.mxu0 0.0
        %7053 = vmatprep.mubr.f32.mxu0 0.0
        %v7054 = vand.u32 %v6708, 4294901760
        %v7055 = vsub.f32 %v6708, %v7054
        %v7056 = vand.u32 %v7055, 4294901760
        %7057 = vmatmul.mubr.f32.gmra.mrb[0].mxu0 %v7056
        %v7058 = vpop.f32.mrb[0].mxu0
        %v7059 = vadd.f32 %v6975, %v7058
        %v7060 = vpop.f32.mrb[0].mxu0
        %7061 = vmatprep.mubr.f32.mxu0 0.0
        %v7062 = vand.u32 %v6710, 4294901760
        %v7063 = vsub.f32 %v6710, %v7062
        %v7064 = vand.u32 %v7063, 4294901760
        %7065 = vmatmul.mubr.f32.gmra.mrb[0].mxu0 %v7064
        %v7066 = vpop.f32.mrb[0].mxu0
        %v7067 = vadd.f32 %v6982, %v7066
        %v7068 = vpop.f32.mrb[0].mxu0
        %7069 = vdwg.mxu0
        %7070 = vmatprep.subr.mxu0 0.0
        %v7071 = vand.u32 %v345, 4294901760
        %v7072 = vsub.f32 %v345, %v7071
        %v7073 = vand.u32 %v7072, 4294901760
        %7074 = vmatpush1.msra.mxu0 %v7073
        %7075 = vmatprep.subr.mxu0 0.0
        %v7076 = vand.u32 %v346, 4294901760
        %v7077 = vsub.f32 %v346, %v7076
        %v7078 = vand.u32 %v7077, 4294901760
        %7079 = vmatpush1.msra.mxu0 %v7078
        %7080 = vmatprep.subr.mxu0 0.0
        %v7081 = vand.u32 %v347, 4294901760
        %v7082 = vsub.f32 %v347, %v7081
        %v7083 = vand.u32 %v7082, 4294901760
        %7084 = vmatpush1.msra.mxu0 %v7083
        %7085 = vmatprep.subr.mxu0 0.0
        %v7086 = vand.u32 %v348, 4294901760
        %v7087 = vsub.f32 %v348, %v7086
        %v7088 = vand.u32 %v7087, 4294901760
        %7089 = vmatpush1.msra.mxu0 %v7088
        %7090 = vmatprep.subr.mxu0 0.0
        %7091 = vmatpush1.msra.mxu0 0.0
        %7092 = vmatprep.subr.mxu0 0.0
        %7093 = vmatpush1.msra.mxu0 0.0
        %7094 = vmatprep.subr.mxu0 0.0
        %7095 = vmatpush1.msra.mxu0 0.0
        %7096 = vmatprep.subr.mxu0 0.0
        %7097 = vmatpush1.msra.mxu0 0.0
        %7098 = vmatprep.subr.mxu0 0.0
        %7099 = vmatpush1.msra.mxu0 0.0
        %7100 = vmatprep.subr.mxu0 0.0
        %7101 = vmatpush1.msra.mxu0 0.0
        %7102 = vmatprep.subr.mxu0 0.0
        %7103 = vmatpush1.msra.mxu0 0.0
        %7104 = vmatprep.subr.mxu0 0.0
        %7105 = vmatpush1.msra.mxu0 0.0
        %7106 = vmatprep.subr.mxu0 0.0
        %7107 = vmatpush1.msra.mxu0 0.0
        %7108 = vmatprep.subr.mxu0 0.0
        %7109 = vmatpush1.msra.mxu0 0.0
        %7110 = vmatprep.subr.mxu0 0.0
        %7111 = vmatpush1.msra.mxu0 0.0
        %7112 = vmatprep.subr.mxu0 0.0
        %7113 = vmatpush1.msra.mxu0 0.0
        %7114 = vmatprep.subr.mxu0 0.0
        %7115 = vmatpush1.msra.mxu0 0.0
        %7116 = vmatprep.subr.mxu0 0.0
        %7117 = vmatpush1.msra.mxu0 0.0
        %7118 = vmatprep.subr.mxu0 0.0
        %7119 = vmatpush1.msra.mxu0 0.0
        %7120 = vmatprep.subr.mxu0 0.0
        %7121 = vmatpush1.msra.mxu0 0.0
        %7122 = vmatprep.subr.mxu0 0.0
        %7123 = vmatpush1.msra.mxu0 0.0
        %7124 = vmatprep.subr.mxu0 0.0
        %7125 = vmatpush1.msra.mxu0 0.0
        %7126 = vmatprep.subr.mxu0 0.0
        %7127 = vmatpush1.msra.mxu0 0.0
        %7128 = vmatprep.subr.mxu0 0.0
        %7129 = vmatpush1.msra.mxu0 0.0
        %7130 = vmatprep.subr.mxu0 0.0
        %7131 = vmatpush1.msra.mxu0 0.0
        %7132 = vmatprep.subr.mxu0 0.0
        %7133 = vmatpush1.msra.mxu0 0.0
        %7134 = vmatprep.subr.mxu0 0.0
        %7135 = vmatpush1.msra.mxu0 0.0
        %7136 = vmatprep.subr.mxu0 0.0
        %7137 = vmatpush1.msra.mxu0 0.0
        %7138 = vmatprep.subr.mxu0 0.0
        %7139 = vmatpush1.msra.mxu0 0.0
        %7140 = vmatprep.subr.mxu0 0.0
        %7141 = vmatpush1.msra.mxu0 0.0
        %7142 = vmatprep.subr.mxu0 0.0
        %7143 = vmatpush1.msra.mxu0 0.0
        %7144 = vmatprep.subr.mxu0 0.0
        %7145 = vmatpush1.msra.mxu0 0.0
        %7146 = vmatprep.mubr.f32.mxu0 0.0
        %v7147 = vand.u32 %v6708, 4294901760
        %7148 = vmatmul.mubr.f32.gmra.mrb[0].mxu0 %v7147
        %v7149 = vpop.f32.mrb[0].mxu0
        %v7150 = vadd.f32 %v7059, %v7149
        %v7151 = vpop.f32.mrb[0].mxu0
        %7152 = vmatprep.mubr.f32.mxu0 0.0
        %v7153 = vand.u32 %v6710, 4294901760
        %7154 = vmatmul.mubr.f32.gmra.mrb[0].mxu0 %v7153
        %v7155 = vpop.f32.mrb[0].mxu0
        %v7156 = vadd.f32 %v7067, %v7155
        %v7157 = vpop.f32.mrb[0].mxu0
        %7158 = vdwg.mxu0
        %7159 = vmatprep.subr.mxu0 0.0
        %v7160 = vand.u32 %v345, 4294901760
        %7161 = vmatpush1.msra.mxu0 %v7160
        %7162 = vmatprep.subr.mxu0 0.0
        %v7163 = vand.u32 %v346, 4294901760
        %7164 = vmatpush1.msra.mxu0 %v7163
        %7165 = vmatprep.subr.mxu0 0.0
        %v7166 = vand.u32 %v347, 4294901760
        %7167 = vmatpush1.msra.mxu0 %v7166
        %7168 = vmatprep.subr.mxu0 0.0
        %v7169 = vand.u32 %v348, 4294901760
        %7170 = vmatpush1.msra.mxu0 %v7169
        %7171 = vmatprep.subr.mxu0 0.0
        %7172 = vmatpush1.msra.mxu0 0.0
        %7173 = vmatprep.subr.mxu0 0.0
        %7174 = vmatpush1.msra.mxu0 0.0
        %7175 = vmatprep.subr.mxu0 0.0
        %7176 = vmatpush1.msra.mxu0 0.0
        %7177 = vmatprep.subr.mxu0 0.0
        %7178 = vmatpush1.msra.mxu0 0.0
        %7179 = vmatprep.subr.mxu0 0.0
        %7180 = vmatpush1.msra.mxu0 0.0
        %7181 = vmatprep.subr.mxu0 0.0
        %7182 = vmatpush1.msra.mxu0 0.0
        %7183 = vmatprep.subr.mxu0 0.0
        %7184 = vmatpush1.msra.mxu0 0.0
        %7185 = vmatprep.subr.mxu0 0.0
        %7186 = vmatpush1.msra.mxu0 0.0
        %7187 = vmatprep.subr.mxu0 0.0
        %7188 = vmatpush1.msra.mxu0 0.0
        %7189 = vmatprep.subr.mxu0 0.0
        %7190 = vmatpush1.msra.mxu0 0.0
        %7191 = vmatprep.subr.mxu0 0.0
        %7192 = vmatpush1.msra.mxu0 0.0
        %7193 = vmatprep.subr.mxu0 0.0
        %7194 = vmatpush1.msra.mxu0 0.0
        %7195 = vmatprep.subr.mxu0 0.0
        %7196 = vmatpush1.msra.mxu0 0.0
        %7197 = vmatprep.subr.mxu0 0.0
        %7198 = vmatpush1.msra.mxu0 0.0
        %7199 = vmatprep.subr.mxu0 0.0
        %7200 = vmatpush1.msra.mxu0 0.0
        %7201 = vmatprep.subr.mxu0 0.0
        %7202 = vmatpush1.msra.mxu0 0.0
        %7203 = vmatprep.subr.mxu0 0.0
        %7204 = vmatpush1.msra.mxu0 0.0
        %7205 = vmatprep.subr.mxu0 0.0
        %7206 = vmatpush1.msra.mxu0 0.0
        %7207 = vmatprep.subr.mxu0 0.0
        %7208 = vmatpush1.msra.mxu0 0.0
        %7209 = vmatprep.subr.mxu0 0.0
        %7210 = vmatpush1.msra.mxu0 0.0
        %7211 = vmatprep.subr.mxu0 0.0
        %7212 = vmatpush1.msra.mxu0 0.0
        %7213 = vmatprep.subr.mxu0 0.0
        %7214 = vmatpush1.msra.mxu0 0.0
        %7215 = vmatprep.subr.mxu0 0.0
        %7216 = vmatpush1.msra.mxu0 0.0
        %7217 = vmatprep.subr.mxu0 0.0
        %7218 = vmatpush1.msra.mxu0 0.0
        %7219 = vmatprep.subr.mxu0 0.0
        %7220 = vmatpush1.msra.mxu0 0.0
        %7221 = vmatprep.subr.mxu0 0.0
        %7222 = vmatpush1.msra.mxu0 0.0
        %7223 = vmatprep.subr.mxu0 0.0
        %7224 = vmatpush1.msra.mxu0 0.0
        %7225 = vmatprep.subr.mxu0 0.0
        %7226 = vmatpush1.msra.mxu0 0.0
        %7227 = vmatprep.mubr.f32.mxu0 0.0
        %v7228 = vand.u32 %v6708, 4294901760
        %7229 = vmatmul.mubr.f32.gmra.mrb[0].mxu0 %v7228
        %v7230 = vpop.f32.mrb[0].mxu0
        %v7231 = vadd.f32 %v7150, %v7230
        %v7232 = vpop.f32.mrb[0].mxu0
        %7233 = vmatprep.mubr.f32.mxu0 0.0
        %v7234 = vand.u32 %v6710, 4294901760
        %7235 = vmatmul.mubr.f32.gmra.mrb[0].mxu0 %v7234
        %v7236 = vpop.f32.mrb[0].mxu0
        %v7237 = vadd.f32 %v7156, %v7236
        %v7238 = vpop.f32.mrb[0].mxu0
        %7239 = vdwg.mxu0
        %v7240 = vadd.f32 %v7231, %v358
        %v7241 = vadd.f32 %v7237, %v358
        %v7242 = vxor.u32 %v7240, 2147483648
        %v7243 = vxor.u32 %v7241, 2147483648
        %v7244 = vmul.f32 %v7242, 1.442695
        %v7245 = vpow.pop %v7244
        %v7246 = vmul.f32 %v7243, 1.442695
        %v7247 = vpow.pop %v7246
        %v7248 = vadd.f32 %v7245, 1.0
        %v7249 = vadd.f32 %v7247, 1.0
        %v7250 = vrcp.pop %v7248
        %v7251 = vmul.f32 1.0, %v7250
        %v7252 = vrcp.pop %v7249
        %v7253 = vmul.f32 1.0, %v7252
        %v7254 = vtanh.pop %v7240
        %v7255 = vtanh.pop %v7241
        %v7256 = vmul.f32 %v7251, %v5568
        %v7257 = vmul.f32 %v7253, %v5569
        %7260 = vrot.lane.b32.xlu0 %v7254, 64
        %v7261 = vpop.permute.xlu0 %7260
        %7262 = vrot.lane.b32.xlu0 %v7255, 64
        %v7263 = vpop.permute.xlu0 %7262
        %v7266 = vmul.f32 %v7251, %v7261
        %v7267 = vmul.f32 %v7253, %v7263
        %7270 = vrot.lane.b32.xlu0 %v7266, 32
        %v7271 = vpop.permute.xlu0 %7270
        %7272 = vrot.lane.b32.xlu0 %v7267, 32
        %v7273 = vpop.permute.xlu0 %7272
        %v7276 = vadd.f32 %v7256, %v7271
        %v7277 = vadd.f32 %v7257, %v7273
        %v7278 = vtanh.pop %v7276
        %v7279 = vtanh.pop %v7277
        %7282 = vrot.lane.b32.xlu0 %v7278, 64
        %v7283 = vpop.permute.xlu0 %7282
        %7284 = vrot.lane.b32.xlu0 %v7279, 64
        %v7285 = vpop.permute.xlu0 %7284
        %v7288 = vmul.f32 %v7251, %v7283
        %v7289 = vmul.f32 %v7253, %v7285
        %v7290 = vsel %vm6165, %v7288, %v5566
        %v7291 = vsel %vm6165, %v7289, %v5567
        %v7292 = vsel %vm6165, %v7276, %v5568
        %v7293 = vsel %vm6165, %v7277, %v5569
        %7296 = vrot.lane.b32.xlu0 %v7290, 32
        %v7297 = vpop.permute.xlu0 %7296
        %7298 = vrot.lane.b32.xlu0 %v7291, 32
        %v7299 = vpop.permute.xlu0 %7298
        %s7302 = scalar_lea.vmem %s313, 48 [#allocation12]
        %7303 = vst.msk [vmem:[%s7302] sm:$0xff] %vm377, %v7297
        %7304 = vst.msk [vmem:[%s7302 + $0x8] sm:$0xff] %vm377, %v7299
        %7307 = vst.msk [vmem:[#allocation2] sm:$0xff] %vm377, %v6705
        %7308 = vst.msk [vmem:[#allocation2 + $0x8] sm:$0xff] %vm377, %v6707
        %7311 = vrot.lane.b32.xlu0 %v6168, 96
        %v7312 = vpop.permute.xlu0 %7311
        %7313 = vrot.lane.b32.xlu0 %v6169, 96
        %v7314 = vpop.permute.xlu0 %7313
        %7317 = vst.msk [vmem:[#allocation3] sm:$0xff] %vm377, %v7312
        %7318 = vst.msk [vmem:[#allocation3 + $0x8] sm:$0xff] %vm377, %v7314
        %7319 = vst.msk [vmem:[%s366] sm:$0xff] %vm377, %v7297
        %7320 = vst.msk [vmem:[%s366 + $0x8] sm:$0xff] %vm377, %v7299
        %7323 = vrot.lane.b32.xlu0 %v7292, 96
        %v7324 = vpop.permute.xlu0 %7323
        %7325 = vrot.lane.b32.xlu0 %v7293, 96
        %v7326 = vpop.permute.xlu0 %7325
        %7329 = vst.msk [vmem:[%s371] sm:$0xff] %vm377, %v7324
        %7330 = vst.msk [vmem:[%s371 + $0x8] sm:$0xff] %vm377, %v7326
        %s7331 = sand.u32 %s158, 1
        %s7332 = scalar_lea.sflag [#allocation6], %s7331
        %s7333 = sand.u32 %s158, 1
        %s7334 = smul.addr %s7333, 64
        %s7335 = scalar_lea.vmem [#allocation12], %s7334
        // Predicated region
        $region61: #{tpu_custom_call.1} parent=39 // pred_check
          %p7336 = pneg %p168
        $region62: #{tpu_custom_call.1} parent=39 // pred_check_branch
          %7338 = sbr.rel (%p7336) target = $region64
        $region63: #{tpu_custom_call.1} parent=39 // pred_region
          %s7339 = smul.u32 4, %s29
          %s7340 = smul.u32 2, %s28
          %s7341 = ssub.s32 10, %s7339
          %p7342 = scmp.lt.s32.totalorder %s7341, 4
          %s7343 = scalar_select %p7342, %s7341, 4
          %s7344 = smul.u32 128, %s7343
          %s7345 = smul.u32 %s7344, 2
          %s7347 = ssub.s32 1024, %s7345
          %7348 = vsyncadd %s7332, %s7347
          %p7349 = scmp.ne.s32.totalorder 0, %s7345
          %s7350 = smul.addr %s7339, 2
          %s7351 = sadd.s32 %s7340, %s7350
          %s7352 = smul.addr %s7351, 128
          %s7353 = scalar_lea.hbm %s5, %s7352
          %s7354 = smul.u32 %s7343, 2
          %s7355 = smul.u32 8, %s7354
          %s7356 = sshll.u32 %s7335, 4
          %s7357 = int_to_ptr.vmem [resolvable:$true] %s7356
          %s7358 = sshll.u32 %s7355, 4
          %7362 = dma.vmem_to_hbm [thread:$0]  (%p7349), %s7357, %s7358, %s7353, %s7332, 128, 128, 8
        $region64: #{tpu_custom_call.1} parent=39 // pred_fallthru
          _
      $region40: #{tpu_custom_call.1} parent=5 // pred_fallthru
        _
      %p7363 = scmp.le.s32.totalorder 2, %s19
      // Predicated region
      $region65: #{tpu_custom_call.1} parent=5 // pred_check
        %p7364 = pneg %p7363
      $region66: #{tpu_custom_call.1} parent=5 // pred_check_branch
        %7366 = sbr.rel (%p7364) target = $region68
      $region67: #{tpu_custom_call.1} parent=5 // pred_region
        %s7367 = ssub.s32 %s19, 2
        // Predicated region
        $region69: #{tpu_custom_call.1} parent=67 // pred_check
          %p7368 = pneg %p174
        $region70: #{tpu_custom_call.1} parent=67 // pred_check_branch
          %7370 = sbr.rel (%p7368) target = $region72
        $region71: #{tpu_custom_call.1} parent=67 // pred_region
          %s7371 = sand.u32 %s159, 1
          %s7372 = scalar_lea.sflag [#allocation6], %s7371
          %s7373 = sand.u32 %s159, 1
          %s7374 = smul.addr %s7373, 64
          %s7375 = scalar_lea.vmem [#allocation12], %s7374
          %7376 = dma.done %s7372, 1024
        $region72: #{tpu_custom_call.1} parent=67 // pred_fallthru
          _
      $region68: #{tpu_custom_call.1} parent=5 // pred_fallthru
        _
    $region6: #{tpu_custom_call.1} parent=1 // loop_footer
      %s23 = sadd.s32 1, %s19
    $region7: #{tpu_custom_call.1} parent=1 // loop_footer_branch
      %18 = sbr.rel target = $region3
    $region8: #{tpu_custom_call.1} parent=1 // loop_exit
      _
    %7377 = vsyncpa [#allocation5], 1
    %s7378 = scalar_lea.sflag [#allocation5], 1
    %7379 = vsyncpa %s7378, 1
    %7380 = vsyncpa [#allocation8], 1
    %7381 = vsyncpa [#allocation11], 1
    %s7382 = scalar_lea.sflag [#allocation11], 1
    %7383 = vsyncpa %s7382, 1
    %7384 = vsyncpa [#allocation6], 1
    %s7385 = scalar_lea.sflag [#allocation6], 1
    %7386 = vsyncpa %s7385, 1

</llo_original>
